<compile_context>
chip_gen: v7x
topology: tpu7x:2x2x1
jax: 0.10.0
libtpu: 0.0.40
codegen_flags: <defaults>
</compile_context>

<pallas_src>
import functools

import jax
import jax.numpy as jnp
from jax import lax
from jax.experimental import pallas as pl
from jax.experimental.pallas import tpu as pltpu

_PB = 4     # pooled rows per conv2/pool block (8 conv rows -> 16-vreg f32 accumulator)
_CB = 128   # pixel rows per conv1 block


def _conv_block2_kernel(x_ref, w1_ref, b1_ref, w2_ref, b2_ref, o_ref,
                        h1_ref, pool_ref, *, H, W, C1, NB):
    """Fused ConvBlock2 for NB batch elements per grid step.

    x_ref   : (NB, H*W, Cin)     bf16 input pixels (row-major H,W)
    w1_ref  : (Cin, C1)          bf16 1x1 conv weight as a matrix
    b1_ref  : (1, C1)            f32
    w2_ref  : (9, C1, C2)        bf16 3x3 conv weight, tap k = 3*di + dj
    b2_ref  : (1, C2)            f32
    o_ref   : (NB, HP*Wh, C2)    f32 pooled output, width padded to Wh = W//2 columns
    h1_ref  : (NB*H*W + 16, C1)  bf16 scratch: conv1+ReLU activations (+ zeroed tail)
    pool_ref: (2*_PB*W, C2)      f32 scratch: one conv2 row-block (for strided pool reads)
    """
    HO = H - 2                 # conv2 'VALID' output height
    HP = HO // 2               # pooled height
    Wh = W // 2                # padded pooled width (column Wh-1 is discarded by wrapper)
    HW = H * W

    b1 = b1_ref[...]           # hoist bias loads out of all loops
    b2 = b2_ref[...]

    # ---- Conv2d(Cin -> C1, 1x1) + bias + ReLU: bf16 MXU matmuls in row blocks ----
    for b in range(NB):
        for r0 in range(0, HW, _CB):
            rows = min(_CB, HW - r0)
            xs = x_ref[b, pl.ds(r0, rows), :]
            h = jnp.dot(xs, w1_ref[...], preferred_element_type=jnp.float32)
            h = jnp.maximum(h + b1, 0.0)
            h1_ref[pl.ds(b * HW + r0, rows), :] = h.astype(jnp.bfloat16)
    # Zero the 16-row tail (one full bf16 tile) so slabs that overrun the last image
    # read zeros; those rows only ever feed discarded right-edge accumulator columns.
    h1_ref[pl.ds(NB * HW, 16), :] = jnp.zeros((16, C1), jnp.bfloat16)

    # ---- Conv2d(C1 -> C2, 3x3, VALID) + MaxPool2d(2,2), per batch, per row block ----
    # acc[i_local*W + j, :] accumulates conv2 at pixel (2*p0 + i_local, j).  For tap
    # (di, dj) the contribution is a contiguous slab of h1 starting at (2*p0+di)*W + dj.
    # Columns j >= W-2 pick up row-wrapped values; they are never read after pooling.
    for b in range(NB):
        p0 = 0
        while p0 < HP:
            pb = min(_PB, HP - p0)          # pooled rows in this block
            M = 2 * pb * W                  # conv rows * W  (flat accumulator rows)
            base = b * HW + (2 * p0) * W

            # Register-resident accumulation over the 9 taps (no VMEM RMW).
            acc = jnp.dot(h1_ref[pl.ds(base, M), :], w2_ref[0],
                          preferred_element_type=jnp.float32)
            for k in range(1, 9):
                di, dj = divmod(k, 3)
                acc = acc + jnp.dot(h1_ref[pl.ds(base + di * W + dj, M), :],
                                    w2_ref[k], preferred_element_type=jnp.float32)

            # Single store of the block accumulator, then width-pool via two strided
            # reads (even/odd flat rows are horizontally adjacent pixels; W is even).
            pool_ref[pl.ds(0, M), :] = acc
            we = pool_ref[pl.ds(0, M // 2, stride=2), :]     # (2*pb*Wh, C2)
            wo = pool_ref[pl.ds(1, M // 2, stride=2), :]
            wflat = jnp.maximum(we, wo)                      # row = i_local*Wh + q

            # Height pool + bias2 + ReLU (both commute with max), stored as full,
            # aligned (Wh, C2) = (8, 128) f32 vreg slabs into the padded output.
            for p in range(pb):
                top = wflat[(2 * p) * Wh:(2 * p) * Wh + Wh]
                bot = wflat[(2 * p + 1) * Wh:(2 * p + 1) * Wh + Wh]
                piece = jnp.maximum(jnp.maximum(top, bot) + b2, 0.0)
                o_ref[b, pl.ds((p0 + p) * Wh, Wh), :] = piece
            p0 += pb


def _batches_per_step(n):
    """Batch elements handled per grid step.

    v7x has 2 TensorCores per chip -> keep one batch per grid step so the 'parallel'
    batch axis puts one batch on each core.  Single-TensorCore chips (v5e/v6e) gain
    nothing from the parallel axis, so fuse the batch into one step to avoid the
    ~0.35 us per-step overhead on this tiny problem.
    """
    try:
        kind = jax.devices()[0].device_kind.lower()
    except Exception:
        kind = ""
    if "v7" in kind or "7x" in kind:
        return 1
    nb = min(n, 8)
    while n % nb:
        nb -= 1
    return nb


def conv_block2_forward(x_nchw, w1_hwio, b1, w2_hwio, b2):
    N, Cin, H, W = x_nchw.shape
    C1 = w1_hwio.shape[-1]
    C2 = w2_hwio.shape[-1]
    # The padded-pooling / discarded-column logic assumes an even width and a
    # 3x3 VALID conv followed by a 2x2/stride-2 pool.
    assert W % 2 == 0 and H >= 4 and W >= 4, "kernel assumes even W and H, W >= 4"
    HO, WO = H - 2, W - 2
    HP, WP = HO // 2, WO // 2
    Wh = W // 2
    HW = H * W

    NB = _batches_per_step(N)
    assert N % NB == 0

    # glue: NCHW -> flat (N, H*W, Cin); weights to matmul form; MXU operands in bf16
    x_flat = jnp.transpose(x_nchw, (0, 2, 3, 1)).reshape(N, HW, Cin).astype(jnp.bfloat16)
    w1_mat = w1_hwio.reshape(Cin, C1).astype(jnp.bfloat16)
    w2_mat = w2_hwio.reshape(9, C1, C2).astype(jnp.bfloat16)
    b1_row = b1.reshape(1, C1).astype(jnp.float32)
    b2_row = b2.reshape(1, C2).astype(jnp.float32)

    kernel = functools.partial(_conv_block2_kernel, H=H, W=W, C1=C1, NB=NB)

    out_flat = pl.pallas_call(
        kernel,
        out_shape=jax.ShapeDtypeStruct((N, HP * Wh, C2), jnp.float32),
        grid_spec=pltpu.PrefetchScalarGridSpec(
            num_scalar_prefetch=0,
            grid=(N // NB,),
            in_specs=[
                pl.BlockSpec((NB, HW, Cin), lambda n: (n, 0, 0)),
                pl.BlockSpec((Cin, C1), lambda n: (0, 0)),
                pl.BlockSpec((1, C1), lambda n: (0, 0)),
                pl.BlockSpec((9, C1, C2), lambda n: (0, 0, 0)),
                pl.BlockSpec((1, C2), lambda n: (0, 0)),
            ],
            out_specs=pl.BlockSpec((NB, HP * Wh, C2), lambda n: (n, 0, 0)),
            scratch_shapes=[
                pltpu.VMEM((NB * HW + 16, C1), jnp.bfloat16),   # conv1 acts (+zero tail)
                pltpu.VMEM((2 * _PB * W, C2), jnp.float32),     # one conv2 row-block
            ],
        ),
        compiler_params=pltpu.CompilerParams(
            dimension_semantics=("parallel",)),
    )(x_flat, w1_mat, b1_row, w2_mat, b2_row)

    # drop the padded (garbage) pooled column and go back to PyTorch NCHW convention
    out = out_flat.reshape(N, HP, Wh, C2)[:, :, :WP, :]
    return jnp.transpose(out, (0, 3, 1, 2))


def reference_forward(x_nchw, w1_hwio, b1, w2_hwio, b2):
    """Pure-JAX f32 reference matching the PyTorch ConvBlock2 semantics."""
    x = jnp.transpose(x_nchw, (0, 2, 3, 1))
    dn = ('NHWC', 'HWIO', 'NHWC')
    y = lax.conv_general_dilated(x, w1_hwio, (1, 1), 'VALID',
                                 dimension_numbers=dn) + b1
    y = jax.nn.relu(y)
    y = lax.conv_general_dilated(y, w2_hwio, (1, 1), 'VALID',
                                 dimension_numbers=dn) + b2
    y = jax.nn.relu(y)
    y = lax.reduce_window(y, -jnp.inf, lax.max,
                          (1, 2, 2, 1), (1, 2, 2, 1), 'VALID')
    return jnp.transpose(y, (0, 3, 1, 2))


if __name__ == "__main__":
    key = jax.random.PRNGKey(0)
    k0, k1, k2, k3, k4 = jax.random.split(key, 5)

    N, Cin, H, W = 2, 64, 16, 16
    C1, C2 = 128, 128
    # Deterministic synthetic parameters (shapes from ConvBlock2.__init__)
    x = jax.random.normal(k0, (N, Cin, H, W), jnp.float32)
    w1 = jax.random.normal(k1, (1, 1, Cin, C1), jnp.float32) * 0.1    # Conv2d(64, 128, 1)
    b1 = jax.random.normal(k2, (C1,), jnp.float32) * 0.05
    w2 = jax.random.normal(k3, (3, 3, C1, C2), jnp.float32) * 0.05    # Conv2d(128, 128, 3)
    b2 = jax.random.normal(k4, (C2,), jnp.float32) * 0.05

    out = conv_block2_forward(x, w1, b1, w2, b2)
    out = jax.block_until_ready(out)

    ref = reference_forward(x, w1, b1, w2, b2)
    assert out.shape == (N, C2, (H - 2) // 2, (W - 2) // 2), out.shape
    max_err = float(jnp.max(jnp.abs(out - ref)))
    ref_scale = float(jnp.max(jnp.abs(ref)))
    # bf16 MXU operands with f32 accumulation -> compare with a scale-aware tolerance
    assert max_err <= 2e-2 * max(1.0, ref_scale), (
        f"max abs error too large: {max_err} (ref scale {ref_scale})")
    print("KERNEL_OK")
</pallas_src>

<mosaic_0001>
module attributes {stable_mosaic.version = 11 : i64} {
  func.func @_conv_block2_kernel(%arg0: i32, %arg1: memref<2x256x64xbf16, #tpu.memory_space<vmem>>, %arg2: memref<64x128xbf16, #tpu.memory_space<vmem>>, %arg3: memref<1x128xf32, #tpu.memory_space<vmem>>, %arg4: memref<9x128x128xbf16, #tpu.memory_space<vmem>>, %arg5: memref<1x128xf32, #tpu.memory_space<vmem>>, %arg6: memref<2x56x128xf32, #tpu.memory_space<vmem>>, %arg7: memref<528x128xbf16, #tpu.memory_space<vmem>>, %arg8: memref<128x128xf32, #tpu.memory_space<vmem>>) attributes {dimension_semantics = [#tpu.dimension_semantics<parallel>], iteration_bounds = array<i64: 1>, scalar_prefetch = 0 : i64, scratch_operands = 2 : i64, tpu.core_type = #tpu.core_type<tc>, window_params = [{transform_indices = @transform_0, window_bounds = array<i64: 2, 256, 64>}, {pipeline_mode = #tpu.pipeline_mode<synchronous>, transform_indices = @transform_1, window_bounds = array<i64: 64, 128>}, {pipeline_mode = #tpu.pipeline_mode<synchronous>, transform_indices = @transform_2, window_bounds = array<i64: 1, 128>}, {pipeline_mode = #tpu.pipeline_mode<synchronous>, transform_indices = @transform_3, window_bounds = array<i64: 9, 128, 128>}, {pipeline_mode = #tpu.pipeline_mode<synchronous>, transform_indices = @transform_4, window_bounds = array<i64: 1, 128>}, {transform_indices = @transform_5, window_bounds = array<i64: 2, 56, 128>}]} {
    %c0 = arith.constant 0 : index
    %c0_0 = arith.constant 0 : index
    %0 = vector.load %arg3[%c0, %c0_0] : memref<1x128xf32, #tpu.memory_space<vmem>>, vector<1x128xf32>
    %c0_1 = arith.constant 0 : index
    %c0_2 = arith.constant 0 : index
    %1 = vector.load %arg5[%c0_1, %c0_2] : memref<1x128xf32, #tpu.memory_space<vmem>>, vector<1x128xf32>
    %c0_3 = arith.constant 0 : index
    %c0_4 = arith.constant 0 : index
    %c0_5 = arith.constant 0 : index
    %2 = vector.load %arg1[%c0_3, %c0_4, %c0_5] : memref<2x256x64xbf16, #tpu.memory_space<vmem>>, vector<1x128x64xbf16>
    %3 = vector.shape_cast %2 : vector<1x128x64xbf16> to vector<128x64xbf16>
    %c0_6 = arith.constant 0 : index
    %c0_7 = arith.constant 0 : index
    %4 = vector.load %arg2[%c0_6, %c0_7] : memref<64x128xbf16, #tpu.memory_space<vmem>>, vector<64x128xbf16>
    %cst = arith.constant dense<0.000000e+00> : vector<128x128xf32>
    %5 = tpu.matmul %3, %4, %cst {dimension_numbers = #tpu.dot_dimension_numbers<[1], [0], [0], [1], [0, 0, 1, 1], [], []>} : vector<128x64xbf16>, vector<64x128xbf16>, vector<128x128xf32> -> vector<128x128xf32>
    %6 = vector.broadcast %0 : vector<1x128xf32> to vector<128x128xf32>
    %7 = arith.addf %5, %6 : vector<128x128xf32>
    %cst_8 = arith.constant 0.000000e+00 : f32
    %8 = vector.broadcast %cst_8 : f32 to vector<128x128xf32>
    %9 = arith.maximumf %7, %8 : vector<128x128xf32>
    %10 = arith.truncf %9 : vector<128x128xf32> to vector<128x128xbf16>
    %c0_9 = arith.constant 0 : index
    %c0_10 = arith.constant 0 : index
    %11 = vector.load %arg7[%c0_9, %c0_10] : memref<528x128xbf16, #tpu.memory_space<vmem>>, vector<128x128xbf16>
    tpu.vector_store %arg7[%c0_9, %c0_10], %10 {strides = array<i32>} : memref<528x128xbf16, #tpu.memory_space<vmem>>, vector<128x128xbf16>,
    %c0_11 = arith.constant 0 : index
    %c128 = arith.constant 128 : index
    %c0_12 = arith.constant 0 : index
    %12 = vector.load %arg1[%c0_11, %c128, %c0_12] : memref<2x256x64xbf16, #tpu.memory_space<vmem>>, vector<1x128x64xbf16>
    %13 = vector.shape_cast %12 : vector<1x128x64xbf16> to vector<128x64xbf16>
    %c0_13 = arith.constant 0 : index
    %c0_14 = arith.constant 0 : index
    %14 = vector.load %arg2[%c0_13, %c0_14] : memref<64x128xbf16, #tpu.memory_space<vmem>>, vector<64x128xbf16>
    %cst_15 = arith.constant dense<0.000000e+00> : vector<128x128xf32>
    %15 = tpu.matmul %13, %14, %cst_15 {dimension_numbers = #tpu.dot_dimension_numbers<[1], [0], [0], [1], [0, 0, 1, 1], [], []>} : vector<128x64xbf16>, vector<64x128xbf16>, vector<128x128xf32> -> vector<128x128xf32>
    %16 = vector.broadcast %0 : vector<1x128xf32> to vector<128x128xf32>
    %17 = arith.addf %15, %16 : vector<128x128xf32>
    %cst_16 = arith.constant 0.000000e+00 : f32
    %18 = vector.broadcast %cst_16 : f32 to vector<128x128xf32>
    %19 = arith.maximumf %17, %18 : vector<128x128xf32>
    %20 = arith.truncf %19 : vector<128x128xf32> to vector<128x128xbf16>
    %c128_17 = arith.constant 128 : index
    %c0_18 = arith.constant 0 : index
    %21 = vector.load %arg7[%c128_17, %c0_18] : memref<528x128xbf16, #tpu.memory_space<vmem>>, vector<128x128xbf16>
    tpu.vector_store %arg7[%c128_17, %c0_18], %20 {strides = array<i32>} : memref<528x128xbf16, #tpu.memory_space<vmem>>, vector<128x128xbf16>,
    %c1 = arith.constant 1 : index
    %c0_19 = arith.constant 0 : index
    %c0_20 = arith.constant 0 : index
    %22 = vector.load %arg1[%c1, %c0_19, %c0_20] : memref<2x256x64xbf16, #tpu.memory_space<vmem>>, vector<1x128x64xbf16>
    %23 = vector.shape_cast %22 : vector<1x128x64xbf16> to vector<128x64xbf16>
    %c0_21 = arith.constant 0 : index
    %c0_22 = arith.constant 0 : index
    %24 = vector.load %arg2[%c0_21, %c0_22] : memref<64x128xbf16, #tpu.memory_space<vmem>>, vector<64x128xbf16>
    %cst_23 = arith.constant dense<0.000000e+00> : vector<128x128xf32>
    %25 = tpu.matmul %23, %24, %cst_23 {dimension_numbers = #tpu.dot_dimension_numbers<[1], [0], [0], [1], [0, 0, 1, 1], [], []>} : vector<128x64xbf16>, vector<64x128xbf16>, vector<128x128xf32> -> vector<128x128xf32>
    %26 = vector.broadcast %0 : vector<1x128xf32> to vector<128x128xf32>
    %27 = arith.addf %25, %26 : vector<128x128xf32>
    %cst_24 = arith.constant 0.000000e+00 : f32
    %28 = vector.broadcast %cst_24 : f32 to vector<128x128xf32>
    %29 = arith.maximumf %27, %28 : vector<128x128xf32>
    %30 = arith.truncf %29 : vector<128x128xf32> to vector<128x128xbf16>
    %c256 = arith.constant 256 : index
    %c0_25 = arith.constant 0 : index
    %31 = vector.load %arg7[%c256, %c0_25] : memref<528x128xbf16, #tpu.memory_space<vmem>>, vector<128x128xbf16>
    tpu.vector_store %arg7[%c256, %c0_25], %30 {strides = array<i32>} : memref<528x128xbf16, #tpu.memory_space<vmem>>, vector<128x128xbf16>,
    %c1_26 = arith.constant 1 : index
    %c128_27 = arith.constant 128 : index
    %c0_28 = arith.constant 0 : index
    %32 = vector.load %arg1[%c1_26, %c128_27, %c0_28] : memref<2x256x64xbf16, #tpu.memory_space<vmem>>, vector<1x128x64xbf16>
    %33 = vector.shape_cast %32 : vector<1x128x64xbf16> to vector<128x64xbf16>
    %c0_29 = arith.constant 0 : index
    %c0_30 = arith.constant 0 : index
    %34 = vector.load %arg2[%c0_29, %c0_30] : memref<64x128xbf16, #tpu.memory_space<vmem>>, vector<64x128xbf16>
    %cst_31 = arith.constant dense<0.000000e+00> : vector<128x128xf32>
    %35 = tpu.matmul %33, %34, %cst_31 {dimension_numbers = #tpu.dot_dimension_numbers<[1], [0], [0], [1], [0, 0, 1, 1], [], []>} : vector<128x64xbf16>, vector<64x128xbf16>, vector<128x128xf32> -> vector<128x128xf32>
    %36 = vector.broadcast %0 : vector<1x128xf32> to vector<128x128xf32>
    %37 = arith.addf %35, %36 : vector<128x128xf32>
    %cst_32 = arith.constant 0.000000e+00 : f32
    %38 = vector.broadcast %cst_32 : f32 to vector<128x128xf32>
    %39 = arith.maximumf %37, %38 : vector<128x128xf32>
    %40 = arith.truncf %39 : vector<128x128xf32> to vector<128x128xbf16>
    %c384 = arith.constant 384 : index
    %c0_33 = arith.constant 0 : index
    %41 = vector.load %arg7[%c384, %c0_33] : memref<528x128xbf16, #tpu.memory_space<vmem>>, vector<128x128xbf16>
    tpu.vector_store %arg7[%c384, %c0_33], %40 {strides = array<i32>} : memref<528x128xbf16, #tpu.memory_space<vmem>>, vector<128x128xbf16>,
    %cst_34 = arith.constant 0.000000e+00 : bf16
    %42 = vector.broadcast %cst_34 : bf16 to vector<16x128xbf16>
    %c512 = arith.constant 512 : index
    %c0_35 = arith.constant 0 : index
    %43 = vector.load %arg7[%c512, %c0_35] : memref<528x128xbf16, #tpu.memory_space<vmem>>, vector<16x128xbf16>
    tpu.vector_store %arg7[%c512, %c0_35], %42 {strides = array<i32>} : memref<528x128xbf16, #tpu.memory_space<vmem>>, vector<16x128xbf16>,
    %c0_36 = arith.constant 0 : index
    %c0_37 = arith.constant 0 : index
    %44 = vector.load %arg7[%c0_36, %c0_37] : memref<528x128xbf16, #tpu.memory_space<vmem>>, vector<128x128xbf16>
    %c0_38 = arith.constant 0 : index
    %c0_39 = arith.constant 0 : index
    %c0_40 = arith.constant 0 : index
    %45 = vector.load %arg4[%c0_38, %c0_39, %c0_40] : memref<9x128x128xbf16, #tpu.memory_space<vmem>>, vector<1x128x128xbf16>
    %46 = vector.shape_cast %45 : vector<1x128x128xbf16> to vector<128x128xbf16>
    %cst_41 = arith.constant dense<0.000000e+00> : vector<128x128xf32>
    %47 = tpu.matmul %44, %46, %cst_41 {dimension_numbers = #tpu.dot_dimension_numbers<[1], [0], [0], [1], [0, 0, 1, 1], [], []>} : vector<128x128xbf16>, vector<128x128xbf16>, vector<128x128xf32> -> vector<128x128xf32>
    %c1_42 = arith.constant 1 : index
    %c0_43 = arith.constant 0 : index
    %48 = vector.load %arg7[%c1_42, %c0_43] : memref<528x128xbf16, #tpu.memory_space<vmem>>, vector<128x128xbf16>
    %c1_44 = arith.constant 1 : index
    %c0_45 = arith.constant 0 : index
    %c0_46 = arith.constant 0 : index
    %49 = vector.load %arg4[%c1_44, %c0_45, %c0_46] : memref<9x128x128xbf16, #tpu.memory_space<vmem>>, vector<1x128x128xbf16>
    %50 = vector.shape_cast %49 : vector<1x128x128xbf16> to vector<128x128xbf16>
    %cst_47 = arith.constant dense<0.000000e+00> : vector<128x128xf32>
    %51 = tpu.matmul %48, %50, %cst_47 {dimension_numbers = #tpu.dot_dimension_numbers<[1], [0], [0], [1], [0, 0, 1, 1], [], []>} : vector<128x128xbf16>, vector<128x128xbf16>, vector<128x128xf32> -> vector<128x128xf32>
    %52 = arith.addf %47, %51 : vector<128x128xf32>
    %c2 = arith.constant 2 : index
    %c0_48 = arith.constant 0 : index
    %53 = vector.load %arg7[%c2, %c0_48] : memref<528x128xbf16, #tpu.memory_space<vmem>>, vector<128x128xbf16>
    %c2_49 = arith.constant 2 : index
    %c0_50 = arith.constant 0 : index
    %c0_51 = arith.constant 0 : index
    %54 = vector.load %arg4[%c2_49, %c0_50, %c0_51] : memref<9x128x128xbf16, #tpu.memory_space<vmem>>, vector<1x128x128xbf16>
    %55 = vector.shape_cast %54 : vector<1x128x128xbf16> to vector<128x128xbf16>
    %cst_52 = arith.constant dense<0.000000e+00> : vector<128x128xf32>
    %56 = tpu.matmul %53, %55, %cst_52 {dimension_numbers = #tpu.dot_dimension_numbers<[1], [0], [0], [1], [0, 0, 1, 1], [], []>} : vector<128x128xbf16>, vector<128x128xbf16>, vector<128x128xf32> -> vector<128x128xf32>
    %57 = arith.addf %52, %56 : vector<128x128xf32>
    %c16 = arith.constant 16 : index
    %c0_53 = arith.constant 0 : index
    %58 = vector.load %arg7[%c16, %c0_53] : memref<528x128xbf16, #tpu.memory_space<vmem>>, vector<128x128xbf16>
    %c3 = arith.constant 3 : index
    %c0_54 = arith.constant 0 : index
    %c0_55 = arith.constant 0 : index
    %59 = vector.load %arg4[%c3, %c0_54, %c0_55] : memref<9x128x128xbf16, #tpu.memory_space<vmem>>, vector<1x128x128xbf16>
    %60 = vector.shape_cast %59 : vector<1x128x128xbf16> to vector<128x128xbf16>
    %cst_56 = arith.constant dense<0.000000e+00> : vector<128x128xf32>
    %61 = tpu.matmul %58, %60, %cst_56 {dimension_numbers = #tpu.dot_dimension_numbers<[1], [0], [0], [1], [0, 0, 1, 1], [], []>} : vector<128x128xbf16>, vector<128x128xbf16>, vector<128x128xf32> -> vector<128x128xf32>
    %62 = arith.addf %57, %61 : vector<128x128xf32>
    %c17 = arith.constant 17 : index
    %c0_57 = arith.constant 0 : index
    %63 = vector.load %arg7[%c17, %c0_57] : memref<528x128xbf16, #tpu.memory_space<vmem>>, vector<128x128xbf16>
    %c4 = arith.constant 4 : index
    %c0_58 = arith.constant 0 : index
    %c0_59 = arith.constant 0 : index
    %64 = vector.load %arg4[%c4, %c0_58, %c0_59] : memref<9x128x128xbf16, #tpu.memory_space<vmem>>, vector<1x128x128xbf16>
    %65 = vector.shape_cast %64 : vector<1x128x128xbf16> to vector<128x128xbf16>
    %cst_60 = arith.constant dense<0.000000e+00> : vector<128x128xf32>
    %66 = tpu.matmul %63, %65, %cst_60 {dimension_numbers = #tpu.dot_dimension_numbers<[1], [0], [0], [1], [0, 0, 1, 1], [], []>} : vector<128x128xbf16>, vector<128x128xbf16>, vector<128x128xf32> -> vector<128x128xf32>
    %67 = arith.addf %62, %66 : vector<128x128xf32>
    %c18 = arith.constant 18 : index
    %c0_61 = arith.constant 0 : index
    %68 = vector.load %arg7[%c18, %c0_61] : memref<528x128xbf16, #tpu.memory_space<vmem>>, vector<128x128xbf16>
    %c5 = arith.constant 5 : index
    %c0_62 = arith.constant 0 : index
    %c0_63 = arith.constant 0 : index
    %69 = vector.load %arg4[%c5, %c0_62, %c0_63] : memref<9x128x128xbf16, #tpu.memory_space<vmem>>, vector<1x128x128xbf16>
    %70 = vector.shape_cast %69 : vector<1x128x128xbf16> to vector<128x128xbf16>
    %cst_64 = arith.constant dense<0.000000e+00> : vector<128x128xf32>
    %71 = tpu.matmul %68, %70, %cst_64 {dimension_numbers = #tpu.dot_dimension_numbers<[1], [0], [0], [1], [0, 0, 1, 1], [], []>} : vector<128x128xbf16>, vector<128x128xbf16>, vector<128x128xf32> -> vector<128x128xf32>
    %72 = arith.addf %67, %71 : vector<128x128xf32>
    %c32 = arith.constant 32 : index
    %c0_65 = arith.constant 0 : index
    %73 = vector.load %arg7[%c32, %c0_65] : memref<528x128xbf16, #tpu.memory_space<vmem>>, vector<128x128xbf16>
    %c6 = arith.constant 6 : index
    %c0_66 = arith.constant 0 : index
    %c0_67 = arith.constant 0 : index
    %74 = vector.load %arg4[%c6, %c0_66, %c0_67] : memref<9x128x128xbf16, #tpu.memory_space<vmem>>, vector<1x128x128xbf16>
    %75 = vector.shape_cast %74 : vector<1x128x128xbf16> to vector<128x128xbf16>
    %cst_68 = arith.constant dense<0.000000e+00> : vector<128x128xf32>
    %76 = tpu.matmul %73, %75, %cst_68 {dimension_numbers = #tpu.dot_dimension_numbers<[1], [0], [0], [1], [0, 0, 1, 1], [], []>} : vector<128x128xbf16>, vector<128x128xbf16>, vector<128x128xf32> -> vector<128x128xf32>
    %77 = arith.addf %72, %76 : vector<128x128xf32>
    %c33 = arith.constant 33 : index
    %c0_69 = arith.constant 0 : index
    %78 = vector.load %arg7[%c33, %c0_69] : memref<528x128xbf16, #tpu.memory_space<vmem>>, vector<128x128xbf16>
    %c7 = arith.constant 7 : index
    %c0_70 = arith.constant 0 : index
    %c0_71 = arith.constant 0 : index
    %79 = vector.load %arg4[%c7, %c0_70, %c0_71] : memref<9x128x128xbf16, #tpu.memory_space<vmem>>, vector<1x128x128xbf16>
    %80 = vector.shape_cast %79 : vector<1x128x128xbf16> to vector<128x128xbf16>
    %cst_72 = arith.constant dense<0.000000e+00> : vector<128x128xf32>
    %81 = tpu.matmul %78, %80, %cst_72 {dimension_numbers = #tpu.dot_dimension_numbers<[1], [0], [0], [1], [0, 0, 1, 1], [], []>} : vector<128x128xbf16>, vector<128x128xbf16>, vector<128x128xf32> -> vector<128x128xf32>
    %82 = arith.addf %77, %81 : vector<128x128xf32>
    %c34 = arith.constant 34 : index
    %c0_73 = arith.constant 0 : index
    %83 = vector.load %arg7[%c34, %c0_73] : memref<528x128xbf16, #tpu.memory_space<vmem>>, vector<128x128xbf16>
    %c8 = arith.constant 8 : index
    %c0_74 = arith.constant 0 : index
    %c0_75 = arith.constant 0 : index
    %84 = vector.load %arg4[%c8, %c0_74, %c0_75] : memref<9x128x128xbf16, #tpu.memory_space<vmem>>, vector<1x128x128xbf16>
    %85 = vector.shape_cast %84 : vector<1x128x128xbf16> to vector<128x128xbf16>
    %cst_76 = arith.constant dense<0.000000e+00> : vector<128x128xf32>
    %86 = tpu.matmul %83, %85, %cst_76 {dimension_numbers = #tpu.dot_dimension_numbers<[1], [0], [0], [1], [0, 0, 1, 1], [], []>} : vector<128x128xbf16>, vector<128x128xbf16>, vector<128x128xf32> -> vector<128x128xf32>
    %87 = arith.addf %82, %86 : vector<128x128xf32>
    %c0_77 = arith.constant 0 : index
    %c0_78 = arith.constant 0 : index
    %88 = vector.load %arg8[%c0_77, %c0_78] : memref<128x128xf32, #tpu.memory_space<vmem>>, vector<128x128xf32>
    tpu.vector_store %arg8[%c0_77, %c0_78], %87 {strides = array<i32>} : memref<128x128xf32, #tpu.memory_space<vmem>>, vector<128x128xf32>,
    %c0_79 = arith.constant 0 : index
    %c0_80 = arith.constant 0 : index
    %89 = tpu.strided_load %arg8[%c0_79, %c0_80] {strides = array<i32: 2, 1>} : memref<128x128xf32, #tpu.memory_space<vmem>>, vector<64x128xf32>
    %c1_81 = arith.constant 1 : index
    %c0_82 = arith.constant 0 : index
    %90 = tpu.strided_load %arg8[%c1_81, %c0_82] {strides = array<i32: 2, 1>} : memref<128x128xf32, #tpu.memory_space<vmem>>, vector<64x128xf32>
    %91 = arith.maximumf %89, %90 : vector<64x128xf32>
    %92 = vector.extract_strided_slice %91 {offsets = [0, 0], sizes = [8, 128], strides = [1, 1]} : vector<64x128xf32> to vector<8x128xf32>
    %93 = vector.extract_strided_slice %91 {offsets = [8, 0], sizes = [8, 128], strides = [1, 1]} : vector<64x128xf32> to vector<8x128xf32>
    %94 = arith.maximumf %92, %93 : vector<8x128xf32>
    %95 = vector.broadcast %1 : vector<1x128xf32> to vector<8x128xf32>
    %96 = arith.addf %94, %95 : vector<8x128xf32>
    %cst_83 = arith.constant 0.000000e+00 : f32
    %97 = vector.broadcast %cst_83 : f32 to vector<8x128xf32>
    %98 = arith.maximumf %96, %97 : vector<8x128xf32>
    %c0_84 = arith.constant 0 : index
    %c0_85 = arith.constant 0 : index
    %c0_86 = arith.constant 0 : index
    %99 = vector.load %arg6[%c0_84, %c0_85, %c0_86] : memref<2x56x128xf32, #tpu.memory_space<vmem>>, vector<1x8x128xf32>
    %100 = vector.shape_cast %99 : vector<1x8x128xf32> to vector<8x128xf32>
    %101 = vector.shape_cast %98 : vector<8x128xf32> to vector<1x8x128xf32>
    tpu.vector_store %arg6[%c0_84, %c0_85, %c0_86], %101 {strides = array<i32>} : memref<2x56x128xf32, #tpu.memory_space<vmem>>, vector<1x8x128xf32>,
    %102 = vector.extract_strided_slice %91 {offsets = [16, 0], sizes = [8, 128], strides = [1, 1]} : vector<64x128xf32> to vector<8x128xf32>
    %103 = vector.extract_strided_slice %91 {offsets = [24, 0], sizes = [8, 128], strides = [1, 1]} : vector<64x128xf32> to vector<8x128xf32>
    %104 = arith.maximumf %102, %103 : vector<8x128xf32>
    %105 = vector.broadcast %1 : vector<1x128xf32> to vector<8x128xf32>
    %106 = arith.addf %104, %105 : vector<8x128xf32>
    %cst_87 = arith.constant 0.000000e+00 : f32
    %107 = vector.broadcast %cst_87 : f32 to vector<8x128xf32>
    %108 = arith.maximumf %106, %107 : vector<8x128xf32>
    %c0_88 = arith.constant 0 : index
    %c8_89 = arith.constant 8 : index
    %c0_90 = arith.constant 0 : index
    %109 = vector.load %arg6[%c0_88, %c8_89, %c0_90] : memref<2x56x128xf32, #tpu.memory_space<vmem>>, vector<1x8x128xf32>
    %110 = vector.shape_cast %109 : vector<1x8x128xf32> to vector<8x128xf32>
    %111 = vector.shape_cast %108 : vector<8x128xf32> to vector<1x8x128xf32>
    tpu.vector_store %arg6[%c0_88, %c8_89, %c0_90], %111 {strides = array<i32>} : memref<2x56x128xf32, #tpu.memory_space<vmem>>, vector<1x8x128xf32>,
    %112 = vector.extract_strided_slice %91 {offsets = [32, 0], sizes = [8, 128], strides = [1, 1]} : vector<64x128xf32> to vector<8x128xf32>
    %113 = vector.extract_strided_slice %91 {offsets = [40, 0], sizes = [8, 128], strides = [1, 1]} : vector<64x128xf32> to vector<8x128xf32>
    %114 = arith.maximumf %112, %113 : vector<8x128xf32>
    %115 = vector.broadcast %1 : vector<1x128xf32> to vector<8x128xf32>
    %116 = arith.addf %114, %115 : vector<8x128xf32>
    %cst_91 = arith.constant 0.000000e+00 : f32
    %117 = vector.broadcast %cst_91 : f32 to vector<8x128xf32>
    %118 = arith.maximumf %116, %117 : vector<8x128xf32>
    %c0_92 = arith.constant 0 : index
    %c16_93 = arith.constant 16 : index
    %c0_94 = arith.constant 0 : index
    %119 = vector.load %arg6[%c0_92, %c16_93, %c0_94] : memref<2x56x128xf32, #tpu.memory_space<vmem>>, vector<1x8x128xf32>
    %120 = vector.shape_cast %119 : vector<1x8x128xf32> to vector<8x128xf32>
    %121 = vector.shape_cast %118 : vector<8x128xf32> to vector<1x8x128xf32>
    tpu.vector_store %arg6[%c0_92, %c16_93, %c0_94], %121 {strides = array<i32>} : memref<2x56x128xf32, #tpu.memory_space<vmem>>, vector<1x8x128xf32>,
    %122 = vector.extract_strided_slice %91 {offsets = [48, 0], sizes = [8, 128], strides = [1, 1]} : vector<64x128xf32> to vector<8x128xf32>
    %123 = vector.extract_strided_slice %91 {offsets = [56, 0], sizes = [8, 128], strides = [1, 1]} : vector<64x128xf32> to vector<8x128xf32>
    %124 = arith.maximumf %122, %123 : vector<8x128xf32>
    %125 = vector.broadcast %1 : vector<1x128xf32> to vector<8x128xf32>
    %126 = arith.addf %124, %125 : vector<8x128xf32>
    %cst_95 = arith.constant 0.000000e+00 : f32
    %127 = vector.broadcast %cst_95 : f32 to vector<8x128xf32>
    %128 = arith.maximumf %126, %127 : vector<8x128xf32>
    %c0_96 = arith.constant 0 : index
    %c24 = arith.constant 24 : index
    %c0_97 = arith.constant 0 : index
    %129 = vector.load %arg6[%c0_96, %c24, %c0_97] : memref<2x56x128xf32, #tpu.memory_space<vmem>>, vector<1x8x128xf32>
    %130 = vector.shape_cast %129 : vector<1x8x128xf32> to vector<8x128xf32>
    %131 = vector.shape_cast %128 : vector<8x128xf32> to vector<1x8x128xf32>
    tpu.vector_store %arg6[%c0_96, %c24, %c0_97], %131 {strides = array<i32>} : memref<2x56x128xf32, #tpu.memory_space<vmem>>, vector<1x8x128xf32>,
    %c128_98 = arith.constant 128 : index
    %c0_99 = arith.constant 0 : index
    %132 = vector.load %arg7[%c128_98, %c0_99] : memref<528x128xbf16, #tpu.memory_space<vmem>>, vector<96x128xbf16>
    %c0_100 = arith.constant 0 : index
    %c0_101 = arith.constant 0 : index
    %c0_102 = arith.constant 0 : index
    %133 = vector.load %arg4[%c0_100, %c0_101, %c0_102] : memref<9x128x128xbf16, #tpu.memory_space<vmem>>, vector<1x128x128xbf16>
    %134 = vector.shape_cast %133 : vector<1x128x128xbf16> to vector<128x128xbf16>
    %cst_103 = arith.constant dense<0.000000e+00> : vector<96x128xf32>
    %135 = tpu.matmul %132, %134, %cst_103 {dimension_numbers = #tpu.dot_dimension_numbers<[1], [0], [0], [1], [0, 0, 1, 1], [], []>} : vector<96x128xbf16>, vector<128x128xbf16>, vector<96x128xf32> -> vector<96x128xf32>
    %c129 = arith.constant 129 : index
    %c0_104 = arith.constant 0 : index
    %136 = vector.load %arg7[%c129, %c0_104] : memref<528x128xbf16, #tpu.memory_space<vmem>>, vector<96x128xbf16>
    %c1_105 = arith.constant 1 : index
    %c0_106 = arith.constant 0 : index
    %c0_107 = arith.constant 0 : index
    %137 = vector.load %arg4[%c1_105, %c0_106, %c0_107] : memref<9x128x128xbf16, #tpu.memory_space<vmem>>, vector<1x128x128xbf16>
    %138 = vector.shape_cast %137 : vector<1x128x128xbf16> to vector<128x128xbf16>
    %cst_108 = arith.constant dense<0.000000e+00> : vector<96x128xf32>
    %139 = tpu.matmul %136, %138, %cst_108 {dimension_numbers = #tpu.dot_dimension_numbers<[1], [0], [0], [1], [0, 0, 1, 1], [], []>} : vector<96x128xbf16>, vector<128x128xbf16>, vector<96x128xf32> -> vector<96x128xf32>
    %140 = arith.addf %135, %139 : vector<96x128xf32>
    %c130 = arith.constant 130 : index
    %c0_109 = arith.constant 0 : index
    %141 = vector.load %arg7[%c130, %c0_109] : memref<528x128xbf16, #tpu.memory_space<vmem>>, vector<96x128xbf16>
    %c2_110 = arith.constant 2 : index
    %c0_111 = arith.constant 0 : index
    %c0_112 = arith.constant 0 : index
    %142 = vector.load %arg4[%c2_110, %c0_111, %c0_112] : memref<9x128x128xbf16, #tpu.memory_space<vmem>>, vector<1x128x128xbf16>
    %143 = vector.shape_cast %142 : vector<1x128x128xbf16> to vector<128x128xbf16>
    %cst_113 = arith.constant dense<0.000000e+00> : vector<96x128xf32>
    %144 = tpu.matmul %141, %143, %cst_113 {dimension_numbers = #tpu.dot_dimension_numbers<[1], [0], [0], [1], [0, 0, 1, 1], [], []>} : vector<96x128xbf16>, vector<128x128xbf16>, vector<96x128xf32> -> vector<96x128xf32>
    %145 = arith.addf %140, %144 : vector<96x128xf32>
    %c144 = arith.constant 144 : index
    %c0_114 = arith.constant 0 : index
    %146 = vector.load %arg7[%c144, %c0_114] : memref<528x128xbf16, #tpu.memory_space<vmem>>, vector<96x128xbf16>
    %c3_115 = arith.constant 3 : index
    %c0_116 = arith.constant 0 : index
    %c0_117 = arith.constant 0 : index
    %147 = vector.load %arg4[%c3_115, %c0_116, %c0_117] : memref<9x128x128xbf16, #tpu.memory_space<vmem>>, vector<1x128x128xbf16>
    %148 = vector.shape_cast %147 : vector<1x128x128xbf16> to vector<128x128xbf16>
    %cst_118 = arith.constant dense<0.000000e+00> : vector<96x128xf32>
    %149 = tpu.matmul %146, %148, %cst_118 {dimension_numbers = #tpu.dot_dimension_numbers<[1], [0], [0], [1], [0, 0, 1, 1], [], []>} : vector<96x128xbf16>, vector<128x128xbf16>, vector<96x128xf32> -> vector<96x128xf32>
    %150 = arith.addf %145, %149 : vector<96x128xf32>
    %c145 = arith.constant 145 : index
    %c0_119 = arith.constant 0 : index
    %151 = vector.load %arg7[%c145, %c0_119] : memref<528x128xbf16, #tpu.memory_space<vmem>>, vector<96x128xbf16>
    %c4_120 = arith.constant 4 : index
    %c0_121 = arith.constant 0 : index
    %c0_122 = arith.constant 0 : index
    %152 = vector.load %arg4[%c4_120, %c0_121, %c0_122] : memref<9x128x128xbf16, #tpu.memory_space<vmem>>, vector<1x128x128xbf16>
    %153 = vector.shape_cast %152 : vector<1x128x128xbf16> to vector<128x128xbf16>
    %cst_123 = arith.constant dense<0.000000e+00> : vector<96x128xf32>
    %154 = tpu.matmul %151, %153, %cst_123 {dimension_numbers = #tpu.dot_dimension_numbers<[1], [0], [0], [1], [0, 0, 1, 1], [], []>} : vector<96x128xbf16>, vector<128x128xbf16>, vector<96x128xf32> -> vector<96x128xf32>
    %155 = arith.addf %150, %154 : vector<96x128xf32>
    %c146 = arith.constant 146 : index
    %c0_124 = arith.constant 0 : index
    %156 = vector.load %arg7[%c146, %c0_124] : memref<528x128xbf16, #tpu.memory_space<vmem>>, vector<96x128xbf16>
    %c5_125 = arith.constant 5 : index
    %c0_126 = arith.constant 0 : index
    %c0_127 = arith.constant 0 : index
    %157 = vector.load %arg4[%c5_125, %c0_126, %c0_127] : memref<9x128x128xbf16, #tpu.memory_space<vmem>>, vector<1x128x128xbf16>
    %158 = vector.shape_cast %157 : vector<1x128x128xbf16> to vector<128x128xbf16>
    %cst_128 = arith.constant dense<0.000000e+00> : vector<96x128xf32>
    %159 = tpu.matmul %156, %158, %cst_128 {dimension_numbers = #tpu.dot_dimension_numbers<[1], [0], [0], [1], [0, 0, 1, 1], [], []>} : vector<96x128xbf16>, vector<128x128xbf16>, vector<96x128xf32> -> vector<96x128xf32>
    %160 = arith.addf %155, %159 : vector<96x128xf32>
    %c160 = arith.constant 160 : index
    %c0_129 = arith.constant 0 : index
    %161 = vector.load %arg7[%c160, %c0_129] : memref<528x128xbf16, #tpu.memory_space<vmem>>, vector<96x128xbf16>
    %c6_130 = arith.constant 6 : index
    %c0_131 = arith.constant 0 : index
    %c0_132 = arith.constant 0 : index
    %162 = vector.load %arg4[%c6_130, %c0_131, %c0_132] : memref<9x128x128xbf16, #tpu.memory_space<vmem>>, vector<1x128x128xbf16>
    %163 = vector.shape_cast %162 : vector<1x128x128xbf16> to vector<128x128xbf16>
    %cst_133 = arith.constant dense<0.000000e+00> : vector<96x128xf32>
    %164 = tpu.matmul %161, %163, %cst_133 {dimension_numbers = #tpu.dot_dimension_numbers<[1], [0], [0], [1], [0, 0, 1, 1], [], []>} : vector<96x128xbf16>, vector<128x128xbf16>, vector<96x128xf32> -> vector<96x128xf32>
    %165 = arith.addf %160, %164 : vector<96x128xf32>
    %c161 = arith.constant 161 : index
    %c0_134 = arith.constant 0 : index
    %166 = vector.load %arg7[%c161, %c0_134] : memref<528x128xbf16, #tpu.memory_space<vmem>>, vector<96x128xbf16>
    %c7_135 = arith.constant 7 : index
    %c0_136 = arith.constant 0 : index
    %c0_137 = arith.constant 0 : index
    %167 = vector.load %arg4[%c7_135, %c0_136, %c0_137] : memref<9x128x128xbf16, #tpu.memory_space<vmem>>, vector<1x128x128xbf16>
    %168 = vector.shape_cast %167 : vector<1x128x128xbf16> to vector<128x128xbf16>
    %cst_138 = arith.constant dense<0.000000e+00> : vector<96x128xf32>
    %169 = tpu.matmul %166, %168, %cst_138 {dimension_numbers = #tpu.dot_dimension_numbers<[1], [0], [0], [1], [0, 0, 1, 1], [], []>} : vector<96x128xbf16>, vector<128x128xbf16>, vector<96x128xf32> -> vector<96x128xf32>
    %170 = arith.addf %165, %169 : vector<96x128xf32>
    %c162 = arith.constant 162 : index
    %c0_139 = arith.constant 0 : index
    %171 = vector.load %arg7[%c162, %c0_139] : memref<528x128xbf16, #tpu.memory_space<vmem>>, vector<96x128xbf16>
    %c8_140 = arith.constant 8 : index
    %c0_141 = arith.constant 0 : index
    %c0_142 = arith.constant 0 : index
    %172 = vector.load %arg4[%c8_140, %c0_141, %c0_142] : memref<9x128x128xbf16, #tpu.memory_space<vmem>>, vector<1x128x128xbf16>
    %173 = vector.shape_cast %172 : vector<1x128x128xbf16> to vector<128x128xbf16>
    %cst_143 = arith.constant dense<0.000000e+00> : vector<96x128xf32>
    %174 = tpu.matmul %171, %173, %cst_143 {dimension_numbers = #tpu.dot_dimension_numbers<[1], [0], [0], [1], [0, 0, 1, 1], [], []>} : vector<96x128xbf16>, vector<128x128xbf16>, vector<96x128xf32> -> vector<96x128xf32>
    %175 = arith.addf %170, %174 : vector<96x128xf32>
    %c0_144 = arith.constant 0 : index
    %c0_145 = arith.constant 0 : index
    %176 = vector.load %arg8[%c0_144, %c0_145] : memref<128x128xf32, #tpu.memory_space<vmem>>, vector<96x128xf32>
    tpu.vector_store %arg8[%c0_144, %c0_145], %175 {strides = array<i32>} : memref<128x128xf32, #tpu.memory_space<vmem>>, vector<96x128xf32>,
    %c0_146 = arith.constant 0 : index
    %c0_147 = arith.constant 0 : index
    %177 = tpu.strided_load %arg8[%c0_146, %c0_147] {strides = array<i32: 2, 1>} : memref<128x128xf32, #tpu.memory_space<vmem>>, vector<48x128xf32>
    %c1_148 = arith.constant 1 : index
    %c0_149 = arith.constant 0 : index
    %178 = tpu.strided_load %arg8[%c1_148, %c0_149] {strides = array<i32: 2, 1>} : memref<128x128xf32, #tpu.memory_space<vmem>>, vector<48x128xf32>
    %179 = arith.maximumf %177, %178 : vector<48x128xf32>
    %180 = vector.extract_strided_slice %179 {offsets = [0, 0], sizes = [8, 128], strides = [1, 1]} : vector<48x128xf32> to vector<8x128xf32>
    %181 = vector.extract_strided_slice %179 {offsets = [8, 0], sizes = [8, 128], strides = [1, 1]} : vector<48x128xf32> to vector<8x128xf32>
    %182 = arith.maximumf %180, %181 : vector<8x128xf32>
    %183 = vector.broadcast %1 : vector<1x128xf32> to vector<8x128xf32>
    %184 = arith.addf %182, %183 : vector<8x128xf32>
    %cst_150 = arith.constant 0.000000e+00 : f32
    %185 = vector.broadcast %cst_150 : f32 to vector<8x128xf32>
    %186 = arith.maximumf %184, %185 : vector<8x128xf32>
    %c0_151 = arith.constant 0 : index
    %c32_152 = arith.constant 32 : index
    %c0_153 = arith.constant 0 : index
    %187 = vector.load %arg6[%c0_151, %c32_152, %c0_153] : memref<2x56x128xf32, #tpu.memory_space<vmem>>, vector<1x8x128xf32>
    %188 = vector.shape_cast %187 : vector<1x8x128xf32> to vector<8x128xf32>
    %189 = vector.shape_cast %186 : vector<8x128xf32> to vector<1x8x128xf32>
    tpu.vector_store %arg6[%c0_151, %c32_152, %c0_153], %189 {strides = array<i32>} : memref<2x56x128xf32, #tpu.memory_space<vmem>>, vector<1x8x128xf32>,
    %190 = vector.extract_strided_slice %179 {offsets = [16, 0], sizes = [8, 128], strides = [1, 1]} : vector<48x128xf32> to vector<8x128xf32>
    %191 = vector.extract_strided_slice %179 {offsets = [24, 0], sizes = [8, 128], strides = [1, 1]} : vector<48x128xf32> to vector<8x128xf32>
    %192 = arith.maximumf %190, %191 : vector<8x128xf32>
    %193 = vector.broadcast %1 : vector<1x128xf32> to vector<8x128xf32>
    %194 = arith.addf %192, %193 : vector<8x128xf32>
    %cst_154 = arith.constant 0.000000e+00 : f32
    %195 = vector.broadcast %cst_154 : f32 to vector<8x128xf32>
    %196 = arith.maximumf %194, %195 : vector<8x128xf32>
    %c0_155 = arith.constant 0 : index
    %c40 = arith.constant 40 : index
    %c0_156 = arith.constant 0 : index
    %197 = vector.load %arg6[%c0_155, %c40, %c0_156] : memref<2x56x128xf32, #tpu.memory_space<vmem>>, vector<1x8x128xf32>
    %198 = vector.shape_cast %197 : vector<1x8x128xf32> to vector<8x128xf32>
    %199 = vector.shape_cast %196 : vector<8x128xf32> to vector<1x8x128xf32>
    tpu.vector_store %arg6[%c0_155, %c40, %c0_156], %199 {strides = array<i32>} : memref<2x56x128xf32, #tpu.memory_space<vmem>>, vector<1x8x128xf32>,
    %200 = vector.extract_strided_slice %179 {offsets = [32, 0], sizes = [8, 128], strides = [1, 1]} : vector<48x128xf32> to vector<8x128xf32>
    %201 = vector.extract_strided_slice %179 {offsets = [40, 0], sizes = [8, 128], strides = [1, 1]} : vector<48x128xf32> to vector<8x128xf32>
    %202 = arith.maximumf %200, %201 : vector<8x128xf32>
    %203 = vector.broadcast %1 : vector<1x128xf32> to vector<8x128xf32>
    %204 = arith.addf %202, %203 : vector<8x128xf32>
    %cst_157 = arith.constant 0.000000e+00 : f32
    %205 = vector.broadcast %cst_157 : f32 to vector<8x128xf32>
    %206 = arith.maximumf %204, %205 : vector<8x128xf32>
    %c0_158 = arith.constant 0 : index
    %c48 = arith.constant 48 : index
    %c0_159 = arith.constant 0 : index
    %207 = vector.load %arg6[%c0_158, %c48, %c0_159] : memref<2x56x128xf32, #tpu.memory_space<vmem>>, vector<1x8x128xf32>
    %208 = vector.shape_cast %207 : vector<1x8x128xf32> to vector<8x128xf32>
    %209 = vector.shape_cast %206 : vector<8x128xf32> to vector<1x8x128xf32>
    tpu.vector_store %arg6[%c0_158, %c48, %c0_159], %209 {strides = array<i32>} : memref<2x56x128xf32, #tpu.memory_space<vmem>>, vector<1x8x128xf32>,
    %c256_160 = arith.constant 256 : index
    %c0_161 = arith.constant 0 : index
    %210 = vector.load %arg7[%c256_160, %c0_161] : memref<528x128xbf16, #tpu.memory_space<vmem>>, vector<128x128xbf16>
    %c0_162 = arith.constant 0 : index
    %c0_163 = arith.constant 0 : index
    %c0_164 = arith.constant 0 : index
    %211 = vector.load %arg4[%c0_162, %c0_163, %c0_164] : memref<9x128x128xbf16, #tpu.memory_space<vmem>>, vector<1x128x128xbf16>
    %212 = vector.shape_cast %211 : vector<1x128x128xbf16> to vector<128x128xbf16>
    %cst_165 = arith.constant dense<0.000000e+00> : vector<128x128xf32>
    %213 = tpu.matmul %210, %212, %cst_165 {dimension_numbers = #tpu.dot_dimension_numbers<[1], [0], [0], [1], [0, 0, 1, 1], [], []>} : vector<128x128xbf16>, vector<128x128xbf16>, vector<128x128xf32> -> vector<128x128xf32>
    %c257 = arith.constant 257 : index
    %c0_166 = arith.constant 0 : index
    %214 = vector.load %arg7[%c257, %c0_166] : memref<528x128xbf16, #tpu.memory_space<vmem>>, vector<128x128xbf16>
    %c1_167 = arith.constant 1 : index
    %c0_168 = arith.constant 0 : index
    %c0_169 = arith.constant 0 : index
    %215 = vector.load %arg4[%c1_167, %c0_168, %c0_169] : memref<9x128x128xbf16, #tpu.memory_space<vmem>>, vector<1x128x128xbf16>
    %216 = vector.shape_cast %215 : vector<1x128x128xbf16> to vector<128x128xbf16>
    %cst_170 = arith.constant dense<0.000000e+00> : vector<128x128xf32>
    %217 = tpu.matmul %214, %216, %cst_170 {dimension_numbers = #tpu.dot_dimension_numbers<[1], [0], [0], [1], [0, 0, 1, 1], [], []>} : vector<128x128xbf16>, vector<128x128xbf16>, vector<128x128xf32> -> vector<128x128xf32>
    %218 = arith.addf %213, %217 : vector<128x128xf32>
    %c258 = arith.constant 258 : index
    %c0_171 = arith.constant 0 : index
    %219 = vector.load %arg7[%c258, %c0_171] : memref<528x128xbf16, #tpu.memory_space<vmem>>, vector<128x128xbf16>
    %c2_172 = arith.constant 2 : index
    %c0_173 = arith.constant 0 : index
    %c0_174 = arith.constant 0 : index
    %220 = vector.load %arg4[%c2_172, %c0_173, %c0_174] : memref<9x128x128xbf16, #tpu.memory_space<vmem>>, vector<1x128x128xbf16>
    %221 = vector.shape_cast %220 : vector<1x128x128xbf16> to vector<128x128xbf16>
    %cst_175 = arith.constant dense<0.000000e+00> : vector<128x128xf32>
    %222 = tpu.matmul %219, %221, %cst_175 {dimension_numbers = #tpu.dot_dimension_numbers<[1], [0], [0], [1], [0, 0, 1, 1], [], []>} : vector<128x128xbf16>, vector<128x128xbf16>, vector<128x128xf32> -> vector<128x128xf32>
    %223 = arith.addf %218, %222 : vector<128x128xf32>
    %c272 = arith.constant 272 : index
    %c0_176 = arith.constant 0 : index
    %224 = vector.load %arg7[%c272, %c0_176] : memref<528x128xbf16, #tpu.memory_space<vmem>>, vector<128x128xbf16>
    %c3_177 = arith.constant 3 : index
    %c0_178 = arith.constant 0 : index
    %c0_179 = arith.constant 0 : index
    %225 = vector.load %arg4[%c3_177, %c0_178, %c0_179] : memref<9x128x128xbf16, #tpu.memory_space<vmem>>, vector<1x128x128xbf16>
    %226 = vector.shape_cast %225 : vector<1x128x128xbf16> to vector<128x128xbf16>
    %cst_180 = arith.constant dense<0.000000e+00> : vector<128x128xf32>
    %227 = tpu.matmul %224, %226, %cst_180 {dimension_numbers = #tpu.dot_dimension_numbers<[1], [0], [0], [1], [0, 0, 1, 1], [], []>} : vector<128x128xbf16>, vector<128x128xbf16>, vector<128x128xf32> -> vector<128x128xf32>
    %228 = arith.addf %223, %227 : vector<128x128xf32>
    %c273 = arith.constant 273 : index
    %c0_181 = arith.constant 0 : index
    %229 = vector.load %arg7[%c273, %c0_181] : memref<528x128xbf16, #tpu.memory_space<vmem>>, vector<128x128xbf16>
    %c4_182 = arith.constant 4 : index
    %c0_183 = arith.constant 0 : index
    %c0_184 = arith.constant 0 : index
    %230 = vector.load %arg4[%c4_182, %c0_183, %c0_184] : memref<9x128x128xbf16, #tpu.memory_space<vmem>>, vector<1x128x128xbf16>
    %231 = vector.shape_cast %230 : vector<1x128x128xbf16> to vector<128x128xbf16>
    %cst_185 = arith.constant dense<0.000000e+00> : vector<128x128xf32>
    %232 = tpu.matmul %229, %231, %cst_185 {dimension_numbers = #tpu.dot_dimension_numbers<[1], [0], [0], [1], [0, 0, 1, 1], [], []>} : vector<128x128xbf16>, vector<128x128xbf16>, vector<128x128xf32> -> vector<128x128xf32>
    %233 = arith.addf %228, %232 : vector<128x128xf32>
    %c274 = arith.constant 274 : index
    %c0_186 = arith.constant 0 : index
    %234 = vector.load %arg7[%c274, %c0_186] : memref<528x128xbf16, #tpu.memory_space<vmem>>, vector<128x128xbf16>
    %c5_187 = arith.constant 5 : index
    %c0_188 = arith.constant 0 : index
    %c0_189 = arith.constant 0 : index
    %235 = vector.load %arg4[%c5_187, %c0_188, %c0_189] : memref<9x128x128xbf16, #tpu.memory_space<vmem>>, vector<1x128x128xbf16>
    %236 = vector.shape_cast %235 : vector<1x128x128xbf16> to vector<128x128xbf16>
    %cst_190 = arith.constant dense<0.000000e+00> : vector<128x128xf32>
    %237 = tpu.matmul %234, %236, %cst_190 {dimension_numbers = #tpu.dot_dimension_numbers<[1], [0], [0], [1], [0, 0, 1, 1], [], []>} : vector<128x128xbf16>, vector<128x128xbf16>, vector<128x128xf32> -> vector<128x128xf32>
    %238 = arith.addf %233, %237 : vector<128x128xf32>
    %c288 = arith.constant 288 : index
    %c0_191 = arith.constant 0 : index
    %239 = vector.load %arg7[%c288, %c0_191] : memref<528x128xbf16, #tpu.memory_space<vmem>>, vector<128x128xbf16>
    %c6_192 = arith.constant 6 : index
    %c0_193 = arith.constant 0 : index
    %c0_194 = arith.constant 0 : index
    %240 = vector.load %arg4[%c6_192, %c0_193, %c0_194] : memref<9x128x128xbf16, #tpu.memory_space<vmem>>, vector<1x128x128xbf16>
    %241 = vector.shape_cast %240 : vector<1x128x128xbf16> to vector<128x128xbf16>
    %cst_195 = arith.constant dense<0.000000e+00> : vector<128x128xf32>
    %242 = tpu.matmul %239, %241, %cst_195 {dimension_numbers = #tpu.dot_dimension_numbers<[1], [0], [0], [1], [0, 0, 1, 1], [], []>} : vector<128x128xbf16>, vector<128x128xbf16>, vector<128x128xf32> -> vector<128x128xf32>
    %243 = arith.addf %238, %242 : vector<128x128xf32>
    %c289 = arith.constant 289 : index
    %c0_196 = arith.constant 0 : index
    %244 = vector.load %arg7[%c289, %c0_196] : memref<528x128xbf16, #tpu.memory_space<vmem>>, vector<128x128xbf16>
    %c7_197 = arith.constant 7 : index
    %c0_198 = arith.constant 0 : index
    %c0_199 = arith.constant 0 : index
    %245 = vector.load %arg4[%c7_197, %c0_198, %c0_199] : memref<9x128x128xbf16, #tpu.memory_space<vmem>>, vector<1x128x128xbf16>
    %246 = vector.shape_cast %245 : vector<1x128x128xbf16> to vector<128x128xbf16>
    %cst_200 = arith.constant dense<0.000000e+00> : vector<128x128xf32>
    %247 = tpu.matmul %244, %246, %cst_200 {dimension_numbers = #tpu.dot_dimension_numbers<[1], [0], [0], [1], [0, 0, 1, 1], [], []>} : vector<128x128xbf16>, vector<128x128xbf16>, vector<128x128xf32> -> vector<128x128xf32>
    %248 = arith.addf %243, %247 : vector<128x128xf32>
    %c290 = arith.constant 290 : index
    %c0_201 = arith.constant 0 : index
    %249 = vector.load %arg7[%c290, %c0_201] : memref<528x128xbf16, #tpu.memory_space<vmem>>, vector<128x128xbf16>
    %c8_202 = arith.constant 8 : index
    %c0_203 = arith.constant 0 : index
    %c0_204 = arith.constant 0 : index
    %250 = vector.load %arg4[%c8_202, %c0_203, %c0_204] : memref<9x128x128xbf16, #tpu.memory_space<vmem>>, vector<1x128x128xbf16>
    %251 = vector.shape_cast %250 : vector<1x128x128xbf16> to vector<128x128xbf16>
    %cst_205 = arith.constant dense<0.000000e+00> : vector<128x128xf32>
    %252 = tpu.matmul %249, %251, %cst_205 {dimension_numbers = #tpu.dot_dimension_numbers<[1], [0], [0], [1], [0, 0, 1, 1], [], []>} : vector<128x128xbf16>, vector<128x128xbf16>, vector<128x128xf32> -> vector<128x128xf32>
    %253 = arith.addf %248, %252 : vector<128x128xf32>
    %c0_206 = arith.constant 0 : index
    %c0_207 = arith.constant 0 : index
    %254 = vector.load %arg8[%c0_206, %c0_207] : memref<128x128xf32, #tpu.memory_space<vmem>>, vector<128x128xf32>
    tpu.vector_store %arg8[%c0_206, %c0_207], %253 {strides = array<i32>} : memref<128x128xf32, #tpu.memory_space<vmem>>, vector<128x128xf32>,
    %c0_208 = arith.constant 0 : index
    %c0_209 = arith.constant 0 : index
    %255 = tpu.strided_load %arg8[%c0_208, %c0_209] {strides = array<i32: 2, 1>} : memref<128x128xf32, #tpu.memory_space<vmem>>, vector<64x128xf32>
    %c1_210 = arith.constant 1 : index
    %c0_211 = arith.constant 0 : index
    %256 = tpu.strided_load %arg8[%c1_210, %c0_211] {strides = array<i32: 2, 1>} : memref<128x128xf32, #tpu.memory_space<vmem>>, vector<64x128xf32>
    %257 = arith.maximumf %255, %256 : vector<64x128xf32>
    %258 = vector.extract_strided_slice %257 {offsets = [0, 0], sizes = [8, 128], strides = [1, 1]} : vector<64x128xf32> to vector<8x128xf32>
    %259 = vector.extract_strided_slice %257 {offsets = [8, 0], sizes = [8, 128], strides = [1, 1]} : vector<64x128xf32> to vector<8x128xf32>
    %260 = arith.maximumf %258, %259 : vector<8x128xf32>
    %261 = vector.broadcast %1 : vector<1x128xf32> to vector<8x128xf32>
    %262 = arith.addf %260, %261 : vector<8x128xf32>
    %cst_212 = arith.constant 0.000000e+00 : f32
    %263 = vector.broadcast %cst_212 : f32 to vector<8x128xf32>
    %264 = arith.maximumf %262, %263 : vector<8x128xf32>
    %c1_213 = arith.constant 1 : index
    %c0_214 = arith.constant 0 : index
    %c0_215 = arith.constant 0 : index
    %265 = vector.load %arg6[%c1_213, %c0_214, %c0_215] : memref<2x56x128xf32, #tpu.memory_space<vmem>>, vector<1x8x128xf32>
    %266 = vector.shape_cast %265 : vector<1x8x128xf32> to vector<8x128xf32>
    %267 = vector.shape_cast %264 : vector<8x128xf32> to vector<1x8x128xf32>
    tpu.vector_store %arg6[%c1_213, %c0_214, %c0_215], %267 {strides = array<i32>} : memref<2x56x128xf32, #tpu.memory_space<vmem>>, vector<1x8x128xf32>,
    %268 = vector.extract_strided_slice %257 {offsets = [16, 0], sizes = [8, 128], strides = [1, 1]} : vector<64x128xf32> to vector<8x128xf32>
    %269 = vector.extract_strided_slice %257 {offsets = [24, 0], sizes = [8, 128], strides = [1, 1]} : vector<64x128xf32> to vector<8x128xf32>
    %270 = arith.maximumf %268, %269 : vector<8x128xf32>
    %271 = vector.broadcast %1 : vector<1x128xf32> to vector<8x128xf32>
    %272 = arith.addf %270, %271 : vector<8x128xf32>
    %cst_216 = arith.constant 0.000000e+00 : f32
    %273 = vector.broadcast %cst_216 : f32 to vector<8x128xf32>
    %274 = arith.maximumf %272, %273 : vector<8x128xf32>
    %c1_217 = arith.constant 1 : index
    %c8_218 = arith.constant 8 : index
    %c0_219 = arith.constant 0 : index
    %275 = vector.load %arg6[%c1_217, %c8_218, %c0_219] : memref<2x56x128xf32, #tpu.memory_space<vmem>>, vector<1x8x128xf32>
    %276 = vector.shape_cast %275 : vector<1x8x128xf32> to vector<8x128xf32>
    %277 = vector.shape_cast %274 : vector<8x128xf32> to vector<1x8x128xf32>
    tpu.vector_store %arg6[%c1_217, %c8_218, %c0_219], %277 {strides = array<i32>} : memref<2x56x128xf32, #tpu.memory_space<vmem>>, vector<1x8x128xf32>,
    %278 = vector.extract_strided_slice %257 {offsets = [32, 0], sizes = [8, 128], strides = [1, 1]} : vector<64x128xf32> to vector<8x128xf32>
    %279 = vector.extract_strided_slice %257 {offsets = [40, 0], sizes = [8, 128], strides = [1, 1]} : vector<64x128xf32> to vector<8x128xf32>
    %280 = arith.maximumf %278, %279 : vector<8x128xf32>
    %281 = vector.broadcast %1 : vector<1x128xf32> to vector<8x128xf32>
    %282 = arith.addf %280, %281 : vector<8x128xf32>
    %cst_220 = arith.constant 0.000000e+00 : f32
    %283 = vector.broadcast %cst_220 : f32 to vector<8x128xf32>
    %284 = arith.maximumf %282, %283 : vector<8x128xf32>
    %c1_221 = arith.constant 1 : index
    %c16_222 = arith.constant 16 : index
    %c0_223 = arith.constant 0 : index
    %285 = vector.load %arg6[%c1_221, %c16_222, %c0_223] : memref<2x56x128xf32, #tpu.memory_space<vmem>>, vector<1x8x128xf32>
    %286 = vector.shape_cast %285 : vector<1x8x128xf32> to vector<8x128xf32>
    %287 = vector.shape_cast %284 : vector<8x128xf32> to vector<1x8x128xf32>
    tpu.vector_store %arg6[%c1_221, %c16_222, %c0_223], %287 {strides = array<i32>} : memref<2x56x128xf32, #tpu.memory_space<vmem>>, vector<1x8x128xf32>,
    %288 = vector.extract_strided_slice %257 {offsets = [48, 0], sizes = [8, 128], strides = [1, 1]} : vector<64x128xf32> to vector<8x128xf32>
    %289 = vector.extract_strided_slice %257 {offsets = [56, 0], sizes = [8, 128], strides = [1, 1]} : vector<64x128xf32> to vector<8x128xf32>
    %290 = arith.maximumf %288, %289 : vector<8x128xf32>
    %291 = vector.broadcast %1 : vector<1x128xf32> to vector<8x128xf32>
    %292 = arith.addf %290, %291 : vector<8x128xf32>
    %cst_224 = arith.constant 0.000000e+00 : f32
    %293 = vector.broadcast %cst_224 : f32 to vector<8x128xf32>
    %294 = arith.maximumf %292, %293 : vector<8x128xf32>
    %c1_225 = arith.constant 1 : index
    %c24_226 = arith.constant 24 : index
    %c0_227 = arith.constant 0 : index
    %295 = vector.load %arg6[%c1_225, %c24_226, %c0_227] : memref<2x56x128xf32, #tpu.memory_space<vmem>>, vector<1x8x128xf32>
    %296 = vector.shape_cast %295 : vector<1x8x128xf32> to vector<8x128xf32>
    %297 = vector.shape_cast %294 : vector<8x128xf32> to vector<1x8x128xf32>
    tpu.vector_store %arg6[%c1_225, %c24_226, %c0_227], %297 {strides = array<i32>} : memref<2x56x128xf32, #tpu.memory_space<vmem>>, vector<1x8x128xf32>,
    %c384_228 = arith.constant 384 : index
    %c0_229 = arith.constant 0 : index
    %298 = vector.load %arg7[%c384_228, %c0_229] : memref<528x128xbf16, #tpu.memory_space<vmem>>, vector<96x128xbf16>
    %c0_230 = arith.constant 0 : index
    %c0_231 = arith.constant 0 : index
    %c0_232 = arith.constant 0 : index
    %299 = vector.load %arg4[%c0_230, %c0_231, %c0_232] : memref<9x128x128xbf16, #tpu.memory_space<vmem>>, vector<1x128x128xbf16>
    %300 = vector.shape_cast %299 : vector<1x128x128xbf16> to vector<128x128xbf16>
    %cst_233 = arith.constant dense<0.000000e+00> : vector<96x128xf32>
    %301 = tpu.matmul %298, %300, %cst_233 {dimension_numbers = #tpu.dot_dimension_numbers<[1], [0], [0], [1], [0, 0, 1, 1], [], []>} : vector<96x128xbf16>, vector<128x128xbf16>, vector<96x128xf32> -> vector<96x128xf32>
    %c385 = arith.constant 385 : index
    %c0_234 = arith.constant 0 : index
    %302 = vector.load %arg7[%c385, %c0_234] : memref<528x128xbf16, #tpu.memory_space<vmem>>, vector<96x128xbf16>
    %c1_235 = arith.constant 1 : index
    %c0_236 = arith.constant 0 : index
    %c0_237 = arith.constant 0 : index
    %303 = vector.load %arg4[%c1_235, %c0_236, %c0_237] : memref<9x128x128xbf16, #tpu.memory_space<vmem>>, vector<1x128x128xbf16>
    %304 = vector.shape_cast %303 : vector<1x128x128xbf16> to vector<128x128xbf16>
    %cst_238 = arith.constant dense<0.000000e+00> : vector<96x128xf32>
    %305 = tpu.matmul %302, %304, %cst_238 {dimension_numbers = #tpu.dot_dimension_numbers<[1], [0], [0], [1], [0, 0, 1, 1], [], []>} : vector<96x128xbf16>, vector<128x128xbf16>, vector<96x128xf32> -> vector<96x128xf32>
    %306 = arith.addf %301, %305 : vector<96x128xf32>
    %c386 = arith.constant 386 : index
    %c0_239 = arith.constant 0 : index
    %307 = vector.load %arg7[%c386, %c0_239] : memref<528x128xbf16, #tpu.memory_space<vmem>>, vector<96x128xbf16>
    %c2_240 = arith.constant 2 : index
    %c0_241 = arith.constant 0 : index
    %c0_242 = arith.constant 0 : index
    %308 = vector.load %arg4[%c2_240, %c0_241, %c0_242] : memref<9x128x128xbf16, #tpu.memory_space<vmem>>, vector<1x128x128xbf16>
    %309 = vector.shape_cast %308 : vector<1x128x128xbf16> to vector<128x128xbf16>
    %cst_243 = arith.constant dense<0.000000e+00> : vector<96x128xf32>
    %310 = tpu.matmul %307, %309, %cst_243 {dimension_numbers = #tpu.dot_dimension_numbers<[1], [0], [0], [1], [0, 0, 1, 1], [], []>} : vector<96x128xbf16>, vector<128x128xbf16>, vector<96x128xf32> -> vector<96x128xf32>
    %311 = arith.addf %306, %310 : vector<96x128xf32>
    %c400 = arith.constant 400 : index
    %c0_244 = arith.constant 0 : index
    %312 = vector.load %arg7[%c400, %c0_244] : memref<528x128xbf16, #tpu.memory_space<vmem>>, vector<96x128xbf16>
    %c3_245 = arith.constant 3 : index
    %c0_246 = arith.constant 0 : index
    %c0_247 = arith.constant 0 : index
    %313 = vector.load %arg4[%c3_245, %c0_246, %c0_247] : memref<9x128x128xbf16, #tpu.memory_space<vmem>>, vector<1x128x128xbf16>
    %314 = vector.shape_cast %313 : vector<1x128x128xbf16> to vector<128x128xbf16>
    %cst_248 = arith.constant dense<0.000000e+00> : vector<96x128xf32>
    %315 = tpu.matmul %312, %314, %cst_248 {dimension_numbers = #tpu.dot_dimension_numbers<[1], [0], [0], [1], [0, 0, 1, 1], [], []>} : vector<96x128xbf16>, vector<128x128xbf16>, vector<96x128xf32> -> vector<96x128xf32>
    %316 = arith.addf %311, %315 : vector<96x128xf32>
    %c401 = arith.constant 401 : index
    %c0_249 = arith.constant 0 : index
    %317 = vector.load %arg7[%c401, %c0_249] : memref<528x128xbf16, #tpu.memory_space<vmem>>, vector<96x128xbf16>
    %c4_250 = arith.constant 4 : index
    %c0_251 = arith.constant 0 : index
    %c0_252 = arith.constant 0 : index
    %318 = vector.load %arg4[%c4_250, %c0_251, %c0_252] : memref<9x128x128xbf16, #tpu.memory_space<vmem>>, vector<1x128x128xbf16>
    %319 = vector.shape_cast %318 : vector<1x128x128xbf16> to vector<128x128xbf16>
    %cst_253 = arith.constant dense<0.000000e+00> : vector<96x128xf32>
    %320 = tpu.matmul %317, %319, %cst_253 {dimension_numbers = #tpu.dot_dimension_numbers<[1], [0], [0], [1], [0, 0, 1, 1], [], []>} : vector<96x128xbf16>, vector<128x128xbf16>, vector<96x128xf32> -> vector<96x128xf32>
    %321 = arith.addf %316, %320 : vector<96x128xf32>
    %c402 = arith.constant 402 : index
    %c0_254 = arith.constant 0 : index
    %322 = vector.load %arg7[%c402, %c0_254] : memref<528x128xbf16, #tpu.memory_space<vmem>>, vector<96x128xbf16>
    %c5_255 = arith.constant 5 : index
    %c0_256 = arith.constant 0 : index
    %c0_257 = arith.constant 0 : index
    %323 = vector.load %arg4[%c5_255, %c0_256, %c0_257] : memref<9x128x128xbf16, #tpu.memory_space<vmem>>, vector<1x128x128xbf16>
    %324 = vector.shape_cast %323 : vector<1x128x128xbf16> to vector<128x128xbf16>
    %cst_258 = arith.constant dense<0.000000e+00> : vector<96x128xf32>
    %325 = tpu.matmul %322, %324, %cst_258 {dimension_numbers = #tpu.dot_dimension_numbers<[1], [0], [0], [1], [0, 0, 1, 1], [], []>} : vector<96x128xbf16>, vector<128x128xbf16>, vector<96x128xf32> -> vector<96x128xf32>
    %326 = arith.addf %321, %325 : vector<96x128xf32>
    %c416 = arith.constant 416 : index
    %c0_259 = arith.constant 0 : index
    %327 = vector.load %arg7[%c416, %c0_259] : memref<528x128xbf16, #tpu.memory_space<vmem>>, vector<96x128xbf16>
    %c6_260 = arith.constant 6 : index
    %c0_261 = arith.constant 0 : index
    %c0_262 = arith.constant 0 : index
    %328 = vector.load %arg4[%c6_260, %c0_261, %c0_262] : memref<9x128x128xbf16, #tpu.memory_space<vmem>>, vector<1x128x128xbf16>
    %329 = vector.shape_cast %328 : vector<1x128x128xbf16> to vector<128x128xbf16>
    %cst_263 = arith.constant dense<0.000000e+00> : vector<96x128xf32>
    %330 = tpu.matmul %327, %329, %cst_263 {dimension_numbers = #tpu.dot_dimension_numbers<[1], [0], [0], [1], [0, 0, 1, 1], [], []>} : vector<96x128xbf16>, vector<128x128xbf16>, vector<96x128xf32> -> vector<96x128xf32>
    %331 = arith.addf %326, %330 : vector<96x128xf32>
    %c417 = arith.constant 417 : index
    %c0_264 = arith.constant 0 : index
    %332 = vector.load %arg7[%c417, %c0_264] : memref<528x128xbf16, #tpu.memory_space<vmem>>, vector<96x128xbf16>
    %c7_265 = arith.constant 7 : index
    %c0_266 = arith.constant 0 : index
    %c0_267 = arith.constant 0 : index
    %333 = vector.load %arg4[%c7_265, %c0_266, %c0_267] : memref<9x128x128xbf16, #tpu.memory_space<vmem>>, vector<1x128x128xbf16>
    %334 = vector.shape_cast %333 : vector<1x128x128xbf16> to vector<128x128xbf16>
    %cst_268 = arith.constant dense<0.000000e+00> : vector<96x128xf32>
    %335 = tpu.matmul %332, %334, %cst_268 {dimension_numbers = #tpu.dot_dimension_numbers<[1], [0], [0], [1], [0, 0, 1, 1], [], []>} : vector<96x128xbf16>, vector<128x128xbf16>, vector<96x128xf32> -> vector<96x128xf32>
    %336 = arith.addf %331, %335 : vector<96x128xf32>
    %c418 = arith.constant 418 : index
    %c0_269 = arith.constant 0 : index
    %337 = vector.load %arg7[%c418, %c0_269] : memref<528x128xbf16, #tpu.memory_space<vmem>>, vector<96x128xbf16>
    %c8_270 = arith.constant 8 : index
    %c0_271 = arith.constant 0 : index
    %c0_272 = arith.constant 0 : index
    %338 = vector.load %arg4[%c8_270, %c0_271, %c0_272] : memref<9x128x128xbf16, #tpu.memory_space<vmem>>, vector<1x128x128xbf16>
    %339 = vector.shape_cast %338 : vector<1x128x128xbf16> to vector<128x128xbf16>
    %cst_273 = arith.constant dense<0.000000e+00> : vector<96x128xf32>
    %340 = tpu.matmul %337, %339, %cst_273 {dimension_numbers = #tpu.dot_dimension_numbers<[1], [0], [0], [1], [0, 0, 1, 1], [], []>} : vector<96x128xbf16>, vector<128x128xbf16>, vector<96x128xf32> -> vector<96x128xf32>
    %341 = arith.addf %336, %340 : vector<96x128xf32>
    %c0_274 = arith.constant 0 : index
    %c0_275 = arith.constant 0 : index
    %342 = vector.load %arg8[%c0_274, %c0_275] : memref<128x128xf32, #tpu.memory_space<vmem>>, vector<96x128xf32>
    tpu.vector_store %arg8[%c0_274, %c0_275], %341 {strides = array<i32>} : memref<128x128xf32, #tpu.memory_space<vmem>>, vector<96x128xf32>,
    %c0_276 = arith.constant 0 : index
    %c0_277 = arith.constant 0 : index
    %343 = tpu.strided_load %arg8[%c0_276, %c0_277] {strides = array<i32: 2, 1>} : memref<128x128xf32, #tpu.memory_space<vmem>>, vector<48x128xf32>
    %c1_278 = arith.constant 1 : index
    %c0_279 = arith.constant 0 : index
    %344 = tpu.strided_load %arg8[%c1_278, %c0_279] {strides = array<i32: 2, 1>} : memref<128x128xf32, #tpu.memory_space<vmem>>, vector<48x128xf32>
    %345 = arith.maximumf %343, %344 : vector<48x128xf32>
    %346 = vector.extract_strided_slice %345 {offsets = [0, 0], sizes = [8, 128], strides = [1, 1]} : vector<48x128xf32> to vector<8x128xf32>
    %347 = vector.extract_strided_slice %345 {offsets = [8, 0], sizes = [8, 128], strides = [1, 1]} : vector<48x128xf32> to vector<8x128xf32>
    %348 = arith.maximumf %346, %347 : vector<8x128xf32>
    %349 = vector.broadcast %1 : vector<1x128xf32> to vector<8x128xf32>
    %350 = arith.addf %348, %349 : vector<8x128xf32>
    %cst_280 = arith.constant 0.000000e+00 : f32
    %351 = vector.broadcast %cst_280 : f32 to vector<8x128xf32>
    %352 = arith.maximumf %350, %351 : vector<8x128xf32>
    %c1_281 = arith.constant 1 : index
    %c32_282 = arith.constant 32 : index
    %c0_283 = arith.constant 0 : index
    %353 = vector.load %arg6[%c1_281, %c32_282, %c0_283] : memref<2x56x128xf32, #tpu.memory_space<vmem>>, vector<1x8x128xf32>
    %354 = vector.shape_cast %353 : vector<1x8x128xf32> to vector<8x128xf32>
    %355 = vector.shape_cast %352 : vector<8x128xf32> to vector<1x8x128xf32>
    tpu.vector_store %arg6[%c1_281, %c32_282, %c0_283], %355 {strides = array<i32>} : memref<2x56x128xf32, #tpu.memory_space<vmem>>, vector<1x8x128xf32>,
    %356 = vector.extract_strided_slice %345 {offsets = [16, 0], sizes = [8, 128], strides = [1, 1]} : vector<48x128xf32> to vector<8x128xf32>
    %357 = vector.extract_strided_slice %345 {offsets = [24, 0], sizes = [8, 128], strides = [1, 1]} : vector<48x128xf32> to vector<8x128xf32>
    %358 = arith.maximumf %356, %357 : vector<8x128xf32>
    %359 = vector.broadcast %1 : vector<1x128xf32> to vector<8x128xf32>
    %360 = arith.addf %358, %359 : vector<8x128xf32>
    %cst_284 = arith.constant 0.000000e+00 : f32
    %361 = vector.broadcast %cst_284 : f32 to vector<8x128xf32>
    %362 = arith.maximumf %360, %361 : vector<8x128xf32>
    %c1_285 = arith.constant 1 : index
    %c40_286 = arith.constant 40 : index
    %c0_287 = arith.constant 0 : index
    %363 = vector.load %arg6[%c1_285, %c40_286, %c0_287] : memref<2x56x128xf32, #tpu.memory_space<vmem>>, vector<1x8x128xf32>
    %364 = vector.shape_cast %363 : vector<1x8x128xf32> to vector<8x128xf32>
    %365 = vector.shape_cast %362 : vector<8x128xf32> to vector<1x8x128xf32>
    tpu.vector_store %arg6[%c1_285, %c40_286, %c0_287], %365 {strides = array<i32>} : memref<2x56x128xf32, #tpu.memory_space<vmem>>, vector<1x8x128xf32>,
    %366 = vector.extract_strided_slice %345 {offsets = [32, 0], sizes = [8, 128], strides = [1, 1]} : vector<48x128xf32> to vector<8x128xf32>
    %367 = vector.extract_strided_slice %345 {offsets = [40, 0], sizes = [8, 128], strides = [1, 1]} : vector<48x128xf32> to vector<8x128xf32>
    %368 = arith.maximumf %366, %367 : vector<8x128xf32>
    %369 = vector.broadcast %1 : vector<1x128xf32> to vector<8x128xf32>
    %370 = arith.addf %368, %369 : vector<8x128xf32>
    %cst_288 = arith.constant 0.000000e+00 : f32
    %371 = vector.broadcast %cst_288 : f32 to vector<8x128xf32>
    %372 = arith.maximumf %370, %371 : vector<8x128xf32>
    %c1_289 = arith.constant 1 : index
    %c48_290 = arith.constant 48 : index
    %c0_291 = arith.constant 0 : index
    %373 = vector.load %arg6[%c1_289, %c48_290, %c0_291] : memref<2x56x128xf32, #tpu.memory_space<vmem>>, vector<1x8x128xf32>
    %374 = vector.shape_cast %373 : vector<1x8x128xf32> to vector<8x128xf32>
    %375 = vector.shape_cast %372 : vector<8x128xf32> to vector<1x8x128xf32>
    tpu.vector_store %arg6[%c1_289, %c48_290, %c0_291], %375 {strides = array<i32>} : memref<2x56x128xf32, #tpu.memory_space<vmem>>, vector<1x8x128xf32>,
    return
  }
  func.func @transform_0(%arg0: i32) -> (i32, i32, i32) {
    %c0_i32 = arith.constant 0 : i32
    %c0_i32_0 = arith.constant 0 : i32
    %c0_i32_1 = arith.constant 0 : i32
    return %arg0, %c0_i32, %c0_i32_0 : i32, i32, i32
  }
  func.func @transform_1(%arg0: i32) -> (i32, i32) {
    %c0_i32 = arith.constant 0 : i32
    %c0_i32_0 = arith.constant 0 : i32
    %c0_i32_1 = arith.constant 0 : i32
    return %c0_i32, %c0_i32_0 : i32, i32
  }
  func.func @transform_2(%arg0: i32) -> (i32, i32) {
    %c0_i32 = arith.constant 0 : i32
    %c0_i32_0 = arith.constant 0 : i32
    %c0_i32_1 = arith.constant 0 : i32
    return %c0_i32, %c0_i32_0 : i32, i32
  }
  func.func @transform_3(%arg0: i32) -> (i32, i32, i32) {
    %c0_i32 = arith.constant 0 : i32
    %c0_i32_0 = arith.constant 0 : i32
    %c0_i32_1 = arith.constant 0 : i32
    %c0_i32_2 = arith.constant 0 : i32
    return %c0_i32, %c0_i32_0, %c0_i32_1 : i32, i32, i32
  }
  func.func @transform_4(%arg0: i32) -> (i32, i32) {
    %c0_i32 = arith.constant 0 : i32
    %c0_i32_0 = arith.constant 0 : i32
    %c0_i32_1 = arith.constant 0 : i32
    return %c0_i32, %c0_i32_0 : i32, i32
  }
  func.func @transform_5(%arg0: i32) -> (i32, i32, i32) {
    %c0_i32 = arith.constant 0 : i32
    %c0_i32_0 = arith.constant 0 : i32
    %c0_i32_1 = arith.constant 0 : i32
    return %arg0, %c0_i32, %c0_i32_0 : i32, i32, i32
  }
}

</mosaic_0001>

<llo_original>
// kernel: tpu_custom_call.1
$region0: #{tpu_custom_call.1}
  #allocation0 [shape = 'u32[]', space=smem, size = 0x4, offset = 0x4, fixed_abs, tag = 'smem constant byte address 0x4 - core index']
  #allocation1 [shape = 'u32[144,128]{1,0:T(1,128)}', space=vmem, size = 0x12000, scoped, tag = 'internal scratch']
  #allocation2 [shape = 'bf16[528,128]{1,0:T(16,128)(2,1)}', space=vmem, size = 0x21000, scoped, tag = 'scratch operand']
  #allocation3 [shape = 'f32[128,128]{1,0:T(8,128)}', space=vmem, size = 0x10000, scoped, tag = 'scratch operand']
  %s0 = inlined_call_operand.vmem [shape: bf16[2,256,64], index: 0, kind: input, shape index: {}]
  %s1 = inlined_call_operand.vmem [shape: bf16[64,128], index: 1, kind: input, shape index: {}]
  %s2 = inlined_call_operand.vmem [shape: f32[1,128], index: 2, kind: input, shape index: {}]
  %s3 = inlined_call_operand.hbm [shape: bf16[9,128,128], index: 3, kind: input, shape index: {}]
  %s4 = inlined_call_operand.vmem [shape: f32[1,128], index: 4, kind: input, shape index: {}]
  %s5 = inlined_call_operand.hbm [shape: f32[2,56,128], index: 5, kind: output, shape index: {}]
  %s6 = sld [smem:[#allocation0]]
  $region34: #{tpu_custom_call.1} parent=0
    _
  %s8 = ssub.s32 1, %s6
  %s9 = scalar_select 0, %s8, %s6
  $region1: #{tpu_custom_call.1} parent=0
    #allocation4 [shape = 'u8[294912]{0}', space=vmem, size = 0x48000, scoped, tag = 'input window, operand 3, single buffered']
    #allocation5 [shape = 's32[1]{0}', space=sflag, size = 0x4, scoped, tag = 'scoped memory for tpu_custom_call.1']
    #allocation6 [shape = 's32[1]{0}', space=sflag, size = 0x4, scoped, tag = 'scoped memory for tpu_custom_call.1']
    #allocation7 [shape = 'u8[57344]{0}', space=vmem, size = 0xe000, scoped, tag = 'output window, operand 0, single buffered']
    %10 = vsyncpa [#allocation5], 0
    %11 = vsyncpa [#allocation6], 0
    // Predicated region
    $region2: #{tpu_custom_call.1} parent=1 // pred_check
      _
    $region3: #{tpu_custom_call.1} parent=1 // pred_check_branch
      %13 = sbr.rel (0) target = $region5
    $region4: #{tpu_custom_call.1} parent=1 // pred_region
      _
    $region5: #{tpu_custom_call.1} parent=1 // pred_fallthru
      _
    // Predicated region
    $region6: #{tpu_custom_call.1} parent=1 // pred_check
      _
    $region7: #{tpu_custom_call.1} parent=1 // pred_check_branch
      %15 = sbr.rel (0) target = $region9
    $region8: #{tpu_custom_call.1} parent=1 // pred_region
      _
    $region9: #{tpu_custom_call.1} parent=1 // pred_fallthru
      _
    // Predicated region
    $region10: #{tpu_custom_call.1} parent=1 // pred_check
      _
    $region11: #{tpu_custom_call.1} parent=1 // pred_check_branch
      %17 = sbr.rel (0) target = $region13
    $region12: #{tpu_custom_call.1} parent=1 // pred_region
      _
    $region13: #{tpu_custom_call.1} parent=1 // pred_fallthru
      _
    // Predicated region
    $region14: #{tpu_custom_call.1} parent=1 // pred_check
      _
    $region15: #{tpu_custom_call.1} parent=1 // pred_check_branch
      %19 = sbr.rel (0) target = $region17
    $region16: #{tpu_custom_call.1} parent=1 // pred_region
      %s21 = ssub.s32 9216, 9216
      %22 = vsyncadd [#allocation5], %s21
      %s23 = sshll.u32 [#allocation4], 4
      %s24 = int_to_ptr.vmem [resolvable:$true] %s23
      %29 = dma.hbm_to_vmem [thread:$0]  %s3, 9216, %s24, [#allocation5], 64, 64, 4
    $region17: #{tpu_custom_call.1} parent=1 // pred_fallthru
      _
    // Predicated region
    $region18: #{tpu_custom_call.1} parent=1 // pred_check
      _
    $region19: #{tpu_custom_call.1} parent=1 // pred_check_branch
      %31 = sbr.rel (0) target = $region21
    $region20: #{tpu_custom_call.1} parent=1 // pred_region
      _
    $region21: #{tpu_custom_call.1} parent=1 // pred_fallthru
      _
    // Predicated region
    $region22: #{tpu_custom_call.1} parent=1 // pred_check
      _
    $region23: #{tpu_custom_call.1} parent=1 // pred_check_branch
      %33 = sbr.rel (0) target = $region25
    $region24: #{tpu_custom_call.1} parent=1 // pred_region
      %34 = dma.done [#allocation5], 9216
    $region25: #{tpu_custom_call.1} parent=1 // pred_fallthru
      _
    %v36 = vld [vmem:[%s2] sm:$0x1]
    %v37 = vld [vmem:[%s4] sm:$0x1]
    %v38 = vld [vmem:[%s0] sm:$0xf]
    %v39 = vld [vmem:[%s0 + $0x4] sm:$0xf]
    %v40 = vld [vmem:[%s0 + $0x8] sm:$0xf]
    %v41 = vld [vmem:[%s0 + $0xc] sm:$0xf]
    %v42 = vld [vmem:[%s0 + $0x10] sm:$0xf]
    %v43 = vld [vmem:[%s0 + $0x14] sm:$0xf]
    %v44 = vld [vmem:[%s0 + $0x18] sm:$0xf]
    %v45 = vld [vmem:[%s0 + $0x1c] sm:$0xf]
    %v46 = vld [vmem:[%s0 + $0x20] sm:$0xf]
    %v47 = vld [vmem:[%s0 + $0x24] sm:$0xf]
    %v48 = vld [vmem:[%s0 + $0x28] sm:$0xf]
    %v49 = vld [vmem:[%s0 + $0x2c] sm:$0xf]
    %v50 = vld [vmem:[%s0 + $0x30] sm:$0xf]
    %v51 = vld [vmem:[%s0 + $0x34] sm:$0xf]
    %v52 = vld [vmem:[%s0 + $0x38] sm:$0xf]
    %v53 = vld [vmem:[%s0 + $0x3c] sm:$0xf]
    %v54 = vld [vmem:[%s1] sm:$0xf]
    %v55 = vld [vmem:[%s1 + $0x4] sm:$0xf]
    %v56 = vld [vmem:[%s1 + $0x8] sm:$0xf]
    %v57 = vld [vmem:[%s1 + $0xc] sm:$0xf]
    %v58 = vld [vmem:[%s1 + $0x10] sm:$0xf]
    %v59 = vld [vmem:[%s1 + $0x14] sm:$0xf]
    %v60 = vld [vmem:[%s1 + $0x18] sm:$0xf]
    %v61 = vld [vmem:[%s1 + $0x1c] sm:$0xf]
    %v63 = vlaneseq
    %v64 = vshrl.u32 %v63, 7
    %v65 = vsub.s32 0, %v64
    %v66 = vrot.slane %v36, %v65
    %v84 = vunpack.c.l.b16 %v38
    %v85 = vunpack.c.l.b16 %v39
    %v86 = vunpack.c.l.b16 %v40
    %v87 = vunpack.c.l.b16 %v41
    %v88 = vunpack.c.l.b16 %v42
    %v89 = vunpack.c.l.b16 %v43
    %v90 = vunpack.c.l.b16 %v44
    %v91 = vunpack.c.l.b16 %v45
    %v92 = vunpack.c.l.b16 %v46
    %v93 = vunpack.c.l.b16 %v47
    %v94 = vunpack.c.l.b16 %v48
    %v95 = vunpack.c.l.b16 %v49
    %v96 = vunpack.c.l.b16 %v50
    %v97 = vunpack.c.l.b16 %v51
    %v98 = vunpack.c.l.b16 %v52
    %v99 = vunpack.c.l.b16 %v53
    %v100 = vpack.c.b16 %v85, %v84
    %v101 = vpack.c.b16 %v87, %v86
    %v102 = vpack.c.b16 %v89, %v88
    %v103 = vpack.c.b16 %v91, %v90
    %v104 = vpack.c.b16 %v93, %v92
    %v105 = vpack.c.b16 %v95, %v94
    %v106 = vpack.c.b16 %v97, %v96
    %v107 = vpack.c.b16 %v99, %v98
    %v116 = vunpack.c.l.b16 %v54
    %v117 = vunpack.c.l.b16 %v55
    %v118 = vunpack.c.l.b16 %v56
    %v119 = vunpack.c.l.b16 %v57
    %v120 = vunpack.c.l.b16 %v58
    %v121 = vunpack.c.l.b16 %v59
    %v122 = vunpack.c.l.b16 %v60
    %v123 = vunpack.c.l.b16 %v61
    %v124 = vpack.c.b16 %v117, %v116
    %v125 = vpack.c.b16 %v119, %v118
    %v126 = vpack.c.b16 %v121, %v120
    %v127 = vpack.c.b16 %v123, %v122
    %vm132 = vcmask 523264
    %v134 = vsel %vm132, %v100, 0
    %v137 = vsel %vm132, %v101, 0
    %v140 = vsel %vm132, %v102, 0
    %v143 = vsel %vm132, %v103, 0
    %v146 = vsel %vm132, %v104, 0
    %v149 = vsel %vm132, %v105, 0
    %v152 = vsel %vm132, %v106, 0
    %v155 = vsel %vm132, %v107, 0
    %157 = vmatprep.subr.bf16.mxu0 0
    %158 = vmatpush1.bf16.msra.mxu0 %v124
    %159 = vmatprep.subr.bf16.mxu0 0
    %160 = vmatpush1.bf16.msra.mxu0 %v125
    %161 = vmatprep.subr.bf16.mxu0 0
    %162 = vmatpush1.bf16.msra.mxu0 %v126
    %163 = vmatprep.subr.bf16.mxu0 0
    %164 = vmatpush1.bf16.msra.mxu0 %v127
    %165 = vmatprep.subr.bf16.mxu0 0
    %166 = vmatpush1.bf16.msra.mxu0 0
    %167 = vmatprep.subr.bf16.mxu0 0
    %168 = vmatpush1.bf16.msra.mxu0 0
    %169 = vmatprep.subr.bf16.mxu0 0
    %170 = vmatpush1.bf16.msra.mxu0 0
    %171 = vmatprep.subr.bf16.mxu0 0
    %172 = vmatpush1.bf16.msra.mxu0 0
    %173 = vmatprep.subr.bf16.mxu0 0
    %174 = vmatpush1.bf16.msra.mxu0 0
    %175 = vmatprep.subr.bf16.mxu0 0
    %176 = vmatpush1.bf16.msra.mxu0 0
    %177 = vmatprep.subr.bf16.mxu0 0
    %178 = vmatpush1.bf16.msra.mxu0 0
    %179 = vmatprep.subr.bf16.mxu0 0
    %180 = vmatpush1.bf16.msra.mxu0 0
    %181 = vmatprep.subr.bf16.mxu0 0
    %182 = vmatpush1.bf16.msra.mxu0 0
    %183 = vmatprep.subr.bf16.mxu0 0
    %184 = vmatpush1.bf16.msra.mxu0 0
    %185 = vmatprep.subr.bf16.mxu0 0
    %186 = vmatpush1.bf16.msra.mxu0 0
    %187 = vmatprep.subr.bf16.mxu0 0
    %188 = vmatpush1.bf16.msra.mxu0 0
    %189 = vmatprep.mubr.bf16.mxu0 0
    %190 = vmatmul.mubr.bf16.gmra.mrb[0].mxu0 %v134
    %v191 = vpop.f32.mrb[0].mxu0
    %v192 = vadd.f32 %v66, %v191
    %v193 = vpop.f32.mrb[0].mxu0
    %v194 = vpop.f32.mrb[0].mxu0
    %v195 = vadd.f32 %v66, %v194
    %v196 = vpop.f32.mrb[0].mxu0
    %197 = vmatprep.mubr.bf16.mxu0 0
    %198 = vmatmul.mubr.bf16.gmra.mrb[0].mxu0 %v137
    %v199 = vpop.f32.mrb[0].mxu0
    %v200 = vadd.f32 %v66, %v199
    %v201 = vpop.f32.mrb[0].mxu0
    %v202 = vpop.f32.mrb[0].mxu0
    %v203 = vadd.f32 %v66, %v202
    %v204 = vpop.f32.mrb[0].mxu0
    %205 = vmatprep.mubr.bf16.mxu0 0
    %206 = vmatmul.mubr.bf16.gmra.mrb[0].mxu0 %v140
    %v207 = vpop.f32.mrb[0].mxu0
    %v208 = vadd.f32 %v66, %v207
    %v209 = vpop.f32.mrb[0].mxu0
    %v210 = vpop.f32.mrb[0].mxu0
    %v211 = vadd.f32 %v66, %v210
    %v212 = vpop.f32.mrb[0].mxu0
    %213 = vmatprep.mubr.bf16.mxu0 0
    %214 = vmatmul.mubr.bf16.gmra.mrb[0].mxu0 %v143
    %v215 = vpop.f32.mrb[0].mxu0
    %v216 = vadd.f32 %v66, %v215
    %v217 = vpop.f32.mrb[0].mxu0
    %v218 = vpop.f32.mrb[0].mxu0
    %v219 = vadd.f32 %v66, %v218
    %v220 = vpop.f32.mrb[0].mxu0
    %221 = vmatprep.mubr.bf16.mxu0 0
    %222 = vmatmul.mubr.bf16.gmra.mrb[0].mxu0 %v146
    %v223 = vpop.f32.mrb[0].mxu0
    %v224 = vadd.f32 %v66, %v223
    %v225 = vpop.f32.mrb[0].mxu0
    %v226 = vpop.f32.mrb[0].mxu0
    %v227 = vadd.f32 %v66, %v226
    %v228 = vpop.f32.mrb[0].mxu0
    %229 = vmatprep.mubr.bf16.mxu0 0
    %230 = vmatmul.mubr.bf16.gmra.mrb[0].mxu0 %v149
    %v231 = vpop.f32.mrb[0].mxu0
    %v232 = vadd.f32 %v66, %v231
    %v233 = vpop.f32.mrb[0].mxu0
    %v234 = vpop.f32.mrb[0].mxu0
    %v235 = vadd.f32 %v66, %v234
    %v236 = vpop.f32.mrb[0].mxu0
    %237 = vmatprep.mubr.bf16.mxu0 0
    %238 = vmatmul.mubr.bf16.gmra.mrb[0].mxu0 %v152
    %v239 = vpop.f32.mrb[0].mxu0
    %v240 = vadd.f32 %v66, %v239
    %v241 = vpop.f32.mrb[0].mxu0
    %v242 = vpop.f32.mrb[0].mxu0
    %v243 = vadd.f32 %v66, %v242
    %v244 = vpop.f32.mrb[0].mxu0
    %245 = vmatprep.mubr.bf16.mxu0 0
    %246 = vmatmul.mubr.bf16.gmra.mrb[0].mxu0 %v155
    %v247 = vpop.f32.mrb[0].mxu0
    %v248 = vadd.f32 %v66, %v247
    %v249 = vpop.f32.mrb[0].mxu0
    %v250 = vpop.f32.mrb[0].mxu0
    %v251 = vadd.f32 %v66, %v250
    %v252 = vpop.f32.mrb[0].mxu0
    %253 = vdwg.mxu0
    %v254 = vmax.f32 %v192, 0.0
    %v255 = vmax.f32 %v195, 0.0
    %v256 = vmax.f32 %v200, 0.0
    %v257 = vmax.f32 %v203, 0.0
    %v258 = vmax.f32 %v208, 0.0
    %v259 = vmax.f32 %v211, 0.0
    %v260 = vmax.f32 %v216, 0.0
    %v261 = vmax.f32 %v219, 0.0
    %v262 = vmax.f32 %v224, 0.0
    %v263 = vmax.f32 %v227, 0.0
    %v264 = vmax.f32 %v232, 0.0
    %v265 = vmax.f32 %v235, 0.0
    %v266 = vmax.f32 %v240, 0.0
    %v267 = vmax.f32 %v243, 0.0
    %v268 = vmax.f32 %v248, 0.0
    %v269 = vmax.f32 %v251, 0.0
    %v270 = vpack.c.bf16 %v255, %v254
    %v271 = vpack.c.bf16 %v257, %v256
    %v272 = vpack.c.bf16 %v259, %v258
    %v273 = vpack.c.bf16 %v261, %v260
    %v274 = vpack.c.bf16 %v263, %v262
    %v275 = vpack.c.bf16 %v265, %v264
    %v276 = vpack.c.bf16 %v267, %v266
    %v277 = vpack.c.bf16 %v269, %v268
    %278 = vst [vmem:[#allocation2] sm:$0xff] %v270
    %279 = vst [vmem:[#allocation2 + $0x8] sm:$0xff] %v271
    %280 = vst [vmem:[#allocation2 + $0x10] sm:$0xff] %v272
    %281 = vst [vmem:[#allocation2 + $0x18] sm:$0xff] %v273
    %282 = vst [vmem:[#allocation2 + $0x20] sm:$0xff] %v274
    %283 = vst [vmem:[#allocation2 + $0x28] sm:$0xff] %v275
    %284 = vst [vmem:[#allocation2 + $0x30] sm:$0xff] %v276
    %285 = vst [vmem:[#allocation2 + $0x38] sm:$0xff] %v277
    %v286 = vld [vmem:[%s0 + $0x40] sm:$0xf]
    %v287 = vld [vmem:[%s0 + $0x44] sm:$0xf]
    %v288 = vld [vmem:[%s0 + $0x48] sm:$0xf]
    %v289 = vld [vmem:[%s0 + $0x4c] sm:$0xf]
    %v290 = vld [vmem:[%s0 + $0x50] sm:$0xf]
    %v291 = vld [vmem:[%s0 + $0x54] sm:$0xf]
    %v292 = vld [vmem:[%s0 + $0x58] sm:$0xf]
    %v293 = vld [vmem:[%s0 + $0x5c] sm:$0xf]
    %v294 = vld [vmem:[%s0 + $0x60] sm:$0xf]
    %v295 = vld [vmem:[%s0 + $0x64] sm:$0xf]
    %v296 = vld [vmem:[%s0 + $0x68] sm:$0xf]
    %v297 = vld [vmem:[%s0 + $0x6c] sm:$0xf]
    %v298 = vld [vmem:[%s0 + $0x70] sm:$0xf]
    %v299 = vld [vmem:[%s0 + $0x74] sm:$0xf]
    %v300 = vld [vmem:[%s0 + $0x78] sm:$0xf]
    %v301 = vld [vmem:[%s0 + $0x7c] sm:$0xf]
    %v302 = vld [vmem:[%s1] sm:$0xf]
    %v303 = vld [vmem:[%s1 + $0x4] sm:$0xf]
    %v304 = vld [vmem:[%s1 + $0x8] sm:$0xf]
    %v305 = vld [vmem:[%s1 + $0xc] sm:$0xf]
    %v306 = vld [vmem:[%s1 + $0x10] sm:$0xf]
    %v307 = vld [vmem:[%s1 + $0x14] sm:$0xf]
    %v308 = vld [vmem:[%s1 + $0x18] sm:$0xf]
    %v309 = vld [vmem:[%s1 + $0x1c] sm:$0xf]
    %v326 = vunpack.c.l.b16 %v286
    %v327 = vunpack.c.l.b16 %v287
    %v328 = vunpack.c.l.b16 %v288
    %v329 = vunpack.c.l.b16 %v289
    %v330 = vunpack.c.l.b16 %v290
    %v331 = vunpack.c.l.b16 %v291
    %v332 = vunpack.c.l.b16 %v292
    %v333 = vunpack.c.l.b16 %v293
    %v334 = vunpack.c.l.b16 %v294
    %v335 = vunpack.c.l.b16 %v295
    %v336 = vunpack.c.l.b16 %v296
    %v337 = vunpack.c.l.b16 %v297
    %v338 = vunpack.c.l.b16 %v298
    %v339 = vunpack.c.l.b16 %v299
    %v340 = vunpack.c.l.b16 %v300
    %v341 = vunpack.c.l.b16 %v301
    %v342 = vpack.c.b16 %v327, %v326
    %v343 = vpack.c.b16 %v329, %v328
    %v344 = vpack.c.b16 %v331, %v330
    %v345 = vpack.c.b16 %v333, %v332
    %v346 = vpack.c.b16 %v335, %v334
    %v347 = vpack.c.b16 %v337, %v336
    %v348 = vpack.c.b16 %v339, %v338
    %v349 = vpack.c.b16 %v341, %v340
    %v358 = vunpack.c.l.b16 %v302
    %v359 = vunpack.c.l.b16 %v303
    %v360 = vunpack.c.l.b16 %v304
    %v361 = vunpack.c.l.b16 %v305
    %v362 = vunpack.c.l.b16 %v306
    %v363 = vunpack.c.l.b16 %v307
    %v364 = vunpack.c.l.b16 %v308
    %v365 = vunpack.c.l.b16 %v309
    %v366 = vpack.c.b16 %v359, %v358
    %v367 = vpack.c.b16 %v361, %v360
    %v368 = vpack.c.b16 %v363, %v362
    %v369 = vpack.c.b16 %v365, %v364
    %v375 = vsel %vm132, %v342, 0
    %v378 = vsel %vm132, %v343, 0
    %v381 = vsel %vm132, %v344, 0
    %v384 = vsel %vm132, %v345, 0
    %v387 = vsel %vm132, %v346, 0
    %v390 = vsel %vm132, %v347, 0
    %v393 = vsel %vm132, %v348, 0
    %v396 = vsel %vm132, %v349, 0
    %398 = vmatprep.subr.bf16.mxu0 0
    %399 = vmatpush1.bf16.msra.mxu0 %v366
    %400 = vmatprep.subr.bf16.mxu0 0
    %401 = vmatpush1.bf16.msra.mxu0 %v367
    %402 = vmatprep.subr.bf16.mxu0 0
    %403 = vmatpush1.bf16.msra.mxu0 %v368
    %404 = vmatprep.subr.bf16.mxu0 0
    %405 = vmatpush1.bf16.msra.mxu0 %v369
    %406 = vmatprep.subr.bf16.mxu0 0
    %407 = vmatpush1.bf16.msra.mxu0 0
    %408 = vmatprep.subr.bf16.mxu0 0
    %409 = vmatpush1.bf16.msra.mxu0 0
    %410 = vmatprep.subr.bf16.mxu0 0
    %411 = vmatpush1.bf16.msra.mxu0 0
    %412 = vmatprep.subr.bf16.mxu0 0
    %413 = vmatpush1.bf16.msra.mxu0 0
    %414 = vmatprep.subr.bf16.mxu0 0
    %415 = vmatpush1.bf16.msra.mxu0 0
    %416 = vmatprep.subr.bf16.mxu0 0
    %417 = vmatpush1.bf16.msra.mxu0 0
    %418 = vmatprep.subr.bf16.mxu0 0
    %419 = vmatpush1.bf16.msra.mxu0 0
    %420 = vmatprep.subr.bf16.mxu0 0
    %421 = vmatpush1.bf16.msra.mxu0 0
    %422 = vmatprep.subr.bf16.mxu0 0
    %423 = vmatpush1.bf16.msra.mxu0 0
    %424 = vmatprep.subr.bf16.mxu0 0
    %425 = vmatpush1.bf16.msra.mxu0 0
    %426 = vmatprep.subr.bf16.mxu0 0
    %427 = vmatpush1.bf16.msra.mxu0 0
    %428 = vmatprep.subr.bf16.mxu0 0
    %429 = vmatpush1.bf16.msra.mxu0 0
    %430 = vmatprep.mubr.bf16.mxu0 0
    %431 = vmatmul.mubr.bf16.gmra.mrb[0].mxu0 %v375
    %v432 = vpop.f32.mrb[0].mxu0
    %v433 = vadd.f32 %v66, %v432
    %v434 = vpop.f32.mrb[0].mxu0
    %v435 = vpop.f32.mrb[0].mxu0
    %v436 = vadd.f32 %v66, %v435
    %v437 = vpop.f32.mrb[0].mxu0
    %438 = vmatprep.mubr.bf16.mxu0 0
    %439 = vmatmul.mubr.bf16.gmra.mrb[0].mxu0 %v378
    %v440 = vpop.f32.mrb[0].mxu0
    %v441 = vadd.f32 %v66, %v440
    %v442 = vpop.f32.mrb[0].mxu0
    %v443 = vpop.f32.mrb[0].mxu0
    %v444 = vadd.f32 %v66, %v443
    %v445 = vpop.f32.mrb[0].mxu0
    %446 = vmatprep.mubr.bf16.mxu0 0
    %447 = vmatmul.mubr.bf16.gmra.mrb[0].mxu0 %v381
    %v448 = vpop.f32.mrb[0].mxu0
    %v449 = vadd.f32 %v66, %v448
    %v450 = vpop.f32.mrb[0].mxu0
    %v451 = vpop.f32.mrb[0].mxu0
    %v452 = vadd.f32 %v66, %v451
    %v453 = vpop.f32.mrb[0].mxu0
    %454 = vmatprep.mubr.bf16.mxu0 0
    %455 = vmatmul.mubr.bf16.gmra.mrb[0].mxu0 %v384
    %v456 = vpop.f32.mrb[0].mxu0
    %v457 = vadd.f32 %v66, %v456
    %v458 = vpop.f32.mrb[0].mxu0
    %v459 = vpop.f32.mrb[0].mxu0
    %v460 = vadd.f32 %v66, %v459
    %v461 = vpop.f32.mrb[0].mxu0
    %462 = vmatprep.mubr.bf16.mxu0 0
    %463 = vmatmul.mubr.bf16.gmra.mrb[0].mxu0 %v387
    %v464 = vpop.f32.mrb[0].mxu0
    %v465 = vadd.f32 %v66, %v464
    %v466 = vpop.f32.mrb[0].mxu0
    %v467 = vpop.f32.mrb[0].mxu0
    %v468 = vadd.f32 %v66, %v467
    %v469 = vpop.f32.mrb[0].mxu0
    %470 = vmatprep.mubr.bf16.mxu0 0
    %471 = vmatmul.mubr.bf16.gmra.mrb[0].mxu0 %v390
    %v472 = vpop.f32.mrb[0].mxu0
    %v473 = vadd.f32 %v66, %v472
    %v474 = vpop.f32.mrb[0].mxu0
    %v475 = vpop.f32.mrb[0].mxu0
    %v476 = vadd.f32 %v66, %v475
    %v477 = vpop.f32.mrb[0].mxu0
    %478 = vmatprep.mubr.bf16.mxu0 0
    %479 = vmatmul.mubr.bf16.gmra.mrb[0].mxu0 %v393
    %v480 = vpop.f32.mrb[0].mxu0
    %v481 = vadd.f32 %v66, %v480
    %v482 = vpop.f32.mrb[0].mxu0
    %v483 = vpop.f32.mrb[0].mxu0
    %v484 = vadd.f32 %v66, %v483
    %v485 = vpop.f32.mrb[0].mxu0
    %486 = vmatprep.mubr.bf16.mxu0 0
    %487 = vmatmul.mubr.bf16.gmra.mrb[0].mxu0 %v396
    %v488 = vpop.f32.mrb[0].mxu0
    %v489 = vadd.f32 %v66, %v488
    %v490 = vpop.f32.mrb[0].mxu0
    %v491 = vpop.f32.mrb[0].mxu0
    %v492 = vadd.f32 %v66, %v491
    %v493 = vpop.f32.mrb[0].mxu0
    %494 = vdwg.mxu0
    %v495 = vmax.f32 %v433, 0.0
    %v496 = vmax.f32 %v436, 0.0
    %v497 = vmax.f32 %v441, 0.0
    %v498 = vmax.f32 %v444, 0.0
    %v499 = vmax.f32 %v449, 0.0
    %v500 = vmax.f32 %v452, 0.0
    %v501 = vmax.f32 %v457, 0.0
    %v502 = vmax.f32 %v460, 0.0
    %v503 = vmax.f32 %v465, 0.0
    %v504 = vmax.f32 %v468, 0.0
    %v505 = vmax.f32 %v473, 0.0
    %v506 = vmax.f32 %v476, 0.0
    %v507 = vmax.f32 %v481, 0.0
    %v508 = vmax.f32 %v484, 0.0
    %v509 = vmax.f32 %v489, 0.0
    %v510 = vmax.f32 %v492, 0.0
    %v511 = vpack.c.bf16 %v496, %v495
    %v512 = vpack.c.bf16 %v498, %v497
    %v513 = vpack.c.bf16 %v500, %v499
    %v514 = vpack.c.bf16 %v502, %v501
    %v515 = vpack.c.bf16 %v504, %v503
    %v516 = vpack.c.bf16 %v506, %v505
    %v517 = vpack.c.bf16 %v508, %v507
    %v518 = vpack.c.bf16 %v510, %v509
    %519 = vst [vmem:[#allocation2 + $0x40] sm:$0xff] %v511
    %520 = vst [vmem:[#allocation2 + $0x48] sm:$0xff] %v512
    %521 = vst [vmem:[#allocation2 + $0x50] sm:$0xff] %v513
    %522 = vst [vmem:[#allocation2 + $0x58] sm:$0xff] %v514
    %523 = vst [vmem:[#allocation2 + $0x60] sm:$0xff] %v515
    %524 = vst [vmem:[#allocation2 + $0x68] sm:$0xff] %v516
    %525 = vst [vmem:[#allocation2 + $0x70] sm:$0xff] %v517
    %526 = vst [vmem:[#allocation2 + $0x78] sm:$0xff] %v518
    %s527 = scalar_lea.vmem %s0, 128
    %v528 = vld [vmem:[%s527] sm:$0xf]
    %v529 = vld [vmem:[%s527 + $0x4] sm:$0xf]
    %v530 = vld [vmem:[%s527 + $0x8] sm:$0xf]
    %v531 = vld [vmem:[%s527 + $0xc] sm:$0xf]
    %v532 = vld [vmem:[%s527 + $0x10] sm:$0xf]
    %v533 = vld [vmem:[%s527 + $0x14] sm:$0xf]
    %v534 = vld [vmem:[%s527 + $0x18] sm:$0xf]
    %v535 = vld [vmem:[%s527 + $0x1c] sm:$0xf]
    %v536 = vld [vmem:[%s527 + $0x20] sm:$0xf]
    %v537 = vld [vmem:[%s527 + $0x24] sm:$0xf]
    %v538 = vld [vmem:[%s527 + $0x28] sm:$0xf]
    %v539 = vld [vmem:[%s527 + $0x2c] sm:$0xf]
    %v540 = vld [vmem:[%s527 + $0x30] sm:$0xf]
    %v541 = vld [vmem:[%s527 + $0x34] sm:$0xf]
    %v542 = vld [vmem:[%s527 + $0x38] sm:$0xf]
    %v543 = vld [vmem:[%s527 + $0x3c] sm:$0xf]
    %v544 = vld [vmem:[%s1] sm:$0xf]
    %v545 = vld [vmem:[%s1 + $0x4] sm:$0xf]
    %v546 = vld [vmem:[%s1 + $0x8] sm:$0xf]
    %v547 = vld [vmem:[%s1 + $0xc] sm:$0xf]
    %v548 = vld [vmem:[%s1 + $0x10] sm:$0xf]
    %v549 = vld [vmem:[%s1 + $0x14] sm:$0xf]
    %v550 = vld [vmem:[%s1 + $0x18] sm:$0xf]
    %v551 = vld [vmem:[%s1 + $0x1c] sm:$0xf]
    %v568 = vunpack.c.l.b16 %v528
    %v569 = vunpack.c.l.b16 %v529
    %v570 = vunpack.c.l.b16 %v530
    %v571 = vunpack.c.l.b16 %v531
    %v572 = vunpack.c.l.b16 %v532
    %v573 = vunpack.c.l.b16 %v533
    %v574 = vunpack.c.l.b16 %v534
    %v575 = vunpack.c.l.b16 %v535
    %v576 = vunpack.c.l.b16 %v536
    %v577 = vunpack.c.l.b16 %v537
    %v578 = vunpack.c.l.b16 %v538
    %v579 = vunpack.c.l.b16 %v539
    %v580 = vunpack.c.l.b16 %v540
    %v581 = vunpack.c.l.b16 %v541
    %v582 = vunpack.c.l.b16 %v542
    %v583 = vunpack.c.l.b16 %v543
    %v584 = vpack.c.b16 %v569, %v568
    %v585 = vpack.c.b16 %v571, %v570
    %v586 = vpack.c.b16 %v573, %v572
    %v587 = vpack.c.b16 %v575, %v574
    %v588 = vpack.c.b16 %v577, %v576
    %v589 = vpack.c.b16 %v579, %v578
    %v590 = vpack.c.b16 %v581, %v580
    %v591 = vpack.c.b16 %v583, %v582
    %v600 = vunpack.c.l.b16 %v544
    %v601 = vunpack.c.l.b16 %v545
    %v602 = vunpack.c.l.b16 %v546
    %v603 = vunpack.c.l.b16 %v547
    %v604 = vunpack.c.l.b16 %v548
    %v605 = vunpack.c.l.b16 %v549
    %v606 = vunpack.c.l.b16 %v550
    %v607 = vunpack.c.l.b16 %v551
    %v608 = vpack.c.b16 %v601, %v600
    %v609 = vpack.c.b16 %v603, %v602
    %v610 = vpack.c.b16 %v605, %v604
    %v611 = vpack.c.b16 %v607, %v606
    %v617 = vsel %vm132, %v584, 0
    %v620 = vsel %vm132, %v585, 0
    %v623 = vsel %vm132, %v586, 0
    %v626 = vsel %vm132, %v587, 0
    %v629 = vsel %vm132, %v588, 0
    %v632 = vsel %vm132, %v589, 0
    %v635 = vsel %vm132, %v590, 0
    %v638 = vsel %vm132, %v591, 0
    %640 = vmatprep.subr.bf16.mxu0 0
    %641 = vmatpush1.bf16.msra.mxu0 %v608
    %642 = vmatprep.subr.bf16.mxu0 0
    %643 = vmatpush1.bf16.msra.mxu0 %v609
    %644 = vmatprep.subr.bf16.mxu0 0
    %645 = vmatpush1.bf16.msra.mxu0 %v610
    %646 = vmatprep.subr.bf16.mxu0 0
    %647 = vmatpush1.bf16.msra.mxu0 %v611
    %648 = vmatprep.subr.bf16.mxu0 0
    %649 = vmatpush1.bf16.msra.mxu0 0
    %650 = vmatprep.subr.bf16.mxu0 0
    %651 = vmatpush1.bf16.msra.mxu0 0
    %652 = vmatprep.subr.bf16.mxu0 0
    %653 = vmatpush1.bf16.msra.mxu0 0
    %654 = vmatprep.subr.bf16.mxu0 0
    %655 = vmatpush1.bf16.msra.mxu0 0
    %656 = vmatprep.subr.bf16.mxu0 0
    %657 = vmatpush1.bf16.msra.mxu0 0
    %658 = vmatprep.subr.bf16.mxu0 0
    %659 = vmatpush1.bf16.msra.mxu0 0
    %660 = vmatprep.subr.bf16.mxu0 0
    %661 = vmatpush1.bf16.msra.mxu0 0
    %662 = vmatprep.subr.bf16.mxu0 0
    %663 = vmatpush1.bf16.msra.mxu0 0
    %664 = vmatprep.subr.bf16.mxu0 0
    %665 = vmatpush1.bf16.msra.mxu0 0
    %666 = vmatprep.subr.bf16.mxu0 0
    %667 = vmatpush1.bf16.msra.mxu0 0
    %668 = vmatprep.subr.bf16.mxu0 0
    %669 = vmatpush1.bf16.msra.mxu0 0
    %670 = vmatprep.subr.bf16.mxu0 0
    %671 = vmatpush1.bf16.msra.mxu0 0
    %672 = vmatprep.mubr.bf16.mxu0 0
    %673 = vmatmul.mubr.bf16.gmra.mrb[0].mxu0 %v617
    %v674 = vpop.f32.mrb[0].mxu0
    %v675 = vadd.f32 %v66, %v674
    %v676 = vpop.f32.mrb[0].mxu0
    %v677 = vpop.f32.mrb[0].mxu0
    %v678 = vadd.f32 %v66, %v677
    %v679 = vpop.f32.mrb[0].mxu0
    %680 = vmatprep.mubr.bf16.mxu0 0
    %681 = vmatmul.mubr.bf16.gmra.mrb[0].mxu0 %v620
    %v682 = vpop.f32.mrb[0].mxu0
    %v683 = vadd.f32 %v66, %v682
    %v684 = vpop.f32.mrb[0].mxu0
    %v685 = vpop.f32.mrb[0].mxu0
    %v686 = vadd.f32 %v66, %v685
    %v687 = vpop.f32.mrb[0].mxu0
    %688 = vmatprep.mubr.bf16.mxu0 0
    %689 = vmatmul.mubr.bf16.gmra.mrb[0].mxu0 %v623
    %v690 = vpop.f32.mrb[0].mxu0
    %v691 = vadd.f32 %v66, %v690
    %v692 = vpop.f32.mrb[0].mxu0
    %v693 = vpop.f32.mrb[0].mxu0
    %v694 = vadd.f32 %v66, %v693
    %v695 = vpop.f32.mrb[0].mxu0
    %696 = vmatprep.mubr.bf16.mxu0 0
    %697 = vmatmul.mubr.bf16.gmra.mrb[0].mxu0 %v626
    %v698 = vpop.f32.mrb[0].mxu0
    %v699 = vadd.f32 %v66, %v698
    %v700 = vpop.f32.mrb[0].mxu0
    %v701 = vpop.f32.mrb[0].mxu0
    %v702 = vadd.f32 %v66, %v701
    %v703 = vpop.f32.mrb[0].mxu0
    %704 = vmatprep.mubr.bf16.mxu0 0
    %705 = vmatmul.mubr.bf16.gmra.mrb[0].mxu0 %v629
    %v706 = vpop.f32.mrb[0].mxu0
    %v707 = vadd.f32 %v66, %v706
    %v708 = vpop.f32.mrb[0].mxu0
    %v709 = vpop.f32.mrb[0].mxu0
    %v710 = vadd.f32 %v66, %v709
    %v711 = vpop.f32.mrb[0].mxu0
    %712 = vmatprep.mubr.bf16.mxu0 0
    %713 = vmatmul.mubr.bf16.gmra.mrb[0].mxu0 %v632
    %v714 = vpop.f32.mrb[0].mxu0
    %v715 = vadd.f32 %v66, %v714
    %v716 = vpop.f32.mrb[0].mxu0
    %v717 = vpop.f32.mrb[0].mxu0
    %v718 = vadd.f32 %v66, %v717
    %v719 = vpop.f32.mrb[0].mxu0
    %720 = vmatprep.mubr.bf16.mxu0 0
    %721 = vmatmul.mubr.bf16.gmra.mrb[0].mxu0 %v635
    %v722 = vpop.f32.mrb[0].mxu0
    %v723 = vadd.f32 %v66, %v722
    %v724 = vpop.f32.mrb[0].mxu0
    %v725 = vpop.f32.mrb[0].mxu0
    %v726 = vadd.f32 %v66, %v725
    %v727 = vpop.f32.mrb[0].mxu0
    %728 = vmatprep.mubr.bf16.mxu0 0
    %729 = vmatmul.mubr.bf16.gmra.mrb[0].mxu0 %v638
    %v730 = vpop.f32.mrb[0].mxu0
    %v731 = vadd.f32 %v66, %v730
    %v732 = vpop.f32.mrb[0].mxu0
    %v733 = vpop.f32.mrb[0].mxu0
    %v734 = vadd.f32 %v66, %v733
    %v735 = vpop.f32.mrb[0].mxu0
    %736 = vdwg.mxu0
    %v737 = vmax.f32 %v675, 0.0
    %v738 = vmax.f32 %v678, 0.0
    %v739 = vmax.f32 %v683, 0.0
    %v740 = vmax.f32 %v686, 0.0
    %v741 = vmax.f32 %v691, 0.0
    %v742 = vmax.f32 %v694, 0.0
    %v743 = vmax.f32 %v699, 0.0
    %v744 = vmax.f32 %v702, 0.0
    %v745 = vmax.f32 %v707, 0.0
    %v746 = vmax.f32 %v710, 0.0
    %v747 = vmax.f32 %v715, 0.0
    %v748 = vmax.f32 %v718, 0.0
    %v749 = vmax.f32 %v723, 0.0
    %v750 = vmax.f32 %v726, 0.0
    %v751 = vmax.f32 %v731, 0.0
    %v752 = vmax.f32 %v734, 0.0
    %v753 = vpack.c.bf16 %v738, %v737
    %v754 = vpack.c.bf16 %v740, %v739
    %v755 = vpack.c.bf16 %v742, %v741
    %v756 = vpack.c.bf16 %v744, %v743
    %v757 = vpack.c.bf16 %v746, %v745
    %v758 = vpack.c.bf16 %v748, %v747
    %v759 = vpack.c.bf16 %v750, %v749
    %v760 = vpack.c.bf16 %v752, %v751
    %761 = vst [vmem:[#allocation2 + $0x80] sm:$0xff] %v753
    %762 = vst [vmem:[#allocation2 + $0x88] sm:$0xff] %v754
    %763 = vst [vmem:[#allocation2 + $0x90] sm:$0xff] %v755
    %764 = vst [vmem:[#allocation2 + $0x98] sm:$0xff] %v756
    %765 = vst [vmem:[#allocation2 + $0xa0] sm:$0xff] %v757
    %766 = vst [vmem:[#allocation2 + $0xa8] sm:$0xff] %v758
    %767 = vst [vmem:[#allocation2 + $0xb0] sm:$0xff] %v759
    %768 = vst [vmem:[#allocation2 + $0xb8] sm:$0xff] %v760
    %v769 = vld [vmem:[%s527 + $0x40] sm:$0xf]
    %v770 = vld [vmem:[%s527 + $0x44] sm:$0xf]
    %v771 = vld [vmem:[%s527 + $0x48] sm:$0xf]
    %v772 = vld [vmem:[%s527 + $0x4c] sm:$0xf]
    %v773 = vld [vmem:[%s527 + $0x50] sm:$0xf]
    %v774 = vld [vmem:[%s527 + $0x54] sm:$0xf]
    %v775 = vld [vmem:[%s527 + $0x58] sm:$0xf]
    %v776 = vld [vmem:[%s527 + $0x5c] sm:$0xf]
    %v777 = vld [vmem:[%s527 + $0x60] sm:$0xf]
    %v778 = vld [vmem:[%s527 + $0x64] sm:$0xf]
    %v779 = vld [vmem:[%s527 + $0x68] sm:$0xf]
    %v780 = vld [vmem:[%s527 + $0x6c] sm:$0xf]
    %v781 = vld [vmem:[%s527 + $0x70] sm:$0xf]
    %v782 = vld [vmem:[%s527 + $0x74] sm:$0xf]
    %v783 = vld [vmem:[%s527 + $0x78] sm:$0xf]
    %v784 = vld [vmem:[%s527 + $0x7c] sm:$0xf]
    %v785 = vld [vmem:[%s1] sm:$0xf]
    %v786 = vld [vmem:[%s1 + $0x4] sm:$0xf]
    %v787 = vld [vmem:[%s1 + $0x8] sm:$0xf]
    %v788 = vld [vmem:[%s1 + $0xc] sm:$0xf]
    %v789 = vld [vmem:[%s1 + $0x10] sm:$0xf]
    %v790 = vld [vmem:[%s1 + $0x14] sm:$0xf]
    %v791 = vld [vmem:[%s1 + $0x18] sm:$0xf]
    %v792 = vld [vmem:[%s1 + $0x1c] sm:$0xf]
    %v809 = vunpack.c.l.b16 %v769
    %v810 = vunpack.c.l.b16 %v770
    %v811 = vunpack.c.l.b16 %v771
    %v812 = vunpack.c.l.b16 %v772
    %v813 = vunpack.c.l.b16 %v773
    %v814 = vunpack.c.l.b16 %v774
    %v815 = vunpack.c.l.b16 %v775
    %v816 = vunpack.c.l.b16 %v776
    %v817 = vunpack.c.l.b16 %v777
    %v818 = vunpack.c.l.b16 %v778
    %v819 = vunpack.c.l.b16 %v779
    %v820 = vunpack.c.l.b16 %v780
    %v821 = vunpack.c.l.b16 %v781
    %v822 = vunpack.c.l.b16 %v782
    %v823 = vunpack.c.l.b16 %v783
    %v824 = vunpack.c.l.b16 %v784
    %v825 = vpack.c.b16 %v810, %v809
    %v826 = vpack.c.b16 %v812, %v811
    %v827 = vpack.c.b16 %v814, %v813
    %v828 = vpack.c.b16 %v816, %v815
    %v829 = vpack.c.b16 %v818, %v817
    %v830 = vpack.c.b16 %v820, %v819
    %v831 = vpack.c.b16 %v822, %v821
    %v832 = vpack.c.b16 %v824, %v823
    %v841 = vunpack.c.l.b16 %v785
    %v842 = vunpack.c.l.b16 %v786
    %v843 = vunpack.c.l.b16 %v787
    %v844 = vunpack.c.l.b16 %v788
    %v845 = vunpack.c.l.b16 %v789
    %v846 = vunpack.c.l.b16 %v790
    %v847 = vunpack.c.l.b16 %v791
    %v848 = vunpack.c.l.b16 %v792
    %v849 = vpack.c.b16 %v842, %v841
    %v850 = vpack.c.b16 %v844, %v843
    %v851 = vpack.c.b16 %v846, %v845
    %v852 = vpack.c.b16 %v848, %v847
    %v858 = vsel %vm132, %v825, 0
    %v861 = vsel %vm132, %v826, 0
    %v864 = vsel %vm132, %v827, 0
    %v867 = vsel %vm132, %v828, 0
    %v870 = vsel %vm132, %v829, 0
    %v873 = vsel %vm132, %v830, 0
    %v876 = vsel %vm132, %v831, 0
    %v879 = vsel %vm132, %v832, 0
    %881 = vmatprep.subr.bf16.mxu0 0
    %882 = vmatpush1.bf16.msra.mxu0 %v849
    %883 = vmatprep.subr.bf16.mxu0 0
    %884 = vmatpush1.bf16.msra.mxu0 %v850
    %885 = vmatprep.subr.bf16.mxu0 0
    %886 = vmatpush1.bf16.msra.mxu0 %v851
    %887 = vmatprep.subr.bf16.mxu0 0
    %888 = vmatpush1.bf16.msra.mxu0 %v852
    %889 = vmatprep.subr.bf16.mxu0 0
    %890 = vmatpush1.bf16.msra.mxu0 0
    %891 = vmatprep.subr.bf16.mxu0 0
    %892 = vmatpush1.bf16.msra.mxu0 0
    %893 = vmatprep.subr.bf16.mxu0 0
    %894 = vmatpush1.bf16.msra.mxu0 0
    %895 = vmatprep.subr.bf16.mxu0 0
    %896 = vmatpush1.bf16.msra.mxu0 0
    %897 = vmatprep.subr.bf16.mxu0 0
    %898 = vmatpush1.bf16.msra.mxu0 0
    %899 = vmatprep.subr.bf16.mxu0 0
    %900 = vmatpush1.bf16.msra.mxu0 0
    %901 = vmatprep.subr.bf16.mxu0 0
    %902 = vmatpush1.bf16.msra.mxu0 0
    %903 = vmatprep.subr.bf16.mxu0 0
    %904 = vmatpush1.bf16.msra.mxu0 0
    %905 = vmatprep.subr.bf16.mxu0 0
    %906 = vmatpush1.bf16.msra.mxu0 0
    %907 = vmatprep.subr.bf16.mxu0 0
    %908 = vmatpush1.bf16.msra.mxu0 0
    %909 = vmatprep.subr.bf16.mxu0 0
    %910 = vmatpush1.bf16.msra.mxu0 0
    %911 = vmatprep.subr.bf16.mxu0 0
    %912 = vmatpush1.bf16.msra.mxu0 0
    %913 = vmatprep.mubr.bf16.mxu0 0
    %914 = vmatmul.mubr.bf16.gmra.mrb[0].mxu0 %v858
    %v915 = vpop.f32.mrb[0].mxu0
    %v916 = vadd.f32 %v66, %v915
    %v917 = vpop.f32.mrb[0].mxu0
    %v918 = vpop.f32.mrb[0].mxu0
    %v919 = vadd.f32 %v66, %v918
    %v920 = vpop.f32.mrb[0].mxu0
    %921 = vmatprep.mubr.bf16.mxu0 0
    %922 = vmatmul.mubr.bf16.gmra.mrb[0].mxu0 %v861
    %v923 = vpop.f32.mrb[0].mxu0
    %v924 = vadd.f32 %v66, %v923
    %v925 = vpop.f32.mrb[0].mxu0
    %v926 = vpop.f32.mrb[0].mxu0
    %v927 = vadd.f32 %v66, %v926
    %v928 = vpop.f32.mrb[0].mxu0
    %929 = vmatprep.mubr.bf16.mxu0 0
    %930 = vmatmul.mubr.bf16.gmra.mrb[0].mxu0 %v864
    %v931 = vpop.f32.mrb[0].mxu0
    %v932 = vadd.f32 %v66, %v931
    %v933 = vpop.f32.mrb[0].mxu0
    %v934 = vpop.f32.mrb[0].mxu0
    %v935 = vadd.f32 %v66, %v934
    %v936 = vpop.f32.mrb[0].mxu0
    %937 = vmatprep.mubr.bf16.mxu0 0
    %938 = vmatmul.mubr.bf16.gmra.mrb[0].mxu0 %v867
    %v939 = vpop.f32.mrb[0].mxu0
    %v940 = vadd.f32 %v66, %v939
    %v941 = vpop.f32.mrb[0].mxu0
    %v942 = vpop.f32.mrb[0].mxu0
    %v943 = vadd.f32 %v66, %v942
    %v944 = vpop.f32.mrb[0].mxu0
    %945 = vmatprep.mubr.bf16.mxu0 0
    %946 = vmatmul.mubr.bf16.gmra.mrb[0].mxu0 %v870
    %v947 = vpop.f32.mrb[0].mxu0
    %v948 = vadd.f32 %v66, %v947
    %v949 = vpop.f32.mrb[0].mxu0
    %v950 = vpop.f32.mrb[0].mxu0
    %v951 = vadd.f32 %v66, %v950
    %v952 = vpop.f32.mrb[0].mxu0
    %953 = vmatprep.mubr.bf16.mxu0 0
    %954 = vmatmul.mubr.bf16.gmra.mrb[0].mxu0 %v873
    %v955 = vpop.f32.mrb[0].mxu0
    %v956 = vadd.f32 %v66, %v955
    %v957 = vpop.f32.mrb[0].mxu0
    %v958 = vpop.f32.mrb[0].mxu0
    %v959 = vadd.f32 %v66, %v958
    %v960 = vpop.f32.mrb[0].mxu0
    %961 = vmatprep.mubr.bf16.mxu0 0
    %962 = vmatmul.mubr.bf16.gmra.mrb[0].mxu0 %v876
    %v963 = vpop.f32.mrb[0].mxu0
    %v964 = vadd.f32 %v66, %v963
    %v965 = vpop.f32.mrb[0].mxu0
    %v966 = vpop.f32.mrb[0].mxu0
    %v967 = vadd.f32 %v66, %v966
    %v968 = vpop.f32.mrb[0].mxu0
    %969 = vmatprep.mubr.bf16.mxu0 0
    %970 = vmatmul.mubr.bf16.gmra.mrb[0].mxu0 %v879
    %v971 = vpop.f32.mrb[0].mxu0
    %v972 = vadd.f32 %v66, %v971
    %v973 = vpop.f32.mrb[0].mxu0
    %v974 = vpop.f32.mrb[0].mxu0
    %v975 = vadd.f32 %v66, %v974
    %v976 = vpop.f32.mrb[0].mxu0
    %977 = vdwg.mxu0
    %v978 = vmax.f32 %v916, 0.0
    %v979 = vmax.f32 %v919, 0.0
    %v980 = vmax.f32 %v924, 0.0
    %v981 = vmax.f32 %v927, 0.0
    %v982 = vmax.f32 %v932, 0.0
    %v983 = vmax.f32 %v935, 0.0
    %v984 = vmax.f32 %v940, 0.0
    %v985 = vmax.f32 %v943, 0.0
    %v986 = vmax.f32 %v948, 0.0
    %v987 = vmax.f32 %v951, 0.0
    %v988 = vmax.f32 %v956, 0.0
    %v989 = vmax.f32 %v959, 0.0
    %v990 = vmax.f32 %v964, 0.0
    %v991 = vmax.f32 %v967, 0.0
    %v992 = vmax.f32 %v972, 0.0
    %v993 = vmax.f32 %v975, 0.0
    %v994 = vpack.c.bf16 %v979, %v978
    %v995 = vpack.c.bf16 %v981, %v980
    %v996 = vpack.c.bf16 %v983, %v982
    %v997 = vpack.c.bf16 %v985, %v984
    %v998 = vpack.c.bf16 %v987, %v986
    %v999 = vpack.c.bf16 %v989, %v988
    %v1000 = vpack.c.bf16 %v991, %v990
    %v1001 = vpack.c.bf16 %v993, %v992
    %1002 = vst [vmem:[#allocation2 + $0xc0] sm:$0xff] %v994
    %1003 = vst [vmem:[#allocation2 + $0xc8] sm:$0xff] %v995
    %1004 = vst [vmem:[#allocation2 + $0xd0] sm:$0xff] %v996
    %1005 = vst [vmem:[#allocation2 + $0xd8] sm:$0xff] %v997
    %1006 = vst [vmem:[#allocation2 + $0xe0] sm:$0xff] %v998
    %1007 = vst [vmem:[#allocation2 + $0xe8] sm:$0xff] %v999
    %1008 = vst [vmem:[#allocation2 + $0xf0] sm:$0xff] %v1000
    %1009 = vst [vmem:[#allocation2 + $0xf8] sm:$0xff] %v1001
    %1010 = vst [vmem:[#allocation2 + $0x100] sm:$0xff] 0
    %v1011 = vld [vmem:[#allocation2] sm:$0xff]
    %v1012 = vld [vmem:[#allocation2 + $0x8] sm:$0xff]
    %v1013 = vld [vmem:[#allocation2 + $0x10] sm:$0xff]
    %v1014 = vld [vmem:[#allocation2 + $0x18] sm:$0xff]
    %v1015 = vld [vmem:[#allocation2 + $0x20] sm:$0xff]
    %v1016 = vld [vmem:[#allocation2 + $0x28] sm:$0xff]
    %v1017 = vld [vmem:[#allocation2 + $0x30] sm:$0xff]
    %v1018 = vld [vmem:[#allocation2 + $0x38] sm:$0xff]
    %v1019 = vld [vmem:[#allocation4] sm:$0xf]
    %v1020 = vld [vmem:[#allocation4 + $0x4] sm:$0xf]
    %v1021 = vld [vmem:[#allocation4 + $0x8] sm:$0xf]
    %v1022 = vld [vmem:[#allocation4 + $0xc] sm:$0xf]
    %v1023 = vld [vmem:[#allocation4 + $0x10] sm:$0xf]
    %v1024 = vld [vmem:[#allocation4 + $0x14] sm:$0xf]
    %v1025 = vld [vmem:[#allocation4 + $0x18] sm:$0xf]
    %v1026 = vld [vmem:[#allocation4 + $0x1c] sm:$0xf]
    %v1027 = vld [vmem:[#allocation4 + $0x20] sm:$0xf]
    %v1028 = vld [vmem:[#allocation4 + $0x24] sm:$0xf]
    %v1029 = vld [vmem:[#allocation4 + $0x28] sm:$0xf]
    %v1030 = vld [vmem:[#allocation4 + $0x2c] sm:$0xf]
    %v1031 = vld [vmem:[#allocation4 + $0x30] sm:$0xf]
    %v1032 = vld [vmem:[#allocation4 + $0x34] sm:$0xf]
    %v1033 = vld [vmem:[#allocation4 + $0x38] sm:$0xf]
    %v1034 = vld [vmem:[#allocation4 + $0x3c] sm:$0xf]
    %v1035 = vld [vmem:[#allocation2 + $0x40] sm:$0x1]
    %s1036 = scalar_lea.vmem [#allocation4], 64
    %v1037 = vld [vmem:[%s1036] sm:$0xf]
    %v1038 = vld [vmem:[%s1036 + $0x4] sm:$0xf]
    %v1039 = vld [vmem:[%s1036 + $0x8] sm:$0xf]
    %v1040 = vld [vmem:[%s1036 + $0xc] sm:$0xf]
    %v1041 = vld [vmem:[%s1036 + $0x10] sm:$0xf]
    %v1042 = vld [vmem:[%s1036 + $0x14] sm:$0xf]
    %v1043 = vld [vmem:[%s1036 + $0x18] sm:$0xf]
    %v1044 = vld [vmem:[%s1036 + $0x1c] sm:$0xf]
    %v1045 = vld [vmem:[%s1036 + $0x20] sm:$0xf]
    %v1046 = vld [vmem:[%s1036 + $0x24] sm:$0xf]
    %v1047 = vld [vmem:[%s1036 + $0x28] sm:$0xf]
    %v1048 = vld [vmem:[%s1036 + $0x2c] sm:$0xf]
    %v1049 = vld [vmem:[%s1036 + $0x30] sm:$0xf]
    %v1050 = vld [vmem:[%s1036 + $0x34] sm:$0xf]
    %v1051 = vld [vmem:[%s1036 + $0x38] sm:$0xf]
    %v1052 = vld [vmem:[%s1036 + $0x3c] sm:$0xf]
    %vm1053 = vsmask.f32 7424
    %v1055 = vshrl.u32 %v1011, 16
    %v1057 = vshll.u32 %v1011, 16
    %v1059 = vrot.slane %v1057, 1
    %v1060 = vor.u32 %v1055, %v1059
    %v1062 = vshll.u32 %v1012, 16
    %v1064 = vrot.slane %v1062, 1
    %v1065 = vsel %vm1053, %v1060, %v1064
    %v1066 = vshrl.u32 %v1012, 16
    %v1068 = vor.u32 %v1066, %v1064
    %v1070 = vshll.u32 %v1013, 16
    %v1072 = vrot.slane %v1070, 1
    %v1073 = vsel %vm1053, %v1068, %v1072
    %v1074 = vshrl.u32 %v1013, 16
    %v1076 = vor.u32 %v1074, %v1072
    %v1078 = vshll.u32 %v1014, 16
    %v1080 = vrot.slane %v1078, 1
    %v1081 = vsel %vm1053, %v1076, %v1080
    %v1082 = vshrl.u32 %v1014, 16
    %v1084 = vor.u32 %v1082, %v1080
    %v1086 = vshll.u32 %v1015, 16
    %v1088 = vrot.slane %v1086, 1
    %v1089 = vsel %vm1053, %v1084, %v1088
    %v1090 = vshrl.u32 %v1015, 16
    %v1092 = vor.u32 %v1090, %v1088
    %v1094 = vshll.u32 %v1016, 16
    %v1096 = vrot.slane %v1094, 1
    %v1097 = vsel %vm1053, %v1092, %v1096
    %v1098 = vshrl.u32 %v1016, 16
    %v1100 = vor.u32 %v1098, %v1096
    %v1102 = vshll.u32 %v1017, 16
    %v1104 = vrot.slane %v1102, 1
    %v1105 = vsel %vm1053, %v1100, %v1104
    %v1106 = vshrl.u32 %v1017, 16
    %v1108 = vor.u32 %v1106, %v1104
    %v1110 = vshll.u32 %v1018, 16
    %v1112 = vrot.slane %v1110, 1
    %v1113 = vsel %vm1053, %v1108, %v1112
    %v1114 = vshrl.u32 %v1018, 16
    %v1116 = vor.u32 %v1114, %v1112
    %v1118 = vshll.u32 %v1035, 16
    %v1120 = vrot.slane %v1118, 1
    %v1121 = vsel %vm1053, %v1116, %v1120
    %v1146 = vunpack.c.l.b16 %v1037
    %v1147 = vunpack.c.l.b16 %v1038
    %v1148 = vunpack.c.l.b16 %v1039
    %v1149 = vunpack.c.l.b16 %v1040
    %v1150 = vunpack.c.l.b16 %v1041
    %v1151 = vunpack.c.l.b16 %v1042
    %v1152 = vunpack.c.l.b16 %v1043
    %v1153 = vunpack.c.l.b16 %v1044
    %v1154 = vunpack.c.l.b16 %v1045
    %v1155 = vunpack.c.l.b16 %v1046
    %v1156 = vunpack.c.l.b16 %v1047
    %v1157 = vunpack.c.l.b16 %v1048
    %v1158 = vunpack.c.l.b16 %v1049
    %v1159 = vunpack.c.l.b16 %v1050
    %v1160 = vunpack.c.l.b16 %v1051
    %v1161 = vunpack.c.l.b16 %v1052
    %v1162 = vpack.c.b16 %v1147, %v1146
    %v1163 = vpack.c.b16 %v1149, %v1148
    %v1164 = vpack.c.b16 %v1151, %v1150
    %v1165 = vpack.c.b16 %v1153, %v1152
    %v1166 = vpack.c.b16 %v1155, %v1154
    %v1167 = vpack.c.b16 %v1157, %v1156
    %v1168 = vpack.c.b16 %v1159, %v1158
    %v1169 = vpack.c.b16 %v1161, %v1160
    %1178 = vmatprep.subr.bf16.mxu0 0
    %1179 = vmatpush1.bf16.msra.mxu0 %v1162
    %1180 = vmatprep.subr.bf16.mxu0 0
    %1181 = vmatpush1.bf16.msra.mxu0 %v1163
    %1182 = vmatprep.subr.bf16.mxu0 0
    %1183 = vmatpush1.bf16.msra.mxu0 %v1164
    %1184 = vmatprep.subr.bf16.mxu0 0
    %1185 = vmatpush1.bf16.msra.mxu0 %v1165
    %1186 = vmatprep.subr.bf16.mxu0 0
    %1187 = vmatpush1.bf16.msra.mxu0 %v1166
    %1188 = vmatprep.subr.bf16.mxu0 0
    %1189 = vmatpush1.bf16.msra.mxu0 %v1167
    %1190 = vmatprep.subr.bf16.mxu0 0
    %1191 = vmatpush1.bf16.msra.mxu0 %v1168
    %1192 = vmatprep.subr.bf16.mxu0 0
    %1193 = vmatpush1.bf16.msra.mxu0 %v1169
    %1194 = vmatprep.subr.bf16.mxu0 0
    %1195 = vmatpush1.bf16.msra.mxu0 0
    %1196 = vmatprep.subr.bf16.mxu0 0
    %1197 = vmatpush1.bf16.msra.mxu0 0
    %1198 = vmatprep.subr.bf16.mxu0 0
    %1199 = vmatpush1.bf16.msra.mxu0 0
    %1200 = vmatprep.subr.bf16.mxu0 0
    %1201 = vmatpush1.bf16.msra.mxu0 0
    %1202 = vmatprep.subr.bf16.mxu0 0
    %1203 = vmatpush1.bf16.msra.mxu0 0
    %1204 = vmatprep.subr.bf16.mxu0 0
    %1205 = vmatpush1.bf16.msra.mxu0 0
    %1206 = vmatprep.subr.bf16.mxu0 0
    %1207 = vmatpush1.bf16.msra.mxu0 0
    %1208 = vmatprep.subr.bf16.mxu0 0
    %1209 = vmatpush1.bf16.msra.mxu0 0
    %1210 = vmatprep.mubr.bf16.mxu0 0
    %1211 = vmatmul.mubr.bf16.gmra.mrb[0].mxu0 %v1065
    %v1212 = vpop.f32.mrb[0].mxu0
    %v1213 = vadd.f32 0.0, %v1212
    %v1214 = vpop.f32.mrb[0].mxu0
    %v1215 = vpop.f32.mrb[0].mxu0
    %v1216 = vadd.f32 0.0, %v1215
    %v1217 = vpop.f32.mrb[0].mxu0
    %1218 = vmatprep.mubr.bf16.mxu0 0
    %1219 = vmatmul.mubr.bf16.gmra.mrb[0].mxu0 %v1073
    %v1220 = vpop.f32.mrb[0].mxu0
    %v1221 = vadd.f32 0.0, %v1220
    %v1222 = vpop.f32.mrb[0].mxu0
    %v1223 = vpop.f32.mrb[0].mxu0
    %v1224 = vadd.f32 0.0, %v1223
    %v1225 = vpop.f32.mrb[0].mxu0
    %1226 = vmatprep.mubr.bf16.mxu0 0
    %1227 = vmatmul.mubr.bf16.gmra.mrb[0].mxu0 %v1081
    %v1228 = vpop.f32.mrb[0].mxu0
    %v1229 = vadd.f32 0.0, %v1228
    %v1230 = vpop.f32.mrb[0].mxu0
    %v1231 = vpop.f32.mrb[0].mxu0
    %v1232 = vadd.f32 0.0, %v1231
    %v1233 = vpop.f32.mrb[0].mxu0
    %1234 = vmatprep.mubr.bf16.mxu0 0
    %1235 = vmatmul.mubr.bf16.gmra.mrb[0].mxu0 %v1089
    %v1236 = vpop.f32.mrb[0].mxu0
    %v1237 = vadd.f32 0.0, %v1236
    %v1238 = vpop.f32.mrb[0].mxu0
    %v1239 = vpop.f32.mrb[0].mxu0
    %v1240 = vadd.f32 0.0, %v1239
    %v1241 = vpop.f32.mrb[0].mxu0
    %1242 = vmatprep.mubr.bf16.mxu0 0
    %1243 = vmatmul.mubr.bf16.gmra.mrb[0].mxu0 %v1097
    %v1244 = vpop.f32.mrb[0].mxu0
    %v1245 = vadd.f32 0.0, %v1244
    %v1246 = vpop.f32.mrb[0].mxu0
    %v1247 = vpop.f32.mrb[0].mxu0
    %v1248 = vadd.f32 0.0, %v1247
    %v1249 = vpop.f32.mrb[0].mxu0
    %1250 = vmatprep.mubr.bf16.mxu0 0
    %1251 = vmatmul.mubr.bf16.gmra.mrb[0].mxu0 %v1105
    %v1252 = vpop.f32.mrb[0].mxu0
    %v1253 = vadd.f32 0.0, %v1252
    %v1254 = vpop.f32.mrb[0].mxu0
    %v1255 = vpop.f32.mrb[0].mxu0
    %v1256 = vadd.f32 0.0, %v1255
    %v1257 = vpop.f32.mrb[0].mxu0
    %1258 = vmatprep.mubr.bf16.mxu0 0
    %1259 = vmatmul.mubr.bf16.gmra.mrb[0].mxu0 %v1113
    %v1260 = vpop.f32.mrb[0].mxu0
    %v1261 = vadd.f32 0.0, %v1260
    %v1262 = vpop.f32.mrb[0].mxu0
    %v1263 = vpop.f32.mrb[0].mxu0
    %v1264 = vadd.f32 0.0, %v1263
    %v1265 = vpop.f32.mrb[0].mxu0
    %1266 = vmatprep.mubr.bf16.mxu0 0
    %1267 = vmatmul.mubr.bf16.gmra.mrb[0].mxu0 %v1121
    %v1268 = vpop.f32.mrb[0].mxu0
    %v1269 = vadd.f32 0.0, %v1268
    %v1270 = vpop.f32.mrb[0].mxu0
    %v1271 = vpop.f32.mrb[0].mxu0
    %v1272 = vadd.f32 0.0, %v1271
    %v1273 = vpop.f32.mrb[0].mxu0
    %1274 = vdwg.mxu0
    %v1291 = vunpack.c.l.b16 %v1019
    %v1292 = vunpack.c.l.b16 %v1020
    %v1293 = vunpack.c.l.b16 %v1021
    %v1294 = vunpack.c.l.b16 %v1022
    %v1295 = vunpack.c.l.b16 %v1023
    %v1296 = vunpack.c.l.b16 %v1024
    %v1297 = vunpack.c.l.b16 %v1025
    %v1298 = vunpack.c.l.b16 %v1026
    %v1299 = vunpack.c.l.b16 %v1027
    %v1300 = vunpack.c.l.b16 %v1028
    %v1301 = vunpack.c.l.b16 %v1029
    %v1302 = vunpack.c.l.b16 %v1030
    %v1303 = vunpack.c.l.b16 %v1031
    %v1304 = vunpack.c.l.b16 %v1032
    %v1305 = vunpack.c.l.b16 %v1033
    %v1306 = vunpack.c.l.b16 %v1034
    %v1307 = vpack.c.b16 %v1292, %v1291
    %v1308 = vpack.c.b16 %v1294, %v1293
    %v1309 = vpack.c.b16 %v1296, %v1295
    %v1310 = vpack.c.b16 %v1298, %v1297
    %v1311 = vpack.c.b16 %v1300, %v1299
    %v1312 = vpack.c.b16 %v1302, %v1301
    %v1313 = vpack.c.b16 %v1304, %v1303
    %v1314 = vpack.c.b16 %v1306, %v1305
    %1323 = vmatprep.subr.bf16.mxu0 0
    %1324 = vmatpush1.bf16.msra.mxu0 %v1307
    %1325 = vmatprep.subr.bf16.mxu0 0
    %1326 = vmatpush1.bf16.msra.mxu0 %v1308
    %1327 = vmatprep.subr.bf16.mxu0 0
    %1328 = vmatpush1.bf16.msra.mxu0 %v1309
    %1329 = vmatprep.subr.bf16.mxu0 0
    %1330 = vmatpush1.bf16.msra.mxu0 %v1310
    %1331 = vmatprep.subr.bf16.mxu0 0
    %1332 = vmatpush1.bf16.msra.mxu0 %v1311
    %1333 = vmatprep.subr.bf16.mxu0 0
    %1334 = vmatpush1.bf16.msra.mxu0 %v1312
    %1335 = vmatprep.subr.bf16.mxu0 0
    %1336 = vmatpush1.bf16.msra.mxu0 %v1313
    %1337 = vmatprep.subr.bf16.mxu0 0
    %1338 = vmatpush1.bf16.msra.mxu0 %v1314
    %1339 = vmatprep.subr.bf16.mxu0 0
    %1340 = vmatpush1.bf16.msra.mxu0 0
    %1341 = vmatprep.subr.bf16.mxu0 0
    %1342 = vmatpush1.bf16.msra.mxu0 0
    %1343 = vmatprep.subr.bf16.mxu0 0
    %1344 = vmatpush1.bf16.msra.mxu0 0
    %1345 = vmatprep.subr.bf16.mxu0 0
    %1346 = vmatpush1.bf16.msra.mxu0 0
    %1347 = vmatprep.subr.bf16.mxu0 0
    %1348 = vmatpush1.bf16.msra.mxu0 0
    %1349 = vmatprep.subr.bf16.mxu0 0
    %1350 = vmatpush1.bf16.msra.mxu0 0
    %1351 = vmatprep.subr.bf16.mxu0 0
    %1352 = vmatpush1.bf16.msra.mxu0 0
    %1353 = vmatprep.subr.bf16.mxu0 0
    %1354 = vmatpush1.bf16.msra.mxu0 0
    %1355 = vmatprep.mubr.bf16.mxu0 0
    %1356 = vmatmul.mubr.bf16.gmra.mrb[0].mxu0 %v1011
    %v1357 = vpop.f32.mrb[0].mxu0
    %v1358 = vadd.f32 %v1213, %v1357
    %v1359 = vpop.f32.mrb[0].mxu0
    %v1360 = vpop.f32.mrb[0].mxu0
    %v1361 = vadd.f32 %v1216, %v1360
    %v1362 = vpop.f32.mrb[0].mxu0
    %1363 = vmatprep.mubr.bf16.mxu0 0
    %1364 = vmatmul.mubr.bf16.gmra.mrb[0].mxu0 %v1012
    %v1365 = vpop.f32.mrb[0].mxu0
    %v1366 = vadd.f32 %v1221, %v1365
    %v1367 = vpop.f32.mrb[0].mxu0
    %v1368 = vpop.f32.mrb[0].mxu0
    %v1369 = vadd.f32 %v1224, %v1368
    %v1370 = vpop.f32.mrb[0].mxu0
    %1371 = vmatprep.mubr.bf16.mxu0 0
    %1372 = vmatmul.mubr.bf16.gmra.mrb[0].mxu0 %v1013
    %v1373 = vpop.f32.mrb[0].mxu0
    %v1374 = vadd.f32 %v1229, %v1373
    %v1375 = vpop.f32.mrb[0].mxu0
    %v1376 = vpop.f32.mrb[0].mxu0
    %v1377 = vadd.f32 %v1232, %v1376
    %v1378 = vpop.f32.mrb[0].mxu0
    %1379 = vmatprep.mubr.bf16.mxu0 0
    %1380 = vmatmul.mubr.bf16.gmra.mrb[0].mxu0 %v1014
    %v1381 = vpop.f32.mrb[0].mxu0
    %v1382 = vadd.f32 %v1237, %v1381
    %v1383 = vpop.f32.mrb[0].mxu0
    %v1384 = vpop.f32.mrb[0].mxu0
    %v1385 = vadd.f32 %v1240, %v1384
    %v1386 = vpop.f32.mrb[0].mxu0
    %1387 = vmatprep.mubr.bf16.mxu0 0
    %1388 = vmatmul.mubr.bf16.gmra.mrb[0].mxu0 %v1015
    %v1389 = vpop.f32.mrb[0].mxu0
    %v1390 = vadd.f32 %v1245, %v1389
    %v1391 = vpop.f32.mrb[0].mxu0
    %v1392 = vpop.f32.mrb[0].mxu0
    %v1393 = vadd.f32 %v1248, %v1392
    %v1394 = vpop.f32.mrb[0].mxu0
    %1395 = vmatprep.mubr.bf16.mxu0 0
    %1396 = vmatmul.mubr.bf16.gmra.mrb[0].mxu0 %v1016
    %v1397 = vpop.f32.mrb[0].mxu0
    %v1398 = vadd.f32 %v1253, %v1397
    %v1399 = vpop.f32.mrb[0].mxu0
    %v1400 = vpop.f32.mrb[0].mxu0
    %v1401 = vadd.f32 %v1256, %v1400
    %v1402 = vpop.f32.mrb[0].mxu0
    %1403 = vmatprep.mubr.bf16.mxu0 0
    %1404 = vmatmul.mubr.bf16.gmra.mrb[0].mxu0 %v1017
    %v1405 = vpop.f32.mrb[0].mxu0
    %v1406 = vadd.f32 %v1261, %v1405
    %v1407 = vpop.f32.mrb[0].mxu0
    %v1408 = vpop.f32.mrb[0].mxu0
    %v1409 = vadd.f32 %v1264, %v1408
    %v1410 = vpop.f32.mrb[0].mxu0
    %1411 = vmatprep.mubr.bf16.mxu0 0
    %1412 = vmatmul.mubr.bf16.gmra.mrb[0].mxu0 %v1018
    %v1413 = vpop.f32.mrb[0].mxu0
    %v1414 = vadd.f32 %v1269, %v1413
    %v1415 = vpop.f32.mrb[0].mxu0
    %v1416 = vpop.f32.mrb[0].mxu0
    %v1417 = vadd.f32 %v1272, %v1416
    %v1418 = vpop.f32.mrb[0].mxu0
    %1419 = vdwg.mxu0
    %v1420 = vld [vmem:[#allocation2] sm:$0xfe]
    %s1421 = scalar_lea.vmem [#allocation4], 128
    %v1422 = vld [vmem:[%s1421] sm:$0xf]
    %v1423 = vld [vmem:[%s1421 + $0x4] sm:$0xf]
    %v1424 = vld [vmem:[%s1421 + $0x8] sm:$0xf]
    %v1425 = vld [vmem:[%s1421 + $0xc] sm:$0xf]
    %v1426 = vld [vmem:[%s1421 + $0x10] sm:$0xf]
    %v1427 = vld [vmem:[%s1421 + $0x14] sm:$0xf]
    %v1428 = vld [vmem:[%s1421 + $0x18] sm:$0xf]
    %v1429 = vld [vmem:[%s1421 + $0x1c] sm:$0xf]
    %v1430 = vld [vmem:[%s1421 + $0x20] sm:$0xf]
    %v1431 = vld [vmem:[%s1421 + $0x24] sm:$0xf]
    %v1432 = vld [vmem:[%s1421 + $0x28] sm:$0xf]
    %v1433 = vld [vmem:[%s1421 + $0x2c] sm:$0xf]
    %v1434 = vld [vmem:[%s1421 + $0x30] sm:$0xf]
    %v1435 = vld [vmem:[%s1421 + $0x34] sm:$0xf]
    %v1436 = vld [vmem:[%s1421 + $0x38] sm:$0xf]
    %v1437 = vld [vmem:[%s1421 + $0x3c] sm:$0xf]
    %vm1447 = vcmask 1046528
    %v1448 = vrot.slane %v1420, 1
    %v1449 = vrot.slane %v1012, 1
    %v1450 = vsel %vm1447, %v1448, %v1449
    %v1451 = vrot.slane %v1013, 1
    %v1452 = vsel %vm1447, %v1449, %v1451
    %v1453 = vrot.slane %v1014, 1
    %v1454 = vsel %vm1447, %v1451, %v1453
    %v1455 = vrot.slane %v1015, 1
    %v1456 = vsel %vm1447, %v1453, %v1455
    %v1457 = vrot.slane %v1016, 1
    %v1458 = vsel %vm1447, %v1455, %v1457
    %v1459 = vrot.slane %v1017, 1
    %v1460 = vsel %vm1447, %v1457, %v1459
    %v1461 = vrot.slane %v1018, 1
    %v1462 = vsel %vm1447, %v1459, %v1461
    %v1463 = vrot.slane %v1035, 1
    %v1464 = vsel %vm1447, %v1461, %v1463
    %v1489 = vunpack.c.l.b16 %v1422
    %v1490 = vunpack.c.l.b16 %v1423
    %v1491 = vunpack.c.l.b16 %v1424
    %v1492 = vunpack.c.l.b16 %v1425
    %v1493 = vunpack.c.l.b16 %v1426
    %v1494 = vunpack.c.l.b16 %v1427
    %v1495 = vunpack.c.l.b16 %v1428
    %v1496 = vunpack.c.l.b16 %v1429
    %v1497 = vunpack.c.l.b16 %v1430
    %v1498 = vunpack.c.l.b16 %v1431
    %v1499 = vunpack.c.l.b16 %v1432
    %v1500 = vunpack.c.l.b16 %v1433
    %v1501 = vunpack.c.l.b16 %v1434
    %v1502 = vunpack.c.l.b16 %v1435
    %v1503 = vunpack.c.l.b16 %v1436
    %v1504 = vunpack.c.l.b16 %v1437
    %v1505 = vpack.c.b16 %v1490, %v1489
    %v1506 = vpack.c.b16 %v1492, %v1491
    %v1507 = vpack.c.b16 %v1494, %v1493
    %v1508 = vpack.c.b16 %v1496, %v1495
    %v1509 = vpack.c.b16 %v1498, %v1497
    %v1510 = vpack.c.b16 %v1500, %v1499
    %v1511 = vpack.c.b16 %v1502, %v1501
    %v1512 = vpack.c.b16 %v1504, %v1503
    %1521 = vmatprep.subr.bf16.mxu0 0
    %1522 = vmatpush1.bf16.msra.mxu0 %v1505
    %1523 = vmatprep.subr.bf16.mxu0 0
    %1524 = vmatpush1.bf16.msra.mxu0 %v1506
    %1525 = vmatprep.subr.bf16.mxu0 0
    %1526 = vmatpush1.bf16.msra.mxu0 %v1507
    %1527 = vmatprep.subr.bf16.mxu0 0
    %1528 = vmatpush1.bf16.msra.mxu0 %v1508
    %1529 = vmatprep.subr.bf16.mxu0 0
    %1530 = vmatpush1.bf16.msra.mxu0 %v1509
    %1531 = vmatprep.subr.bf16.mxu0 0
    %1532 = vmatpush1.bf16.msra.mxu0 %v1510
    %1533 = vmatprep.subr.bf16.mxu0 0
    %1534 = vmatpush1.bf16.msra.mxu0 %v1511
    %1535 = vmatprep.subr.bf16.mxu0 0
    %1536 = vmatpush1.bf16.msra.mxu0 %v1512
    %1537 = vmatprep.subr.bf16.mxu0 0
    %1538 = vmatpush1.bf16.msra.mxu0 0
    %1539 = vmatprep.subr.bf16.mxu0 0
    %1540 = vmatpush1.bf16.msra.mxu0 0
    %1541 = vmatprep.subr.bf16.mxu0 0
    %1542 = vmatpush1.bf16.msra.mxu0 0
    %1543 = vmatprep.subr.bf16.mxu0 0
    %1544 = vmatpush1.bf16.msra.mxu0 0
    %1545 = vmatprep.subr.bf16.mxu0 0
    %1546 = vmatpush1.bf16.msra.mxu0 0
    %1547 = vmatprep.subr.bf16.mxu0 0
    %1548 = vmatpush1.bf16.msra.mxu0 0
    %1549 = vmatprep.subr.bf16.mxu0 0
    %1550 = vmatpush1.bf16.msra.mxu0 0
    %1551 = vmatprep.subr.bf16.mxu0 0
    %1552 = vmatpush1.bf16.msra.mxu0 0
    %1553 = vmatprep.mubr.bf16.mxu0 0
    %1554 = vmatmul.mubr.bf16.gmra.mrb[0].mxu0 %v1450
    %v1555 = vpop.f32.mrb[0].mxu0
    %v1556 = vadd.f32 0.0, %v1555
    %v1557 = vpop.f32.mrb[0].mxu0
    %v1558 = vpop.f32.mrb[0].mxu0
    %v1559 = vadd.f32 0.0, %v1558
    %v1560 = vpop.f32.mrb[0].mxu0
    %1561 = vmatprep.mubr.bf16.mxu0 0
    %1562 = vmatmul.mubr.bf16.gmra.mrb[0].mxu0 %v1452
    %v1563 = vpop.f32.mrb[0].mxu0
    %v1564 = vadd.f32 0.0, %v1563
    %v1565 = vpop.f32.mrb[0].mxu0
    %v1566 = vpop.f32.mrb[0].mxu0
    %v1567 = vadd.f32 0.0, %v1566
    %v1568 = vpop.f32.mrb[0].mxu0
    %1569 = vmatprep.mubr.bf16.mxu0 0
    %1570 = vmatmul.mubr.bf16.gmra.mrb[0].mxu0 %v1454
    %v1571 = vpop.f32.mrb[0].mxu0
    %v1572 = vadd.f32 0.0, %v1571
    %v1573 = vpop.f32.mrb[0].mxu0
    %v1574 = vpop.f32.mrb[0].mxu0
    %v1575 = vadd.f32 0.0, %v1574
    %v1576 = vpop.f32.mrb[0].mxu0
    %1577 = vmatprep.mubr.bf16.mxu0 0
    %1578 = vmatmul.mubr.bf16.gmra.mrb[0].mxu0 %v1456
    %v1579 = vpop.f32.mrb[0].mxu0
    %v1580 = vadd.f32 0.0, %v1579
    %v1581 = vpop.f32.mrb[0].mxu0
    %v1582 = vpop.f32.mrb[0].mxu0
    %v1583 = vadd.f32 0.0, %v1582
    %v1584 = vpop.f32.mrb[0].mxu0
    %1585 = vmatprep.mubr.bf16.mxu0 0
    %1586 = vmatmul.mubr.bf16.gmra.mrb[0].mxu0 %v1458
    %v1587 = vpop.f32.mrb[0].mxu0
    %v1588 = vadd.f32 0.0, %v1587
    %v1589 = vpop.f32.mrb[0].mxu0
    %v1590 = vpop.f32.mrb[0].mxu0
    %v1591 = vadd.f32 0.0, %v1590
    %v1592 = vpop.f32.mrb[0].mxu0
    %1593 = vmatprep.mubr.bf16.mxu0 0
    %1594 = vmatmul.mubr.bf16.gmra.mrb[0].mxu0 %v1460
    %v1595 = vpop.f32.mrb[0].mxu0
    %v1596 = vadd.f32 0.0, %v1595
    %v1597 = vpop.f32.mrb[0].mxu0
    %v1598 = vpop.f32.mrb[0].mxu0
    %v1599 = vadd.f32 0.0, %v1598
    %v1600 = vpop.f32.mrb[0].mxu0
    %1601 = vmatprep.mubr.bf16.mxu0 0
    %1602 = vmatmul.mubr.bf16.gmra.mrb[0].mxu0 %v1462
    %v1603 = vpop.f32.mrb[0].mxu0
    %v1604 = vadd.f32 0.0, %v1603
    %v1605 = vpop.f32.mrb[0].mxu0
    %v1606 = vpop.f32.mrb[0].mxu0
    %v1607 = vadd.f32 0.0, %v1606
    %v1608 = vpop.f32.mrb[0].mxu0
    %1609 = vmatprep.mubr.bf16.mxu0 0
    %1610 = vmatmul.mubr.bf16.gmra.mrb[0].mxu0 %v1464
    %v1611 = vpop.f32.mrb[0].mxu0
    %v1612 = vadd.f32 0.0, %v1611
    %v1613 = vpop.f32.mrb[0].mxu0
    %v1614 = vpop.f32.mrb[0].mxu0
    %v1615 = vadd.f32 0.0, %v1614
    %v1616 = vpop.f32.mrb[0].mxu0
    %1617 = vdwg.mxu0
    %v1618 = vadd.f32 %v1358, %v1556
    %v1619 = vadd.f32 %v1361, %v1559
    %v1620 = vadd.f32 %v1366, %v1564
    %v1621 = vadd.f32 %v1369, %v1567
    %v1622 = vadd.f32 %v1374, %v1572
    %v1623 = vadd.f32 %v1377, %v1575
    %v1624 = vadd.f32 %v1382, %v1580
    %v1625 = vadd.f32 %v1385, %v1583
    %v1626 = vadd.f32 %v1390, %v1588
    %v1627 = vadd.f32 %v1393, %v1591
    %v1628 = vadd.f32 %v1398, %v1596
    %v1629 = vadd.f32 %v1401, %v1599
    %v1630 = vadd.f32 %v1406, %v1604
    %v1631 = vadd.f32 %v1409, %v1607
    %v1632 = vadd.f32 %v1414, %v1612
    %v1633 = vadd.f32 %v1417, %v1615
    %v1634 = vld [vmem:[#allocation2 + $0x40] sm:$0xff]
    %s1635 = scalar_lea.vmem [#allocation4], 192
    %v1636 = vld [vmem:[%s1635] sm:$0xf]
    %v1637 = vld [vmem:[%s1635 + $0x4] sm:$0xf]
    %v1638 = vld [vmem:[%s1635 + $0x8] sm:$0xf]
    %v1639 = vld [vmem:[%s1635 + $0xc] sm:$0xf]
    %v1640 = vld [vmem:[%s1635 + $0x10] sm:$0xf]
    %v1641 = vld [vmem:[%s1635 + $0x14] sm:$0xf]
    %v1642 = vld [vmem:[%s1635 + $0x18] sm:$0xf]
    %v1643 = vld [vmem:[%s1635 + $0x1c] sm:$0xf]
    %v1644 = vld [vmem:[%s1635 + $0x20] sm:$0xf]
    %v1645 = vld [vmem:[%s1635 + $0x24] sm:$0xf]
    %v1646 = vld [vmem:[%s1635 + $0x28] sm:$0xf]
    %v1647 = vld [vmem:[%s1635 + $0x2c] sm:$0xf]
    %v1648 = vld [vmem:[%s1635 + $0x30] sm:$0xf]
    %v1649 = vld [vmem:[%s1635 + $0x34] sm:$0xf]
    %v1650 = vld [vmem:[%s1635 + $0x38] sm:$0xf]
    %v1651 = vld [vmem:[%s1635 + $0x3c] sm:$0xf]
    %v1668 = vunpack.c.l.b16 %v1636
    %v1669 = vunpack.c.l.b16 %v1637
    %v1670 = vunpack.c.l.b16 %v1638
    %v1671 = vunpack.c.l.b16 %v1639
    %v1672 = vunpack.c.l.b16 %v1640
    %v1673 = vunpack.c.l.b16 %v1641
    %v1674 = vunpack.c.l.b16 %v1642
    %v1675 = vunpack.c.l.b16 %v1643
    %v1676 = vunpack.c.l.b16 %v1644
    %v1677 = vunpack.c.l.b16 %v1645
    %v1678 = vunpack.c.l.b16 %v1646
    %v1679 = vunpack.c.l.b16 %v1647
    %v1680 = vunpack.c.l.b16 %v1648
    %v1681 = vunpack.c.l.b16 %v1649
    %v1682 = vunpack.c.l.b16 %v1650
    %v1683 = vunpack.c.l.b16 %v1651
    %v1684 = vpack.c.b16 %v1669, %v1668
    %v1685 = vpack.c.b16 %v1671, %v1670
    %v1686 = vpack.c.b16 %v1673, %v1672
    %v1687 = vpack.c.b16 %v1675, %v1674
    %v1688 = vpack.c.b16 %v1677, %v1676
    %v1689 = vpack.c.b16 %v1679, %v1678
    %v1690 = vpack.c.b16 %v1681, %v1680
    %v1691 = vpack.c.b16 %v1683, %v1682
    %1700 = vmatprep.subr.bf16.mxu0 0
    %1701 = vmatpush1.bf16.msra.mxu0 %v1684
    %1702 = vmatprep.subr.bf16.mxu0 0
    %1703 = vmatpush1.bf16.msra.mxu0 %v1685
    %1704 = vmatprep.subr.bf16.mxu0 0
    %1705 = vmatpush1.bf16.msra.mxu0 %v1686
    %1706 = vmatprep.subr.bf16.mxu0 0
    %1707 = vmatpush1.bf16.msra.mxu0 %v1687
    %1708 = vmatprep.subr.bf16.mxu0 0
    %1709 = vmatpush1.bf16.msra.mxu0 %v1688
    %1710 = vmatprep.subr.bf16.mxu0 0
    %1711 = vmatpush1.bf16.msra.mxu0 %v1689
    %1712 = vmatprep.subr.bf16.mxu0 0
    %1713 = vmatpush1.bf16.msra.mxu0 %v1690
    %1714 = vmatprep.subr.bf16.mxu0 0
    %1715 = vmatpush1.bf16.msra.mxu0 %v1691
    %1716 = vmatprep.subr.bf16.mxu0 0
    %1717 = vmatpush1.bf16.msra.mxu0 0
    %1718 = vmatprep.subr.bf16.mxu0 0
    %1719 = vmatpush1.bf16.msra.mxu0 0
    %1720 = vmatprep.subr.bf16.mxu0 0
    %1721 = vmatpush1.bf16.msra.mxu0 0
    %1722 = vmatprep.subr.bf16.mxu0 0
    %1723 = vmatpush1.bf16.msra.mxu0 0
    %1724 = vmatprep.subr.bf16.mxu0 0
    %1725 = vmatpush1.bf16.msra.mxu0 0
    %1726 = vmatprep.subr.bf16.mxu0 0
    %1727 = vmatpush1.bf16.msra.mxu0 0
    %1728 = vmatprep.subr.bf16.mxu0 0
    %1729 = vmatpush1.bf16.msra.mxu0 0
    %1730 = vmatprep.subr.bf16.mxu0 0
    %1731 = vmatpush1.bf16.msra.mxu0 0
    %1732 = vmatprep.mubr.bf16.mxu0 0
    %1733 = vmatmul.mubr.bf16.gmra.mrb[0].mxu0 %v1012
    %v1734 = vpop.f32.mrb[0].mxu0
    %v1735 = vadd.f32 0.0, %v1734
    %v1736 = vpop.f32.mrb[0].mxu0
    %v1737 = vpop.f32.mrb[0].mxu0
    %v1738 = vadd.f32 0.0, %v1737
    %v1739 = vpop.f32.mrb[0].mxu0
    %1740 = vmatprep.mubr.bf16.mxu0 0
    %1741 = vmatmul.mubr.bf16.gmra.mrb[0].mxu0 %v1013
    %v1742 = vpop.f32.mrb[0].mxu0
    %v1743 = vadd.f32 0.0, %v1742
    %v1744 = vpop.f32.mrb[0].mxu0
    %v1745 = vpop.f32.mrb[0].mxu0
    %v1746 = vadd.f32 0.0, %v1745
    %v1747 = vpop.f32.mrb[0].mxu0
    %1748 = vmatprep.mubr.bf16.mxu0 0
    %1749 = vmatmul.mubr.bf16.gmra.mrb[0].mxu0 %v1014
    %v1750 = vpop.f32.mrb[0].mxu0
    %v1751 = vadd.f32 0.0, %v1750
    %v1752 = vpop.f32.mrb[0].mxu0
    %v1753 = vpop.f32.mrb[0].mxu0
    %v1754 = vadd.f32 0.0, %v1753
    %v1755 = vpop.f32.mrb[0].mxu0
    %1756 = vmatprep.mubr.bf16.mxu0 0
    %1757 = vmatmul.mubr.bf16.gmra.mrb[0].mxu0 %v1015
    %v1758 = vpop.f32.mrb[0].mxu0
    %v1759 = vadd.f32 0.0, %v1758
    %v1760 = vpop.f32.mrb[0].mxu0
    %v1761 = vpop.f32.mrb[0].mxu0
    %v1762 = vadd.f32 0.0, %v1761
    %v1763 = vpop.f32.mrb[0].mxu0
    %1764 = vmatprep.mubr.bf16.mxu0 0
    %1765 = vmatmul.mubr.bf16.gmra.mrb[0].mxu0 %v1016
    %v1766 = vpop.f32.mrb[0].mxu0
    %v1767 = vadd.f32 0.0, %v1766
    %v1768 = vpop.f32.mrb[0].mxu0
    %v1769 = vpop.f32.mrb[0].mxu0
    %v1770 = vadd.f32 0.0, %v1769
    %v1771 = vpop.f32.mrb[0].mxu0
    %1772 = vmatprep.mubr.bf16.mxu0 0
    %1773 = vmatmul.mubr.bf16.gmra.mrb[0].mxu0 %v1017
    %v1774 = vpop.f32.mrb[0].mxu0
    %v1775 = vadd.f32 0.0, %v1774
    %v1776 = vpop.f32.mrb[0].mxu0
    %v1777 = vpop.f32.mrb[0].mxu0
    %v1778 = vadd.f32 0.0, %v1777
    %v1779 = vpop.f32.mrb[0].mxu0
    %1780 = vmatprep.mubr.bf16.mxu0 0
    %1781 = vmatmul.mubr.bf16.gmra.mrb[0].mxu0 %v1018
    %v1782 = vpop.f32.mrb[0].mxu0
    %v1783 = vadd.f32 0.0, %v1782
    %v1784 = vpop.f32.mrb[0].mxu0
    %v1785 = vpop.f32.mrb[0].mxu0
    %v1786 = vadd.f32 0.0, %v1785
    %v1787 = vpop.f32.mrb[0].mxu0
    %1788 = vmatprep.mubr.bf16.mxu0 0
    %1789 = vmatmul.mubr.bf16.gmra.mrb[0].mxu0 %v1634
    %v1790 = vpop.f32.mrb[0].mxu0
    %v1791 = vadd.f32 0.0, %v1790
    %v1792 = vpop.f32.mrb[0].mxu0
    %v1793 = vpop.f32.mrb[0].mxu0
    %v1794 = vadd.f32 0.0, %v1793
    %v1795 = vpop.f32.mrb[0].mxu0
    %1796 = vdwg.mxu0
    %v1797 = vadd.f32 %v1618, %v1735
    %v1798 = vadd.f32 %v1619, %v1738
    %v1799 = vadd.f32 %v1620, %v1743
    %v1800 = vadd.f32 %v1621, %v1746
    %v1801 = vadd.f32 %v1622, %v1751
    %v1802 = vadd.f32 %v1623, %v1754
    %v1803 = vadd.f32 %v1624, %v1759
    %v1804 = vadd.f32 %v1625, %v1762
    %v1805 = vadd.f32 %v1626, %v1767
    %v1806 = vadd.f32 %v1627, %v1770
    %v1807 = vadd.f32 %v1628, %v1775
    %v1808 = vadd.f32 %v1629, %v1778
    %v1809 = vadd.f32 %v1630, %v1783
    %v1810 = vadd.f32 %v1631, %v1786
    %v1811 = vadd.f32 %v1632, %v1791
    %v1812 = vadd.f32 %v1633, %v1794
    %v1813 = vld [vmem:[#allocation2 + $0x8] sm:$0xff]
    %v1814 = vld [vmem:[#allocation2 + $0x10] sm:$0xff]
    %v1815 = vld [vmem:[#allocation2 + $0x18] sm:$0xff]
    %v1816 = vld [vmem:[#allocation2 + $0x20] sm:$0xff]
    %v1817 = vld [vmem:[#allocation2 + $0x28] sm:$0xff]
    %v1818 = vld [vmem:[#allocation2 + $0x30] sm:$0xff]
    %v1819 = vld [vmem:[#allocation2 + $0x38] sm:$0xff]
    %v1820 = vld [vmem:[#allocation2 + $0x40] sm:$0xff]
    %v1821 = vld [vmem:[#allocation2 + $0x48] sm:$0x1]
    %s1822 = scalar_lea.vmem [#allocation4], 256
    %v1823 = vld [vmem:[%s1822] sm:$0xf]
    %v1824 = vld [vmem:[%s1822 + $0x4] sm:$0xf]
    %v1825 = vld [vmem:[%s1822 + $0x8] sm:$0xf]
    %v1826 = vld [vmem:[%s1822 + $0xc] sm:$0xf]
    %v1827 = vld [vmem:[%s1822 + $0x10] sm:$0xf]
    %v1828 = vld [vmem:[%s1822 + $0x14] sm:$0xf]
    %v1829 = vld [vmem:[%s1822 + $0x18] sm:$0xf]
    %v1830 = vld [vmem:[%s1822 + $0x1c] sm:$0xf]
    %v1831 = vld [vmem:[%s1822 + $0x20] sm:$0xf]
    %v1832 = vld [vmem:[%s1822 + $0x24] sm:$0xf]
    %v1833 = vld [vmem:[%s1822 + $0x28] sm:$0xf]
    %v1834 = vld [vmem:[%s1822 + $0x2c] sm:$0xf]
    %v1835 = vld [vmem:[%s1822 + $0x30] sm:$0xf]
    %v1836 = vld [vmem:[%s1822 + $0x34] sm:$0xf]
    %v1837 = vld [vmem:[%s1822 + $0x38] sm:$0xf]
    %v1838 = vld [vmem:[%s1822 + $0x3c] sm:$0xf]
    %v1840 = vshrl.u32 %v1813, 16
    %v1842 = vshll.u32 %v1813, 16
    %v1844 = vrot.slane %v1842, 1
    %v1845 = vor.u32 %v1840, %v1844
    %v1847 = vshll.u32 %v1814, 16
    %v1849 = vrot.slane %v1847, 1
    %v1850 = vsel %vm1053, %v1845, %v1849
    %v1851 = vshrl.u32 %v1814, 16
    %v1853 = vor.u32 %v1851, %v1849
    %v1855 = vshll.u32 %v1815, 16
    %v1857 = vrot.slane %v1855, 1
    %v1858 = vsel %vm1053, %v1853, %v1857
    %v1859 = vshrl.u32 %v1815, 16
    %v1861 = vor.u32 %v1859, %v1857
    %v1863 = vshll.u32 %v1816, 16
    %v1865 = vrot.slane %v1863, 1
    %v1866 = vsel %vm1053, %v1861, %v1865
    %v1867 = vshrl.u32 %v1816, 16
    %v1869 = vor.u32 %v1867, %v1865
    %v1871 = vshll.u32 %v1817, 16
    %v1873 = vrot.slane %v1871, 1
    %v1874 = vsel %vm1053, %v1869, %v1873
    %v1875 = vshrl.u32 %v1817, 16
    %v1877 = vor.u32 %v1875, %v1873
    %v1879 = vshll.u32 %v1818, 16
    %v1881 = vrot.slane %v1879, 1
    %v1882 = vsel %vm1053, %v1877, %v1881
    %v1883 = vshrl.u32 %v1818, 16
    %v1885 = vor.u32 %v1883, %v1881
    %v1887 = vshll.u32 %v1819, 16
    %v1889 = vrot.slane %v1887, 1
    %v1890 = vsel %vm1053, %v1885, %v1889
    %v1891 = vshrl.u32 %v1819, 16
    %v1893 = vor.u32 %v1891, %v1889
    %v1895 = vshll.u32 %v1820, 16
    %v1897 = vrot.slane %v1895, 1
    %v1898 = vsel %vm1053, %v1893, %v1897
    %v1899 = vshrl.u32 %v1820, 16
    %v1901 = vor.u32 %v1899, %v1897
    %v1903 = vshll.u32 %v1821, 16
    %v1905 = vrot.slane %v1903, 1
    %v1906 = vsel %vm1053, %v1901, %v1905
    %v1931 = vunpack.c.l.b16 %v1823
    %v1932 = vunpack.c.l.b16 %v1824
    %v1933 = vunpack.c.l.b16 %v1825
    %v1934 = vunpack.c.l.b16 %v1826
    %v1935 = vunpack.c.l.b16 %v1827
    %v1936 = vunpack.c.l.b16 %v1828
    %v1937 = vunpack.c.l.b16 %v1829
    %v1938 = vunpack.c.l.b16 %v1830
    %v1939 = vunpack.c.l.b16 %v1831
    %v1940 = vunpack.c.l.b16 %v1832
    %v1941 = vunpack.c.l.b16 %v1833
    %v1942 = vunpack.c.l.b16 %v1834
    %v1943 = vunpack.c.l.b16 %v1835
    %v1944 = vunpack.c.l.b16 %v1836
    %v1945 = vunpack.c.l.b16 %v1837
    %v1946 = vunpack.c.l.b16 %v1838
    %v1947 = vpack.c.b16 %v1932, %v1931
    %v1948 = vpack.c.b16 %v1934, %v1933
    %v1949 = vpack.c.b16 %v1936, %v1935
    %v1950 = vpack.c.b16 %v1938, %v1937
    %v1951 = vpack.c.b16 %v1940, %v1939
    %v1952 = vpack.c.b16 %v1942, %v1941
    %v1953 = vpack.c.b16 %v1944, %v1943
    %v1954 = vpack.c.b16 %v1946, %v1945
    %1963 = vmatprep.subr.bf16.mxu0 0
    %1964 = vmatpush1.bf16.msra.mxu0 %v1947
    %1965 = vmatprep.subr.bf16.mxu0 0
    %1966 = vmatpush1.bf16.msra.mxu0 %v1948
    %1967 = vmatprep.subr.bf16.mxu0 0
    %1968 = vmatpush1.bf16.msra.mxu0 %v1949
    %1969 = vmatprep.subr.bf16.mxu0 0
    %1970 = vmatpush1.bf16.msra.mxu0 %v1950
    %1971 = vmatprep.subr.bf16.mxu0 0
    %1972 = vmatpush1.bf16.msra.mxu0 %v1951
    %1973 = vmatprep.subr.bf16.mxu0 0
    %1974 = vmatpush1.bf16.msra.mxu0 %v1952
    %1975 = vmatprep.subr.bf16.mxu0 0
    %1976 = vmatpush1.bf16.msra.mxu0 %v1953
    %1977 = vmatprep.subr.bf16.mxu0 0
    %1978 = vmatpush1.bf16.msra.mxu0 %v1954
    %1979 = vmatprep.subr.bf16.mxu0 0
    %1980 = vmatpush1.bf16.msra.mxu0 0
    %1981 = vmatprep.subr.bf16.mxu0 0
    %1982 = vmatpush1.bf16.msra.mxu0 0
    %1983 = vmatprep.subr.bf16.mxu0 0
    %1984 = vmatpush1.bf16.msra.mxu0 0
    %1985 = vmatprep.subr.bf16.mxu0 0
    %1986 = vmatpush1.bf16.msra.mxu0 0
    %1987 = vmatprep.subr.bf16.mxu0 0
    %1988 = vmatpush1.bf16.msra.mxu0 0
    %1989 = vmatprep.subr.bf16.mxu0 0
    %1990 = vmatpush1.bf16.msra.mxu0 0
    %1991 = vmatprep.subr.bf16.mxu0 0
    %1992 = vmatpush1.bf16.msra.mxu0 0
    %1993 = vmatprep.subr.bf16.mxu0 0
    %1994 = vmatpush1.bf16.msra.mxu0 0
    %1995 = vmatprep.mubr.bf16.mxu0 0
    %1996 = vmatmul.mubr.bf16.gmra.mrb[0].mxu0 %v1850
    %v1997 = vpop.f32.mrb[0].mxu0
    %v1998 = vadd.f32 0.0, %v1997
    %v1999 = vpop.f32.mrb[0].mxu0
    %v2000 = vpop.f32.mrb[0].mxu0
    %v2001 = vadd.f32 0.0, %v2000
    %v2002 = vpop.f32.mrb[0].mxu0
    %2003 = vmatprep.mubr.bf16.mxu0 0
    %2004 = vmatmul.mubr.bf16.gmra.mrb[0].mxu0 %v1858
    %v2005 = vpop.f32.mrb[0].mxu0
    %v2006 = vadd.f32 0.0, %v2005
    %v2007 = vpop.f32.mrb[0].mxu0
    %v2008 = vpop.f32.mrb[0].mxu0
    %v2009 = vadd.f32 0.0, %v2008
    %v2010 = vpop.f32.mrb[0].mxu0
    %2011 = vmatprep.mubr.bf16.mxu0 0
    %2012 = vmatmul.mubr.bf16.gmra.mrb[0].mxu0 %v1866
    %v2013 = vpop.f32.mrb[0].mxu0
    %v2014 = vadd.f32 0.0, %v2013
    %v2015 = vpop.f32.mrb[0].mxu0
    %v2016 = vpop.f32.mrb[0].mxu0
    %v2017 = vadd.f32 0.0, %v2016
    %v2018 = vpop.f32.mrb[0].mxu0
    %2019 = vmatprep.mubr.bf16.mxu0 0
    %2020 = vmatmul.mubr.bf16.gmra.mrb[0].mxu0 %v1874
    %v2021 = vpop.f32.mrb[0].mxu0
    %v2022 = vadd.f32 0.0, %v2021
    %v2023 = vpop.f32.mrb[0].mxu0
    %v2024 = vpop.f32.mrb[0].mxu0
    %v2025 = vadd.f32 0.0, %v2024
    %v2026 = vpop.f32.mrb[0].mxu0
    %2027 = vmatprep.mubr.bf16.mxu0 0
    %2028 = vmatmul.mubr.bf16.gmra.mrb[0].mxu0 %v1882
    %v2029 = vpop.f32.mrb[0].mxu0
    %v2030 = vadd.f32 0.0, %v2029
    %v2031 = vpop.f32.mrb[0].mxu0
    %v2032 = vpop.f32.mrb[0].mxu0
    %v2033 = vadd.f32 0.0, %v2032
    %v2034 = vpop.f32.mrb[0].mxu0
    %2035 = vmatprep.mubr.bf16.mxu0 0
    %2036 = vmatmul.mubr.bf16.gmra.mrb[0].mxu0 %v1890
    %v2037 = vpop.f32.mrb[0].mxu0
    %v2038 = vadd.f32 0.0, %v2037
    %v2039 = vpop.f32.mrb[0].mxu0
    %v2040 = vpop.f32.mrb[0].mxu0
    %v2041 = vadd.f32 0.0, %v2040
    %v2042 = vpop.f32.mrb[0].mxu0
    %2043 = vmatprep.mubr.bf16.mxu0 0
    %2044 = vmatmul.mubr.bf16.gmra.mrb[0].mxu0 %v1898
    %v2045 = vpop.f32.mrb[0].mxu0
    %v2046 = vadd.f32 0.0, %v2045
    %v2047 = vpop.f32.mrb[0].mxu0
    %v2048 = vpop.f32.mrb[0].mxu0
    %v2049 = vadd.f32 0.0, %v2048
    %v2050 = vpop.f32.mrb[0].mxu0
    %2051 = vmatprep.mubr.bf16.mxu0 0
    %2052 = vmatmul.mubr.bf16.gmra.mrb[0].mxu0 %v1906
    %v2053 = vpop.f32.mrb[0].mxu0
    %v2054 = vadd.f32 0.0, %v2053
    %v2055 = vpop.f32.mrb[0].mxu0
    %v2056 = vpop.f32.mrb[0].mxu0
    %v2057 = vadd.f32 0.0, %v2056
    %v2058 = vpop.f32.mrb[0].mxu0
    %2059 = vdwg.mxu0
    %v2060 = vadd.f32 %v1797, %v1998
    %v2061 = vadd.f32 %v1798, %v2001
    %v2062 = vadd.f32 %v1799, %v2006
    %v2063 = vadd.f32 %v1800, %v2009
    %v2064 = vadd.f32 %v1801, %v2014
    %v2065 = vadd.f32 %v1802, %v2017
    %v2066 = vadd.f32 %v1803, %v2022
    %v2067 = vadd.f32 %v1804, %v2025
    %v2068 = vadd.f32 %v1805, %v2030
    %v2069 = vadd.f32 %v1806, %v2033
    %v2070 = vadd.f32 %v1807, %v2038
    %v2071 = vadd.f32 %v1808, %v2041
    %v2072 = vadd.f32 %v1809, %v2046
    %v2073 = vadd.f32 %v1810, %v2049
    %v2074 = vadd.f32 %v1811, %v2054
    %v2075 = vadd.f32 %v1812, %v2057
    %v2076 = vld [vmem:[#allocation2 + $0x8] sm:$0xfe]
    %s2077 = scalar_lea.vmem [#allocation4], 320
    %v2078 = vld [vmem:[%s2077] sm:$0xf]
    %v2079 = vld [vmem:[%s2077 + $0x4] sm:$0xf]
    %v2080 = vld [vmem:[%s2077 + $0x8] sm:$0xf]
    %v2081 = vld [vmem:[%s2077 + $0xc] sm:$0xf]
    %v2082 = vld [vmem:[%s2077 + $0x10] sm:$0xf]
    %v2083 = vld [vmem:[%s2077 + $0x14] sm:$0xf]
    %v2084 = vld [vmem:[%s2077 + $0x18] sm:$0xf]
    %v2085 = vld [vmem:[%s2077 + $0x1c] sm:$0xf]
    %v2086 = vld [vmem:[%s2077 + $0x20] sm:$0xf]
    %v2087 = vld [vmem:[%s2077 + $0x24] sm:$0xf]
    %v2088 = vld [vmem:[%s2077 + $0x28] sm:$0xf]
    %v2089 = vld [vmem:[%s2077 + $0x2c] sm:$0xf]
    %v2090 = vld [vmem:[%s2077 + $0x30] sm:$0xf]
    %v2091 = vld [vmem:[%s2077 + $0x34] sm:$0xf]
    %v2092 = vld [vmem:[%s2077 + $0x38] sm:$0xf]
    %v2093 = vld [vmem:[%s2077 + $0x3c] sm:$0xf]
    %v2103 = vrot.slane %v2076, 1
    %v2104 = vrot.slane %v1814, 1
    %v2105 = vsel %vm1447, %v2103, %v2104
    %v2106 = vrot.slane %v1815, 1
    %v2107 = vsel %vm1447, %v2104, %v2106
    %v2108 = vrot.slane %v1816, 1
    %v2109 = vsel %vm1447, %v2106, %v2108
    %v2110 = vrot.slane %v1817, 1
    %v2111 = vsel %vm1447, %v2108, %v2110
    %v2112 = vrot.slane %v1818, 1
    %v2113 = vsel %vm1447, %v2110, %v2112
    %v2114 = vrot.slane %v1819, 1
    %v2115 = vsel %vm1447, %v2112, %v2114
    %v2116 = vrot.slane %v1820, 1
    %v2117 = vsel %vm1447, %v2114, %v2116
    %v2118 = vrot.slane %v1821, 1
    %v2119 = vsel %vm1447, %v2116, %v2118
    %v2144 = vunpack.c.l.b16 %v2078
    %v2145 = vunpack.c.l.b16 %v2079
    %v2146 = vunpack.c.l.b16 %v2080
    %v2147 = vunpack.c.l.b16 %v2081
    %v2148 = vunpack.c.l.b16 %v2082
    %v2149 = vunpack.c.l.b16 %v2083
    %v2150 = vunpack.c.l.b16 %v2084
    %v2151 = vunpack.c.l.b16 %v2085
    %v2152 = vunpack.c.l.b16 %v2086
    %v2153 = vunpack.c.l.b16 %v2087
    %v2154 = vunpack.c.l.b16 %v2088
    %v2155 = vunpack.c.l.b16 %v2089
    %v2156 = vunpack.c.l.b16 %v2090
    %v2157 = vunpack.c.l.b16 %v2091
    %v2158 = vunpack.c.l.b16 %v2092
    %v2159 = vunpack.c.l.b16 %v2093
    %v2160 = vpack.c.b16 %v2145, %v2144
    %v2161 = vpack.c.b16 %v2147, %v2146
    %v2162 = vpack.c.b16 %v2149, %v2148
    %v2163 = vpack.c.b16 %v2151, %v2150
    %v2164 = vpack.c.b16 %v2153, %v2152
    %v2165 = vpack.c.b16 %v2155, %v2154
    %v2166 = vpack.c.b16 %v2157, %v2156
    %v2167 = vpack.c.b16 %v2159, %v2158
    %2176 = vmatprep.subr.bf16.mxu0 0
    %2177 = vmatpush1.bf16.msra.mxu0 %v2160
    %2178 = vmatprep.subr.bf16.mxu0 0
    %2179 = vmatpush1.bf16.msra.mxu0 %v2161
    %2180 = vmatprep.subr.bf16.mxu0 0
    %2181 = vmatpush1.bf16.msra.mxu0 %v2162
    %2182 = vmatprep.subr.bf16.mxu0 0
    %2183 = vmatpush1.bf16.msra.mxu0 %v2163
    %2184 = vmatprep.subr.bf16.mxu0 0
    %2185 = vmatpush1.bf16.msra.mxu0 %v2164
    %2186 = vmatprep.subr.bf16.mxu0 0
    %2187 = vmatpush1.bf16.msra.mxu0 %v2165
    %2188 = vmatprep.subr.bf16.mxu0 0
    %2189 = vmatpush1.bf16.msra.mxu0 %v2166
    %2190 = vmatprep.subr.bf16.mxu0 0
    %2191 = vmatpush1.bf16.msra.mxu0 %v2167
    %2192 = vmatprep.subr.bf16.mxu0 0
    %2193 = vmatpush1.bf16.msra.mxu0 0
    %2194 = vmatprep.subr.bf16.mxu0 0
    %2195 = vmatpush1.bf16.msra.mxu0 0
    %2196 = vmatprep.subr.bf16.mxu0 0
    %2197 = vmatpush1.bf16.msra.mxu0 0
    %2198 = vmatprep.subr.bf16.mxu0 0
    %2199 = vmatpush1.bf16.msra.mxu0 0
    %2200 = vmatprep.subr.bf16.mxu0 0
    %2201 = vmatpush1.bf16.msra.mxu0 0
    %2202 = vmatprep.subr.bf16.mxu0 0
    %2203 = vmatpush1.bf16.msra.mxu0 0
    %2204 = vmatprep.subr.bf16.mxu0 0
    %2205 = vmatpush1.bf16.msra.mxu0 0
    %2206 = vmatprep.subr.bf16.mxu0 0
    %2207 = vmatpush1.bf16.msra.mxu0 0
    %2208 = vmatprep.mubr.bf16.mxu0 0
    %2209 = vmatmul.mubr.bf16.gmra.mrb[0].mxu0 %v2105
    %v2210 = vpop.f32.mrb[0].mxu0
    %v2211 = vadd.f32 0.0, %v2210
    %v2212 = vpop.f32.mrb[0].mxu0
    %v2213 = vpop.f32.mrb[0].mxu0
    %v2214 = vadd.f32 0.0, %v2213
    %v2215 = vpop.f32.mrb[0].mxu0
    %2216 = vmatprep.mubr.bf16.mxu0 0
    %2217 = vmatmul.mubr.bf16.gmra.mrb[0].mxu0 %v2107
    %v2218 = vpop.f32.mrb[0].mxu0
    %v2219 = vadd.f32 0.0, %v2218
    %v2220 = vpop.f32.mrb[0].mxu0
    %v2221 = vpop.f32.mrb[0].mxu0
    %v2222 = vadd.f32 0.0, %v2221
    %v2223 = vpop.f32.mrb[0].mxu0
    %2224 = vmatprep.mubr.bf16.mxu0 0
    %2225 = vmatmul.mubr.bf16.gmra.mrb[0].mxu0 %v2109
    %v2226 = vpop.f32.mrb[0].mxu0
    %v2227 = vadd.f32 0.0, %v2226
    %v2228 = vpop.f32.mrb[0].mxu0
    %v2229 = vpop.f32.mrb[0].mxu0
    %v2230 = vadd.f32 0.0, %v2229
    %v2231 = vpop.f32.mrb[0].mxu0
    %2232 = vmatprep.mubr.bf16.mxu0 0
    %2233 = vmatmul.mubr.bf16.gmra.mrb[0].mxu0 %v2111
    %v2234 = vpop.f32.mrb[0].mxu0
    %v2235 = vadd.f32 0.0, %v2234
    %v2236 = vpop.f32.mrb[0].mxu0
    %v2237 = vpop.f32.mrb[0].mxu0
    %v2238 = vadd.f32 0.0, %v2237
    %v2239 = vpop.f32.mrb[0].mxu0
    %2240 = vmatprep.mubr.bf16.mxu0 0
    %2241 = vmatmul.mubr.bf16.gmra.mrb[0].mxu0 %v2113
    %v2242 = vpop.f32.mrb[0].mxu0
    %v2243 = vadd.f32 0.0, %v2242
    %v2244 = vpop.f32.mrb[0].mxu0
    %v2245 = vpop.f32.mrb[0].mxu0
    %v2246 = vadd.f32 0.0, %v2245
    %v2247 = vpop.f32.mrb[0].mxu0
    %2248 = vmatprep.mubr.bf16.mxu0 0
    %2249 = vmatmul.mubr.bf16.gmra.mrb[0].mxu0 %v2115
    %v2250 = vpop.f32.mrb[0].mxu0
    %v2251 = vadd.f32 0.0, %v2250
    %v2252 = vpop.f32.mrb[0].mxu0
    %v2253 = vpop.f32.mrb[0].mxu0
    %v2254 = vadd.f32 0.0, %v2253
    %v2255 = vpop.f32.mrb[0].mxu0
    %2256 = vmatprep.mubr.bf16.mxu0 0
    %2257 = vmatmul.mubr.bf16.gmra.mrb[0].mxu0 %v2117
    %v2258 = vpop.f32.mrb[0].mxu0
    %v2259 = vadd.f32 0.0, %v2258
    %v2260 = vpop.f32.mrb[0].mxu0
    %v2261 = vpop.f32.mrb[0].mxu0
    %v2262 = vadd.f32 0.0, %v2261
    %v2263 = vpop.f32.mrb[0].mxu0
    %2264 = vmatprep.mubr.bf16.mxu0 0
    %2265 = vmatmul.mubr.bf16.gmra.mrb[0].mxu0 %v2119
    %v2266 = vpop.f32.mrb[0].mxu0
    %v2267 = vadd.f32 0.0, %v2266
    %v2268 = vpop.f32.mrb[0].mxu0
    %v2269 = vpop.f32.mrb[0].mxu0
    %v2270 = vadd.f32 0.0, %v2269
    %v2271 = vpop.f32.mrb[0].mxu0
    %2272 = vdwg.mxu0
    %v2273 = vadd.f32 %v2060, %v2211
    %v2274 = vadd.f32 %v2061, %v2214
    %v2275 = vadd.f32 %v2062, %v2219
    %v2276 = vadd.f32 %v2063, %v2222
    %v2277 = vadd.f32 %v2064, %v2227
    %v2278 = vadd.f32 %v2065, %v2230
    %v2279 = vadd.f32 %v2066, %v2235
    %v2280 = vadd.f32 %v2067, %v2238
    %v2281 = vadd.f32 %v2068, %v2243
    %v2282 = vadd.f32 %v2069, %v2246
    %v2283 = vadd.f32 %v2070, %v2251
    %v2284 = vadd.f32 %v2071, %v2254
    %v2285 = vadd.f32 %v2072, %v2259
    %v2286 = vadd.f32 %v2073, %v2262
    %v2287 = vadd.f32 %v2074, %v2267
    %v2288 = vadd.f32 %v2075, %v2270
    %v2289 = vld [vmem:[#allocation2 + $0x48] sm:$0xff]
    %s2290 = scalar_lea.vmem [#allocation4], 384
    %v2291 = vld [vmem:[%s2290] sm:$0xf]
    %v2292 = vld [vmem:[%s2290 + $0x4] sm:$0xf]
    %v2293 = vld [vmem:[%s2290 + $0x8] sm:$0xf]
    %v2294 = vld [vmem:[%s2290 + $0xc] sm:$0xf]
    %v2295 = vld [vmem:[%s2290 + $0x10] sm:$0xf]
    %v2296 = vld [vmem:[%s2290 + $0x14] sm:$0xf]
    %v2297 = vld [vmem:[%s2290 + $0x18] sm:$0xf]
    %v2298 = vld [vmem:[%s2290 + $0x1c] sm:$0xf]
    %v2299 = vld [vmem:[%s2290 + $0x20] sm:$0xf]
    %v2300 = vld [vmem:[%s2290 + $0x24] sm:$0xf]
    %v2301 = vld [vmem:[%s2290 + $0x28] sm:$0xf]
    %v2302 = vld [vmem:[%s2290 + $0x2c] sm:$0xf]
    %v2303 = vld [vmem:[%s2290 + $0x30] sm:$0xf]
    %v2304 = vld [vmem:[%s2290 + $0x34] sm:$0xf]
    %v2305 = vld [vmem:[%s2290 + $0x38] sm:$0xf]
    %v2306 = vld [vmem:[%s2290 + $0x3c] sm:$0xf]
    %v2323 = vunpack.c.l.b16 %v2291
    %v2324 = vunpack.c.l.b16 %v2292
    %v2325 = vunpack.c.l.b16 %v2293
    %v2326 = vunpack.c.l.b16 %v2294
    %v2327 = vunpack.c.l.b16 %v2295
    %v2328 = vunpack.c.l.b16 %v2296
    %v2329 = vunpack.c.l.b16 %v2297
    %v2330 = vunpack.c.l.b16 %v2298
    %v2331 = vunpack.c.l.b16 %v2299
    %v2332 = vunpack.c.l.b16 %v2300
    %v2333 = vunpack.c.l.b16 %v2301
    %v2334 = vunpack.c.l.b16 %v2302
    %v2335 = vunpack.c.l.b16 %v2303
    %v2336 = vunpack.c.l.b16 %v2304
    %v2337 = vunpack.c.l.b16 %v2305
    %v2338 = vunpack.c.l.b16 %v2306
    %v2339 = vpack.c.b16 %v2324, %v2323
    %v2340 = vpack.c.b16 %v2326, %v2325
    %v2341 = vpack.c.b16 %v2328, %v2327
    %v2342 = vpack.c.b16 %v2330, %v2329
    %v2343 = vpack.c.b16 %v2332, %v2331
    %v2344 = vpack.c.b16 %v2334, %v2333
    %v2345 = vpack.c.b16 %v2336, %v2335
    %v2346 = vpack.c.b16 %v2338, %v2337
    %2355 = vmatprep.subr.bf16.mxu0 0
    %2356 = vmatpush1.bf16.msra.mxu0 %v2339
    %2357 = vmatprep.subr.bf16.mxu0 0
    %2358 = vmatpush1.bf16.msra.mxu0 %v2340
    %2359 = vmatprep.subr.bf16.mxu0 0
    %2360 = vmatpush1.bf16.msra.mxu0 %v2341
    %2361 = vmatprep.subr.bf16.mxu0 0
    %2362 = vmatpush1.bf16.msra.mxu0 %v2342
    %2363 = vmatprep.subr.bf16.mxu0 0
    %2364 = vmatpush1.bf16.msra.mxu0 %v2343
    %2365 = vmatprep.subr.bf16.mxu0 0
    %2366 = vmatpush1.bf16.msra.mxu0 %v2344
    %2367 = vmatprep.subr.bf16.mxu0 0
    %2368 = vmatpush1.bf16.msra.mxu0 %v2345
    %2369 = vmatprep.subr.bf16.mxu0 0
    %2370 = vmatpush1.bf16.msra.mxu0 %v2346
    %2371 = vmatprep.subr.bf16.mxu0 0
    %2372 = vmatpush1.bf16.msra.mxu0 0
    %2373 = vmatprep.subr.bf16.mxu0 0
    %2374 = vmatpush1.bf16.msra.mxu0 0
    %2375 = vmatprep.subr.bf16.mxu0 0
    %2376 = vmatpush1.bf16.msra.mxu0 0
    %2377 = vmatprep.subr.bf16.mxu0 0
    %2378 = vmatpush1.bf16.msra.mxu0 0
    %2379 = vmatprep.subr.bf16.mxu0 0
    %2380 = vmatpush1.bf16.msra.mxu0 0
    %2381 = vmatprep.subr.bf16.mxu0 0
    %2382 = vmatpush1.bf16.msra.mxu0 0
    %2383 = vmatprep.subr.bf16.mxu0 0
    %2384 = vmatpush1.bf16.msra.mxu0 0
    %2385 = vmatprep.subr.bf16.mxu0 0
    %2386 = vmatpush1.bf16.msra.mxu0 0
    %2387 = vmatprep.mubr.bf16.mxu0 0
    %2388 = vmatmul.mubr.bf16.gmra.mrb[0].mxu0 %v1814
    %v2389 = vpop.f32.mrb[0].mxu0
    %v2390 = vadd.f32 0.0, %v2389
    %v2391 = vpop.f32.mrb[0].mxu0
    %v2392 = vpop.f32.mrb[0].mxu0
    %v2393 = vadd.f32 0.0, %v2392
    %v2394 = vpop.f32.mrb[0].mxu0
    %2395 = vmatprep.mubr.bf16.mxu0 0
    %2396 = vmatmul.mubr.bf16.gmra.mrb[0].mxu0 %v1815
    %v2397 = vpop.f32.mrb[0].mxu0
    %v2398 = vadd.f32 0.0, %v2397
    %v2399 = vpop.f32.mrb[0].mxu0
    %v2400 = vpop.f32.mrb[0].mxu0
    %v2401 = vadd.f32 0.0, %v2400
    %v2402 = vpop.f32.mrb[0].mxu0
    %2403 = vmatprep.mubr.bf16.mxu0 0
    %2404 = vmatmul.mubr.bf16.gmra.mrb[0].mxu0 %v1816
    %v2405 = vpop.f32.mrb[0].mxu0
    %v2406 = vadd.f32 0.0, %v2405
    %v2407 = vpop.f32.mrb[0].mxu0
    %v2408 = vpop.f32.mrb[0].mxu0
    %v2409 = vadd.f32 0.0, %v2408
    %v2410 = vpop.f32.mrb[0].mxu0
    %2411 = vmatprep.mubr.bf16.mxu0 0
    %2412 = vmatmul.mubr.bf16.gmra.mrb[0].mxu0 %v1817
    %v2413 = vpop.f32.mrb[0].mxu0
    %v2414 = vadd.f32 0.0, %v2413
    %v2415 = vpop.f32.mrb[0].mxu0
    %v2416 = vpop.f32.mrb[0].mxu0
    %v2417 = vadd.f32 0.0, %v2416
    %v2418 = vpop.f32.mrb[0].mxu0
    %2419 = vmatprep.mubr.bf16.mxu0 0
    %2420 = vmatmul.mubr.bf16.gmra.mrb[0].mxu0 %v1818
    %v2421 = vpop.f32.mrb[0].mxu0
    %v2422 = vadd.f32 0.0, %v2421
    %v2423 = vpop.f32.mrb[0].mxu0
    %v2424 = vpop.f32.mrb[0].mxu0
    %v2425 = vadd.f32 0.0, %v2424
    %v2426 = vpop.f32.mrb[0].mxu0
    %2427 = vmatprep.mubr.bf16.mxu0 0
    %2428 = vmatmul.mubr.bf16.gmra.mrb[0].mxu0 %v1819
    %v2429 = vpop.f32.mrb[0].mxu0
    %v2430 = vadd.f32 0.0, %v2429
    %v2431 = vpop.f32.mrb[0].mxu0
    %v2432 = vpop.f32.mrb[0].mxu0
    %v2433 = vadd.f32 0.0, %v2432
    %v2434 = vpop.f32.mrb[0].mxu0
    %2435 = vmatprep.mubr.bf16.mxu0 0
    %2436 = vmatmul.mubr.bf16.gmra.mrb[0].mxu0 %v1820
    %v2437 = vpop.f32.mrb[0].mxu0
    %v2438 = vadd.f32 0.0, %v2437
    %v2439 = vpop.f32.mrb[0].mxu0
    %v2440 = vpop.f32.mrb[0].mxu0
    %v2441 = vadd.f32 0.0, %v2440
    %v2442 = vpop.f32.mrb[0].mxu0
    %2443 = vmatprep.mubr.bf16.mxu0 0
    %2444 = vmatmul.mubr.bf16.gmra.mrb[0].mxu0 %v2289
    %v2445 = vpop.f32.mrb[0].mxu0
    %v2446 = vadd.f32 0.0, %v2445
    %v2447 = vpop.f32.mrb[0].mxu0
    %v2448 = vpop.f32.mrb[0].mxu0
    %v2449 = vadd.f32 0.0, %v2448
    %v2450 = vpop.f32.mrb[0].mxu0
    %2451 = vdwg.mxu0
    %v2452 = vadd.f32 %v2273, %v2390
    %v2453 = vadd.f32 %v2274, %v2393
    %v2454 = vadd.f32 %v2275, %v2398
    %v2455 = vadd.f32 %v2276, %v2401
    %v2456 = vadd.f32 %v2277, %v2406
    %v2457 = vadd.f32 %v2278, %v2409
    %v2458 = vadd.f32 %v2279, %v2414
    %v2459 = vadd.f32 %v2280, %v2417
    %v2460 = vadd.f32 %v2281, %v2422
    %v2461 = vadd.f32 %v2282, %v2425
    %v2462 = vadd.f32 %v2283, %v2430
    %v2463 = vadd.f32 %v2284, %v2433
    %v2464 = vadd.f32 %v2285, %v2438
    %v2465 = vadd.f32 %v2286, %v2441
    %v2466 = vadd.f32 %v2287, %v2446
    %v2467 = vadd.f32 %v2288, %v2449
    %v2468 = vld [vmem:[#allocation2 + $0x10] sm:$0xff]
    %v2469 = vld [vmem:[#allocation2 + $0x18] sm:$0xff]
    %v2470 = vld [vmem:[#allocation2 + $0x20] sm:$0xff]
    %v2471 = vld [vmem:[#allocation2 + $0x28] sm:$0xff]
    %v2472 = vld [vmem:[#allocation2 + $0x30] sm:$0xff]
    %v2473 = vld [vmem:[#allocation2 + $0x38] sm:$0xff]
    %v2474 = vld [vmem:[#allocation2 + $0x40] sm:$0xff]
    %v2475 = vld [vmem:[#allocation2 + $0x48] sm:$0xff]
    %v2476 = vld [vmem:[#allocation2 + $0x50] sm:$0x1]
    %s2477 = scalar_lea.vmem [#allocation4], 448
    %v2478 = vld [vmem:[%s2477] sm:$0xf]
    %v2479 = vld [vmem:[%s2477 + $0x4] sm:$0xf]
    %v2480 = vld [vmem:[%s2477 + $0x8] sm:$0xf]
    %v2481 = vld [vmem:[%s2477 + $0xc] sm:$0xf]
    %v2482 = vld [vmem:[%s2477 + $0x10] sm:$0xf]
    %v2483 = vld [vmem:[%s2477 + $0x14] sm:$0xf]
    %v2484 = vld [vmem:[%s2477 + $0x18] sm:$0xf]
    %v2485 = vld [vmem:[%s2477 + $0x1c] sm:$0xf]
    %v2486 = vld [vmem:[%s2477 + $0x20] sm:$0xf]
    %v2487 = vld [vmem:[%s2477 + $0x24] sm:$0xf]
    %v2488 = vld [vmem:[%s2477 + $0x28] sm:$0xf]
    %v2489 = vld [vmem:[%s2477 + $0x2c] sm:$0xf]
    %v2490 = vld [vmem:[%s2477 + $0x30] sm:$0xf]
    %v2491 = vld [vmem:[%s2477 + $0x34] sm:$0xf]
    %v2492 = vld [vmem:[%s2477 + $0x38] sm:$0xf]
    %v2493 = vld [vmem:[%s2477 + $0x3c] sm:$0xf]
    %v2495 = vshrl.u32 %v2468, 16
    %v2497 = vshll.u32 %v2468, 16
    %v2499 = vrot.slane %v2497, 1
    %v2500 = vor.u32 %v2495, %v2499
    %v2502 = vshll.u32 %v2469, 16
    %v2504 = vrot.slane %v2502, 1
    %v2505 = vsel %vm1053, %v2500, %v2504
    %v2506 = vshrl.u32 %v2469, 16
    %v2508 = vor.u32 %v2506, %v2504
    %v2510 = vshll.u32 %v2470, 16
    %v2512 = vrot.slane %v2510, 1
    %v2513 = vsel %vm1053, %v2508, %v2512
    %v2514 = vshrl.u32 %v2470, 16
    %v2516 = vor.u32 %v2514, %v2512
    %v2518 = vshll.u32 %v2471, 16
    %v2520 = vrot.slane %v2518, 1
    %v2521 = vsel %vm1053, %v2516, %v2520
    %v2522 = vshrl.u32 %v2471, 16
    %v2524 = vor.u32 %v2522, %v2520
    %v2526 = vshll.u32 %v2472, 16
    %v2528 = vrot.slane %v2526, 1
    %v2529 = vsel %vm1053, %v2524, %v2528
    %v2530 = vshrl.u32 %v2472, 16
    %v2532 = vor.u32 %v2530, %v2528
    %v2534 = vshll.u32 %v2473, 16
    %v2536 = vrot.slane %v2534, 1
    %v2537 = vsel %vm1053, %v2532, %v2536
    %v2538 = vshrl.u32 %v2473, 16
    %v2540 = vor.u32 %v2538, %v2536
    %v2542 = vshll.u32 %v2474, 16
    %v2544 = vrot.slane %v2542, 1
    %v2545 = vsel %vm1053, %v2540, %v2544
    %v2546 = vshrl.u32 %v2474, 16
    %v2548 = vor.u32 %v2546, %v2544
    %v2550 = vshll.u32 %v2475, 16
    %v2552 = vrot.slane %v2550, 1
    %v2553 = vsel %vm1053, %v2548, %v2552
    %v2554 = vshrl.u32 %v2475, 16
    %v2556 = vor.u32 %v2554, %v2552
    %v2558 = vshll.u32 %v2476, 16
    %v2560 = vrot.slane %v2558, 1
    %v2561 = vsel %vm1053, %v2556, %v2560
    %v2586 = vunpack.c.l.b16 %v2478
    %v2587 = vunpack.c.l.b16 %v2479
    %v2588 = vunpack.c.l.b16 %v2480
    %v2589 = vunpack.c.l.b16 %v2481
    %v2590 = vunpack.c.l.b16 %v2482
    %v2591 = vunpack.c.l.b16 %v2483
    %v2592 = vunpack.c.l.b16 %v2484
    %v2593 = vunpack.c.l.b16 %v2485
    %v2594 = vunpack.c.l.b16 %v2486
    %v2595 = vunpack.c.l.b16 %v2487
    %v2596 = vunpack.c.l.b16 %v2488
    %v2597 = vunpack.c.l.b16 %v2489
    %v2598 = vunpack.c.l.b16 %v2490
    %v2599 = vunpack.c.l.b16 %v2491
    %v2600 = vunpack.c.l.b16 %v2492
    %v2601 = vunpack.c.l.b16 %v2493
    %v2602 = vpack.c.b16 %v2587, %v2586
    %v2603 = vpack.c.b16 %v2589, %v2588
    %v2604 = vpack.c.b16 %v2591, %v2590
    %v2605 = vpack.c.b16 %v2593, %v2592
    %v2606 = vpack.c.b16 %v2595, %v2594
    %v2607 = vpack.c.b16 %v2597, %v2596
    %v2608 = vpack.c.b16 %v2599, %v2598
    %v2609 = vpack.c.b16 %v2601, %v2600
    %2618 = vmatprep.subr.bf16.mxu0 0
    %2619 = vmatpush1.bf16.msra.mxu0 %v2602
    %2620 = vmatprep.subr.bf16.mxu0 0
    %2621 = vmatpush1.bf16.msra.mxu0 %v2603
    %2622 = vmatprep.subr.bf16.mxu0 0
    %2623 = vmatpush1.bf16.msra.mxu0 %v2604
    %2624 = vmatprep.subr.bf16.mxu0 0
    %2625 = vmatpush1.bf16.msra.mxu0 %v2605
    %2626 = vmatprep.subr.bf16.mxu0 0
    %2627 = vmatpush1.bf16.msra.mxu0 %v2606
    %2628 = vmatprep.subr.bf16.mxu0 0
    %2629 = vmatpush1.bf16.msra.mxu0 %v2607
    %2630 = vmatprep.subr.bf16.mxu0 0
    %2631 = vmatpush1.bf16.msra.mxu0 %v2608
    %2632 = vmatprep.subr.bf16.mxu0 0
    %2633 = vmatpush1.bf16.msra.mxu0 %v2609
    %2634 = vmatprep.subr.bf16.mxu0 0
    %2635 = vmatpush1.bf16.msra.mxu0 0
    %2636 = vmatprep.subr.bf16.mxu0 0
    %2637 = vmatpush1.bf16.msra.mxu0 0
    %2638 = vmatprep.subr.bf16.mxu0 0
    %2639 = vmatpush1.bf16.msra.mxu0 0
    %2640 = vmatprep.subr.bf16.mxu0 0
    %2641 = vmatpush1.bf16.msra.mxu0 0
    %2642 = vmatprep.subr.bf16.mxu0 0
    %2643 = vmatpush1.bf16.msra.mxu0 0
    %2644 = vmatprep.subr.bf16.mxu0 0
    %2645 = vmatpush1.bf16.msra.mxu0 0
    %2646 = vmatprep.subr.bf16.mxu0 0
    %2647 = vmatpush1.bf16.msra.mxu0 0
    %2648 = vmatprep.subr.bf16.mxu0 0
    %2649 = vmatpush1.bf16.msra.mxu0 0
    %2650 = vmatprep.mubr.bf16.mxu0 0
    %2651 = vmatmul.mubr.bf16.gmra.mrb[0].mxu0 %v2505
    %v2652 = vpop.f32.mrb[0].mxu0
    %v2653 = vadd.f32 0.0, %v2652
    %v2654 = vpop.f32.mrb[0].mxu0
    %v2655 = vpop.f32.mrb[0].mxu0
    %v2656 = vadd.f32 0.0, %v2655
    %v2657 = vpop.f32.mrb[0].mxu0
    %2658 = vmatprep.mubr.bf16.mxu0 0
    %2659 = vmatmul.mubr.bf16.gmra.mrb[0].mxu0 %v2513
    %v2660 = vpop.f32.mrb[0].mxu0
    %v2661 = vadd.f32 0.0, %v2660
    %v2662 = vpop.f32.mrb[0].mxu0
    %v2663 = vpop.f32.mrb[0].mxu0
    %v2664 = vadd.f32 0.0, %v2663
    %v2665 = vpop.f32.mrb[0].mxu0
    %2666 = vmatprep.mubr.bf16.mxu0 0
    %2667 = vmatmul.mubr.bf16.gmra.mrb[0].mxu0 %v2521
    %v2668 = vpop.f32.mrb[0].mxu0
    %v2669 = vadd.f32 0.0, %v2668
    %v2670 = vpop.f32.mrb[0].mxu0
    %v2671 = vpop.f32.mrb[0].mxu0
    %v2672 = vadd.f32 0.0, %v2671
    %v2673 = vpop.f32.mrb[0].mxu0
    %2674 = vmatprep.mubr.bf16.mxu0 0
    %2675 = vmatmul.mubr.bf16.gmra.mrb[0].mxu0 %v2529
    %v2676 = vpop.f32.mrb[0].mxu0
    %v2677 = vadd.f32 0.0, %v2676
    %v2678 = vpop.f32.mrb[0].mxu0
    %v2679 = vpop.f32.mrb[0].mxu0
    %v2680 = vadd.f32 0.0, %v2679
    %v2681 = vpop.f32.mrb[0].mxu0
    %2682 = vmatprep.mubr.bf16.mxu0 0
    %2683 = vmatmul.mubr.bf16.gmra.mrb[0].mxu0 %v2537
    %v2684 = vpop.f32.mrb[0].mxu0
    %v2685 = vadd.f32 0.0, %v2684
    %v2686 = vpop.f32.mrb[0].mxu0
    %v2687 = vpop.f32.mrb[0].mxu0
    %v2688 = vadd.f32 0.0, %v2687
    %v2689 = vpop.f32.mrb[0].mxu0
    %2690 = vmatprep.mubr.bf16.mxu0 0
    %2691 = vmatmul.mubr.bf16.gmra.mrb[0].mxu0 %v2545
    %v2692 = vpop.f32.mrb[0].mxu0
    %v2693 = vadd.f32 0.0, %v2692
    %v2694 = vpop.f32.mrb[0].mxu0
    %v2695 = vpop.f32.mrb[0].mxu0
    %v2696 = vadd.f32 0.0, %v2695
    %v2697 = vpop.f32.mrb[0].mxu0
    %2698 = vmatprep.mubr.bf16.mxu0 0
    %2699 = vmatmul.mubr.bf16.gmra.mrb[0].mxu0 %v2553
    %v2700 = vpop.f32.mrb[0].mxu0
    %v2701 = vadd.f32 0.0, %v2700
    %v2702 = vpop.f32.mrb[0].mxu0
    %v2703 = vpop.f32.mrb[0].mxu0
    %v2704 = vadd.f32 0.0, %v2703
    %v2705 = vpop.f32.mrb[0].mxu0
    %2706 = vmatprep.mubr.bf16.mxu0 0
    %2707 = vmatmul.mubr.bf16.gmra.mrb[0].mxu0 %v2561
    %v2708 = vpop.f32.mrb[0].mxu0
    %v2709 = vadd.f32 0.0, %v2708
    %v2710 = vpop.f32.mrb[0].mxu0
    %v2711 = vpop.f32.mrb[0].mxu0
    %v2712 = vadd.f32 0.0, %v2711
    %v2713 = vpop.f32.mrb[0].mxu0
    %2714 = vdwg.mxu0
    %v2715 = vadd.f32 %v2452, %v2653
    %v2716 = vadd.f32 %v2453, %v2656
    %v2717 = vadd.f32 %v2454, %v2661
    %v2718 = vadd.f32 %v2455, %v2664
    %v2719 = vadd.f32 %v2456, %v2669
    %v2720 = vadd.f32 %v2457, %v2672
    %v2721 = vadd.f32 %v2458, %v2677
    %v2722 = vadd.f32 %v2459, %v2680
    %v2723 = vadd.f32 %v2460, %v2685
    %v2724 = vadd.f32 %v2461, %v2688
    %v2725 = vadd.f32 %v2462, %v2693
    %v2726 = vadd.f32 %v2463, %v2696
    %v2727 = vadd.f32 %v2464, %v2701
    %v2728 = vadd.f32 %v2465, %v2704
    %v2729 = vadd.f32 %v2466, %v2709
    %v2730 = vadd.f32 %v2467, %v2712
    %v2731 = vld [vmem:[#allocation2 + $0x10] sm:$0xfe]
    %s2732 = scalar_lea.vmem [#allocation4], 512
    %v2733 = vld [vmem:[%s2732] sm:$0xf]
    %v2734 = vld [vmem:[%s2732 + $0x4] sm:$0xf]
    %v2735 = vld [vmem:[%s2732 + $0x8] sm:$0xf]
    %v2736 = vld [vmem:[%s2732 + $0xc] sm:$0xf]
    %v2737 = vld [vmem:[%s2732 + $0x10] sm:$0xf]
    %v2738 = vld [vmem:[%s2732 + $0x14] sm:$0xf]
    %v2739 = vld [vmem:[%s2732 + $0x18] sm:$0xf]
    %v2740 = vld [vmem:[%s2732 + $0x1c] sm:$0xf]
    %v2741 = vld [vmem:[%s2732 + $0x20] sm:$0xf]
    %v2742 = vld [vmem:[%s2732 + $0x24] sm:$0xf]
    %v2743 = vld [vmem:[%s2732 + $0x28] sm:$0xf]
    %v2744 = vld [vmem:[%s2732 + $0x2c] sm:$0xf]
    %v2745 = vld [vmem:[%s2732 + $0x30] sm:$0xf]
    %v2746 = vld [vmem:[%s2732 + $0x34] sm:$0xf]
    %v2747 = vld [vmem:[%s2732 + $0x38] sm:$0xf]
    %v2748 = vld [vmem:[%s2732 + $0x3c] sm:$0xf]
    %v2758 = vrot.slane %v2731, 1
    %v2759 = vrot.slane %v2469, 1
    %v2760 = vsel %vm1447, %v2758, %v2759
    %v2761 = vrot.slane %v2470, 1
    %v2762 = vsel %vm1447, %v2759, %v2761
    %v2763 = vrot.slane %v2471, 1
    %v2764 = vsel %vm1447, %v2761, %v2763
    %v2765 = vrot.slane %v2472, 1
    %v2766 = vsel %vm1447, %v2763, %v2765
    %v2767 = vrot.slane %v2473, 1
    %v2768 = vsel %vm1447, %v2765, %v2767
    %v2769 = vrot.slane %v2474, 1
    %v2770 = vsel %vm1447, %v2767, %v2769
    %v2771 = vrot.slane %v2475, 1
    %v2772 = vsel %vm1447, %v2769, %v2771
    %v2773 = vrot.slane %v2476, 1
    %v2774 = vsel %vm1447, %v2771, %v2773
    %v2799 = vunpack.c.l.b16 %v2733
    %v2800 = vunpack.c.l.b16 %v2734
    %v2801 = vunpack.c.l.b16 %v2735
    %v2802 = vunpack.c.l.b16 %v2736
    %v2803 = vunpack.c.l.b16 %v2737
    %v2804 = vunpack.c.l.b16 %v2738
    %v2805 = vunpack.c.l.b16 %v2739
    %v2806 = vunpack.c.l.b16 %v2740
    %v2807 = vunpack.c.l.b16 %v2741
    %v2808 = vunpack.c.l.b16 %v2742
    %v2809 = vunpack.c.l.b16 %v2743
    %v2810 = vunpack.c.l.b16 %v2744
    %v2811 = vunpack.c.l.b16 %v2745
    %v2812 = vunpack.c.l.b16 %v2746
    %v2813 = vunpack.c.l.b16 %v2747
    %v2814 = vunpack.c.l.b16 %v2748
    %v2815 = vpack.c.b16 %v2800, %v2799
    %v2816 = vpack.c.b16 %v2802, %v2801
    %v2817 = vpack.c.b16 %v2804, %v2803
    %v2818 = vpack.c.b16 %v2806, %v2805
    %v2819 = vpack.c.b16 %v2808, %v2807
    %v2820 = vpack.c.b16 %v2810, %v2809
    %v2821 = vpack.c.b16 %v2812, %v2811
    %v2822 = vpack.c.b16 %v2814, %v2813
    %2831 = vmatprep.subr.bf16.mxu0 0
    %2832 = vmatpush1.bf16.msra.mxu0 %v2815
    %2833 = vmatprep.subr.bf16.mxu0 0
    %2834 = vmatpush1.bf16.msra.mxu0 %v2816
    %2835 = vmatprep.subr.bf16.mxu0 0
    %2836 = vmatpush1.bf16.msra.mxu0 %v2817
    %2837 = vmatprep.subr.bf16.mxu0 0
    %2838 = vmatpush1.bf16.msra.mxu0 %v2818
    %2839 = vmatprep.subr.bf16.mxu0 0
    %2840 = vmatpush1.bf16.msra.mxu0 %v2819
    %2841 = vmatprep.subr.bf16.mxu0 0
    %2842 = vmatpush1.bf16.msra.mxu0 %v2820
    %2843 = vmatprep.subr.bf16.mxu0 0
    %2844 = vmatpush1.bf16.msra.mxu0 %v2821
    %2845 = vmatprep.subr.bf16.mxu0 0
    %2846 = vmatpush1.bf16.msra.mxu0 %v2822
    %2847 = vmatprep.subr.bf16.mxu0 0
    %2848 = vmatpush1.bf16.msra.mxu0 0
    %2849 = vmatprep.subr.bf16.mxu0 0
    %2850 = vmatpush1.bf16.msra.mxu0 0
    %2851 = vmatprep.subr.bf16.mxu0 0
    %2852 = vmatpush1.bf16.msra.mxu0 0
    %2853 = vmatprep.subr.bf16.mxu0 0
    %2854 = vmatpush1.bf16.msra.mxu0 0
    %2855 = vmatprep.subr.bf16.mxu0 0
    %2856 = vmatpush1.bf16.msra.mxu0 0
    %2857 = vmatprep.subr.bf16.mxu0 0
    %2858 = vmatpush1.bf16.msra.mxu0 0
    %2859 = vmatprep.subr.bf16.mxu0 0
    %2860 = vmatpush1.bf16.msra.mxu0 0
    %2861 = vmatprep.subr.bf16.mxu0 0
    %2862 = vmatpush1.bf16.msra.mxu0 0
    %2863 = vmatprep.mubr.bf16.mxu0 0
    %2864 = vmatmul.mubr.bf16.gmra.mrb[0].mxu0 %v2760
    %v2865 = vpop.f32.mrb[0].mxu0
    %v2866 = vadd.f32 0.0, %v2865
    %v2867 = vpop.f32.mrb[0].mxu0
    %v2868 = vpop.f32.mrb[0].mxu0
    %v2869 = vadd.f32 0.0, %v2868
    %v2870 = vpop.f32.mrb[0].mxu0
    %2871 = vmatprep.mubr.bf16.mxu0 0
    %2872 = vmatmul.mubr.bf16.gmra.mrb[0].mxu0 %v2762
    %v2873 = vpop.f32.mrb[0].mxu0
    %v2874 = vadd.f32 0.0, %v2873
    %v2875 = vpop.f32.mrb[0].mxu0
    %v2876 = vpop.f32.mrb[0].mxu0
    %v2877 = vadd.f32 0.0, %v2876
    %v2878 = vpop.f32.mrb[0].mxu0
    %2879 = vmatprep.mubr.bf16.mxu0 0
    %2880 = vmatmul.mubr.bf16.gmra.mrb[0].mxu0 %v2764
    %v2881 = vpop.f32.mrb[0].mxu0
    %v2882 = vadd.f32 0.0, %v2881
    %v2883 = vpop.f32.mrb[0].mxu0
    %v2884 = vpop.f32.mrb[0].mxu0
    %v2885 = vadd.f32 0.0, %v2884
    %v2886 = vpop.f32.mrb[0].mxu0
    %2887 = vmatprep.mubr.bf16.mxu0 0
    %2888 = vmatmul.mubr.bf16.gmra.mrb[0].mxu0 %v2766
    %v2889 = vpop.f32.mrb[0].mxu0
    %v2890 = vadd.f32 0.0, %v2889
    %v2891 = vpop.f32.mrb[0].mxu0
    %v2892 = vpop.f32.mrb[0].mxu0
    %v2893 = vadd.f32 0.0, %v2892
    %v2894 = vpop.f32.mrb[0].mxu0
    %2895 = vmatprep.mubr.bf16.mxu0 0
    %2896 = vmatmul.mubr.bf16.gmra.mrb[0].mxu0 %v2768
    %v2897 = vpop.f32.mrb[0].mxu0
    %v2898 = vadd.f32 0.0, %v2897
    %v2899 = vpop.f32.mrb[0].mxu0
    %v2900 = vpop.f32.mrb[0].mxu0
    %v2901 = vadd.f32 0.0, %v2900
    %v2902 = vpop.f32.mrb[0].mxu0
    %2903 = vmatprep.mubr.bf16.mxu0 0
    %2904 = vmatmul.mubr.bf16.gmra.mrb[0].mxu0 %v2770
    %v2905 = vpop.f32.mrb[0].mxu0
    %v2906 = vadd.f32 0.0, %v2905
    %v2907 = vpop.f32.mrb[0].mxu0
    %v2908 = vpop.f32.mrb[0].mxu0
    %v2909 = vadd.f32 0.0, %v2908
    %v2910 = vpop.f32.mrb[0].mxu0
    %2911 = vmatprep.mubr.bf16.mxu0 0
    %2912 = vmatmul.mubr.bf16.gmra.mrb[0].mxu0 %v2772
    %v2913 = vpop.f32.mrb[0].mxu0
    %v2914 = vadd.f32 0.0, %v2913
    %v2915 = vpop.f32.mrb[0].mxu0
    %v2916 = vpop.f32.mrb[0].mxu0
    %v2917 = vadd.f32 0.0, %v2916
    %v2918 = vpop.f32.mrb[0].mxu0
    %2919 = vmatprep.mubr.bf16.mxu0 0
    %2920 = vmatmul.mubr.bf16.gmra.mrb[0].mxu0 %v2774
    %v2921 = vpop.f32.mrb[0].mxu0
    %v2922 = vadd.f32 0.0, %v2921
    %v2923 = vpop.f32.mrb[0].mxu0
    %v2924 = vpop.f32.mrb[0].mxu0
    %v2925 = vadd.f32 0.0, %v2924
    %v2926 = vpop.f32.mrb[0].mxu0
    %2927 = vdwg.mxu0
    %v2928 = vadd.f32 %v2715, %v2866
    %v2929 = vadd.f32 %v2716, %v2869
    %v2930 = vadd.f32 %v2717, %v2874
    %v2931 = vadd.f32 %v2718, %v2877
    %v2932 = vadd.f32 %v2719, %v2882
    %v2933 = vadd.f32 %v2720, %v2885
    %v2934 = vadd.f32 %v2721, %v2890
    %v2935 = vadd.f32 %v2722, %v2893
    %v2936 = vadd.f32 %v2723, %v2898
    %v2937 = vadd.f32 %v2724, %v2901
    %v2938 = vadd.f32 %v2725, %v2906
    %v2939 = vadd.f32 %v2726, %v2909
    %v2940 = vadd.f32 %v2727, %v2914
    %v2941 = vadd.f32 %v2728, %v2917
    %v2942 = vadd.f32 %v2729, %v2922
    %v2943 = vadd.f32 %v2730, %v2925
    %2944 = vst [vmem:[#allocation3] sm:$0xff] %v2928
    %2945 = vst [vmem:[#allocation3 + $0x8] sm:$0xff] %v2929
    %2946 = vst [vmem:[#allocation3 + $0x10] sm:$0xff] %v2930
    %2947 = vst [vmem:[#allocation3 + $0x18] sm:$0xff] %v2931
    %2948 = vst [vmem:[#allocation3 + $0x20] sm:$0xff] %v2932
    %2949 = vst [vmem:[#allocation3 + $0x28] sm:$0xff] %v2933
    %2950 = vst [vmem:[#allocation3 + $0x30] sm:$0xff] %v2934
    %2951 = vst [vmem:[#allocation3 + $0x38] sm:$0xff] %v2935
    %2952 = vst [vmem:[#allocation3 + $0x40] sm:$0xff] %v2936
    %2953 = vst [vmem:[#allocation3 + $0x48] sm:$0xff] %v2937
    %2954 = vst [vmem:[#allocation3 + $0x50] sm:$0xff] %v2938
    %2955 = vst [vmem:[#allocation3 + $0x58] sm:$0xff] %v2939
    %2956 = vst [vmem:[#allocation3 + $0x60] sm:$0xff] %v2940
    %2957 = vst [vmem:[#allocation3 + $0x68] sm:$0xff] %v2941
    %2958 = vst [vmem:[#allocation3 + $0x70] sm:$0xff] %v2942
    %2959 = vst [vmem:[#allocation3 + $0x78] sm:$0xff] %v2943
    %v2960 = vld [vmem:[#allocation3] ss:$2 sm:$0xff]
    %s2961 = scalar_lea.vmem [#allocation3], 16
    %v2962 = vld [vmem:[%s2961] ss:$2 sm:$0xff]
    %s2963 = scalar_lea.vmem [#allocation3], 32
    %v2964 = vld [vmem:[%s2963] ss:$2 sm:$0xff]
    %s2965 = scalar_lea.vmem [#allocation3], 48
    %v2966 = vld [vmem:[%s2965] ss:$2 sm:$0xff]
    %s2967 = scalar_lea.vmem [#allocation3], 64
    %v2968 = vld [vmem:[%s2967] ss:$2 sm:$0xff]
    %s2969 = scalar_lea.vmem [#allocation3], 80
    %v2970 = vld [vmem:[%s2969] ss:$2 sm:$0xff]
    %s2971 = scalar_lea.vmem [#allocation3], 96
    %v2972 = vld [vmem:[%s2971] ss:$2 sm:$0xff]
    %s2973 = scalar_lea.vmem [#allocation3], 112
    %v2974 = vld [vmem:[%s2973] ss:$2 sm:$0xff]
    %s2975 = scalar_lea.vmem [#allocation3], 1
    %v2976 = vld [vmem:[%s2975] ss:$2 sm:$0xff]
    %s2977 = scalar_lea.vmem [#allocation3], 17
    %v2978 = vld [vmem:[%s2977] ss:$2 sm:$0xff]
    %s2979 = scalar_lea.vmem [#allocation3], 33
    %v2980 = vld [vmem:[%s2979] ss:$2 sm:$0xff]
    %s2981 = scalar_lea.vmem [#allocation3], 49
    %v2982 = vld [vmem:[%s2981] ss:$2 sm:$0xff]
    %s2983 = scalar_lea.vmem [#allocation3], 65
    %v2984 = vld [vmem:[%s2983] ss:$2 sm:$0xff]
    %s2985 = scalar_lea.vmem [#allocation3], 81
    %v2986 = vld [vmem:[%s2985] ss:$2 sm:$0xff]
    %s2987 = scalar_lea.vmem [#allocation3], 97
    %v2988 = vld [vmem:[%s2987] ss:$2 sm:$0xff]
    %s2989 = scalar_lea.vmem [#allocation3], 113
    %v2990 = vld [vmem:[%s2989] ss:$2 sm:$0xff]
    %v2991 = vmax.f32 %v2960, %v2976
    %v2992 = vmax.f32 %v2962, %v2978
    %v2993 = vmax.f32 %v2964, %v2980
    %v2994 = vmax.f32 %v2966, %v2982
    %v2995 = vmax.f32 %v2968, %v2984
    %v2996 = vmax.f32 %v2970, %v2986
    %v2997 = vmax.f32 %v2972, %v2988
    %v2998 = vmax.f32 %v2974, %v2990
    %v2999 = vmax.f32 %v2991, %v2992
    %v3001 = vlaneseq
    %v3002 = vshrl.u32 %v3001, 7
    %v3003 = vsub.s32 0, %v3002
    %v3004 = vrot.slane %v37, %v3003
    %v3006 = vadd.f32 %v2999, %v3004
    %v3007 = vmax.f32 %v3006, 0.0
    %3008 = vst [vmem:[#allocation7] sm:$0xff] %v3007
    %v3009 = vmax.f32 %v2993, %v2994
    %v3010 = vadd.f32 %v3009, %v3004
    %v3011 = vmax.f32 %v3010, 0.0
    %3012 = vst [vmem:[#allocation7 + $0x8] sm:$0xff] %v3011
    %v3013 = vmax.f32 %v2995, %v2996
    %v3014 = vadd.f32 %v3013, %v3004
    %v3015 = vmax.f32 %v3014, 0.0
    %3016 = vst [vmem:[#allocation7 + $0x10] sm:$0xff] %v3015
    %v3017 = vmax.f32 %v2997, %v2998
    %v3018 = vadd.f32 %v3017, %v3004
    %v3019 = vmax.f32 %v3018, 0.0
    %3020 = vst [vmem:[#allocation7 + $0x18] sm:$0xff] %v3019
    %v3021 = vld [vmem:[#allocation2 + $0x40] sm:$0xff]
    %v3022 = vld [vmem:[#allocation2 + $0x48] sm:$0xff]
    %v3023 = vld [vmem:[#allocation2 + $0x50] sm:$0xff]
    %v3024 = vld [vmem:[#allocation2 + $0x58] sm:$0xff]
    %v3025 = vld [vmem:[#allocation2 + $0x60] sm:$0xff]
    %v3026 = vld [vmem:[#allocation2 + $0x68] sm:$0xff]
    %v3027 = vld [vmem:[#allocation4] sm:$0xf]
    %v3028 = vld [vmem:[#allocation4 + $0x4] sm:$0xf]
    %v3029 = vld [vmem:[#allocation4 + $0x8] sm:$0xf]
    %v3030 = vld [vmem:[#allocation4 + $0xc] sm:$0xf]
    %v3031 = vld [vmem:[#allocation4 + $0x10] sm:$0xf]
    %v3032 = vld [vmem:[#allocation4 + $0x14] sm:$0xf]
    %v3033 = vld [vmem:[#allocation4 + $0x18] sm:$0xf]
    %v3034 = vld [vmem:[#allocation4 + $0x1c] sm:$0xf]
    %v3035 = vld [vmem:[#allocation4 + $0x20] sm:$0xf]
    %v3036 = vld [vmem:[#allocation4 + $0x24] sm:$0xf]
    %v3037 = vld [vmem:[#allocation4 + $0x28] sm:$0xf]
    %v3038 = vld [vmem:[#allocation4 + $0x2c] sm:$0xf]
    %v3039 = vld [vmem:[#allocation4 + $0x30] sm:$0xf]
    %v3040 = vld [vmem:[#allocation4 + $0x34] sm:$0xf]
    %v3041 = vld [vmem:[#allocation4 + $0x38] sm:$0xf]
    %v3042 = vld [vmem:[#allocation4 + $0x3c] sm:$0xf]
    %v3043 = vld [vmem:[#allocation2 + $0x70] sm:$0x1]
    %v3044 = vld [vmem:[%s1036] sm:$0xf]
    %v3045 = vld [vmem:[%s1036 + $0x4] sm:$0xf]
    %v3046 = vld [vmem:[%s1036 + $0x8] sm:$0xf]
    %v3047 = vld [vmem:[%s1036 + $0xc] sm:$0xf]
    %v3048 = vld [vmem:[%s1036 + $0x10] sm:$0xf]
    %v3049 = vld [vmem:[%s1036 + $0x14] sm:$0xf]
    %v3050 = vld [vmem:[%s1036 + $0x18] sm:$0xf]
    %v3051 = vld [vmem:[%s1036 + $0x1c] sm:$0xf]
    %v3052 = vld [vmem:[%s1036 + $0x20] sm:$0xf]
    %v3053 = vld [vmem:[%s1036 + $0x24] sm:$0xf]
    %v3054 = vld [vmem:[%s1036 + $0x28] sm:$0xf]
    %v3055 = vld [vmem:[%s1036 + $0x2c] sm:$0xf]
    %v3056 = vld [vmem:[%s1036 + $0x30] sm:$0xf]
    %v3057 = vld [vmem:[%s1036 + $0x34] sm:$0xf]
    %v3058 = vld [vmem:[%s1036 + $0x38] sm:$0xf]
    %v3059 = vld [vmem:[%s1036 + $0x3c] sm:$0xf]
    %v3061 = vshrl.u32 %v3021, 16
    %v3063 = vshll.u32 %v3021, 16
    %v3065 = vrot.slane %v3063, 1
    %v3066 = vor.u32 %v3061, %v3065
    %v3068 = vshll.u32 %v3022, 16
    %v3070 = vrot.slane %v3068, 1
    %v3071 = vsel %vm1053, %v3066, %v3070
    %v3072 = vshrl.u32 %v3022, 16
    %v3074 = vor.u32 %v3072, %v3070
    %v3076 = vshll.u32 %v3023, 16
    %v3078 = vrot.slane %v3076, 1
    %v3079 = vsel %vm1053, %v3074, %v3078
    %v3080 = vshrl.u32 %v3023, 16
    %v3082 = vor.u32 %v3080, %v3078
    %v3084 = vshll.u32 %v3024, 16
    %v3086 = vrot.slane %v3084, 1
    %v3087 = vsel %vm1053, %v3082, %v3086
    %v3088 = vshrl.u32 %v3024, 16
    %v3090 = vor.u32 %v3088, %v3086
    %v3092 = vshll.u32 %v3025, 16
    %v3094 = vrot.slane %v3092, 1
    %v3095 = vsel %vm1053, %v3090, %v3094
    %v3096 = vshrl.u32 %v3025, 16
    %v3098 = vor.u32 %v3096, %v3094
    %v3100 = vshll.u32 %v3026, 16
    %v3102 = vrot.slane %v3100, 1
    %v3103 = vsel %vm1053, %v3098, %v3102
    %v3104 = vshrl.u32 %v3026, 16
    %v3106 = vor.u32 %v3104, %v3102
    %v3108 = vshll.u32 %v3043, 16
    %v3110 = vrot.slane %v3108, 1
    %v3111 = vsel %vm1053, %v3106, %v3110
    %v3134 = vunpack.c.l.b16 %v3044
    %v3135 = vunpack.c.l.b16 %v3045
    %v3136 = vunpack.c.l.b16 %v3046
    %v3137 = vunpack.c.l.b16 %v3047
    %v3138 = vunpack.c.l.b16 %v3048
    %v3139 = vunpack.c.l.b16 %v3049
    %v3140 = vunpack.c.l.b16 %v3050
    %v3141 = vunpack.c.l.b16 %v3051
    %v3142 = vunpack.c.l.b16 %v3052
    %v3143 = vunpack.c.l.b16 %v3053
    %v3144 = vunpack.c.l.b16 %v3054
    %v3145 = vunpack.c.l.b16 %v3055
    %v3146 = vunpack.c.l.b16 %v3056
    %v3147 = vunpack.c.l.b16 %v3057
    %v3148 = vunpack.c.l.b16 %v3058
    %v3149 = vunpack.c.l.b16 %v3059
    %v3150 = vpack.c.b16 %v3135, %v3134
    %v3151 = vpack.c.b16 %v3137, %v3136
    %v3152 = vpack.c.b16 %v3139, %v3138
    %v3153 = vpack.c.b16 %v3141, %v3140
    %v3154 = vpack.c.b16 %v3143, %v3142
    %v3155 = vpack.c.b16 %v3145, %v3144
    %v3156 = vpack.c.b16 %v3147, %v3146
    %v3157 = vpack.c.b16 %v3149, %v3148
    %3166 = vmatprep.subr.bf16.mxu0 0
    %3167 = vmatpush1.bf16.msra.mxu0 %v3150
    %3168 = vmatprep.subr.bf16.mxu0 0
    %3169 = vmatpush1.bf16.msra.mxu0 %v3151
    %3170 = vmatprep.subr.bf16.mxu0 0
    %3171 = vmatpush1.bf16.msra.mxu0 %v3152
    %3172 = vmatprep.subr.bf16.mxu0 0
    %3173 = vmatpush1.bf16.msra.mxu0 %v3153
    %3174 = vmatprep.subr.bf16.mxu0 0
    %3175 = vmatpush1.bf16.msra.mxu0 %v3154
    %3176 = vmatprep.subr.bf16.mxu0 0
    %3177 = vmatpush1.bf16.msra.mxu0 %v3155
    %3178 = vmatprep.subr.bf16.mxu0 0
    %3179 = vmatpush1.bf16.msra.mxu0 %v3156
    %3180 = vmatprep.subr.bf16.mxu0 0
    %3181 = vmatpush1.bf16.msra.mxu0 %v3157
    %3182 = vmatprep.subr.bf16.mxu0 0
    %3183 = vmatpush1.bf16.msra.mxu0 0
    %3184 = vmatprep.subr.bf16.mxu0 0
    %3185 = vmatpush1.bf16.msra.mxu0 0
    %3186 = vmatprep.subr.bf16.mxu0 0
    %3187 = vmatpush1.bf16.msra.mxu0 0
    %3188 = vmatprep.subr.bf16.mxu0 0
    %3189 = vmatpush1.bf16.msra.mxu0 0
    %3190 = vmatprep.subr.bf16.mxu0 0
    %3191 = vmatpush1.bf16.msra.mxu0 0
    %3192 = vmatprep.subr.bf16.mxu0 0
    %3193 = vmatpush1.bf16.msra.mxu0 0
    %3194 = vmatprep.subr.bf16.mxu0 0
    %3195 = vmatpush1.bf16.msra.mxu0 0
    %3196 = vmatprep.subr.bf16.mxu0 0
    %3197 = vmatpush1.bf16.msra.mxu0 0
    %3198 = vmatprep.mubr.bf16.mxu0 0
    %3199 = vmatmul.mubr.bf16.gmra.mrb[0].mxu0 %v3071
    %v3200 = vpop.f32.mrb[0].mxu0
    %v3201 = vadd.f32 0.0, %v3200
    %v3202 = vpop.f32.mrb[0].mxu0
    %v3203 = vpop.f32.mrb[0].mxu0
    %v3204 = vadd.f32 0.0, %v3203
    %v3205 = vpop.f32.mrb[0].mxu0
    %3206 = vmatprep.mubr.bf16.mxu0 0
    %3207 = vmatmul.mubr.bf16.gmra.mrb[0].mxu0 %v3079
    %v3208 = vpop.f32.mrb[0].mxu0
    %v3209 = vadd.f32 0.0, %v3208
    %v3210 = vpop.f32.mrb[0].mxu0
    %v3211 = vpop.f32.mrb[0].mxu0
    %v3212 = vadd.f32 0.0, %v3211
    %v3213 = vpop.f32.mrb[0].mxu0
    %3214 = vmatprep.mubr.bf16.mxu0 0
    %3215 = vmatmul.mubr.bf16.gmra.mrb[0].mxu0 %v3087
    %v3216 = vpop.f32.mrb[0].mxu0
    %v3217 = vadd.f32 0.0, %v3216
    %v3218 = vpop.f32.mrb[0].mxu0
    %v3219 = vpop.f32.mrb[0].mxu0
    %v3220 = vadd.f32 0.0, %v3219
    %v3221 = vpop.f32.mrb[0].mxu0
    %3222 = vmatprep.mubr.bf16.mxu0 0
    %3223 = vmatmul.mubr.bf16.gmra.mrb[0].mxu0 %v3095
    %v3224 = vpop.f32.mrb[0].mxu0
    %v3225 = vadd.f32 0.0, %v3224
    %v3226 = vpop.f32.mrb[0].mxu0
    %v3227 = vpop.f32.mrb[0].mxu0
    %v3228 = vadd.f32 0.0, %v3227
    %v3229 = vpop.f32.mrb[0].mxu0
    %3230 = vmatprep.mubr.bf16.mxu0 0
    %3231 = vmatmul.mubr.bf16.gmra.mrb[0].mxu0 %v3103
    %v3232 = vpop.f32.mrb[0].mxu0
    %v3233 = vadd.f32 0.0, %v3232
    %v3234 = vpop.f32.mrb[0].mxu0
    %v3235 = vpop.f32.mrb[0].mxu0
    %v3236 = vadd.f32 0.0, %v3235
    %v3237 = vpop.f32.mrb[0].mxu0
    %3238 = vmatprep.mubr.bf16.mxu0 0
    %3239 = vmatmul.mubr.bf16.gmra.mrb[0].mxu0 %v3111
    %v3240 = vpop.f32.mrb[0].mxu0
    %v3241 = vadd.f32 0.0, %v3240
    %v3242 = vpop.f32.mrb[0].mxu0
    %v3243 = vpop.f32.mrb[0].mxu0
    %v3244 = vadd.f32 0.0, %v3243
    %v3245 = vpop.f32.mrb[0].mxu0
    %3246 = vdwg.mxu0
    %v3263 = vunpack.c.l.b16 %v3027
    %v3264 = vunpack.c.l.b16 %v3028
    %v3265 = vunpack.c.l.b16 %v3029
    %v3266 = vunpack.c.l.b16 %v3030
    %v3267 = vunpack.c.l.b16 %v3031
    %v3268 = vunpack.c.l.b16 %v3032
    %v3269 = vunpack.c.l.b16 %v3033
    %v3270 = vunpack.c.l.b16 %v3034
    %v3271 = vunpack.c.l.b16 %v3035
    %v3272 = vunpack.c.l.b16 %v3036
    %v3273 = vunpack.c.l.b16 %v3037
    %v3274 = vunpack.c.l.b16 %v3038
    %v3275 = vunpack.c.l.b16 %v3039
    %v3276 = vunpack.c.l.b16 %v3040
    %v3277 = vunpack.c.l.b16 %v3041
    %v3278 = vunpack.c.l.b16 %v3042
    %v3279 = vpack.c.b16 %v3264, %v3263
    %v3280 = vpack.c.b16 %v3266, %v3265
    %v3281 = vpack.c.b16 %v3268, %v3267
    %v3282 = vpack.c.b16 %v3270, %v3269
    %v3283 = vpack.c.b16 %v3272, %v3271
    %v3284 = vpack.c.b16 %v3274, %v3273
    %v3285 = vpack.c.b16 %v3276, %v3275
    %v3286 = vpack.c.b16 %v3278, %v3277
    %3295 = vmatprep.subr.bf16.mxu0 0
    %3296 = vmatpush1.bf16.msra.mxu0 %v3279
    %3297 = vmatprep.subr.bf16.mxu0 0
    %3298 = vmatpush1.bf16.msra.mxu0 %v3280
    %3299 = vmatprep.subr.bf16.mxu0 0
    %3300 = vmatpush1.bf16.msra.mxu0 %v3281
    %3301 = vmatprep.subr.bf16.mxu0 0
    %3302 = vmatpush1.bf16.msra.mxu0 %v3282
    %3303 = vmatprep.subr.bf16.mxu0 0
    %3304 = vmatpush1.bf16.msra.mxu0 %v3283
    %3305 = vmatprep.subr.bf16.mxu0 0
    %3306 = vmatpush1.bf16.msra.mxu0 %v3284
    %3307 = vmatprep.subr.bf16.mxu0 0
    %3308 = vmatpush1.bf16.msra.mxu0 %v3285
    %3309 = vmatprep.subr.bf16.mxu0 0
    %3310 = vmatpush1.bf16.msra.mxu0 %v3286
    %3311 = vmatprep.subr.bf16.mxu0 0
    %3312 = vmatpush1.bf16.msra.mxu0 0
    %3313 = vmatprep.subr.bf16.mxu0 0
    %3314 = vmatpush1.bf16.msra.mxu0 0
    %3315 = vmatprep.subr.bf16.mxu0 0
    %3316 = vmatpush1.bf16.msra.mxu0 0
    %3317 = vmatprep.subr.bf16.mxu0 0
    %3318 = vmatpush1.bf16.msra.mxu0 0
    %3319 = vmatprep.subr.bf16.mxu0 0
    %3320 = vmatpush1.bf16.msra.mxu0 0
    %3321 = vmatprep.subr.bf16.mxu0 0
    %3322 = vmatpush1.bf16.msra.mxu0 0
    %3323 = vmatprep.subr.bf16.mxu0 0
    %3324 = vmatpush1.bf16.msra.mxu0 0
    %3325 = vmatprep.subr.bf16.mxu0 0
    %3326 = vmatpush1.bf16.msra.mxu0 0
    %3327 = vmatprep.mubr.bf16.mxu0 0
    %3328 = vmatmul.mubr.bf16.gmra.mrb[0].mxu0 %v3021
    %v3329 = vpop.f32.mrb[0].mxu0
    %v3330 = vadd.f32 %v3201, %v3329
    %v3331 = vpop.f32.mrb[0].mxu0
    %v3332 = vpop.f32.mrb[0].mxu0
    %v3333 = vadd.f32 %v3204, %v3332
    %v3334 = vpop.f32.mrb[0].mxu0
    %3335 = vmatprep.mubr.bf16.mxu0 0
    %3336 = vmatmul.mubr.bf16.gmra.mrb[0].mxu0 %v3022
    %v3337 = vpop.f32.mrb[0].mxu0
    %v3338 = vadd.f32 %v3209, %v3337
    %v3339 = vpop.f32.mrb[0].mxu0
    %v3340 = vpop.f32.mrb[0].mxu0
    %v3341 = vadd.f32 %v3212, %v3340
    %v3342 = vpop.f32.mrb[0].mxu0
    %3343 = vmatprep.mubr.bf16.mxu0 0
    %3344 = vmatmul.mubr.bf16.gmra.mrb[0].mxu0 %v3023
    %v3345 = vpop.f32.mrb[0].mxu0
    %v3346 = vadd.f32 %v3217, %v3345
    %v3347 = vpop.f32.mrb[0].mxu0
    %v3348 = vpop.f32.mrb[0].mxu0
    %v3349 = vadd.f32 %v3220, %v3348
    %v3350 = vpop.f32.mrb[0].mxu0
    %3351 = vmatprep.mubr.bf16.mxu0 0
    %3352 = vmatmul.mubr.bf16.gmra.mrb[0].mxu0 %v3024
    %v3353 = vpop.f32.mrb[0].mxu0
    %v3354 = vadd.f32 %v3225, %v3353
    %v3355 = vpop.f32.mrb[0].mxu0
    %v3356 = vpop.f32.mrb[0].mxu0
    %v3357 = vadd.f32 %v3228, %v3356
    %v3358 = vpop.f32.mrb[0].mxu0
    %3359 = vmatprep.mubr.bf16.mxu0 0
    %3360 = vmatmul.mubr.bf16.gmra.mrb[0].mxu0 %v3025
    %v3361 = vpop.f32.mrb[0].mxu0
    %v3362 = vadd.f32 %v3233, %v3361
    %v3363 = vpop.f32.mrb[0].mxu0
    %v3364 = vpop.f32.mrb[0].mxu0
    %v3365 = vadd.f32 %v3236, %v3364
    %v3366 = vpop.f32.mrb[0].mxu0
    %3367 = vmatprep.mubr.bf16.mxu0 0
    %3368 = vmatmul.mubr.bf16.gmra.mrb[0].mxu0 %v3026
    %v3369 = vpop.f32.mrb[0].mxu0
    %v3370 = vadd.f32 %v3241, %v3369
    %v3371 = vpop.f32.mrb[0].mxu0
    %v3372 = vpop.f32.mrb[0].mxu0
    %v3373 = vadd.f32 %v3244, %v3372
    %v3374 = vpop.f32.mrb[0].mxu0
    %3375 = vdwg.mxu0
    %v3376 = vld [vmem:[#allocation2 + $0x40] sm:$0xfe]
    %v3377 = vld [vmem:[%s1421] sm:$0xf]
    %v3378 = vld [vmem:[%s1421 + $0x4] sm:$0xf]
    %v3379 = vld [vmem:[%s1421 + $0x8] sm:$0xf]
    %v3380 = vld [vmem:[%s1421 + $0xc] sm:$0xf]
    %v3381 = vld [vmem:[%s1421 + $0x10] sm:$0xf]
    %v3382 = vld [vmem:[%s1421 + $0x14] sm:$0xf]
    %v3383 = vld [vmem:[%s1421 + $0x18] sm:$0xf]
    %v3384 = vld [vmem:[%s1421 + $0x1c] sm:$0xf]
    %v3385 = vld [vmem:[%s1421 + $0x20] sm:$0xf]
    %v3386 = vld [vmem:[%s1421 + $0x24] sm:$0xf]
    %v3387 = vld [vmem:[%s1421 + $0x28] sm:$0xf]
    %v3388 = vld [vmem:[%s1421 + $0x2c] sm:$0xf]
    %v3389 = vld [vmem:[%s1421 + $0x30] sm:$0xf]
    %v3390 = vld [vmem:[%s1421 + $0x34] sm:$0xf]
    %v3391 = vld [vmem:[%s1421 + $0x38] sm:$0xf]
    %v3392 = vld [vmem:[%s1421 + $0x3c] sm:$0xf]
    %v3400 = vrot.slane %v3376, 1
    %v3401 = vrot.slane %v3022, 1
    %v3402 = vsel %vm1447, %v3400, %v3401
    %v3403 = vrot.slane %v3023, 1
    %v3404 = vsel %vm1447, %v3401, %v3403
    %v3405 = vrot.slane %v3024, 1
    %v3406 = vsel %vm1447, %v3403, %v3405
    %v3407 = vrot.slane %v3025, 1
    %v3408 = vsel %vm1447, %v3405, %v3407
    %v3409 = vrot.slane %v3026, 1
    %v3410 = vsel %vm1447, %v3407, %v3409
    %v3411 = vrot.slane %v3043, 1
    %v3412 = vsel %vm1447, %v3409, %v3411
    %v3435 = vunpack.c.l.b16 %v3377
    %v3436 = vunpack.c.l.b16 %v3378
    %v3437 = vunpack.c.l.b16 %v3379
    %v3438 = vunpack.c.l.b16 %v3380
    %v3439 = vunpack.c.l.b16 %v3381
    %v3440 = vunpack.c.l.b16 %v3382
    %v3441 = vunpack.c.l.b16 %v3383
    %v3442 = vunpack.c.l.b16 %v3384
    %v3443 = vunpack.c.l.b16 %v3385
    %v3444 = vunpack.c.l.b16 %v3386
    %v3445 = vunpack.c.l.b16 %v3387
    %v3446 = vunpack.c.l.b16 %v3388
    %v3447 = vunpack.c.l.b16 %v3389
    %v3448 = vunpack.c.l.b16 %v3390
    %v3449 = vunpack.c.l.b16 %v3391
    %v3450 = vunpack.c.l.b16 %v3392
    %v3451 = vpack.c.b16 %v3436, %v3435
    %v3452 = vpack.c.b16 %v3438, %v3437
    %v3453 = vpack.c.b16 %v3440, %v3439
    %v3454 = vpack.c.b16 %v3442, %v3441
    %v3455 = vpack.c.b16 %v3444, %v3443
    %v3456 = vpack.c.b16 %v3446, %v3445
    %v3457 = vpack.c.b16 %v3448, %v3447
    %v3458 = vpack.c.b16 %v3450, %v3449
    %3467 = vmatprep.subr.bf16.mxu0 0
    %3468 = vmatpush1.bf16.msra.mxu0 %v3451
    %3469 = vmatprep.subr.bf16.mxu0 0
    %3470 = vmatpush1.bf16.msra.mxu0 %v3452
    %3471 = vmatprep.subr.bf16.mxu0 0
    %3472 = vmatpush1.bf16.msra.mxu0 %v3453
    %3473 = vmatprep.subr.bf16.mxu0 0
    %3474 = vmatpush1.bf16.msra.mxu0 %v3454
    %3475 = vmatprep.subr.bf16.mxu0 0
    %3476 = vmatpush1.bf16.msra.mxu0 %v3455
    %3477 = vmatprep.subr.bf16.mxu0 0
    %3478 = vmatpush1.bf16.msra.mxu0 %v3456
    %3479 = vmatprep.subr.bf16.mxu0 0
    %3480 = vmatpush1.bf16.msra.mxu0 %v3457
    %3481 = vmatprep.subr.bf16.mxu0 0
    %3482 = vmatpush1.bf16.msra.mxu0 %v3458
    %3483 = vmatprep.subr.bf16.mxu0 0
    %3484 = vmatpush1.bf16.msra.mxu0 0
    %3485 = vmatprep.subr.bf16.mxu0 0
    %3486 = vmatpush1.bf16.msra.mxu0 0
    %3487 = vmatprep.subr.bf16.mxu0 0
    %3488 = vmatpush1.bf16.msra.mxu0 0
    %3489 = vmatprep.subr.bf16.mxu0 0
    %3490 = vmatpush1.bf16.msra.mxu0 0
    %3491 = vmatprep.subr.bf16.mxu0 0
    %3492 = vmatpush1.bf16.msra.mxu0 0
    %3493 = vmatprep.subr.bf16.mxu0 0
    %3494 = vmatpush1.bf16.msra.mxu0 0
    %3495 = vmatprep.subr.bf16.mxu0 0
    %3496 = vmatpush1.bf16.msra.mxu0 0
    %3497 = vmatprep.subr.bf16.mxu0 0
    %3498 = vmatpush1.bf16.msra.mxu0 0
    %3499 = vmatprep.mubr.bf16.mxu0 0
    %3500 = vmatmul.mubr.bf16.gmra.mrb[0].mxu0 %v3402
    %v3501 = vpop.f32.mrb[0].mxu0
    %v3502 = vadd.f32 0.0, %v3501
    %v3503 = vpop.f32.mrb[0].mxu0
    %v3504 = vpop.f32.mrb[0].mxu0
    %v3505 = vadd.f32 0.0, %v3504
    %v3506 = vpop.f32.mrb[0].mxu0
    %3507 = vmatprep.mubr.bf16.mxu0 0
    %3508 = vmatmul.mubr.bf16.gmra.mrb[0].mxu0 %v3404
    %v3509 = vpop.f32.mrb[0].mxu0
    %v3510 = vadd.f32 0.0, %v3509
    %v3511 = vpop.f32.mrb[0].mxu0
    %v3512 = vpop.f32.mrb[0].mxu0
    %v3513 = vadd.f32 0.0, %v3512
    %v3514 = vpop.f32.mrb[0].mxu0
    %3515 = vmatprep.mubr.bf16.mxu0 0
    %3516 = vmatmul.mubr.bf16.gmra.mrb[0].mxu0 %v3406
    %v3517 = vpop.f32.mrb[0].mxu0
    %v3518 = vadd.f32 0.0, %v3517
    %v3519 = vpop.f32.mrb[0].mxu0
    %v3520 = vpop.f32.mrb[0].mxu0
    %v3521 = vadd.f32 0.0, %v3520
    %v3522 = vpop.f32.mrb[0].mxu0
    %3523 = vmatprep.mubr.bf16.mxu0 0
    %3524 = vmatmul.mubr.bf16.gmra.mrb[0].mxu0 %v3408
    %v3525 = vpop.f32.mrb[0].mxu0
    %v3526 = vadd.f32 0.0, %v3525
    %v3527 = vpop.f32.mrb[0].mxu0
    %v3528 = vpop.f32.mrb[0].mxu0
    %v3529 = vadd.f32 0.0, %v3528
    %v3530 = vpop.f32.mrb[0].mxu0
    %3531 = vmatprep.mubr.bf16.mxu0 0
    %3532 = vmatmul.mubr.bf16.gmra.mrb[0].mxu0 %v3410
    %v3533 = vpop.f32.mrb[0].mxu0
    %v3534 = vadd.f32 0.0, %v3533
    %v3535 = vpop.f32.mrb[0].mxu0
    %v3536 = vpop.f32.mrb[0].mxu0
    %v3537 = vadd.f32 0.0, %v3536
    %v3538 = vpop.f32.mrb[0].mxu0
    %3539 = vmatprep.mubr.bf16.mxu0 0
    %3540 = vmatmul.mubr.bf16.gmra.mrb[0].mxu0 %v3412
    %v3541 = vpop.f32.mrb[0].mxu0
    %v3542 = vadd.f32 0.0, %v3541
    %v3543 = vpop.f32.mrb[0].mxu0
    %v3544 = vpop.f32.mrb[0].mxu0
    %v3545 = vadd.f32 0.0, %v3544
    %v3546 = vpop.f32.mrb[0].mxu0
    %3547 = vdwg.mxu0
    %v3548 = vadd.f32 %v3330, %v3502
    %v3549 = vadd.f32 %v3333, %v3505
    %v3550 = vadd.f32 %v3338, %v3510
    %v3551 = vadd.f32 %v3341, %v3513
    %v3552 = vadd.f32 %v3346, %v3518
    %v3553 = vadd.f32 %v3349, %v3521
    %v3554 = vadd.f32 %v3354, %v3526
    %v3555 = vadd.f32 %v3357, %v3529
    %v3556 = vadd.f32 %v3362, %v3534
    %v3557 = vadd.f32 %v3365, %v3537
    %v3558 = vadd.f32 %v3370, %v3542
    %v3559 = vadd.f32 %v3373, %v3545
    %v3560 = vld [vmem:[#allocation2 + $0x70] sm:$0xff]
    %v3561 = vld [vmem:[%s1635] sm:$0xf]
    %v3562 = vld [vmem:[%s1635 + $0x4] sm:$0xf]
    %v3563 = vld [vmem:[%s1635 + $0x8] sm:$0xf]
    %v3564 = vld [vmem:[%s1635 + $0xc] sm:$0xf]
    %v3565 = vld [vmem:[%s1635 + $0x10] sm:$0xf]
    %v3566 = vld [vmem:[%s1635 + $0x14] sm:$0xf]
    %v3567 = vld [vmem:[%s1635 + $0x18] sm:$0xf]
    %v3568 = vld [vmem:[%s1635 + $0x1c] sm:$0xf]
    %v3569 = vld [vmem:[%s1635 + $0x20] sm:$0xf]
    %v3570 = vld [vmem:[%s1635 + $0x24] sm:$0xf]
    %v3571 = vld [vmem:[%s1635 + $0x28] sm:$0xf]
    %v3572 = vld [vmem:[%s1635 + $0x2c] sm:$0xf]
    %v3573 = vld [vmem:[%s1635 + $0x30] sm:$0xf]
    %v3574 = vld [vmem:[%s1635 + $0x34] sm:$0xf]
    %v3575 = vld [vmem:[%s1635 + $0x38] sm:$0xf]
    %v3576 = vld [vmem:[%s1635 + $0x3c] sm:$0xf]
    %v3593 = vunpack.c.l.b16 %v3561
    %v3594 = vunpack.c.l.b16 %v3562
    %v3595 = vunpack.c.l.b16 %v3563
    %v3596 = vunpack.c.l.b16 %v3564
    %v3597 = vunpack.c.l.b16 %v3565
    %v3598 = vunpack.c.l.b16 %v3566
    %v3599 = vunpack.c.l.b16 %v3567
    %v3600 = vunpack.c.l.b16 %v3568
    %v3601 = vunpack.c.l.b16 %v3569
    %v3602 = vunpack.c.l.b16 %v3570
    %v3603 = vunpack.c.l.b16 %v3571
    %v3604 = vunpack.c.l.b16 %v3572
    %v3605 = vunpack.c.l.b16 %v3573
    %v3606 = vunpack.c.l.b16 %v3574
    %v3607 = vunpack.c.l.b16 %v3575
    %v3608 = vunpack.c.l.b16 %v3576
    %v3609 = vpack.c.b16 %v3594, %v3593
    %v3610 = vpack.c.b16 %v3596, %v3595
    %v3611 = vpack.c.b16 %v3598, %v3597
    %v3612 = vpack.c.b16 %v3600, %v3599
    %v3613 = vpack.c.b16 %v3602, %v3601
    %v3614 = vpack.c.b16 %v3604, %v3603
    %v3615 = vpack.c.b16 %v3606, %v3605
    %v3616 = vpack.c.b16 %v3608, %v3607
    %3625 = vmatprep.subr.bf16.mxu0 0
    %3626 = vmatpush1.bf16.msra.mxu0 %v3609
    %3627 = vmatprep.subr.bf16.mxu0 0
    %3628 = vmatpush1.bf16.msra.mxu0 %v3610
    %3629 = vmatprep.subr.bf16.mxu0 0
    %3630 = vmatpush1.bf16.msra.mxu0 %v3611
    %3631 = vmatprep.subr.bf16.mxu0 0
    %3632 = vmatpush1.bf16.msra.mxu0 %v3612
    %3633 = vmatprep.subr.bf16.mxu0 0
    %3634 = vmatpush1.bf16.msra.mxu0 %v3613
    %3635 = vmatprep.subr.bf16.mxu0 0
    %3636 = vmatpush1.bf16.msra.mxu0 %v3614
    %3637 = vmatprep.subr.bf16.mxu0 0
    %3638 = vmatpush1.bf16.msra.mxu0 %v3615
    %3639 = vmatprep.subr.bf16.mxu0 0
    %3640 = vmatpush1.bf16.msra.mxu0 %v3616
    %3641 = vmatprep.subr.bf16.mxu0 0
    %3642 = vmatpush1.bf16.msra.mxu0 0
    %3643 = vmatprep.subr.bf16.mxu0 0
    %3644 = vmatpush1.bf16.msra.mxu0 0
    %3645 = vmatprep.subr.bf16.mxu0 0
    %3646 = vmatpush1.bf16.msra.mxu0 0
    %3647 = vmatprep.subr.bf16.mxu0 0
    %3648 = vmatpush1.bf16.msra.mxu0 0
    %3649 = vmatprep.subr.bf16.mxu0 0
    %3650 = vmatpush1.bf16.msra.mxu0 0
    %3651 = vmatprep.subr.bf16.mxu0 0
    %3652 = vmatpush1.bf16.msra.mxu0 0
    %3653 = vmatprep.subr.bf16.mxu0 0
    %3654 = vmatpush1.bf16.msra.mxu0 0
    %3655 = vmatprep.subr.bf16.mxu0 0
    %3656 = vmatpush1.bf16.msra.mxu0 0
    %3657 = vmatprep.mubr.bf16.mxu0 0
    %3658 = vmatmul.mubr.bf16.gmra.mrb[0].mxu0 %v3022
    %v3659 = vpop.f32.mrb[0].mxu0
    %v3660 = vadd.f32 0.0, %v3659
    %v3661 = vpop.f32.mrb[0].mxu0
    %v3662 = vpop.f32.mrb[0].mxu0
    %v3663 = vadd.f32 0.0, %v3662
    %v3664 = vpop.f32.mrb[0].mxu0
    %3665 = vmatprep.mubr.bf16.mxu0 0
    %3666 = vmatmul.mubr.bf16.gmra.mrb[0].mxu0 %v3023
    %v3667 = vpop.f32.mrb[0].mxu0
    %v3668 = vadd.f32 0.0, %v3667
    %v3669 = vpop.f32.mrb[0].mxu0
    %v3670 = vpop.f32.mrb[0].mxu0
    %v3671 = vadd.f32 0.0, %v3670
    %v3672 = vpop.f32.mrb[0].mxu0
    %3673 = vmatprep.mubr.bf16.mxu0 0
    %3674 = vmatmul.mubr.bf16.gmra.mrb[0].mxu0 %v3024
    %v3675 = vpop.f32.mrb[0].mxu0
    %v3676 = vadd.f32 0.0, %v3675
    %v3677 = vpop.f32.mrb[0].mxu0
    %v3678 = vpop.f32.mrb[0].mxu0
    %v3679 = vadd.f32 0.0, %v3678
    %v3680 = vpop.f32.mrb[0].mxu0
    %3681 = vmatprep.mubr.bf16.mxu0 0
    %3682 = vmatmul.mubr.bf16.gmra.mrb[0].mxu0 %v3025
    %v3683 = vpop.f32.mrb[0].mxu0
    %v3684 = vadd.f32 0.0, %v3683
    %v3685 = vpop.f32.mrb[0].mxu0
    %v3686 = vpop.f32.mrb[0].mxu0
    %v3687 = vadd.f32 0.0, %v3686
    %v3688 = vpop.f32.mrb[0].mxu0
    %3689 = vmatprep.mubr.bf16.mxu0 0
    %3690 = vmatmul.mubr.bf16.gmra.mrb[0].mxu0 %v3026
    %v3691 = vpop.f32.mrb[0].mxu0
    %v3692 = vadd.f32 0.0, %v3691
    %v3693 = vpop.f32.mrb[0].mxu0
    %v3694 = vpop.f32.mrb[0].mxu0
    %v3695 = vadd.f32 0.0, %v3694
    %v3696 = vpop.f32.mrb[0].mxu0
    %3697 = vmatprep.mubr.bf16.mxu0 0
    %3698 = vmatmul.mubr.bf16.gmra.mrb[0].mxu0 %v3560
    %v3699 = vpop.f32.mrb[0].mxu0
    %v3700 = vadd.f32 0.0, %v3699
    %v3701 = vpop.f32.mrb[0].mxu0
    %v3702 = vpop.f32.mrb[0].mxu0
    %v3703 = vadd.f32 0.0, %v3702
    %v3704 = vpop.f32.mrb[0].mxu0
    %3705 = vdwg.mxu0
    %v3706 = vadd.f32 %v3548, %v3660
    %v3707 = vadd.f32 %v3549, %v3663
    %v3708 = vadd.f32 %v3550, %v3668
    %v3709 = vadd.f32 %v3551, %v3671
    %v3710 = vadd.f32 %v3552, %v3676
    %v3711 = vadd.f32 %v3553, %v3679
    %v3712 = vadd.f32 %v3554, %v3684
    %v3713 = vadd.f32 %v3555, %v3687
    %v3714 = vadd.f32 %v3556, %v3692
    %v3715 = vadd.f32 %v3557, %v3695
    %v3716 = vadd.f32 %v3558, %v3700
    %v3717 = vadd.f32 %v3559, %v3703
    %v3718 = vld [vmem:[#allocation2 + $0x48] sm:$0xff]
    %v3719 = vld [vmem:[#allocation2 + $0x50] sm:$0xff]
    %v3720 = vld [vmem:[#allocation2 + $0x58] sm:$0xff]
    %v3721 = vld [vmem:[#allocation2 + $0x60] sm:$0xff]
    %v3722 = vld [vmem:[#allocation2 + $0x68] sm:$0xff]
    %v3723 = vld [vmem:[#allocation2 + $0x70] sm:$0xff]
    %v3724 = vld [vmem:[#allocation2 + $0x78] sm:$0x1]
    %v3725 = vld [vmem:[%s1822] sm:$0xf]
    %v3726 = vld [vmem:[%s1822 + $0x4] sm:$0xf]
    %v3727 = vld [vmem:[%s1822 + $0x8] sm:$0xf]
    %v3728 = vld [vmem:[%s1822 + $0xc] sm:$0xf]
    %v3729 = vld [vmem:[%s1822 + $0x10] sm:$0xf]
    %v3730 = vld [vmem:[%s1822 + $0x14] sm:$0xf]
    %v3731 = vld [vmem:[%s1822 + $0x18] sm:$0xf]
    %v3732 = vld [vmem:[%s1822 + $0x1c] sm:$0xf]
    %v3733 = vld [vmem:[%s1822 + $0x20] sm:$0xf]
    %v3734 = vld [vmem:[%s1822 + $0x24] sm:$0xf]
    %v3735 = vld [vmem:[%s1822 + $0x28] sm:$0xf]
    %v3736 = vld [vmem:[%s1822 + $0x2c] sm:$0xf]
    %v3737 = vld [vmem:[%s1822 + $0x30] sm:$0xf]
    %v3738 = vld [vmem:[%s1822 + $0x34] sm:$0xf]
    %v3739 = vld [vmem:[%s1822 + $0x38] sm:$0xf]
    %v3740 = vld [vmem:[%s1822 + $0x3c] sm:$0xf]
    %v3742 = vshrl.u32 %v3718, 16
    %v3744 = vshll.u32 %v3718, 16
    %v3746 = vrot.slane %v3744, 1
    %v3747 = vor.u32 %v3742, %v3746
    %v3749 = vshll.u32 %v3719, 16
    %v3751 = vrot.slane %v3749, 1
    %v3752 = vsel %vm1053, %v3747, %v3751
    %v3753 = vshrl.u32 %v3719, 16
    %v3755 = vor.u32 %v3753, %v3751
    %v3757 = vshll.u32 %v3720, 16
    %v3759 = vrot.slane %v3757, 1
    %v3760 = vsel %vm1053, %v3755, %v3759
    %v3761 = vshrl.u32 %v3720, 16
    %v3763 = vor.u32 %v3761, %v3759
    %v3765 = vshll.u32 %v3721, 16
    %v3767 = vrot.slane %v3765, 1
    %v3768 = vsel %vm1053, %v3763, %v3767
    %v3769 = vshrl.u32 %v3721, 16
    %v3771 = vor.u32 %v3769, %v3767
    %v3773 = vshll.u32 %v3722, 16
    %v3775 = vrot.slane %v3773, 1
    %v3776 = vsel %vm1053, %v3771, %v3775
    %v3777 = vshrl.u32 %v3722, 16
    %v3779 = vor.u32 %v3777, %v3775
    %v3781 = vshll.u32 %v3723, 16
    %v3783 = vrot.slane %v3781, 1
    %v3784 = vsel %vm1053, %v3779, %v3783
    %v3785 = vshrl.u32 %v3723, 16
    %v3787 = vor.u32 %v3785, %v3783
    %v3789 = vshll.u32 %v3724, 16
    %v3791 = vrot.slane %v3789, 1
    %v3792 = vsel %vm1053, %v3787, %v3791
    %v3815 = vunpack.c.l.b16 %v3725
    %v3816 = vunpack.c.l.b16 %v3726
    %v3817 = vunpack.c.l.b16 %v3727
    %v3818 = vunpack.c.l.b16 %v3728
    %v3819 = vunpack.c.l.b16 %v3729
    %v3820 = vunpack.c.l.b16 %v3730
    %v3821 = vunpack.c.l.b16 %v3731
    %v3822 = vunpack.c.l.b16 %v3732
    %v3823 = vunpack.c.l.b16 %v3733
    %v3824 = vunpack.c.l.b16 %v3734
    %v3825 = vunpack.c.l.b16 %v3735
    %v3826 = vunpack.c.l.b16 %v3736
    %v3827 = vunpack.c.l.b16 %v3737
    %v3828 = vunpack.c.l.b16 %v3738
    %v3829 = vunpack.c.l.b16 %v3739
    %v3830 = vunpack.c.l.b16 %v3740
    %v3831 = vpack.c.b16 %v3816, %v3815
    %v3832 = vpack.c.b16 %v3818, %v3817
    %v3833 = vpack.c.b16 %v3820, %v3819
    %v3834 = vpack.c.b16 %v3822, %v3821
    %v3835 = vpack.c.b16 %v3824, %v3823
    %v3836 = vpack.c.b16 %v3826, %v3825
    %v3837 = vpack.c.b16 %v3828, %v3827
    %v3838 = vpack.c.b16 %v3830, %v3829
    %3847 = vmatprep.subr.bf16.mxu0 0
    %3848 = vmatpush1.bf16.msra.mxu0 %v3831
    %3849 = vmatprep.subr.bf16.mxu0 0
    %3850 = vmatpush1.bf16.msra.mxu0 %v3832
    %3851 = vmatprep.subr.bf16.mxu0 0
    %3852 = vmatpush1.bf16.msra.mxu0 %v3833
    %3853 = vmatprep.subr.bf16.mxu0 0
    %3854 = vmatpush1.bf16.msra.mxu0 %v3834
    %3855 = vmatprep.subr.bf16.mxu0 0
    %3856 = vmatpush1.bf16.msra.mxu0 %v3835
    %3857 = vmatprep.subr.bf16.mxu0 0
    %3858 = vmatpush1.bf16.msra.mxu0 %v3836
    %3859 = vmatprep.subr.bf16.mxu0 0
    %3860 = vmatpush1.bf16.msra.mxu0 %v3837
    %3861 = vmatprep.subr.bf16.mxu0 0
    %3862 = vmatpush1.bf16.msra.mxu0 %v3838
    %3863 = vmatprep.subr.bf16.mxu0 0
    %3864 = vmatpush1.bf16.msra.mxu0 0
    %3865 = vmatprep.subr.bf16.mxu0 0
    %3866 = vmatpush1.bf16.msra.mxu0 0
    %3867 = vmatprep.subr.bf16.mxu0 0
    %3868 = vmatpush1.bf16.msra.mxu0 0
    %3869 = vmatprep.subr.bf16.mxu0 0
    %3870 = vmatpush1.bf16.msra.mxu0 0
    %3871 = vmatprep.subr.bf16.mxu0 0
    %3872 = vmatpush1.bf16.msra.mxu0 0
    %3873 = vmatprep.subr.bf16.mxu0 0
    %3874 = vmatpush1.bf16.msra.mxu0 0
    %3875 = vmatprep.subr.bf16.mxu0 0
    %3876 = vmatpush1.bf16.msra.mxu0 0
    %3877 = vmatprep.subr.bf16.mxu0 0
    %3878 = vmatpush1.bf16.msra.mxu0 0
    %3879 = vmatprep.mubr.bf16.mxu0 0
    %3880 = vmatmul.mubr.bf16.gmra.mrb[0].mxu0 %v3752
    %v3881 = vpop.f32.mrb[0].mxu0
    %v3882 = vadd.f32 0.0, %v3881
    %v3883 = vpop.f32.mrb[0].mxu0
    %v3884 = vpop.f32.mrb[0].mxu0
    %v3885 = vadd.f32 0.0, %v3884
    %v3886 = vpop.f32.mrb[0].mxu0
    %3887 = vmatprep.mubr.bf16.mxu0 0
    %3888 = vmatmul.mubr.bf16.gmra.mrb[0].mxu0 %v3760
    %v3889 = vpop.f32.mrb[0].mxu0
    %v3890 = vadd.f32 0.0, %v3889
    %v3891 = vpop.f32.mrb[0].mxu0
    %v3892 = vpop.f32.mrb[0].mxu0
    %v3893 = vadd.f32 0.0, %v3892
    %v3894 = vpop.f32.mrb[0].mxu0
    %3895 = vmatprep.mubr.bf16.mxu0 0
    %3896 = vmatmul.mubr.bf16.gmra.mrb[0].mxu0 %v3768
    %v3897 = vpop.f32.mrb[0].mxu0
    %v3898 = vadd.f32 0.0, %v3897
    %v3899 = vpop.f32.mrb[0].mxu0
    %v3900 = vpop.f32.mrb[0].mxu0
    %v3901 = vadd.f32 0.0, %v3900
    %v3902 = vpop.f32.mrb[0].mxu0
    %3903 = vmatprep.mubr.bf16.mxu0 0
    %3904 = vmatmul.mubr.bf16.gmra.mrb[0].mxu0 %v3776
    %v3905 = vpop.f32.mrb[0].mxu0
    %v3906 = vadd.f32 0.0, %v3905
    %v3907 = vpop.f32.mrb[0].mxu0
    %v3908 = vpop.f32.mrb[0].mxu0
    %v3909 = vadd.f32 0.0, %v3908
    %v3910 = vpop.f32.mrb[0].mxu0
    %3911 = vmatprep.mubr.bf16.mxu0 0
    %3912 = vmatmul.mubr.bf16.gmra.mrb[0].mxu0 %v3784
    %v3913 = vpop.f32.mrb[0].mxu0
    %v3914 = vadd.f32 0.0, %v3913
    %v3915 = vpop.f32.mrb[0].mxu0
    %v3916 = vpop.f32.mrb[0].mxu0
    %v3917 = vadd.f32 0.0, %v3916
    %v3918 = vpop.f32.mrb[0].mxu0
    %3919 = vmatprep.mubr.bf16.mxu0 0
    %3920 = vmatmul.mubr.bf16.gmra.mrb[0].mxu0 %v3792
    %v3921 = vpop.f32.mrb[0].mxu0
    %v3922 = vadd.f32 0.0, %v3921
    %v3923 = vpop.f32.mrb[0].mxu0
    %v3924 = vpop.f32.mrb[0].mxu0
    %v3925 = vadd.f32 0.0, %v3924
    %v3926 = vpop.f32.mrb[0].mxu0
    %3927 = vdwg.mxu0
    %v3928 = vadd.f32 %v3706, %v3882
    %v3929 = vadd.f32 %v3707, %v3885
    %v3930 = vadd.f32 %v3708, %v3890
    %v3931 = vadd.f32 %v3709, %v3893
    %v3932 = vadd.f32 %v3710, %v3898
    %v3933 = vadd.f32 %v3711, %v3901
    %v3934 = vadd.f32 %v3712, %v3906
    %v3935 = vadd.f32 %v3713, %v3909
    %v3936 = vadd.f32 %v3714, %v3914
    %v3937 = vadd.f32 %v3715, %v3917
    %v3938 = vadd.f32 %v3716, %v3922
    %v3939 = vadd.f32 %v3717, %v3925
    %v3940 = vld [vmem:[#allocation2 + $0x48] sm:$0xfe]
    %v3941 = vld [vmem:[%s2077] sm:$0xf]
    %v3942 = vld [vmem:[%s2077 + $0x4] sm:$0xf]
    %v3943 = vld [vmem:[%s2077 + $0x8] sm:$0xf]
    %v3944 = vld [vmem:[%s2077 + $0xc] sm:$0xf]
    %v3945 = vld [vmem:[%s2077 + $0x10] sm:$0xf]
    %v3946 = vld [vmem:[%s2077 + $0x14] sm:$0xf]
    %v3947 = vld [vmem:[%s2077 + $0x18] sm:$0xf]
    %v3948 = vld [vmem:[%s2077 + $0x1c] sm:$0xf]
    %v3949 = vld [vmem:[%s2077 + $0x20] sm:$0xf]
    %v3950 = vld [vmem:[%s2077 + $0x24] sm:$0xf]
    %v3951 = vld [vmem:[%s2077 + $0x28] sm:$0xf]
    %v3952 = vld [vmem:[%s2077 + $0x2c] sm:$0xf]
    %v3953 = vld [vmem:[%s2077 + $0x30] sm:$0xf]
    %v3954 = vld [vmem:[%s2077 + $0x34] sm:$0xf]
    %v3955 = vld [vmem:[%s2077 + $0x38] sm:$0xf]
    %v3956 = vld [vmem:[%s2077 + $0x3c] sm:$0xf]
    %v3964 = vrot.slane %v3940, 1
    %v3965 = vrot.slane %v3719, 1
    %v3966 = vsel %vm1447, %v3964, %v3965
    %v3967 = vrot.slane %v3720, 1
    %v3968 = vsel %vm1447, %v3965, %v3967
    %v3969 = vrot.slane %v3721, 1
    %v3970 = vsel %vm1447, %v3967, %v3969
    %v3971 = vrot.slane %v3722, 1
    %v3972 = vsel %vm1447, %v3969, %v3971
    %v3973 = vrot.slane %v3723, 1
    %v3974 = vsel %vm1447, %v3971, %v3973
    %v3975 = vrot.slane %v3724, 1
    %v3976 = vsel %vm1447, %v3973, %v3975
    %v3999 = vunpack.c.l.b16 %v3941
    %v4000 = vunpack.c.l.b16 %v3942
    %v4001 = vunpack.c.l.b16 %v3943
    %v4002 = vunpack.c.l.b16 %v3944
    %v4003 = vunpack.c.l.b16 %v3945
    %v4004 = vunpack.c.l.b16 %v3946
    %v4005 = vunpack.c.l.b16 %v3947
    %v4006 = vunpack.c.l.b16 %v3948
    %v4007 = vunpack.c.l.b16 %v3949
    %v4008 = vunpack.c.l.b16 %v3950
    %v4009 = vunpack.c.l.b16 %v3951
    %v4010 = vunpack.c.l.b16 %v3952
    %v4011 = vunpack.c.l.b16 %v3953
    %v4012 = vunpack.c.l.b16 %v3954
    %v4013 = vunpack.c.l.b16 %v3955
    %v4014 = vunpack.c.l.b16 %v3956
    %v4015 = vpack.c.b16 %v4000, %v3999
    %v4016 = vpack.c.b16 %v4002, %v4001
    %v4017 = vpack.c.b16 %v4004, %v4003
    %v4018 = vpack.c.b16 %v4006, %v4005
    %v4019 = vpack.c.b16 %v4008, %v4007
    %v4020 = vpack.c.b16 %v4010, %v4009
    %v4021 = vpack.c.b16 %v4012, %v4011
    %v4022 = vpack.c.b16 %v4014, %v4013
    %4031 = vmatprep.subr.bf16.mxu0 0
    %4032 = vmatpush1.bf16.msra.mxu0 %v4015
    %4033 = vmatprep.subr.bf16.mxu0 0
    %4034 = vmatpush1.bf16.msra.mxu0 %v4016
    %4035 = vmatprep.subr.bf16.mxu0 0
    %4036 = vmatpush1.bf16.msra.mxu0 %v4017
    %4037 = vmatprep.subr.bf16.mxu0 0
    %4038 = vmatpush1.bf16.msra.mxu0 %v4018
    %4039 = vmatprep.subr.bf16.mxu0 0
    %4040 = vmatpush1.bf16.msra.mxu0 %v4019
    %4041 = vmatprep.subr.bf16.mxu0 0
    %4042 = vmatpush1.bf16.msra.mxu0 %v4020
    %4043 = vmatprep.subr.bf16.mxu0 0
    %4044 = vmatpush1.bf16.msra.mxu0 %v4021
    %4045 = vmatprep.subr.bf16.mxu0 0
    %4046 = vmatpush1.bf16.msra.mxu0 %v4022
    %4047 = vmatprep.subr.bf16.mxu0 0
    %4048 = vmatpush1.bf16.msra.mxu0 0
    %4049 = vmatprep.subr.bf16.mxu0 0
    %4050 = vmatpush1.bf16.msra.mxu0 0
    %4051 = vmatprep.subr.bf16.mxu0 0
    %4052 = vmatpush1.bf16.msra.mxu0 0
    %4053 = vmatprep.subr.bf16.mxu0 0
    %4054 = vmatpush1.bf16.msra.mxu0 0
    %4055 = vmatprep.subr.bf16.mxu0 0
    %4056 = vmatpush1.bf16.msra.mxu0 0
    %4057 = vmatprep.subr.bf16.mxu0 0
    %4058 = vmatpush1.bf16.msra.mxu0 0
    %4059 = vmatprep.subr.bf16.mxu0 0
    %4060 = vmatpush1.bf16.msra.mxu0 0
    %4061 = vmatprep.subr.bf16.mxu0 0
    %4062 = vmatpush1.bf16.msra.mxu0 0
    %4063 = vmatprep.mubr.bf16.mxu0 0
    %4064 = vmatmul.mubr.bf16.gmra.mrb[0].mxu0 %v3966
    %v4065 = vpop.f32.mrb[0].mxu0
    %v4066 = vadd.f32 0.0, %v4065
    %v4067 = vpop.f32.mrb[0].mxu0
    %v4068 = vpop.f32.mrb[0].mxu0
    %v4069 = vadd.f32 0.0, %v4068
    %v4070 = vpop.f32.mrb[0].mxu0
    %4071 = vmatprep.mubr.bf16.mxu0 0
    %4072 = vmatmul.mubr.bf16.gmra.mrb[0].mxu0 %v3968
    %v4073 = vpop.f32.mrb[0].mxu0
    %v4074 = vadd.f32 0.0, %v4073
    %v4075 = vpop.f32.mrb[0].mxu0
    %v4076 = vpop.f32.mrb[0].mxu0
    %v4077 = vadd.f32 0.0, %v4076
    %v4078 = vpop.f32.mrb[0].mxu0
    %4079 = vmatprep.mubr.bf16.mxu0 0
    %4080 = vmatmul.mubr.bf16.gmra.mrb[0].mxu0 %v3970
    %v4081 = vpop.f32.mrb[0].mxu0
    %v4082 = vadd.f32 0.0, %v4081
    %v4083 = vpop.f32.mrb[0].mxu0
    %v4084 = vpop.f32.mrb[0].mxu0
    %v4085 = vadd.f32 0.0, %v4084
    %v4086 = vpop.f32.mrb[0].mxu0
    %4087 = vmatprep.mubr.bf16.mxu0 0
    %4088 = vmatmul.mubr.bf16.gmra.mrb[0].mxu0 %v3972
    %v4089 = vpop.f32.mrb[0].mxu0
    %v4090 = vadd.f32 0.0, %v4089
    %v4091 = vpop.f32.mrb[0].mxu0
    %v4092 = vpop.f32.mrb[0].mxu0
    %v4093 = vadd.f32 0.0, %v4092
    %v4094 = vpop.f32.mrb[0].mxu0
    %4095 = vmatprep.mubr.bf16.mxu0 0
    %4096 = vmatmul.mubr.bf16.gmra.mrb[0].mxu0 %v3974
    %v4097 = vpop.f32.mrb[0].mxu0
    %v4098 = vadd.f32 0.0, %v4097
    %v4099 = vpop.f32.mrb[0].mxu0
    %v4100 = vpop.f32.mrb[0].mxu0
    %v4101 = vadd.f32 0.0, %v4100
    %v4102 = vpop.f32.mrb[0].mxu0
    %4103 = vmatprep.mubr.bf16.mxu0 0
    %4104 = vmatmul.mubr.bf16.gmra.mrb[0].mxu0 %v3976
    %v4105 = vpop.f32.mrb[0].mxu0
    %v4106 = vadd.f32 0.0, %v4105
    %v4107 = vpop.f32.mrb[0].mxu0
    %v4108 = vpop.f32.mrb[0].mxu0
    %v4109 = vadd.f32 0.0, %v4108
    %v4110 = vpop.f32.mrb[0].mxu0
    %4111 = vdwg.mxu0
    %v4112 = vadd.f32 %v3928, %v4066
    %v4113 = vadd.f32 %v3929, %v4069
    %v4114 = vadd.f32 %v3930, %v4074
    %v4115 = vadd.f32 %v3931, %v4077
    %v4116 = vadd.f32 %v3932, %v4082
    %v4117 = vadd.f32 %v3933, %v4085
    %v4118 = vadd.f32 %v3934, %v4090
    %v4119 = vadd.f32 %v3935, %v4093
    %v4120 = vadd.f32 %v3936, %v4098
    %v4121 = vadd.f32 %v3937, %v4101
    %v4122 = vadd.f32 %v3938, %v4106
    %v4123 = vadd.f32 %v3939, %v4109
    %v4124 = vld [vmem:[#allocation2 + $0x78] sm:$0xff]
    %v4125 = vld [vmem:[%s2290] sm:$0xf]
    %v4126 = vld [vmem:[%s2290 + $0x4] sm:$0xf]
    %v4127 = vld [vmem:[%s2290 + $0x8] sm:$0xf]
    %v4128 = vld [vmem:[%s2290 + $0xc] sm:$0xf]
    %v4129 = vld [vmem:[%s2290 + $0x10] sm:$0xf]
    %v4130 = vld [vmem:[%s2290 + $0x14] sm:$0xf]
    %v4131 = vld [vmem:[%s2290 + $0x18] sm:$0xf]
    %v4132 = vld [vmem:[%s2290 + $0x1c] sm:$0xf]
    %v4133 = vld [vmem:[%s2290 + $0x20] sm:$0xf]
    %v4134 = vld [vmem:[%s2290 + $0x24] sm:$0xf]
    %v4135 = vld [vmem:[%s2290 + $0x28] sm:$0xf]
    %v4136 = vld [vmem:[%s2290 + $0x2c] sm:$0xf]
    %v4137 = vld [vmem:[%s2290 + $0x30] sm:$0xf]
    %v4138 = vld [vmem:[%s2290 + $0x34] sm:$0xf]
    %v4139 = vld [vmem:[%s2290 + $0x38] sm:$0xf]
    %v4140 = vld [vmem:[%s2290 + $0x3c] sm:$0xf]
    %v4157 = vunpack.c.l.b16 %v4125
    %v4158 = vunpack.c.l.b16 %v4126
    %v4159 = vunpack.c.l.b16 %v4127
    %v4160 = vunpack.c.l.b16 %v4128
    %v4161 = vunpack.c.l.b16 %v4129
    %v4162 = vunpack.c.l.b16 %v4130
    %v4163 = vunpack.c.l.b16 %v4131
    %v4164 = vunpack.c.l.b16 %v4132
    %v4165 = vunpack.c.l.b16 %v4133
    %v4166 = vunpack.c.l.b16 %v4134
    %v4167 = vunpack.c.l.b16 %v4135
    %v4168 = vunpack.c.l.b16 %v4136
    %v4169 = vunpack.c.l.b16 %v4137
    %v4170 = vunpack.c.l.b16 %v4138
    %v4171 = vunpack.c.l.b16 %v4139
    %v4172 = vunpack.c.l.b16 %v4140
    %v4173 = vpack.c.b16 %v4158, %v4157
    %v4174 = vpack.c.b16 %v4160, %v4159
    %v4175 = vpack.c.b16 %v4162, %v4161
    %v4176 = vpack.c.b16 %v4164, %v4163
    %v4177 = vpack.c.b16 %v4166, %v4165
    %v4178 = vpack.c.b16 %v4168, %v4167
    %v4179 = vpack.c.b16 %v4170, %v4169
    %v4180 = vpack.c.b16 %v4172, %v4171
    %4189 = vmatprep.subr.bf16.mxu0 0
    %4190 = vmatpush1.bf16.msra.mxu0 %v4173
    %4191 = vmatprep.subr.bf16.mxu0 0
    %4192 = vmatpush1.bf16.msra.mxu0 %v4174
    %4193 = vmatprep.subr.bf16.mxu0 0
    %4194 = vmatpush1.bf16.msra.mxu0 %v4175
    %4195 = vmatprep.subr.bf16.mxu0 0
    %4196 = vmatpush1.bf16.msra.mxu0 %v4176
    %4197 = vmatprep.subr.bf16.mxu0 0
    %4198 = vmatpush1.bf16.msra.mxu0 %v4177
    %4199 = vmatprep.subr.bf16.mxu0 0
    %4200 = vmatpush1.bf16.msra.mxu0 %v4178
    %4201 = vmatprep.subr.bf16.mxu0 0
    %4202 = vmatpush1.bf16.msra.mxu0 %v4179
    %4203 = vmatprep.subr.bf16.mxu0 0
    %4204 = vmatpush1.bf16.msra.mxu0 %v4180
    %4205 = vmatprep.subr.bf16.mxu0 0
    %4206 = vmatpush1.bf16.msra.mxu0 0
    %4207 = vmatprep.subr.bf16.mxu0 0
    %4208 = vmatpush1.bf16.msra.mxu0 0
    %4209 = vmatprep.subr.bf16.mxu0 0
    %4210 = vmatpush1.bf16.msra.mxu0 0
    %4211 = vmatprep.subr.bf16.mxu0 0
    %4212 = vmatpush1.bf16.msra.mxu0 0
    %4213 = vmatprep.subr.bf16.mxu0 0
    %4214 = vmatpush1.bf16.msra.mxu0 0
    %4215 = vmatprep.subr.bf16.mxu0 0
    %4216 = vmatpush1.bf16.msra.mxu0 0
    %4217 = vmatprep.subr.bf16.mxu0 0
    %4218 = vmatpush1.bf16.msra.mxu0 0
    %4219 = vmatprep.subr.bf16.mxu0 0
    %4220 = vmatpush1.bf16.msra.mxu0 0
    %4221 = vmatprep.mubr.bf16.mxu0 0
    %4222 = vmatmul.mubr.bf16.gmra.mrb[0].mxu0 %v3719
    %v4223 = vpop.f32.mrb[0].mxu0
    %v4224 = vadd.f32 0.0, %v4223
    %v4225 = vpop.f32.mrb[0].mxu0
    %v4226 = vpop.f32.mrb[0].mxu0
    %v4227 = vadd.f32 0.0, %v4226
    %v4228 = vpop.f32.mrb[0].mxu0
    %4229 = vmatprep.mubr.bf16.mxu0 0
    %4230 = vmatmul.mubr.bf16.gmra.mrb[0].mxu0 %v3720
    %v4231 = vpop.f32.mrb[0].mxu0
    %v4232 = vadd.f32 0.0, %v4231
    %v4233 = vpop.f32.mrb[0].mxu0
    %v4234 = vpop.f32.mrb[0].mxu0
    %v4235 = vadd.f32 0.0, %v4234
    %v4236 = vpop.f32.mrb[0].mxu0
    %4237 = vmatprep.mubr.bf16.mxu0 0
    %4238 = vmatmul.mubr.bf16.gmra.mrb[0].mxu0 %v3721
    %v4239 = vpop.f32.mrb[0].mxu0
    %v4240 = vadd.f32 0.0, %v4239
    %v4241 = vpop.f32.mrb[0].mxu0
    %v4242 = vpop.f32.mrb[0].mxu0
    %v4243 = vadd.f32 0.0, %v4242
    %v4244 = vpop.f32.mrb[0].mxu0
    %4245 = vmatprep.mubr.bf16.mxu0 0
    %4246 = vmatmul.mubr.bf16.gmra.mrb[0].mxu0 %v3722
    %v4247 = vpop.f32.mrb[0].mxu0
    %v4248 = vadd.f32 0.0, %v4247
    %v4249 = vpop.f32.mrb[0].mxu0
    %v4250 = vpop.f32.mrb[0].mxu0
    %v4251 = vadd.f32 0.0, %v4250
    %v4252 = vpop.f32.mrb[0].mxu0
    %4253 = vmatprep.mubr.bf16.mxu0 0
    %4254 = vmatmul.mubr.bf16.gmra.mrb[0].mxu0 %v3723
    %v4255 = vpop.f32.mrb[0].mxu0
    %v4256 = vadd.f32 0.0, %v4255
    %v4257 = vpop.f32.mrb[0].mxu0
    %v4258 = vpop.f32.mrb[0].mxu0
    %v4259 = vadd.f32 0.0, %v4258
    %v4260 = vpop.f32.mrb[0].mxu0
    %4261 = vmatprep.mubr.bf16.mxu0 0
    %4262 = vmatmul.mubr.bf16.gmra.mrb[0].mxu0 %v4124
    %v4263 = vpop.f32.mrb[0].mxu0
    %v4264 = vadd.f32 0.0, %v4263
    %v4265 = vpop.f32.mrb[0].mxu0
    %v4266 = vpop.f32.mrb[0].mxu0
    %v4267 = vadd.f32 0.0, %v4266
    %v4268 = vpop.f32.mrb[0].mxu0
    %4269 = vdwg.mxu0
    %v4270 = vadd.f32 %v4112, %v4224
    %v4271 = vadd.f32 %v4113, %v4227
    %v4272 = vadd.f32 %v4114, %v4232
    %v4273 = vadd.f32 %v4115, %v4235
    %v4274 = vadd.f32 %v4116, %v4240
    %v4275 = vadd.f32 %v4117, %v4243
    %v4276 = vadd.f32 %v4118, %v4248
    %v4277 = vadd.f32 %v4119, %v4251
    %v4278 = vadd.f32 %v4120, %v4256
    %v4279 = vadd.f32 %v4121, %v4259
    %v4280 = vadd.f32 %v4122, %v4264
    %v4281 = vadd.f32 %v4123, %v4267
    %v4282 = vld [vmem:[#allocation2 + $0x50] sm:$0xff]
    %v4283 = vld [vmem:[#allocation2 + $0x58] sm:$0xff]
    %v4284 = vld [vmem:[#allocation2 + $0x60] sm:$0xff]
    %v4285 = vld [vmem:[#allocation2 + $0x68] sm:$0xff]
    %v4286 = vld [vmem:[#allocation2 + $0x70] sm:$0xff]
    %v4287 = vld [vmem:[#allocation2 + $0x78] sm:$0xff]
    %v4288 = vld [vmem:[#allocation2 + $0x80] sm:$0x1]
    %v4289 = vld [vmem:[%s2477] sm:$0xf]
    %v4290 = vld [vmem:[%s2477 + $0x4] sm:$0xf]
    %v4291 = vld [vmem:[%s2477 + $0x8] sm:$0xf]
    %v4292 = vld [vmem:[%s2477 + $0xc] sm:$0xf]
    %v4293 = vld [vmem:[%s2477 + $0x10] sm:$0xf]
    %v4294 = vld [vmem:[%s2477 + $0x14] sm:$0xf]
    %v4295 = vld [vmem:[%s2477 + $0x18] sm:$0xf]
    %v4296 = vld [vmem:[%s2477 + $0x1c] sm:$0xf]
    %v4297 = vld [vmem:[%s2477 + $0x20] sm:$0xf]
    %v4298 = vld [vmem:[%s2477 + $0x24] sm:$0xf]
    %v4299 = vld [vmem:[%s2477 + $0x28] sm:$0xf]
    %v4300 = vld [vmem:[%s2477 + $0x2c] sm:$0xf]
    %v4301 = vld [vmem:[%s2477 + $0x30] sm:$0xf]
    %v4302 = vld [vmem:[%s2477 + $0x34] sm:$0xf]
    %v4303 = vld [vmem:[%s2477 + $0x38] sm:$0xf]
    %v4304 = vld [vmem:[%s2477 + $0x3c] sm:$0xf]
    %v4306 = vshrl.u32 %v4282, 16
    %v4308 = vshll.u32 %v4282, 16
    %v4310 = vrot.slane %v4308, 1
    %v4311 = vor.u32 %v4306, %v4310
    %v4313 = vshll.u32 %v4283, 16
    %v4315 = vrot.slane %v4313, 1
    %v4316 = vsel %vm1053, %v4311, %v4315
    %v4317 = vshrl.u32 %v4283, 16
    %v4319 = vor.u32 %v4317, %v4315
    %v4321 = vshll.u32 %v4284, 16
    %v4323 = vrot.slane %v4321, 1
    %v4324 = vsel %vm1053, %v4319, %v4323
    %v4325 = vshrl.u32 %v4284, 16
    %v4327 = vor.u32 %v4325, %v4323
    %v4329 = vshll.u32 %v4285, 16
    %v4331 = vrot.slane %v4329, 1
    %v4332 = vsel %vm1053, %v4327, %v4331
    %v4333 = vshrl.u32 %v4285, 16
    %v4335 = vor.u32 %v4333, %v4331
    %v4337 = vshll.u32 %v4286, 16
    %v4339 = vrot.slane %v4337, 1
    %v4340 = vsel %vm1053, %v4335, %v4339
    %v4341 = vshrl.u32 %v4286, 16
    %v4343 = vor.u32 %v4341, %v4339
    %v4345 = vshll.u32 %v4287, 16
    %v4347 = vrot.slane %v4345, 1
    %v4348 = vsel %vm1053, %v4343, %v4347
    %v4349 = vshrl.u32 %v4287, 16
    %v4351 = vor.u32 %v4349, %v4347
    %v4353 = vshll.u32 %v4288, 16
    %v4355 = vrot.slane %v4353, 1
    %v4356 = vsel %vm1053, %v4351, %v4355
    %v4379 = vunpack.c.l.b16 %v4289
    %v4380 = vunpack.c.l.b16 %v4290
    %v4381 = vunpack.c.l.b16 %v4291
    %v4382 = vunpack.c.l.b16 %v4292
    %v4383 = vunpack.c.l.b16 %v4293
    %v4384 = vunpack.c.l.b16 %v4294
    %v4385 = vunpack.c.l.b16 %v4295
    %v4386 = vunpack.c.l.b16 %v4296
    %v4387 = vunpack.c.l.b16 %v4297
    %v4388 = vunpack.c.l.b16 %v4298
    %v4389 = vunpack.c.l.b16 %v4299
    %v4390 = vunpack.c.l.b16 %v4300
    %v4391 = vunpack.c.l.b16 %v4301
    %v4392 = vunpack.c.l.b16 %v4302
    %v4393 = vunpack.c.l.b16 %v4303
    %v4394 = vunpack.c.l.b16 %v4304
    %v4395 = vpack.c.b16 %v4380, %v4379
    %v4396 = vpack.c.b16 %v4382, %v4381
    %v4397 = vpack.c.b16 %v4384, %v4383
    %v4398 = vpack.c.b16 %v4386, %v4385
    %v4399 = vpack.c.b16 %v4388, %v4387
    %v4400 = vpack.c.b16 %v4390, %v4389
    %v4401 = vpack.c.b16 %v4392, %v4391
    %v4402 = vpack.c.b16 %v4394, %v4393
    %4411 = vmatprep.subr.bf16.mxu0 0
    %4412 = vmatpush1.bf16.msra.mxu0 %v4395
    %4413 = vmatprep.subr.bf16.mxu0 0
    %4414 = vmatpush1.bf16.msra.mxu0 %v4396
    %4415 = vmatprep.subr.bf16.mxu0 0
    %4416 = vmatpush1.bf16.msra.mxu0 %v4397
    %4417 = vmatprep.subr.bf16.mxu0 0
    %4418 = vmatpush1.bf16.msra.mxu0 %v4398
    %4419 = vmatprep.subr.bf16.mxu0 0
    %4420 = vmatpush1.bf16.msra.mxu0 %v4399
    %4421 = vmatprep.subr.bf16.mxu0 0
    %4422 = vmatpush1.bf16.msra.mxu0 %v4400
    %4423 = vmatprep.subr.bf16.mxu0 0
    %4424 = vmatpush1.bf16.msra.mxu0 %v4401
    %4425 = vmatprep.subr.bf16.mxu0 0
    %4426 = vmatpush1.bf16.msra.mxu0 %v4402
    %4427 = vmatprep.subr.bf16.mxu0 0
    %4428 = vmatpush1.bf16.msra.mxu0 0
    %4429 = vmatprep.subr.bf16.mxu0 0
    %4430 = vmatpush1.bf16.msra.mxu0 0
    %4431 = vmatprep.subr.bf16.mxu0 0
    %4432 = vmatpush1.bf16.msra.mxu0 0
    %4433 = vmatprep.subr.bf16.mxu0 0
    %4434 = vmatpush1.bf16.msra.mxu0 0
    %4435 = vmatprep.subr.bf16.mxu0 0
    %4436 = vmatpush1.bf16.msra.mxu0 0
    %4437 = vmatprep.subr.bf16.mxu0 0
    %4438 = vmatpush1.bf16.msra.mxu0 0
    %4439 = vmatprep.subr.bf16.mxu0 0
    %4440 = vmatpush1.bf16.msra.mxu0 0
    %4441 = vmatprep.subr.bf16.mxu0 0
    %4442 = vmatpush1.bf16.msra.mxu0 0
    %4443 = vmatprep.mubr.bf16.mxu0 0
    %4444 = vmatmul.mubr.bf16.gmra.mrb[0].mxu0 %v4316
    %v4445 = vpop.f32.mrb[0].mxu0
    %v4446 = vadd.f32 0.0, %v4445
    %v4447 = vpop.f32.mrb[0].mxu0
    %v4448 = vpop.f32.mrb[0].mxu0
    %v4449 = vadd.f32 0.0, %v4448
    %v4450 = vpop.f32.mrb[0].mxu0
    %4451 = vmatprep.mubr.bf16.mxu0 0
    %4452 = vmatmul.mubr.bf16.gmra.mrb[0].mxu0 %v4324
    %v4453 = vpop.f32.mrb[0].mxu0
    %v4454 = vadd.f32 0.0, %v4453
    %v4455 = vpop.f32.mrb[0].mxu0
    %v4456 = vpop.f32.mrb[0].mxu0
    %v4457 = vadd.f32 0.0, %v4456
    %v4458 = vpop.f32.mrb[0].mxu0
    %4459 = vmatprep.mubr.bf16.mxu0 0
    %4460 = vmatmul.mubr.bf16.gmra.mrb[0].mxu0 %v4332
    %v4461 = vpop.f32.mrb[0].mxu0
    %v4462 = vadd.f32 0.0, %v4461
    %v4463 = vpop.f32.mrb[0].mxu0
    %v4464 = vpop.f32.mrb[0].mxu0
    %v4465 = vadd.f32 0.0, %v4464
    %v4466 = vpop.f32.mrb[0].mxu0
    %4467 = vmatprep.mubr.bf16.mxu0 0
    %4468 = vmatmul.mubr.bf16.gmra.mrb[0].mxu0 %v4340
    %v4469 = vpop.f32.mrb[0].mxu0
    %v4470 = vadd.f32 0.0, %v4469
    %v4471 = vpop.f32.mrb[0].mxu0
    %v4472 = vpop.f32.mrb[0].mxu0
    %v4473 = vadd.f32 0.0, %v4472
    %v4474 = vpop.f32.mrb[0].mxu0
    %4475 = vmatprep.mubr.bf16.mxu0 0
    %4476 = vmatmul.mubr.bf16.gmra.mrb[0].mxu0 %v4348
    %v4477 = vpop.f32.mrb[0].mxu0
    %v4478 = vadd.f32 0.0, %v4477
    %v4479 = vpop.f32.mrb[0].mxu0
    %v4480 = vpop.f32.mrb[0].mxu0
    %v4481 = vadd.f32 0.0, %v4480
    %v4482 = vpop.f32.mrb[0].mxu0
    %4483 = vmatprep.mubr.bf16.mxu0 0
    %4484 = vmatmul.mubr.bf16.gmra.mrb[0].mxu0 %v4356
    %v4485 = vpop.f32.mrb[0].mxu0
    %v4486 = vadd.f32 0.0, %v4485
    %v4487 = vpop.f32.mrb[0].mxu0
    %v4488 = vpop.f32.mrb[0].mxu0
    %v4489 = vadd.f32 0.0, %v4488
    %v4490 = vpop.f32.mrb[0].mxu0
    %4491 = vdwg.mxu0
    %v4492 = vadd.f32 %v4270, %v4446
    %v4493 = vadd.f32 %v4271, %v4449
    %v4494 = vadd.f32 %v4272, %v4454
    %v4495 = vadd.f32 %v4273, %v4457
    %v4496 = vadd.f32 %v4274, %v4462
    %v4497 = vadd.f32 %v4275, %v4465
    %v4498 = vadd.f32 %v4276, %v4470
    %v4499 = vadd.f32 %v4277, %v4473
    %v4500 = vadd.f32 %v4278, %v4478
    %v4501 = vadd.f32 %v4279, %v4481
    %v4502 = vadd.f32 %v4280, %v4486
    %v4503 = vadd.f32 %v4281, %v4489
    %v4504 = vld [vmem:[#allocation2 + $0x50] sm:$0xfe]
    %v4505 = vld [vmem:[%s2732] sm:$0xf]
    %v4506 = vld [vmem:[%s2732 + $0x4] sm:$0xf]
    %v4507 = vld [vmem:[%s2732 + $0x8] sm:$0xf]
    %v4508 = vld [vmem:[%s2732 + $0xc] sm:$0xf]
    %v4509 = vld [vmem:[%s2732 + $0x10] sm:$0xf]
    %v4510 = vld [vmem:[%s2732 + $0x14] sm:$0xf]
    %v4511 = vld [vmem:[%s2732 + $0x18] sm:$0xf]
    %v4512 = vld [vmem:[%s2732 + $0x1c] sm:$0xf]
    %v4513 = vld [vmem:[%s2732 + $0x20] sm:$0xf]
    %v4514 = vld [vmem:[%s2732 + $0x24] sm:$0xf]
    %v4515 = vld [vmem:[%s2732 + $0x28] sm:$0xf]
    %v4516 = vld [vmem:[%s2732 + $0x2c] sm:$0xf]
    %v4517 = vld [vmem:[%s2732 + $0x30] sm:$0xf]
    %v4518 = vld [vmem:[%s2732 + $0x34] sm:$0xf]
    %v4519 = vld [vmem:[%s2732 + $0x38] sm:$0xf]
    %v4520 = vld [vmem:[%s2732 + $0x3c] sm:$0xf]
    %v4528 = vrot.slane %v4504, 1
    %v4529 = vrot.slane %v4283, 1
    %v4530 = vsel %vm1447, %v4528, %v4529
    %v4531 = vrot.slane %v4284, 1
    %v4532 = vsel %vm1447, %v4529, %v4531
    %v4533 = vrot.slane %v4285, 1
    %v4534 = vsel %vm1447, %v4531, %v4533
    %v4535 = vrot.slane %v4286, 1
    %v4536 = vsel %vm1447, %v4533, %v4535
    %v4537 = vrot.slane %v4287, 1
    %v4538 = vsel %vm1447, %v4535, %v4537
    %v4539 = vrot.slane %v4288, 1
    %v4540 = vsel %vm1447, %v4537, %v4539
    %v4563 = vunpack.c.l.b16 %v4505
    %v4564 = vunpack.c.l.b16 %v4506
    %v4565 = vunpack.c.l.b16 %v4507
    %v4566 = vunpack.c.l.b16 %v4508
    %v4567 = vunpack.c.l.b16 %v4509
    %v4568 = vunpack.c.l.b16 %v4510
    %v4569 = vunpack.c.l.b16 %v4511
    %v4570 = vunpack.c.l.b16 %v4512
    %v4571 = vunpack.c.l.b16 %v4513
    %v4572 = vunpack.c.l.b16 %v4514
    %v4573 = vunpack.c.l.b16 %v4515
    %v4574 = vunpack.c.l.b16 %v4516
    %v4575 = vunpack.c.l.b16 %v4517
    %v4576 = vunpack.c.l.b16 %v4518
    %v4577 = vunpack.c.l.b16 %v4519
    %v4578 = vunpack.c.l.b16 %v4520
    %v4579 = vpack.c.b16 %v4564, %v4563
    %v4580 = vpack.c.b16 %v4566, %v4565
    %v4581 = vpack.c.b16 %v4568, %v4567
    %v4582 = vpack.c.b16 %v4570, %v4569
    %v4583 = vpack.c.b16 %v4572, %v4571
    %v4584 = vpack.c.b16 %v4574, %v4573
    %v4585 = vpack.c.b16 %v4576, %v4575
    %v4586 = vpack.c.b16 %v4578, %v4577
    %4595 = vmatprep.subr.bf16.mxu0 0
    %4596 = vmatpush1.bf16.msra.mxu0 %v4579
    %4597 = vmatprep.subr.bf16.mxu0 0
    %4598 = vmatpush1.bf16.msra.mxu0 %v4580
    %4599 = vmatprep.subr.bf16.mxu0 0
    %4600 = vmatpush1.bf16.msra.mxu0 %v4581
    %4601 = vmatprep.subr.bf16.mxu0 0
    %4602 = vmatpush1.bf16.msra.mxu0 %v4582
    %4603 = vmatprep.subr.bf16.mxu0 0
    %4604 = vmatpush1.bf16.msra.mxu0 %v4583
    %4605 = vmatprep.subr.bf16.mxu0 0
    %4606 = vmatpush1.bf16.msra.mxu0 %v4584
    %4607 = vmatprep.subr.bf16.mxu0 0
    %4608 = vmatpush1.bf16.msra.mxu0 %v4585
    %4609 = vmatprep.subr.bf16.mxu0 0
    %4610 = vmatpush1.bf16.msra.mxu0 %v4586
    %4611 = vmatprep.subr.bf16.mxu0 0
    %4612 = vmatpush1.bf16.msra.mxu0 0
    %4613 = vmatprep.subr.bf16.mxu0 0
    %4614 = vmatpush1.bf16.msra.mxu0 0
    %4615 = vmatprep.subr.bf16.mxu0 0
    %4616 = vmatpush1.bf16.msra.mxu0 0
    %4617 = vmatprep.subr.bf16.mxu0 0
    %4618 = vmatpush1.bf16.msra.mxu0 0
    %4619 = vmatprep.subr.bf16.mxu0 0
    %4620 = vmatpush1.bf16.msra.mxu0 0
    %4621 = vmatprep.subr.bf16.mxu0 0
    %4622 = vmatpush1.bf16.msra.mxu0 0
    %4623 = vmatprep.subr.bf16.mxu0 0
    %4624 = vmatpush1.bf16.msra.mxu0 0
    %4625 = vmatprep.subr.bf16.mxu0 0
    %4626 = vmatpush1.bf16.msra.mxu0 0
    %4627 = vmatprep.mubr.bf16.mxu0 0
    %4628 = vmatmul.mubr.bf16.gmra.mrb[0].mxu0 %v4530
    %v4629 = vpop.f32.mrb[0].mxu0
    %v4630 = vadd.f32 0.0, %v4629
    %v4631 = vpop.f32.mrb[0].mxu0
    %v4632 = vpop.f32.mrb[0].mxu0
    %v4633 = vadd.f32 0.0, %v4632
    %v4634 = vpop.f32.mrb[0].mxu0
    %4635 = vmatprep.mubr.bf16.mxu0 0
    %4636 = vmatmul.mubr.bf16.gmra.mrb[0].mxu0 %v4532
    %v4637 = vpop.f32.mrb[0].mxu0
    %v4638 = vadd.f32 0.0, %v4637
    %v4639 = vpop.f32.mrb[0].mxu0
    %v4640 = vpop.f32.mrb[0].mxu0
    %v4641 = vadd.f32 0.0, %v4640
    %v4642 = vpop.f32.mrb[0].mxu0
    %4643 = vmatprep.mubr.bf16.mxu0 0
    %4644 = vmatmul.mubr.bf16.gmra.mrb[0].mxu0 %v4534
    %v4645 = vpop.f32.mrb[0].mxu0
    %v4646 = vadd.f32 0.0, %v4645
    %v4647 = vpop.f32.mrb[0].mxu0
    %v4648 = vpop.f32.mrb[0].mxu0
    %v4649 = vadd.f32 0.0, %v4648
    %v4650 = vpop.f32.mrb[0].mxu0
    %4651 = vmatprep.mubr.bf16.mxu0 0
    %4652 = vmatmul.mubr.bf16.gmra.mrb[0].mxu0 %v4536
    %v4653 = vpop.f32.mrb[0].mxu0
    %v4654 = vadd.f32 0.0, %v4653
    %v4655 = vpop.f32.mrb[0].mxu0
    %v4656 = vpop.f32.mrb[0].mxu0
    %v4657 = vadd.f32 0.0, %v4656
    %v4658 = vpop.f32.mrb[0].mxu0
    %4659 = vmatprep.mubr.bf16.mxu0 0
    %4660 = vmatmul.mubr.bf16.gmra.mrb[0].mxu0 %v4538
    %v4661 = vpop.f32.mrb[0].mxu0
    %v4662 = vadd.f32 0.0, %v4661
    %v4663 = vpop.f32.mrb[0].mxu0
    %v4664 = vpop.f32.mrb[0].mxu0
    %v4665 = vadd.f32 0.0, %v4664
    %v4666 = vpop.f32.mrb[0].mxu0
    %4667 = vmatprep.mubr.bf16.mxu0 0
    %4668 = vmatmul.mubr.bf16.gmra.mrb[0].mxu0 %v4540
    %v4669 = vpop.f32.mrb[0].mxu0
    %v4670 = vadd.f32 0.0, %v4669
    %v4671 = vpop.f32.mrb[0].mxu0
    %v4672 = vpop.f32.mrb[0].mxu0
    %v4673 = vadd.f32 0.0, %v4672
    %v4674 = vpop.f32.mrb[0].mxu0
    %4675 = vdwg.mxu0
    %v4676 = vadd.f32 %v4492, %v4630
    %v4677 = vadd.f32 %v4493, %v4633
    %v4678 = vadd.f32 %v4494, %v4638
    %v4679 = vadd.f32 %v4495, %v4641
    %v4680 = vadd.f32 %v4496, %v4646
    %v4681 = vadd.f32 %v4497, %v4649
    %v4682 = vadd.f32 %v4498, %v4654
    %v4683 = vadd.f32 %v4499, %v4657
    %v4684 = vadd.f32 %v4500, %v4662
    %v4685 = vadd.f32 %v4501, %v4665
    %v4686 = vadd.f32 %v4502, %v4670
    %v4687 = vadd.f32 %v4503, %v4673
    %4688 = vst [vmem:[#allocation3] sm:$0xff] %v4676
    %4689 = vst [vmem:[#allocation3 + $0x8] sm:$0xff] %v4677
    %4690 = vst [vmem:[#allocation3 + $0x10] sm:$0xff] %v4678
    %4691 = vst [vmem:[#allocation3 + $0x18] sm:$0xff] %v4679
    %4692 = vst [vmem:[#allocation3 + $0x20] sm:$0xff] %v4680
    %4693 = vst [vmem:[#allocation3 + $0x28] sm:$0xff] %v4681
    %4694 = vst [vmem:[#allocation3 + $0x30] sm:$0xff] %v4682
    %4695 = vst [vmem:[#allocation3 + $0x38] sm:$0xff] %v4683
    %4696 = vst [vmem:[#allocation3 + $0x40] sm:$0xff] %v4684
    %4697 = vst [vmem:[#allocation3 + $0x48] sm:$0xff] %v4685
    %4698 = vst [vmem:[#allocation3 + $0x50] sm:$0xff] %v4686
    %4699 = vst [vmem:[#allocation3 + $0x58] sm:$0xff] %v4687
    %v4700 = vld [vmem:[#allocation3] ss:$2 sm:$0xff]
    %s4701 = scalar_lea.vmem [#allocation3], 16
    %v4702 = vld [vmem:[%s4701] ss:$2 sm:$0xff]
    %s4703 = scalar_lea.vmem [#allocation3], 32
    %v4704 = vld [vmem:[%s4703] ss:$2 sm:$0xff]
    %s4705 = scalar_lea.vmem [#allocation3], 48
    %v4706 = vld [vmem:[%s4705] ss:$2 sm:$0xff]
    %s4707 = scalar_lea.vmem [#allocation3], 64
    %v4708 = vld [vmem:[%s4707] ss:$2 sm:$0xff]
    %s4709 = scalar_lea.vmem [#allocation3], 80
    %v4710 = vld [vmem:[%s4709] ss:$2 sm:$0xff]
    %v4711 = vld [vmem:[%s2975] ss:$2 sm:$0xff]
    %v4712 = vld [vmem:[%s2977] ss:$2 sm:$0xff]
    %v4713 = vld [vmem:[%s2979] ss:$2 sm:$0xff]
    %v4714 = vld [vmem:[%s2981] ss:$2 sm:$0xff]
    %v4715 = vld [vmem:[%s2983] ss:$2 sm:$0xff]
    %v4716 = vld [vmem:[%s2985] ss:$2 sm:$0xff]
    %v4717 = vmax.f32 %v4700, %v4711
    %v4718 = vmax.f32 %v4702, %v4712
    %v4719 = vmax.f32 %v4704, %v4713
    %v4720 = vmax.f32 %v4706, %v4714
    %v4721 = vmax.f32 %v4708, %v4715
    %v4722 = vmax.f32 %v4710, %v4716
    %v4723 = vmax.f32 %v4717, %v4718
    %v4724 = vadd.f32 %v4723, %v3004
    %v4725 = vmax.f32 %v4724, 0.0
    %4726 = vst [vmem:[#allocation7 + $0x20] sm:$0xff] %v4725
    %v4727 = vmax.f32 %v4719, %v4720
    %v4728 = vadd.f32 %v4727, %v3004
    %v4729 = vmax.f32 %v4728, 0.0
    %4730 = vst [vmem:[#allocation7 + $0x28] sm:$0xff] %v4729
    %v4731 = vmax.f32 %v4721, %v4722
    %v4732 = vadd.f32 %v4731, %v3004
    %v4733 = vmax.f32 %v4732, 0.0
    %4734 = vst [vmem:[#allocation7 + $0x30] sm:$0xff] %v4733
    %v4735 = vld [vmem:[#allocation2 + $0x80] sm:$0xff]
    %v4736 = vld [vmem:[#allocation2 + $0x88] sm:$0xff]
    %v4737 = vld [vmem:[#allocation2 + $0x90] sm:$0xff]
    %v4738 = vld [vmem:[#allocation2 + $0x98] sm:$0xff]
    %v4739 = vld [vmem:[#allocation2 + $0xa0] sm:$0xff]
    %v4740 = vld [vmem:[#allocation2 + $0xa8] sm:$0xff]
    %v4741 = vld [vmem:[#allocation2 + $0xb0] sm:$0xff]
    %v4742 = vld [vmem:[#allocation2 + $0xb8] sm:$0xff]
    %v4743 = vld [vmem:[#allocation4] sm:$0xf]
    %v4744 = vld [vmem:[#allocation4 + $0x4] sm:$0xf]
    %v4745 = vld [vmem:[#allocation4 + $0x8] sm:$0xf]
    %v4746 = vld [vmem:[#allocation4 + $0xc] sm:$0xf]
    %v4747 = vld [vmem:[#allocation4 + $0x10] sm:$0xf]
    %v4748 = vld [vmem:[#allocation4 + $0x14] sm:$0xf]
    %v4749 = vld [vmem:[#allocation4 + $0x18] sm:$0xf]
    %v4750 = vld [vmem:[#allocation4 + $0x1c] sm:$0xf]
    %v4751 = vld [vmem:[#allocation4 + $0x20] sm:$0xf]
    %v4752 = vld [vmem:[#allocation4 + $0x24] sm:$0xf]
    %v4753 = vld [vmem:[#allocation4 + $0x28] sm:$0xf]
    %v4754 = vld [vmem:[#allocation4 + $0x2c] sm:$0xf]
    %v4755 = vld [vmem:[#allocation4 + $0x30] sm:$0xf]
    %v4756 = vld [vmem:[#allocation4 + $0x34] sm:$0xf]
    %v4757 = vld [vmem:[#allocation4 + $0x38] sm:$0xf]
    %v4758 = vld [vmem:[#allocation4 + $0x3c] sm:$0xf]
    %v4759 = vld [vmem:[#allocation2 + $0xc0] sm:$0x1]
    %v4760 = vld [vmem:[%s1036] sm:$0xf]
    %v4761 = vld [vmem:[%s1036 + $0x4] sm:$0xf]
    %v4762 = vld [vmem:[%s1036 + $0x8] sm:$0xf]
    %v4763 = vld [vmem:[%s1036 + $0xc] sm:$0xf]
    %v4764 = vld [vmem:[%s1036 + $0x10] sm:$0xf]
    %v4765 = vld [vmem:[%s1036 + $0x14] sm:$0xf]
    %v4766 = vld [vmem:[%s1036 + $0x18] sm:$0xf]
    %v4767 = vld [vmem:[%s1036 + $0x1c] sm:$0xf]
    %v4768 = vld [vmem:[%s1036 + $0x20] sm:$0xf]
    %v4769 = vld [vmem:[%s1036 + $0x24] sm:$0xf]
    %v4770 = vld [vmem:[%s1036 + $0x28] sm:$0xf]
    %v4771 = vld [vmem:[%s1036 + $0x2c] sm:$0xf]
    %v4772 = vld [vmem:[%s1036 + $0x30] sm:$0xf]
    %v4773 = vld [vmem:[%s1036 + $0x34] sm:$0xf]
    %v4774 = vld [vmem:[%s1036 + $0x38] sm:$0xf]
    %v4775 = vld [vmem:[%s1036 + $0x3c] sm:$0xf]
    %v4777 = vshrl.u32 %v4735, 16
    %v4779 = vshll.u32 %v4735, 16
    %v4781 = vrot.slane %v4779, 1
    %v4782 = vor.u32 %v4777, %v4781
    %v4784 = vshll.u32 %v4736, 16
    %v4786 = vrot.slane %v4784, 1
    %v4787 = vsel %vm1053, %v4782, %v4786
    %v4788 = vshrl.u32 %v4736, 16
    %v4790 = vor.u32 %v4788, %v4786
    %v4792 = vshll.u32 %v4737, 16
    %v4794 = vrot.slane %v4792, 1
    %v4795 = vsel %vm1053, %v4790, %v4794
    %v4796 = vshrl.u32 %v4737, 16
    %v4798 = vor.u32 %v4796, %v4794
    %v4800 = vshll.u32 %v4738, 16
    %v4802 = vrot.slane %v4800, 1
    %v4803 = vsel %vm1053, %v4798, %v4802
    %v4804 = vshrl.u32 %v4738, 16
    %v4806 = vor.u32 %v4804, %v4802
    %v4808 = vshll.u32 %v4739, 16
    %v4810 = vrot.slane %v4808, 1
    %v4811 = vsel %vm1053, %v4806, %v4810
    %v4812 = vshrl.u32 %v4739, 16
    %v4814 = vor.u32 %v4812, %v4810
    %v4816 = vshll.u32 %v4740, 16
    %v4818 = vrot.slane %v4816, 1
    %v4819 = vsel %vm1053, %v4814, %v4818
    %v4820 = vshrl.u32 %v4740, 16
    %v4822 = vor.u32 %v4820, %v4818
    %v4824 = vshll.u32 %v4741, 16
    %v4826 = vrot.slane %v4824, 1
    %v4827 = vsel %vm1053, %v4822, %v4826
    %v4828 = vshrl.u32 %v4741, 16
    %v4830 = vor.u32 %v4828, %v4826
    %v4832 = vshll.u32 %v4742, 16
    %v4834 = vrot.slane %v4832, 1
    %v4835 = vsel %vm1053, %v4830, %v4834
    %v4836 = vshrl.u32 %v4742, 16
    %v4838 = vor.u32 %v4836, %v4834
    %v4840 = vshll.u32 %v4759, 16
    %v4842 = vrot.slane %v4840, 1
    %v4843 = vsel %vm1053, %v4838, %v4842
    %v4868 = vunpack.c.l.b16 %v4760
    %v4869 = vunpack.c.l.b16 %v4761
    %v4870 = vunpack.c.l.b16 %v4762
    %v4871 = vunpack.c.l.b16 %v4763
    %v4872 = vunpack.c.l.b16 %v4764
    %v4873 = vunpack.c.l.b16 %v4765
    %v4874 = vunpack.c.l.b16 %v4766
    %v4875 = vunpack.c.l.b16 %v4767
    %v4876 = vunpack.c.l.b16 %v4768
    %v4877 = vunpack.c.l.b16 %v4769
    %v4878 = vunpack.c.l.b16 %v4770
    %v4879 = vunpack.c.l.b16 %v4771
    %v4880 = vunpack.c.l.b16 %v4772
    %v4881 = vunpack.c.l.b16 %v4773
    %v4882 = vunpack.c.l.b16 %v4774
    %v4883 = vunpack.c.l.b16 %v4775
    %v4884 = vpack.c.b16 %v4869, %v4868
    %v4885 = vpack.c.b16 %v4871, %v4870
    %v4886 = vpack.c.b16 %v4873, %v4872
    %v4887 = vpack.c.b16 %v4875, %v4874
    %v4888 = vpack.c.b16 %v4877, %v4876
    %v4889 = vpack.c.b16 %v4879, %v4878
    %v4890 = vpack.c.b16 %v4881, %v4880
    %v4891 = vpack.c.b16 %v4883, %v4882
    %4900 = vmatprep.subr.bf16.mxu0 0
    %4901 = vmatpush1.bf16.msra.mxu0 %v4884
    %4902 = vmatprep.subr.bf16.mxu0 0
    %4903 = vmatpush1.bf16.msra.mxu0 %v4885
    %4904 = vmatprep.subr.bf16.mxu0 0
    %4905 = vmatpush1.bf16.msra.mxu0 %v4886
    %4906 = vmatprep.subr.bf16.mxu0 0
    %4907 = vmatpush1.bf16.msra.mxu0 %v4887
    %4908 = vmatprep.subr.bf16.mxu0 0
    %4909 = vmatpush1.bf16.msra.mxu0 %v4888
    %4910 = vmatprep.subr.bf16.mxu0 0
    %4911 = vmatpush1.bf16.msra.mxu0 %v4889
    %4912 = vmatprep.subr.bf16.mxu0 0
    %4913 = vmatpush1.bf16.msra.mxu0 %v4890
    %4914 = vmatprep.subr.bf16.mxu0 0
    %4915 = vmatpush1.bf16.msra.mxu0 %v4891
    %4916 = vmatprep.subr.bf16.mxu0 0
    %4917 = vmatpush1.bf16.msra.mxu0 0
    %4918 = vmatprep.subr.bf16.mxu0 0
    %4919 = vmatpush1.bf16.msra.mxu0 0
    %4920 = vmatprep.subr.bf16.mxu0 0
    %4921 = vmatpush1.bf16.msra.mxu0 0
    %4922 = vmatprep.subr.bf16.mxu0 0
    %4923 = vmatpush1.bf16.msra.mxu0 0
    %4924 = vmatprep.subr.bf16.mxu0 0
    %4925 = vmatpush1.bf16.msra.mxu0 0
    %4926 = vmatprep.subr.bf16.mxu0 0
    %4927 = vmatpush1.bf16.msra.mxu0 0
    %4928 = vmatprep.subr.bf16.mxu0 0
    %4929 = vmatpush1.bf16.msra.mxu0 0
    %4930 = vmatprep.subr.bf16.mxu0 0
    %4931 = vmatpush1.bf16.msra.mxu0 0
    %4932 = vmatprep.mubr.bf16.mxu0 0
    %4933 = vmatmul.mubr.bf16.gmra.mrb[0].mxu0 %v4787
    %v4934 = vpop.f32.mrb[0].mxu0
    %v4935 = vadd.f32 0.0, %v4934
    %v4936 = vpop.f32.mrb[0].mxu0
    %v4937 = vpop.f32.mrb[0].mxu0
    %v4938 = vadd.f32 0.0, %v4937
    %v4939 = vpop.f32.mrb[0].mxu0
    %4940 = vmatprep.mubr.bf16.mxu0 0
    %4941 = vmatmul.mubr.bf16.gmra.mrb[0].mxu0 %v4795
    %v4942 = vpop.f32.mrb[0].mxu0
    %v4943 = vadd.f32 0.0, %v4942
    %v4944 = vpop.f32.mrb[0].mxu0
    %v4945 = vpop.f32.mrb[0].mxu0
    %v4946 = vadd.f32 0.0, %v4945
    %v4947 = vpop.f32.mrb[0].mxu0
    %4948 = vmatprep.mubr.bf16.mxu0 0
    %4949 = vmatmul.mubr.bf16.gmra.mrb[0].mxu0 %v4803
    %v4950 = vpop.f32.mrb[0].mxu0
    %v4951 = vadd.f32 0.0, %v4950
    %v4952 = vpop.f32.mrb[0].mxu0
    %v4953 = vpop.f32.mrb[0].mxu0
    %v4954 = vadd.f32 0.0, %v4953
    %v4955 = vpop.f32.mrb[0].mxu0
    %4956 = vmatprep.mubr.bf16.mxu0 0
    %4957 = vmatmul.mubr.bf16.gmra.mrb[0].mxu0 %v4811
    %v4958 = vpop.f32.mrb[0].mxu0
    %v4959 = vadd.f32 0.0, %v4958
    %v4960 = vpop.f32.mrb[0].mxu0
    %v4961 = vpop.f32.mrb[0].mxu0
    %v4962 = vadd.f32 0.0, %v4961
    %v4963 = vpop.f32.mrb[0].mxu0
    %4964 = vmatprep.mubr.bf16.mxu0 0
    %4965 = vmatmul.mubr.bf16.gmra.mrb[0].mxu0 %v4819
    %v4966 = vpop.f32.mrb[0].mxu0
    %v4967 = vadd.f32 0.0, %v4966
    %v4968 = vpop.f32.mrb[0].mxu0
    %v4969 = vpop.f32.mrb[0].mxu0
    %v4970 = vadd.f32 0.0, %v4969
    %v4971 = vpop.f32.mrb[0].mxu0
    %4972 = vmatprep.mubr.bf16.mxu0 0
    %4973 = vmatmul.mubr.bf16.gmra.mrb[0].mxu0 %v4827
    %v4974 = vpop.f32.mrb[0].mxu0
    %v4975 = vadd.f32 0.0, %v4974
    %v4976 = vpop.f32.mrb[0].mxu0
    %v4977 = vpop.f32.mrb[0].mxu0
    %v4978 = vadd.f32 0.0, %v4977
    %v4979 = vpop.f32.mrb[0].mxu0
    %4980 = vmatprep.mubr.bf16.mxu0 0
    %4981 = vmatmul.mubr.bf16.gmra.mrb[0].mxu0 %v4835
    %v4982 = vpop.f32.mrb[0].mxu0
    %v4983 = vadd.f32 0.0, %v4982
    %v4984 = vpop.f32.mrb[0].mxu0
    %v4985 = vpop.f32.mrb[0].mxu0
    %v4986 = vadd.f32 0.0, %v4985
    %v4987 = vpop.f32.mrb[0].mxu0
    %4988 = vmatprep.mubr.bf16.mxu0 0
    %4989 = vmatmul.mubr.bf16.gmra.mrb[0].mxu0 %v4843
    %v4990 = vpop.f32.mrb[0].mxu0
    %v4991 = vadd.f32 0.0, %v4990
    %v4992 = vpop.f32.mrb[0].mxu0
    %v4993 = vpop.f32.mrb[0].mxu0
    %v4994 = vadd.f32 0.0, %v4993
    %v4995 = vpop.f32.mrb[0].mxu0
    %4996 = vdwg.mxu0
    %v5013 = vunpack.c.l.b16 %v4743
    %v5014 = vunpack.c.l.b16 %v4744
    %v5015 = vunpack.c.l.b16 %v4745
    %v5016 = vunpack.c.l.b16 %v4746
    %v5017 = vunpack.c.l.b16 %v4747
    %v5018 = vunpack.c.l.b16 %v4748
    %v5019 = vunpack.c.l.b16 %v4749
    %v5020 = vunpack.c.l.b16 %v4750
    %v5021 = vunpack.c.l.b16 %v4751
    %v5022 = vunpack.c.l.b16 %v4752
    %v5023 = vunpack.c.l.b16 %v4753
    %v5024 = vunpack.c.l.b16 %v4754
    %v5025 = vunpack.c.l.b16 %v4755
    %v5026 = vunpack.c.l.b16 %v4756
    %v5027 = vunpack.c.l.b16 %v4757
    %v5028 = vunpack.c.l.b16 %v4758
    %v5029 = vpack.c.b16 %v5014, %v5013
    %v5030 = vpack.c.b16 %v5016, %v5015
    %v5031 = vpack.c.b16 %v5018, %v5017
    %v5032 = vpack.c.b16 %v5020, %v5019
    %v5033 = vpack.c.b16 %v5022, %v5021
    %v5034 = vpack.c.b16 %v5024, %v5023
    %v5035 = vpack.c.b16 %v5026, %v5025
    %v5036 = vpack.c.b16 %v5028, %v5027
    %5045 = vmatprep.subr.bf16.mxu0 0
    %5046 = vmatpush1.bf16.msra.mxu0 %v5029
    %5047 = vmatprep.subr.bf16.mxu0 0
    %5048 = vmatpush1.bf16.msra.mxu0 %v5030
    %5049 = vmatprep.subr.bf16.mxu0 0
    %5050 = vmatpush1.bf16.msra.mxu0 %v5031
    %5051 = vmatprep.subr.bf16.mxu0 0
    %5052 = vmatpush1.bf16.msra.mxu0 %v5032
    %5053 = vmatprep.subr.bf16.mxu0 0
    %5054 = vmatpush1.bf16.msra.mxu0 %v5033
    %5055 = vmatprep.subr.bf16.mxu0 0
    %5056 = vmatpush1.bf16.msra.mxu0 %v5034
    %5057 = vmatprep.subr.bf16.mxu0 0
    %5058 = vmatpush1.bf16.msra.mxu0 %v5035
    %5059 = vmatprep.subr.bf16.mxu0 0
    %5060 = vmatpush1.bf16.msra.mxu0 %v5036
    %5061 = vmatprep.subr.bf16.mxu0 0
    %5062 = vmatpush1.bf16.msra.mxu0 0
    %5063 = vmatprep.subr.bf16.mxu0 0
    %5064 = vmatpush1.bf16.msra.mxu0 0
    %5065 = vmatprep.subr.bf16.mxu0 0
    %5066 = vmatpush1.bf16.msra.mxu0 0
    %5067 = vmatprep.subr.bf16.mxu0 0
    %5068 = vmatpush1.bf16.msra.mxu0 0
    %5069 = vmatprep.subr.bf16.mxu0 0
    %5070 = vmatpush1.bf16.msra.mxu0 0
    %5071 = vmatprep.subr.bf16.mxu0 0
    %5072 = vmatpush1.bf16.msra.mxu0 0
    %5073 = vmatprep.subr.bf16.mxu0 0
    %5074 = vmatpush1.bf16.msra.mxu0 0
    %5075 = vmatprep.subr.bf16.mxu0 0
    %5076 = vmatpush1.bf16.msra.mxu0 0
    %5077 = vmatprep.mubr.bf16.mxu0 0
    %5078 = vmatmul.mubr.bf16.gmra.mrb[0].mxu0 %v4735
    %v5079 = vpop.f32.mrb[0].mxu0
    %v5080 = vadd.f32 %v4935, %v5079
    %v5081 = vpop.f32.mrb[0].mxu0
    %v5082 = vpop.f32.mrb[0].mxu0
    %v5083 = vadd.f32 %v4938, %v5082
    %v5084 = vpop.f32.mrb[0].mxu0
    %5085 = vmatprep.mubr.bf16.mxu0 0
    %5086 = vmatmul.mubr.bf16.gmra.mrb[0].mxu0 %v4736
    %v5087 = vpop.f32.mrb[0].mxu0
    %v5088 = vadd.f32 %v4943, %v5087
    %v5089 = vpop.f32.mrb[0].mxu0
    %v5090 = vpop.f32.mrb[0].mxu0
    %v5091 = vadd.f32 %v4946, %v5090
    %v5092 = vpop.f32.mrb[0].mxu0
    %5093 = vmatprep.mubr.bf16.mxu0 0
    %5094 = vmatmul.mubr.bf16.gmra.mrb[0].mxu0 %v4737
    %v5095 = vpop.f32.mrb[0].mxu0
    %v5096 = vadd.f32 %v4951, %v5095
    %v5097 = vpop.f32.mrb[0].mxu0
    %v5098 = vpop.f32.mrb[0].mxu0
    %v5099 = vadd.f32 %v4954, %v5098
    %v5100 = vpop.f32.mrb[0].mxu0
    %5101 = vmatprep.mubr.bf16.mxu0 0
    %5102 = vmatmul.mubr.bf16.gmra.mrb[0].mxu0 %v4738
    %v5103 = vpop.f32.mrb[0].mxu0
    %v5104 = vadd.f32 %v4959, %v5103
    %v5105 = vpop.f32.mrb[0].mxu0
    %v5106 = vpop.f32.mrb[0].mxu0
    %v5107 = vadd.f32 %v4962, %v5106
    %v5108 = vpop.f32.mrb[0].mxu0
    %5109 = vmatprep.mubr.bf16.mxu0 0
    %5110 = vmatmul.mubr.bf16.gmra.mrb[0].mxu0 %v4739
    %v5111 = vpop.f32.mrb[0].mxu0
    %v5112 = vadd.f32 %v4967, %v5111
    %v5113 = vpop.f32.mrb[0].mxu0
    %v5114 = vpop.f32.mrb[0].mxu0
    %v5115 = vadd.f32 %v4970, %v5114
    %v5116 = vpop.f32.mrb[0].mxu0
    %5117 = vmatprep.mubr.bf16.mxu0 0
    %5118 = vmatmul.mubr.bf16.gmra.mrb[0].mxu0 %v4740
    %v5119 = vpop.f32.mrb[0].mxu0
    %v5120 = vadd.f32 %v4975, %v5119
    %v5121 = vpop.f32.mrb[0].mxu0
    %v5122 = vpop.f32.mrb[0].mxu0
    %v5123 = vadd.f32 %v4978, %v5122
    %v5124 = vpop.f32.mrb[0].mxu0
    %5125 = vmatprep.mubr.bf16.mxu0 0
    %5126 = vmatmul.mubr.bf16.gmra.mrb[0].mxu0 %v4741
    %v5127 = vpop.f32.mrb[0].mxu0
    %v5128 = vadd.f32 %v4983, %v5127
    %v5129 = vpop.f32.mrb[0].mxu0
    %v5130 = vpop.f32.mrb[0].mxu0
    %v5131 = vadd.f32 %v4986, %v5130
    %v5132 = vpop.f32.mrb[0].mxu0
    %5133 = vmatprep.mubr.bf16.mxu0 0
    %5134 = vmatmul.mubr.bf16.gmra.mrb[0].mxu0 %v4742
    %v5135 = vpop.f32.mrb[0].mxu0
    %v5136 = vadd.f32 %v4991, %v5135
    %v5137 = vpop.f32.mrb[0].mxu0
    %v5138 = vpop.f32.mrb[0].mxu0
    %v5139 = vadd.f32 %v4994, %v5138
    %v5140 = vpop.f32.mrb[0].mxu0
    %5141 = vdwg.mxu0
    %v5142 = vld [vmem:[#allocation2 + $0x80] sm:$0xfe]
    %v5143 = vld [vmem:[%s1421] sm:$0xf]
    %v5144 = vld [vmem:[%s1421 + $0x4] sm:$0xf]
    %v5145 = vld [vmem:[%s1421 + $0x8] sm:$0xf]
    %v5146 = vld [vmem:[%s1421 + $0xc] sm:$0xf]
    %v5147 = vld [vmem:[%s1421 + $0x10] sm:$0xf]
    %v5148 = vld [vmem:[%s1421 + $0x14] sm:$0xf]
    %v5149 = vld [vmem:[%s1421 + $0x18] sm:$0xf]
    %v5150 = vld [vmem:[%s1421 + $0x1c] sm:$0xf]
    %v5151 = vld [vmem:[%s1421 + $0x20] sm:$0xf]
    %v5152 = vld [vmem:[%s1421 + $0x24] sm:$0xf]
    %v5153 = vld [vmem:[%s1421 + $0x28] sm:$0xf]
    %v5154 = vld [vmem:[%s1421 + $0x2c] sm:$0xf]
    %v5155 = vld [vmem:[%s1421 + $0x30] sm:$0xf]
    %v5156 = vld [vmem:[%s1421 + $0x34] sm:$0xf]
    %v5157 = vld [vmem:[%s1421 + $0x38] sm:$0xf]
    %v5158 = vld [vmem:[%s1421 + $0x3c] sm:$0xf]
    %v5168 = vrot.slane %v5142, 1
    %v5169 = vrot.slane %v4736, 1
    %v5170 = vsel %vm1447, %v5168, %v5169
    %v5171 = vrot.slane %v4737, 1
    %v5172 = vsel %vm1447, %v5169, %v5171
    %v5173 = vrot.slane %v4738, 1
    %v5174 = vsel %vm1447, %v5171, %v5173
    %v5175 = vrot.slane %v4739, 1
    %v5176 = vsel %vm1447, %v5173, %v5175
    %v5177 = vrot.slane %v4740, 1
    %v5178 = vsel %vm1447, %v5175, %v5177
    %v5179 = vrot.slane %v4741, 1
    %v5180 = vsel %vm1447, %v5177, %v5179
    %v5181 = vrot.slane %v4742, 1
    %v5182 = vsel %vm1447, %v5179, %v5181
    %v5183 = vrot.slane %v4759, 1
    %v5184 = vsel %vm1447, %v5181, %v5183
    %v5209 = vunpack.c.l.b16 %v5143
    %v5210 = vunpack.c.l.b16 %v5144
    %v5211 = vunpack.c.l.b16 %v5145
    %v5212 = vunpack.c.l.b16 %v5146
    %v5213 = vunpack.c.l.b16 %v5147
    %v5214 = vunpack.c.l.b16 %v5148
    %v5215 = vunpack.c.l.b16 %v5149
    %v5216 = vunpack.c.l.b16 %v5150
    %v5217 = vunpack.c.l.b16 %v5151
    %v5218 = vunpack.c.l.b16 %v5152
    %v5219 = vunpack.c.l.b16 %v5153
    %v5220 = vunpack.c.l.b16 %v5154
    %v5221 = vunpack.c.l.b16 %v5155
    %v5222 = vunpack.c.l.b16 %v5156
    %v5223 = vunpack.c.l.b16 %v5157
    %v5224 = vunpack.c.l.b16 %v5158
    %v5225 = vpack.c.b16 %v5210, %v5209
    %v5226 = vpack.c.b16 %v5212, %v5211
    %v5227 = vpack.c.b16 %v5214, %v5213
    %v5228 = vpack.c.b16 %v5216, %v5215
    %v5229 = vpack.c.b16 %v5218, %v5217
    %v5230 = vpack.c.b16 %v5220, %v5219
    %v5231 = vpack.c.b16 %v5222, %v5221
    %v5232 = vpack.c.b16 %v5224, %v5223
    %5241 = vmatprep.subr.bf16.mxu0 0
    %5242 = vmatpush1.bf16.msra.mxu0 %v5225
    %5243 = vmatprep.subr.bf16.mxu0 0
    %5244 = vmatpush1.bf16.msra.mxu0 %v5226
    %5245 = vmatprep.subr.bf16.mxu0 0
    %5246 = vmatpush1.bf16.msra.mxu0 %v5227
    %5247 = vmatprep.subr.bf16.mxu0 0
    %5248 = vmatpush1.bf16.msra.mxu0 %v5228
    %5249 = vmatprep.subr.bf16.mxu0 0
    %5250 = vmatpush1.bf16.msra.mxu0 %v5229
    %5251 = vmatprep.subr.bf16.mxu0 0
    %5252 = vmatpush1.bf16.msra.mxu0 %v5230
    %5253 = vmatprep.subr.bf16.mxu0 0
    %5254 = vmatpush1.bf16.msra.mxu0 %v5231
    %5255 = vmatprep.subr.bf16.mxu0 0
    %5256 = vmatpush1.bf16.msra.mxu0 %v5232
    %5257 = vmatprep.subr.bf16.mxu0 0
    %5258 = vmatpush1.bf16.msra.mxu0 0
    %5259 = vmatprep.subr.bf16.mxu0 0
    %5260 = vmatpush1.bf16.msra.mxu0 0
    %5261 = vmatprep.subr.bf16.mxu0 0
    %5262 = vmatpush1.bf16.msra.mxu0 0
    %5263 = vmatprep.subr.bf16.mxu0 0
    %5264 = vmatpush1.bf16.msra.mxu0 0
    %5265 = vmatprep.subr.bf16.mxu0 0
    %5266 = vmatpush1.bf16.msra.mxu0 0
    %5267 = vmatprep.subr.bf16.mxu0 0
    %5268 = vmatpush1.bf16.msra.mxu0 0
    %5269 = vmatprep.subr.bf16.mxu0 0
    %5270 = vmatpush1.bf16.msra.mxu0 0
    %5271 = vmatprep.subr.bf16.mxu0 0
    %5272 = vmatpush1.bf16.msra.mxu0 0
    %5273 = vmatprep.mubr.bf16.mxu0 0
    %5274 = vmatmul.mubr.bf16.gmra.mrb[0].mxu0 %v5170
    %v5275 = vpop.f32.mrb[0].mxu0
    %v5276 = vadd.f32 0.0, %v5275
    %v5277 = vpop.f32.mrb[0].mxu0
    %v5278 = vpop.f32.mrb[0].mxu0
    %v5279 = vadd.f32 0.0, %v5278
    %v5280 = vpop.f32.mrb[0].mxu0
    %5281 = vmatprep.mubr.bf16.mxu0 0
    %5282 = vmatmul.mubr.bf16.gmra.mrb[0].mxu0 %v5172
    %v5283 = vpop.f32.mrb[0].mxu0
    %v5284 = vadd.f32 0.0, %v5283
    %v5285 = vpop.f32.mrb[0].mxu0
    %v5286 = vpop.f32.mrb[0].mxu0
    %v5287 = vadd.f32 0.0, %v5286
    %v5288 = vpop.f32.mrb[0].mxu0
    %5289 = vmatprep.mubr.bf16.mxu0 0
    %5290 = vmatmul.mubr.bf16.gmra.mrb[0].mxu0 %v5174
    %v5291 = vpop.f32.mrb[0].mxu0
    %v5292 = vadd.f32 0.0, %v5291
    %v5293 = vpop.f32.mrb[0].mxu0
    %v5294 = vpop.f32.mrb[0].mxu0
    %v5295 = vadd.f32 0.0, %v5294
    %v5296 = vpop.f32.mrb[0].mxu0
    %5297 = vmatprep.mubr.bf16.mxu0 0
    %5298 = vmatmul.mubr.bf16.gmra.mrb[0].mxu0 %v5176
    %v5299 = vpop.f32.mrb[0].mxu0
    %v5300 = vadd.f32 0.0, %v5299
    %v5301 = vpop.f32.mrb[0].mxu0
    %v5302 = vpop.f32.mrb[0].mxu0
    %v5303 = vadd.f32 0.0, %v5302
    %v5304 = vpop.f32.mrb[0].mxu0
    %5305 = vmatprep.mubr.bf16.mxu0 0
    %5306 = vmatmul.mubr.bf16.gmra.mrb[0].mxu0 %v5178
    %v5307 = vpop.f32.mrb[0].mxu0
    %v5308 = vadd.f32 0.0, %v5307
    %v5309 = vpop.f32.mrb[0].mxu0
    %v5310 = vpop.f32.mrb[0].mxu0
    %v5311 = vadd.f32 0.0, %v5310
    %v5312 = vpop.f32.mrb[0].mxu0
    %5313 = vmatprep.mubr.bf16.mxu0 0
    %5314 = vmatmul.mubr.bf16.gmra.mrb[0].mxu0 %v5180
    %v5315 = vpop.f32.mrb[0].mxu0
    %v5316 = vadd.f32 0.0, %v5315
    %v5317 = vpop.f32.mrb[0].mxu0
    %v5318 = vpop.f32.mrb[0].mxu0
    %v5319 = vadd.f32 0.0, %v5318
    %v5320 = vpop.f32.mrb[0].mxu0
    %5321 = vmatprep.mubr.bf16.mxu0 0
    %5322 = vmatmul.mubr.bf16.gmra.mrb[0].mxu0 %v5182
    %v5323 = vpop.f32.mrb[0].mxu0
    %v5324 = vadd.f32 0.0, %v5323
    %v5325 = vpop.f32.mrb[0].mxu0
    %v5326 = vpop.f32.mrb[0].mxu0
    %v5327 = vadd.f32 0.0, %v5326
    %v5328 = vpop.f32.mrb[0].mxu0
    %5329 = vmatprep.mubr.bf16.mxu0 0
    %5330 = vmatmul.mubr.bf16.gmra.mrb[0].mxu0 %v5184
    %v5331 = vpop.f32.mrb[0].mxu0
    %v5332 = vadd.f32 0.0, %v5331
    %v5333 = vpop.f32.mrb[0].mxu0
    %v5334 = vpop.f32.mrb[0].mxu0
    %v5335 = vadd.f32 0.0, %v5334
    %v5336 = vpop.f32.mrb[0].mxu0
    %5337 = vdwg.mxu0
    %v5338 = vadd.f32 %v5080, %v5276
    %v5339 = vadd.f32 %v5083, %v5279
    %v5340 = vadd.f32 %v5088, %v5284
    %v5341 = vadd.f32 %v5091, %v5287
    %v5342 = vadd.f32 %v5096, %v5292
    %v5343 = vadd.f32 %v5099, %v5295
    %v5344 = vadd.f32 %v5104, %v5300
    %v5345 = vadd.f32 %v5107, %v5303
    %v5346 = vadd.f32 %v5112, %v5308
    %v5347 = vadd.f32 %v5115, %v5311
    %v5348 = vadd.f32 %v5120, %v5316
    %v5349 = vadd.f32 %v5123, %v5319
    %v5350 = vadd.f32 %v5128, %v5324
    %v5351 = vadd.f32 %v5131, %v5327
    %v5352 = vadd.f32 %v5136, %v5332
    %v5353 = vadd.f32 %v5139, %v5335
    %v5354 = vld [vmem:[#allocation2 + $0xc0] sm:$0xff]
    %v5355 = vld [vmem:[%s1635] sm:$0xf]
    %v5356 = vld [vmem:[%s1635 + $0x4] sm:$0xf]
    %v5357 = vld [vmem:[%s1635 + $0x8] sm:$0xf]
    %v5358 = vld [vmem:[%s1635 + $0xc] sm:$0xf]
    %v5359 = vld [vmem:[%s1635 + $0x10] sm:$0xf]
    %v5360 = vld [vmem:[%s1635 + $0x14] sm:$0xf]
    %v5361 = vld [vmem:[%s1635 + $0x18] sm:$0xf]
    %v5362 = vld [vmem:[%s1635 + $0x1c] sm:$0xf]
    %v5363 = vld [vmem:[%s1635 + $0x20] sm:$0xf]
    %v5364 = vld [vmem:[%s1635 + $0x24] sm:$0xf]
    %v5365 = vld [vmem:[%s1635 + $0x28] sm:$0xf]
    %v5366 = vld [vmem:[%s1635 + $0x2c] sm:$0xf]
    %v5367 = vld [vmem:[%s1635 + $0x30] sm:$0xf]
    %v5368 = vld [vmem:[%s1635 + $0x34] sm:$0xf]
    %v5369 = vld [vmem:[%s1635 + $0x38] sm:$0xf]
    %v5370 = vld [vmem:[%s1635 + $0x3c] sm:$0xf]
    %v5387 = vunpack.c.l.b16 %v5355
    %v5388 = vunpack.c.l.b16 %v5356
    %v5389 = vunpack.c.l.b16 %v5357
    %v5390 = vunpack.c.l.b16 %v5358
    %v5391 = vunpack.c.l.b16 %v5359
    %v5392 = vunpack.c.l.b16 %v5360
    %v5393 = vunpack.c.l.b16 %v5361
    %v5394 = vunpack.c.l.b16 %v5362
    %v5395 = vunpack.c.l.b16 %v5363
    %v5396 = vunpack.c.l.b16 %v5364
    %v5397 = vunpack.c.l.b16 %v5365
    %v5398 = vunpack.c.l.b16 %v5366
    %v5399 = vunpack.c.l.b16 %v5367
    %v5400 = vunpack.c.l.b16 %v5368
    %v5401 = vunpack.c.l.b16 %v5369
    %v5402 = vunpack.c.l.b16 %v5370
    %v5403 = vpack.c.b16 %v5388, %v5387
    %v5404 = vpack.c.b16 %v5390, %v5389
    %v5405 = vpack.c.b16 %v5392, %v5391
    %v5406 = vpack.c.b16 %v5394, %v5393
    %v5407 = vpack.c.b16 %v5396, %v5395
    %v5408 = vpack.c.b16 %v5398, %v5397
    %v5409 = vpack.c.b16 %v5400, %v5399
    %v5410 = vpack.c.b16 %v5402, %v5401
    %5419 = vmatprep.subr.bf16.mxu0 0
    %5420 = vmatpush1.bf16.msra.mxu0 %v5403
    %5421 = vmatprep.subr.bf16.mxu0 0
    %5422 = vmatpush1.bf16.msra.mxu0 %v5404
    %5423 = vmatprep.subr.bf16.mxu0 0
    %5424 = vmatpush1.bf16.msra.mxu0 %v5405
    %5425 = vmatprep.subr.bf16.mxu0 0
    %5426 = vmatpush1.bf16.msra.mxu0 %v5406
    %5427 = vmatprep.subr.bf16.mxu0 0
    %5428 = vmatpush1.bf16.msra.mxu0 %v5407
    %5429 = vmatprep.subr.bf16.mxu0 0
    %5430 = vmatpush1.bf16.msra.mxu0 %v5408
    %5431 = vmatprep.subr.bf16.mxu0 0
    %5432 = vmatpush1.bf16.msra.mxu0 %v5409
    %5433 = vmatprep.subr.bf16.mxu0 0
    %5434 = vmatpush1.bf16.msra.mxu0 %v5410
    %5435 = vmatprep.subr.bf16.mxu0 0
    %5436 = vmatpush1.bf16.msra.mxu0 0
    %5437 = vmatprep.subr.bf16.mxu0 0
    %5438 = vmatpush1.bf16.msra.mxu0 0
    %5439 = vmatprep.subr.bf16.mxu0 0
    %5440 = vmatpush1.bf16.msra.mxu0 0
    %5441 = vmatprep.subr.bf16.mxu0 0
    %5442 = vmatpush1.bf16.msra.mxu0 0
    %5443 = vmatprep.subr.bf16.mxu0 0
    %5444 = vmatpush1.bf16.msra.mxu0 0
    %5445 = vmatprep.subr.bf16.mxu0 0
    %5446 = vmatpush1.bf16.msra.mxu0 0
    %5447 = vmatprep.subr.bf16.mxu0 0
    %5448 = vmatpush1.bf16.msra.mxu0 0
    %5449 = vmatprep.subr.bf16.mxu0 0
    %5450 = vmatpush1.bf16.msra.mxu0 0
    %5451 = vmatprep.mubr.bf16.mxu0 0
    %5452 = vmatmul.mubr.bf16.gmra.mrb[0].mxu0 %v4736
    %v5453 = vpop.f32.mrb[0].mxu0
    %v5454 = vadd.f32 0.0, %v5453
    %v5455 = vpop.f32.mrb[0].mxu0
    %v5456 = vpop.f32.mrb[0].mxu0
    %v5457 = vadd.f32 0.0, %v5456
    %v5458 = vpop.f32.mrb[0].mxu0
    %5459 = vmatprep.mubr.bf16.mxu0 0
    %5460 = vmatmul.mubr.bf16.gmra.mrb[0].mxu0 %v4737
    %v5461 = vpop.f32.mrb[0].mxu0
    %v5462 = vadd.f32 0.0, %v5461
    %v5463 = vpop.f32.mrb[0].mxu0
    %v5464 = vpop.f32.mrb[0].mxu0
    %v5465 = vadd.f32 0.0, %v5464
    %v5466 = vpop.f32.mrb[0].mxu0
    %5467 = vmatprep.mubr.bf16.mxu0 0
    %5468 = vmatmul.mubr.bf16.gmra.mrb[0].mxu0 %v4738
    %v5469 = vpop.f32.mrb[0].mxu0
    %v5470 = vadd.f32 0.0, %v5469
    %v5471 = vpop.f32.mrb[0].mxu0
    %v5472 = vpop.f32.mrb[0].mxu0
    %v5473 = vadd.f32 0.0, %v5472
    %v5474 = vpop.f32.mrb[0].mxu0
    %5475 = vmatprep.mubr.bf16.mxu0 0
    %5476 = vmatmul.mubr.bf16.gmra.mrb[0].mxu0 %v4739
    %v5477 = vpop.f32.mrb[0].mxu0
    %v5478 = vadd.f32 0.0, %v5477
    %v5479 = vpop.f32.mrb[0].mxu0
    %v5480 = vpop.f32.mrb[0].mxu0
    %v5481 = vadd.f32 0.0, %v5480
    %v5482 = vpop.f32.mrb[0].mxu0
    %5483 = vmatprep.mubr.bf16.mxu0 0
    %5484 = vmatmul.mubr.bf16.gmra.mrb[0].mxu0 %v4740
    %v5485 = vpop.f32.mrb[0].mxu0
    %v5486 = vadd.f32 0.0, %v5485
    %v5487 = vpop.f32.mrb[0].mxu0
    %v5488 = vpop.f32.mrb[0].mxu0
    %v5489 = vadd.f32 0.0, %v5488
    %v5490 = vpop.f32.mrb[0].mxu0
    %5491 = vmatprep.mubr.bf16.mxu0 0
    %5492 = vmatmul.mubr.bf16.gmra.mrb[0].mxu0 %v4741
    %v5493 = vpop.f32.mrb[0].mxu0
    %v5494 = vadd.f32 0.0, %v5493
    %v5495 = vpop.f32.mrb[0].mxu0
    %v5496 = vpop.f32.mrb[0].mxu0
    %v5497 = vadd.f32 0.0, %v5496
    %v5498 = vpop.f32.mrb[0].mxu0
    %5499 = vmatprep.mubr.bf16.mxu0 0
    %5500 = vmatmul.mubr.bf16.gmra.mrb[0].mxu0 %v4742
    %v5501 = vpop.f32.mrb[0].mxu0
    %v5502 = vadd.f32 0.0, %v5501
    %v5503 = vpop.f32.mrb[0].mxu0
    %v5504 = vpop.f32.mrb[0].mxu0
    %v5505 = vadd.f32 0.0, %v5504
    %v5506 = vpop.f32.mrb[0].mxu0
    %5507 = vmatprep.mubr.bf16.mxu0 0
    %5508 = vmatmul.mubr.bf16.gmra.mrb[0].mxu0 %v5354
    %v5509 = vpop.f32.mrb[0].mxu0
    %v5510 = vadd.f32 0.0, %v5509
    %v5511 = vpop.f32.mrb[0].mxu0
    %v5512 = vpop.f32.mrb[0].mxu0
    %v5513 = vadd.f32 0.0, %v5512
    %v5514 = vpop.f32.mrb[0].mxu0
    %5515 = vdwg.mxu0
    %v5516 = vadd.f32 %v5338, %v5454
    %v5517 = vadd.f32 %v5339, %v5457
    %v5518 = vadd.f32 %v5340, %v5462
    %v5519 = vadd.f32 %v5341, %v5465
    %v5520 = vadd.f32 %v5342, %v5470
    %v5521 = vadd.f32 %v5343, %v5473
    %v5522 = vadd.f32 %v5344, %v5478
    %v5523 = vadd.f32 %v5345, %v5481
    %v5524 = vadd.f32 %v5346, %v5486
    %v5525 = vadd.f32 %v5347, %v5489
    %v5526 = vadd.f32 %v5348, %v5494
    %v5527 = vadd.f32 %v5349, %v5497
    %v5528 = vadd.f32 %v5350, %v5502
    %v5529 = vadd.f32 %v5351, %v5505
    %v5530 = vadd.f32 %v5352, %v5510
    %v5531 = vadd.f32 %v5353, %v5513
    %v5532 = vld [vmem:[#allocation2 + $0x88] sm:$0xff]
    %v5533 = vld [vmem:[#allocation2 + $0x90] sm:$0xff]
    %v5534 = vld [vmem:[#allocation2 + $0x98] sm:$0xff]
    %v5535 = vld [vmem:[#allocation2 + $0xa0] sm:$0xff]
    %v5536 = vld [vmem:[#allocation2 + $0xa8] sm:$0xff]
    %v5537 = vld [vmem:[#allocation2 + $0xb0] sm:$0xff]
    %v5538 = vld [vmem:[#allocation2 + $0xb8] sm:$0xff]
    %v5539 = vld [vmem:[#allocation2 + $0xc0] sm:$0xff]
    %v5540 = vld [vmem:[#allocation2 + $0xc8] sm:$0x1]
    %v5541 = vld [vmem:[%s1822] sm:$0xf]
    %v5542 = vld [vmem:[%s1822 + $0x4] sm:$0xf]
    %v5543 = vld [vmem:[%s1822 + $0x8] sm:$0xf]
    %v5544 = vld [vmem:[%s1822 + $0xc] sm:$0xf]
    %v5545 = vld [vmem:[%s1822 + $0x10] sm:$0xf]
    %v5546 = vld [vmem:[%s1822 + $0x14] sm:$0xf]
    %v5547 = vld [vmem:[%s1822 + $0x18] sm:$0xf]
    %v5548 = vld [vmem:[%s1822 + $0x1c] sm:$0xf]
    %v5549 = vld [vmem:[%s1822 + $0x20] sm:$0xf]
    %v5550 = vld [vmem:[%s1822 + $0x24] sm:$0xf]
    %v5551 = vld [vmem:[%s1822 + $0x28] sm:$0xf]
    %v5552 = vld [vmem:[%s1822 + $0x2c] sm:$0xf]
    %v5553 = vld [vmem:[%s1822 + $0x30] sm:$0xf]
    %v5554 = vld [vmem:[%s1822 + $0x34] sm:$0xf]
    %v5555 = vld [vmem:[%s1822 + $0x38] sm:$0xf]
    %v5556 = vld [vmem:[%s1822 + $0x3c] sm:$0xf]
    %v5558 = vshrl.u32 %v5532, 16
    %v5560 = vshll.u32 %v5532, 16
    %v5562 = vrot.slane %v5560, 1
    %v5563 = vor.u32 %v5558, %v5562
    %v5565 = vshll.u32 %v5533, 16
    %v5567 = vrot.slane %v5565, 1
    %v5568 = vsel %vm1053, %v5563, %v5567
    %v5569 = vshrl.u32 %v5533, 16
    %v5571 = vor.u32 %v5569, %v5567
    %v5573 = vshll.u32 %v5534, 16
    %v5575 = vrot.slane %v5573, 1
    %v5576 = vsel %vm1053, %v5571, %v5575
    %v5577 = vshrl.u32 %v5534, 16
    %v5579 = vor.u32 %v5577, %v5575
    %v5581 = vshll.u32 %v5535, 16
    %v5583 = vrot.slane %v5581, 1
    %v5584 = vsel %vm1053, %v5579, %v5583
    %v5585 = vshrl.u32 %v5535, 16
    %v5587 = vor.u32 %v5585, %v5583
    %v5589 = vshll.u32 %v5536, 16
    %v5591 = vrot.slane %v5589, 1
    %v5592 = vsel %vm1053, %v5587, %v5591
    %v5593 = vshrl.u32 %v5536, 16
    %v5595 = vor.u32 %v5593, %v5591
    %v5597 = vshll.u32 %v5537, 16
    %v5599 = vrot.slane %v5597, 1
    %v5600 = vsel %vm1053, %v5595, %v5599
    %v5601 = vshrl.u32 %v5537, 16
    %v5603 = vor.u32 %v5601, %v5599
    %v5605 = vshll.u32 %v5538, 16
    %v5607 = vrot.slane %v5605, 1
    %v5608 = vsel %vm1053, %v5603, %v5607
    %v5609 = vshrl.u32 %v5538, 16
    %v5611 = vor.u32 %v5609, %v5607
    %v5613 = vshll.u32 %v5539, 16
    %v5615 = vrot.slane %v5613, 1
    %v5616 = vsel %vm1053, %v5611, %v5615
    %v5617 = vshrl.u32 %v5539, 16
    %v5619 = vor.u32 %v5617, %v5615
    %v5621 = vshll.u32 %v5540, 16
    %v5623 = vrot.slane %v5621, 1
    %v5624 = vsel %vm1053, %v5619, %v5623
    %v5649 = vunpack.c.l.b16 %v5541
    %v5650 = vunpack.c.l.b16 %v5542
    %v5651 = vunpack.c.l.b16 %v5543
    %v5652 = vunpack.c.l.b16 %v5544
    %v5653 = vunpack.c.l.b16 %v5545
    %v5654 = vunpack.c.l.b16 %v5546
    %v5655 = vunpack.c.l.b16 %v5547
    %v5656 = vunpack.c.l.b16 %v5548
    %v5657 = vunpack.c.l.b16 %v5549
    %v5658 = vunpack.c.l.b16 %v5550
    %v5659 = vunpack.c.l.b16 %v5551
    %v5660 = vunpack.c.l.b16 %v5552
    %v5661 = vunpack.c.l.b16 %v5553
    %v5662 = vunpack.c.l.b16 %v5554
    %v5663 = vunpack.c.l.b16 %v5555
    %v5664 = vunpack.c.l.b16 %v5556
    %v5665 = vpack.c.b16 %v5650, %v5649
    %v5666 = vpack.c.b16 %v5652, %v5651
    %v5667 = vpack.c.b16 %v5654, %v5653
    %v5668 = vpack.c.b16 %v5656, %v5655
    %v5669 = vpack.c.b16 %v5658, %v5657
    %v5670 = vpack.c.b16 %v5660, %v5659
    %v5671 = vpack.c.b16 %v5662, %v5661
    %v5672 = vpack.c.b16 %v5664, %v5663
    %5681 = vmatprep.subr.bf16.mxu0 0
    %5682 = vmatpush1.bf16.msra.mxu0 %v5665
    %5683 = vmatprep.subr.bf16.mxu0 0
    %5684 = vmatpush1.bf16.msra.mxu0 %v5666
    %5685 = vmatprep.subr.bf16.mxu0 0
    %5686 = vmatpush1.bf16.msra.mxu0 %v5667
    %5687 = vmatprep.subr.bf16.mxu0 0
    %5688 = vmatpush1.bf16.msra.mxu0 %v5668
    %5689 = vmatprep.subr.bf16.mxu0 0
    %5690 = vmatpush1.bf16.msra.mxu0 %v5669
    %5691 = vmatprep.subr.bf16.mxu0 0
    %5692 = vmatpush1.bf16.msra.mxu0 %v5670
    %5693 = vmatprep.subr.bf16.mxu0 0
    %5694 = vmatpush1.bf16.msra.mxu0 %v5671
    %5695 = vmatprep.subr.bf16.mxu0 0
    %5696 = vmatpush1.bf16.msra.mxu0 %v5672
    %5697 = vmatprep.subr.bf16.mxu0 0
    %5698 = vmatpush1.bf16.msra.mxu0 0
    %5699 = vmatprep.subr.bf16.mxu0 0
    %5700 = vmatpush1.bf16.msra.mxu0 0
    %5701 = vmatprep.subr.bf16.mxu0 0
    %5702 = vmatpush1.bf16.msra.mxu0 0
    %5703 = vmatprep.subr.bf16.mxu0 0
    %5704 = vmatpush1.bf16.msra.mxu0 0
    %5705 = vmatprep.subr.bf16.mxu0 0
    %5706 = vmatpush1.bf16.msra.mxu0 0
    %5707 = vmatprep.subr.bf16.mxu0 0
    %5708 = vmatpush1.bf16.msra.mxu0 0
    %5709 = vmatprep.subr.bf16.mxu0 0
    %5710 = vmatpush1.bf16.msra.mxu0 0
    %5711 = vmatprep.subr.bf16.mxu0 0
    %5712 = vmatpush1.bf16.msra.mxu0 0
    %5713 = vmatprep.mubr.bf16.mxu0 0
    %5714 = vmatmul.mubr.bf16.gmra.mrb[0].mxu0 %v5568
    %v5715 = vpop.f32.mrb[0].mxu0
    %v5716 = vadd.f32 0.0, %v5715
    %v5717 = vpop.f32.mrb[0].mxu0
    %v5718 = vpop.f32.mrb[0].mxu0
    %v5719 = vadd.f32 0.0, %v5718
    %v5720 = vpop.f32.mrb[0].mxu0
    %5721 = vmatprep.mubr.bf16.mxu0 0
    %5722 = vmatmul.mubr.bf16.gmra.mrb[0].mxu0 %v5576
    %v5723 = vpop.f32.mrb[0].mxu0
    %v5724 = vadd.f32 0.0, %v5723
    %v5725 = vpop.f32.mrb[0].mxu0
    %v5726 = vpop.f32.mrb[0].mxu0
    %v5727 = vadd.f32 0.0, %v5726
    %v5728 = vpop.f32.mrb[0].mxu0
    %5729 = vmatprep.mubr.bf16.mxu0 0
    %5730 = vmatmul.mubr.bf16.gmra.mrb[0].mxu0 %v5584
    %v5731 = vpop.f32.mrb[0].mxu0
    %v5732 = vadd.f32 0.0, %v5731
    %v5733 = vpop.f32.mrb[0].mxu0
    %v5734 = vpop.f32.mrb[0].mxu0
    %v5735 = vadd.f32 0.0, %v5734
    %v5736 = vpop.f32.mrb[0].mxu0
    %5737 = vmatprep.mubr.bf16.mxu0 0
    %5738 = vmatmul.mubr.bf16.gmra.mrb[0].mxu0 %v5592
    %v5739 = vpop.f32.mrb[0].mxu0
    %v5740 = vadd.f32 0.0, %v5739
    %v5741 = vpop.f32.mrb[0].mxu0
    %v5742 = vpop.f32.mrb[0].mxu0
    %v5743 = vadd.f32 0.0, %v5742
    %v5744 = vpop.f32.mrb[0].mxu0
    %5745 = vmatprep.mubr.bf16.mxu0 0
    %5746 = vmatmul.mubr.bf16.gmra.mrb[0].mxu0 %v5600
    %v5747 = vpop.f32.mrb[0].mxu0
    %v5748 = vadd.f32 0.0, %v5747
    %v5749 = vpop.f32.mrb[0].mxu0
    %v5750 = vpop.f32.mrb[0].mxu0
    %v5751 = vadd.f32 0.0, %v5750
    %v5752 = vpop.f32.mrb[0].mxu0
    %5753 = vmatprep.mubr.bf16.mxu0 0
    %5754 = vmatmul.mubr.bf16.gmra.mrb[0].mxu0 %v5608
    %v5755 = vpop.f32.mrb[0].mxu0
    %v5756 = vadd.f32 0.0, %v5755
    %v5757 = vpop.f32.mrb[0].mxu0
    %v5758 = vpop.f32.mrb[0].mxu0
    %v5759 = vadd.f32 0.0, %v5758
    %v5760 = vpop.f32.mrb[0].mxu0
    %5761 = vmatprep.mubr.bf16.mxu0 0
    %5762 = vmatmul.mubr.bf16.gmra.mrb[0].mxu0 %v5616
    %v5763 = vpop.f32.mrb[0].mxu0
    %v5764 = vadd.f32 0.0, %v5763
    %v5765 = vpop.f32.mrb[0].mxu0
    %v5766 = vpop.f32.mrb[0].mxu0
    %v5767 = vadd.f32 0.0, %v5766
    %v5768 = vpop.f32.mrb[0].mxu0
    %5769 = vmatprep.mubr.bf16.mxu0 0
    %5770 = vmatmul.mubr.bf16.gmra.mrb[0].mxu0 %v5624
    %v5771 = vpop.f32.mrb[0].mxu0
    %v5772 = vadd.f32 0.0, %v5771
    %v5773 = vpop.f32.mrb[0].mxu0
    %v5774 = vpop.f32.mrb[0].mxu0
    %v5775 = vadd.f32 0.0, %v5774
    %v5776 = vpop.f32.mrb[0].mxu0
    %5777 = vdwg.mxu0
    %v5778 = vadd.f32 %v5516, %v5716
    %v5779 = vadd.f32 %v5517, %v5719
    %v5780 = vadd.f32 %v5518, %v5724
    %v5781 = vadd.f32 %v5519, %v5727
    %v5782 = vadd.f32 %v5520, %v5732
    %v5783 = vadd.f32 %v5521, %v5735
    %v5784 = vadd.f32 %v5522, %v5740
    %v5785 = vadd.f32 %v5523, %v5743
    %v5786 = vadd.f32 %v5524, %v5748
    %v5787 = vadd.f32 %v5525, %v5751
    %v5788 = vadd.f32 %v5526, %v5756
    %v5789 = vadd.f32 %v5527, %v5759
    %v5790 = vadd.f32 %v5528, %v5764
    %v5791 = vadd.f32 %v5529, %v5767
    %v5792 = vadd.f32 %v5530, %v5772
    %v5793 = vadd.f32 %v5531, %v5775
    %v5794 = vld [vmem:[#allocation2 + $0x88] sm:$0xfe]
    %v5795 = vld [vmem:[%s2077] sm:$0xf]
    %v5796 = vld [vmem:[%s2077 + $0x4] sm:$0xf]
    %v5797 = vld [vmem:[%s2077 + $0x8] sm:$0xf]
    %v5798 = vld [vmem:[%s2077 + $0xc] sm:$0xf]
    %v5799 = vld [vmem:[%s2077 + $0x10] sm:$0xf]
    %v5800 = vld [vmem:[%s2077 + $0x14] sm:$0xf]
    %v5801 = vld [vmem:[%s2077 + $0x18] sm:$0xf]
    %v5802 = vld [vmem:[%s2077 + $0x1c] sm:$0xf]
    %v5803 = vld [vmem:[%s2077 + $0x20] sm:$0xf]
    %v5804 = vld [vmem:[%s2077 + $0x24] sm:$0xf]
    %v5805 = vld [vmem:[%s2077 + $0x28] sm:$0xf]
    %v5806 = vld [vmem:[%s2077 + $0x2c] sm:$0xf]
    %v5807 = vld [vmem:[%s2077 + $0x30] sm:$0xf]
    %v5808 = vld [vmem:[%s2077 + $0x34] sm:$0xf]
    %v5809 = vld [vmem:[%s2077 + $0x38] sm:$0xf]
    %v5810 = vld [vmem:[%s2077 + $0x3c] sm:$0xf]
    %v5820 = vrot.slane %v5794, 1
    %v5821 = vrot.slane %v5533, 1
    %v5822 = vsel %vm1447, %v5820, %v5821
    %v5823 = vrot.slane %v5534, 1
    %v5824 = vsel %vm1447, %v5821, %v5823
    %v5825 = vrot.slane %v5535, 1
    %v5826 = vsel %vm1447, %v5823, %v5825
    %v5827 = vrot.slane %v5536, 1
    %v5828 = vsel %vm1447, %v5825, %v5827
    %v5829 = vrot.slane %v5537, 1
    %v5830 = vsel %vm1447, %v5827, %v5829
    %v5831 = vrot.slane %v5538, 1
    %v5832 = vsel %vm1447, %v5829, %v5831
    %v5833 = vrot.slane %v5539, 1
    %v5834 = vsel %vm1447, %v5831, %v5833
    %v5835 = vrot.slane %v5540, 1
    %v5836 = vsel %vm1447, %v5833, %v5835
    %v5861 = vunpack.c.l.b16 %v5795
    %v5862 = vunpack.c.l.b16 %v5796
    %v5863 = vunpack.c.l.b16 %v5797
    %v5864 = vunpack.c.l.b16 %v5798
    %v5865 = vunpack.c.l.b16 %v5799
    %v5866 = vunpack.c.l.b16 %v5800
    %v5867 = vunpack.c.l.b16 %v5801
    %v5868 = vunpack.c.l.b16 %v5802
    %v5869 = vunpack.c.l.b16 %v5803
    %v5870 = vunpack.c.l.b16 %v5804
    %v5871 = vunpack.c.l.b16 %v5805
    %v5872 = vunpack.c.l.b16 %v5806
    %v5873 = vunpack.c.l.b16 %v5807
    %v5874 = vunpack.c.l.b16 %v5808
    %v5875 = vunpack.c.l.b16 %v5809
    %v5876 = vunpack.c.l.b16 %v5810
    %v5877 = vpack.c.b16 %v5862, %v5861
    %v5878 = vpack.c.b16 %v5864, %v5863
    %v5879 = vpack.c.b16 %v5866, %v5865
    %v5880 = vpack.c.b16 %v5868, %v5867
    %v5881 = vpack.c.b16 %v5870, %v5869
    %v5882 = vpack.c.b16 %v5872, %v5871
    %v5883 = vpack.c.b16 %v5874, %v5873
    %v5884 = vpack.c.b16 %v5876, %v5875
    %5893 = vmatprep.subr.bf16.mxu0 0
    %5894 = vmatpush1.bf16.msra.mxu0 %v5877
    %5895 = vmatprep.subr.bf16.mxu0 0
    %5896 = vmatpush1.bf16.msra.mxu0 %v5878
    %5897 = vmatprep.subr.bf16.mxu0 0
    %5898 = vmatpush1.bf16.msra.mxu0 %v5879
    %5899 = vmatprep.subr.bf16.mxu0 0
    %5900 = vmatpush1.bf16.msra.mxu0 %v5880
    %5901 = vmatprep.subr.bf16.mxu0 0
    %5902 = vmatpush1.bf16.msra.mxu0 %v5881
    %5903 = vmatprep.subr.bf16.mxu0 0
    %5904 = vmatpush1.bf16.msra.mxu0 %v5882
    %5905 = vmatprep.subr.bf16.mxu0 0
    %5906 = vmatpush1.bf16.msra.mxu0 %v5883
    %5907 = vmatprep.subr.bf16.mxu0 0
    %5908 = vmatpush1.bf16.msra.mxu0 %v5884
    %5909 = vmatprep.subr.bf16.mxu0 0
    %5910 = vmatpush1.bf16.msra.mxu0 0
    %5911 = vmatprep.subr.bf16.mxu0 0
    %5912 = vmatpush1.bf16.msra.mxu0 0
    %5913 = vmatprep.subr.bf16.mxu0 0
    %5914 = vmatpush1.bf16.msra.mxu0 0
    %5915 = vmatprep.subr.bf16.mxu0 0
    %5916 = vmatpush1.bf16.msra.mxu0 0
    %5917 = vmatprep.subr.bf16.mxu0 0
    %5918 = vmatpush1.bf16.msra.mxu0 0
    %5919 = vmatprep.subr.bf16.mxu0 0
    %5920 = vmatpush1.bf16.msra.mxu0 0
    %5921 = vmatprep.subr.bf16.mxu0 0
    %5922 = vmatpush1.bf16.msra.mxu0 0
    %5923 = vmatprep.subr.bf16.mxu0 0
    %5924 = vmatpush1.bf16.msra.mxu0 0
    %5925 = vmatprep.mubr.bf16.mxu0 0
    %5926 = vmatmul.mubr.bf16.gmra.mrb[0].mxu0 %v5822
    %v5927 = vpop.f32.mrb[0].mxu0
    %v5928 = vadd.f32 0.0, %v5927
    %v5929 = vpop.f32.mrb[0].mxu0
    %v5930 = vpop.f32.mrb[0].mxu0
    %v5931 = vadd.f32 0.0, %v5930
    %v5932 = vpop.f32.mrb[0].mxu0
    %5933 = vmatprep.mubr.bf16.mxu0 0
    %5934 = vmatmul.mubr.bf16.gmra.mrb[0].mxu0 %v5824
    %v5935 = vpop.f32.mrb[0].mxu0
    %v5936 = vadd.f32 0.0, %v5935
    %v5937 = vpop.f32.mrb[0].mxu0
    %v5938 = vpop.f32.mrb[0].mxu0
    %v5939 = vadd.f32 0.0, %v5938
    %v5940 = vpop.f32.mrb[0].mxu0
    %5941 = vmatprep.mubr.bf16.mxu0 0
    %5942 = vmatmul.mubr.bf16.gmra.mrb[0].mxu0 %v5826
    %v5943 = vpop.f32.mrb[0].mxu0
    %v5944 = vadd.f32 0.0, %v5943
    %v5945 = vpop.f32.mrb[0].mxu0
    %v5946 = vpop.f32.mrb[0].mxu0
    %v5947 = vadd.f32 0.0, %v5946
    %v5948 = vpop.f32.mrb[0].mxu0
    %5949 = vmatprep.mubr.bf16.mxu0 0
    %5950 = vmatmul.mubr.bf16.gmra.mrb[0].mxu0 %v5828
    %v5951 = vpop.f32.mrb[0].mxu0
    %v5952 = vadd.f32 0.0, %v5951
    %v5953 = vpop.f32.mrb[0].mxu0
    %v5954 = vpop.f32.mrb[0].mxu0
    %v5955 = vadd.f32 0.0, %v5954
    %v5956 = vpop.f32.mrb[0].mxu0
    %5957 = vmatprep.mubr.bf16.mxu0 0
    %5958 = vmatmul.mubr.bf16.gmra.mrb[0].mxu0 %v5830
    %v5959 = vpop.f32.mrb[0].mxu0
    %v5960 = vadd.f32 0.0, %v5959
    %v5961 = vpop.f32.mrb[0].mxu0
    %v5962 = vpop.f32.mrb[0].mxu0
    %v5963 = vadd.f32 0.0, %v5962
    %v5964 = vpop.f32.mrb[0].mxu0
    %5965 = vmatprep.mubr.bf16.mxu0 0
    %5966 = vmatmul.mubr.bf16.gmra.mrb[0].mxu0 %v5832
    %v5967 = vpop.f32.mrb[0].mxu0
    %v5968 = vadd.f32 0.0, %v5967
    %v5969 = vpop.f32.mrb[0].mxu0
    %v5970 = vpop.f32.mrb[0].mxu0
    %v5971 = vadd.f32 0.0, %v5970
    %v5972 = vpop.f32.mrb[0].mxu0
    %5973 = vmatprep.mubr.bf16.mxu0 0
    %5974 = vmatmul.mubr.bf16.gmra.mrb[0].mxu0 %v5834
    %v5975 = vpop.f32.mrb[0].mxu0
    %v5976 = vadd.f32 0.0, %v5975
    %v5977 = vpop.f32.mrb[0].mxu0
    %v5978 = vpop.f32.mrb[0].mxu0
    %v5979 = vadd.f32 0.0, %v5978
    %v5980 = vpop.f32.mrb[0].mxu0
    %5981 = vmatprep.mubr.bf16.mxu0 0
    %5982 = vmatmul.mubr.bf16.gmra.mrb[0].mxu0 %v5836
    %v5983 = vpop.f32.mrb[0].mxu0
    %v5984 = vadd.f32 0.0, %v5983
    %v5985 = vpop.f32.mrb[0].mxu0
    %v5986 = vpop.f32.mrb[0].mxu0
    %v5987 = vadd.f32 0.0, %v5986
    %v5988 = vpop.f32.mrb[0].mxu0
    %5989 = vdwg.mxu0
    %v5990 = vadd.f32 %v5778, %v5928
    %v5991 = vadd.f32 %v5779, %v5931
    %v5992 = vadd.f32 %v5780, %v5936
    %v5993 = vadd.f32 %v5781, %v5939
    %v5994 = vadd.f32 %v5782, %v5944
    %v5995 = vadd.f32 %v5783, %v5947
    %v5996 = vadd.f32 %v5784, %v5952
    %v5997 = vadd.f32 %v5785, %v5955
    %v5998 = vadd.f32 %v5786, %v5960
    %v5999 = vadd.f32 %v5787, %v5963
    %v6000 = vadd.f32 %v5788, %v5968
    %v6001 = vadd.f32 %v5789, %v5971
    %v6002 = vadd.f32 %v5790, %v5976
    %v6003 = vadd.f32 %v5791, %v5979
    %v6004 = vadd.f32 %v5792, %v5984
    %v6005 = vadd.f32 %v5793, %v5987
    %v6006 = vld [vmem:[#allocation2 + $0xc8] sm:$0xff]
    %v6007 = vld [vmem:[%s2290] sm:$0xf]
    %v6008 = vld [vmem:[%s2290 + $0x4] sm:$0xf]
    %v6009 = vld [vmem:[%s2290 + $0x8] sm:$0xf]
    %v6010 = vld [vmem:[%s2290 + $0xc] sm:$0xf]
    %v6011 = vld [vmem:[%s2290 + $0x10] sm:$0xf]
    %v6012 = vld [vmem:[%s2290 + $0x14] sm:$0xf]
    %v6013 = vld [vmem:[%s2290 + $0x18] sm:$0xf]
    %v6014 = vld [vmem:[%s2290 + $0x1c] sm:$0xf]
    %v6015 = vld [vmem:[%s2290 + $0x20] sm:$0xf]
    %v6016 = vld [vmem:[%s2290 + $0x24] sm:$0xf]
    %v6017 = vld [vmem:[%s2290 + $0x28] sm:$0xf]
    %v6018 = vld [vmem:[%s2290 + $0x2c] sm:$0xf]
    %v6019 = vld [vmem:[%s2290 + $0x30] sm:$0xf]
    %v6020 = vld [vmem:[%s2290 + $0x34] sm:$0xf]
    %v6021 = vld [vmem:[%s2290 + $0x38] sm:$0xf]
    %v6022 = vld [vmem:[%s2290 + $0x3c] sm:$0xf]
    %v6039 = vunpack.c.l.b16 %v6007
    %v6040 = vunpack.c.l.b16 %v6008
    %v6041 = vunpack.c.l.b16 %v6009
    %v6042 = vunpack.c.l.b16 %v6010
    %v6043 = vunpack.c.l.b16 %v6011
    %v6044 = vunpack.c.l.b16 %v6012
    %v6045 = vunpack.c.l.b16 %v6013
    %v6046 = vunpack.c.l.b16 %v6014
    %v6047 = vunpack.c.l.b16 %v6015
    %v6048 = vunpack.c.l.b16 %v6016
    %v6049 = vunpack.c.l.b16 %v6017
    %v6050 = vunpack.c.l.b16 %v6018
    %v6051 = vunpack.c.l.b16 %v6019
    %v6052 = vunpack.c.l.b16 %v6020
    %v6053 = vunpack.c.l.b16 %v6021
    %v6054 = vunpack.c.l.b16 %v6022
    %v6055 = vpack.c.b16 %v6040, %v6039
    %v6056 = vpack.c.b16 %v6042, %v6041
    %v6057 = vpack.c.b16 %v6044, %v6043
    %v6058 = vpack.c.b16 %v6046, %v6045
    %v6059 = vpack.c.b16 %v6048, %v6047
    %v6060 = vpack.c.b16 %v6050, %v6049
    %v6061 = vpack.c.b16 %v6052, %v6051
    %v6062 = vpack.c.b16 %v6054, %v6053
    %6071 = vmatprep.subr.bf16.mxu0 0
    %6072 = vmatpush1.bf16.msra.mxu0 %v6055
    %6073 = vmatprep.subr.bf16.mxu0 0
    %6074 = vmatpush1.bf16.msra.mxu0 %v6056
    %6075 = vmatprep.subr.bf16.mxu0 0
    %6076 = vmatpush1.bf16.msra.mxu0 %v6057
    %6077 = vmatprep.subr.bf16.mxu0 0
    %6078 = vmatpush1.bf16.msra.mxu0 %v6058
    %6079 = vmatprep.subr.bf16.mxu0 0
    %6080 = vmatpush1.bf16.msra.mxu0 %v6059
    %6081 = vmatprep.subr.bf16.mxu0 0
    %6082 = vmatpush1.bf16.msra.mxu0 %v6060
    %6083 = vmatprep.subr.bf16.mxu0 0
    %6084 = vmatpush1.bf16.msra.mxu0 %v6061
    %6085 = vmatprep.subr.bf16.mxu0 0
    %6086 = vmatpush1.bf16.msra.mxu0 %v6062
    %6087 = vmatprep.subr.bf16.mxu0 0
    %6088 = vmatpush1.bf16.msra.mxu0 0
    %6089 = vmatprep.subr.bf16.mxu0 0
    %6090 = vmatpush1.bf16.msra.mxu0 0
    %6091 = vmatprep.subr.bf16.mxu0 0
    %6092 = vmatpush1.bf16.msra.mxu0 0
    %6093 = vmatprep.subr.bf16.mxu0 0
    %6094 = vmatpush1.bf16.msra.mxu0 0
    %6095 = vmatprep.subr.bf16.mxu0 0
    %6096 = vmatpush1.bf16.msra.mxu0 0
    %6097 = vmatprep.subr.bf16.mxu0 0
    %6098 = vmatpush1.bf16.msra.mxu0 0
    %6099 = vmatprep.subr.bf16.mxu0 0
    %6100 = vmatpush1.bf16.msra.mxu0 0
    %6101 = vmatprep.subr.bf16.mxu0 0
    %6102 = vmatpush1.bf16.msra.mxu0 0
    %6103 = vmatprep.mubr.bf16.mxu0 0
    %6104 = vmatmul.mubr.bf16.gmra.mrb[0].mxu0 %v5533
    %v6105 = vpop.f32.mrb[0].mxu0
    %v6106 = vadd.f32 0.0, %v6105
    %v6107 = vpop.f32.mrb[0].mxu0
    %v6108 = vpop.f32.mrb[0].mxu0
    %v6109 = vadd.f32 0.0, %v6108
    %v6110 = vpop.f32.mrb[0].mxu0
    %6111 = vmatprep.mubr.bf16.mxu0 0
    %6112 = vmatmul.mubr.bf16.gmra.mrb[0].mxu0 %v5534
    %v6113 = vpop.f32.mrb[0].mxu0
    %v6114 = vadd.f32 0.0, %v6113
    %v6115 = vpop.f32.mrb[0].mxu0
    %v6116 = vpop.f32.mrb[0].mxu0
    %v6117 = vadd.f32 0.0, %v6116
    %v6118 = vpop.f32.mrb[0].mxu0
    %6119 = vmatprep.mubr.bf16.mxu0 0
    %6120 = vmatmul.mubr.bf16.gmra.mrb[0].mxu0 %v5535
    %v6121 = vpop.f32.mrb[0].mxu0
    %v6122 = vadd.f32 0.0, %v6121
    %v6123 = vpop.f32.mrb[0].mxu0
    %v6124 = vpop.f32.mrb[0].mxu0
    %v6125 = vadd.f32 0.0, %v6124
    %v6126 = vpop.f32.mrb[0].mxu0
    %6127 = vmatprep.mubr.bf16.mxu0 0
    %6128 = vmatmul.mubr.bf16.gmra.mrb[0].mxu0 %v5536
    %v6129 = vpop.f32.mrb[0].mxu0
    %v6130 = vadd.f32 0.0, %v6129
    %v6131 = vpop.f32.mrb[0].mxu0
    %v6132 = vpop.f32.mrb[0].mxu0
    %v6133 = vadd.f32 0.0, %v6132
    %v6134 = vpop.f32.mrb[0].mxu0
    %6135 = vmatprep.mubr.bf16.mxu0 0
    %6136 = vmatmul.mubr.bf16.gmra.mrb[0].mxu0 %v5537
    %v6137 = vpop.f32.mrb[0].mxu0
    %v6138 = vadd.f32 0.0, %v6137
    %v6139 = vpop.f32.mrb[0].mxu0
    %v6140 = vpop.f32.mrb[0].mxu0
    %v6141 = vadd.f32 0.0, %v6140
    %v6142 = vpop.f32.mrb[0].mxu0
    %6143 = vmatprep.mubr.bf16.mxu0 0
    %6144 = vmatmul.mubr.bf16.gmra.mrb[0].mxu0 %v5538
    %v6145 = vpop.f32.mrb[0].mxu0
    %v6146 = vadd.f32 0.0, %v6145
    %v6147 = vpop.f32.mrb[0].mxu0
    %v6148 = vpop.f32.mrb[0].mxu0
    %v6149 = vadd.f32 0.0, %v6148
    %v6150 = vpop.f32.mrb[0].mxu0
    %6151 = vmatprep.mubr.bf16.mxu0 0
    %6152 = vmatmul.mubr.bf16.gmra.mrb[0].mxu0 %v5539
    %v6153 = vpop.f32.mrb[0].mxu0
    %v6154 = vadd.f32 0.0, %v6153
    %v6155 = vpop.f32.mrb[0].mxu0
    %v6156 = vpop.f32.mrb[0].mxu0
    %v6157 = vadd.f32 0.0, %v6156
    %v6158 = vpop.f32.mrb[0].mxu0
    %6159 = vmatprep.mubr.bf16.mxu0 0
    %6160 = vmatmul.mubr.bf16.gmra.mrb[0].mxu0 %v6006
    %v6161 = vpop.f32.mrb[0].mxu0
    %v6162 = vadd.f32 0.0, %v6161
    %v6163 = vpop.f32.mrb[0].mxu0
    %v6164 = vpop.f32.mrb[0].mxu0
    %v6165 = vadd.f32 0.0, %v6164
    %v6166 = vpop.f32.mrb[0].mxu0
    %6167 = vdwg.mxu0
    %v6168 = vadd.f32 %v5990, %v6106
    %v6169 = vadd.f32 %v5991, %v6109
    %v6170 = vadd.f32 %v5992, %v6114
    %v6171 = vadd.f32 %v5993, %v6117
    %v6172 = vadd.f32 %v5994, %v6122
    %v6173 = vadd.f32 %v5995, %v6125
    %v6174 = vadd.f32 %v5996, %v6130
    %v6175 = vadd.f32 %v5997, %v6133
    %v6176 = vadd.f32 %v5998, %v6138
    %v6177 = vadd.f32 %v5999, %v6141
    %v6178 = vadd.f32 %v6000, %v6146
    %v6179 = vadd.f32 %v6001, %v6149
    %v6180 = vadd.f32 %v6002, %v6154
    %v6181 = vadd.f32 %v6003, %v6157
    %v6182 = vadd.f32 %v6004, %v6162
    %v6183 = vadd.f32 %v6005, %v6165
    %v6184 = vld [vmem:[#allocation2 + $0x90] sm:$0xff]
    %v6185 = vld [vmem:[#allocation2 + $0x98] sm:$0xff]
    %v6186 = vld [vmem:[#allocation2 + $0xa0] sm:$0xff]
    %v6187 = vld [vmem:[#allocation2 + $0xa8] sm:$0xff]
    %v6188 = vld [vmem:[#allocation2 + $0xb0] sm:$0xff]
    %v6189 = vld [vmem:[#allocation2 + $0xb8] sm:$0xff]
    %v6190 = vld [vmem:[#allocation2 + $0xc0] sm:$0xff]
    %v6191 = vld [vmem:[#allocation2 + $0xc8] sm:$0xff]
    %v6192 = vld [vmem:[#allocation2 + $0xd0] sm:$0x1]
    %v6193 = vld [vmem:[%s2477] sm:$0xf]
    %v6194 = vld [vmem:[%s2477 + $0x4] sm:$0xf]
    %v6195 = vld [vmem:[%s2477 + $0x8] sm:$0xf]
    %v6196 = vld [vmem:[%s2477 + $0xc] sm:$0xf]
    %v6197 = vld [vmem:[%s2477 + $0x10] sm:$0xf]
    %v6198 = vld [vmem:[%s2477 + $0x14] sm:$0xf]
    %v6199 = vld [vmem:[%s2477 + $0x18] sm:$0xf]
    %v6200 = vld [vmem:[%s2477 + $0x1c] sm:$0xf]
    %v6201 = vld [vmem:[%s2477 + $0x20] sm:$0xf]
    %v6202 = vld [vmem:[%s2477 + $0x24] sm:$0xf]
    %v6203 = vld [vmem:[%s2477 + $0x28] sm:$0xf]
    %v6204 = vld [vmem:[%s2477 + $0x2c] sm:$0xf]
    %v6205 = vld [vmem:[%s2477 + $0x30] sm:$0xf]
    %v6206 = vld [vmem:[%s2477 + $0x34] sm:$0xf]
    %v6207 = vld [vmem:[%s2477 + $0x38] sm:$0xf]
    %v6208 = vld [vmem:[%s2477 + $0x3c] sm:$0xf]
    %v6210 = vshrl.u32 %v6184, 16
    %v6212 = vshll.u32 %v6184, 16
    %v6214 = vrot.slane %v6212, 1
    %v6215 = vor.u32 %v6210, %v6214
    %v6217 = vshll.u32 %v6185, 16
    %v6219 = vrot.slane %v6217, 1
    %v6220 = vsel %vm1053, %v6215, %v6219
    %v6221 = vshrl.u32 %v6185, 16
    %v6223 = vor.u32 %v6221, %v6219
    %v6225 = vshll.u32 %v6186, 16
    %v6227 = vrot.slane %v6225, 1
    %v6228 = vsel %vm1053, %v6223, %v6227
    %v6229 = vshrl.u32 %v6186, 16
    %v6231 = vor.u32 %v6229, %v6227
    %v6233 = vshll.u32 %v6187, 16
    %v6235 = vrot.slane %v6233, 1
    %v6236 = vsel %vm1053, %v6231, %v6235
    %v6237 = vshrl.u32 %v6187, 16
    %v6239 = vor.u32 %v6237, %v6235
    %v6241 = vshll.u32 %v6188, 16
    %v6243 = vrot.slane %v6241, 1
    %v6244 = vsel %vm1053, %v6239, %v6243
    %v6245 = vshrl.u32 %v6188, 16
    %v6247 = vor.u32 %v6245, %v6243
    %v6249 = vshll.u32 %v6189, 16
    %v6251 = vrot.slane %v6249, 1
    %v6252 = vsel %vm1053, %v6247, %v6251
    %v6253 = vshrl.u32 %v6189, 16
    %v6255 = vor.u32 %v6253, %v6251
    %v6257 = vshll.u32 %v6190, 16
    %v6259 = vrot.slane %v6257, 1
    %v6260 = vsel %vm1053, %v6255, %v6259
    %v6261 = vshrl.u32 %v6190, 16
    %v6263 = vor.u32 %v6261, %v6259
    %v6265 = vshll.u32 %v6191, 16
    %v6267 = vrot.slane %v6265, 1
    %v6268 = vsel %vm1053, %v6263, %v6267
    %v6269 = vshrl.u32 %v6191, 16
    %v6271 = vor.u32 %v6269, %v6267
    %v6273 = vshll.u32 %v6192, 16
    %v6275 = vrot.slane %v6273, 1
    %v6276 = vsel %vm1053, %v6271, %v6275
    %v6301 = vunpack.c.l.b16 %v6193
    %v6302 = vunpack.c.l.b16 %v6194
    %v6303 = vunpack.c.l.b16 %v6195
    %v6304 = vunpack.c.l.b16 %v6196
    %v6305 = vunpack.c.l.b16 %v6197
    %v6306 = vunpack.c.l.b16 %v6198
    %v6307 = vunpack.c.l.b16 %v6199
    %v6308 = vunpack.c.l.b16 %v6200
    %v6309 = vunpack.c.l.b16 %v6201
    %v6310 = vunpack.c.l.b16 %v6202
    %v6311 = vunpack.c.l.b16 %v6203
    %v6312 = vunpack.c.l.b16 %v6204
    %v6313 = vunpack.c.l.b16 %v6205
    %v6314 = vunpack.c.l.b16 %v6206
    %v6315 = vunpack.c.l.b16 %v6207
    %v6316 = vunpack.c.l.b16 %v6208
    %v6317 = vpack.c.b16 %v6302, %v6301
    %v6318 = vpack.c.b16 %v6304, %v6303
    %v6319 = vpack.c.b16 %v6306, %v6305
    %v6320 = vpack.c.b16 %v6308, %v6307
    %v6321 = vpack.c.b16 %v6310, %v6309
    %v6322 = vpack.c.b16 %v6312, %v6311
    %v6323 = vpack.c.b16 %v6314, %v6313
    %v6324 = vpack.c.b16 %v6316, %v6315
    %6333 = vmatprep.subr.bf16.mxu0 0
    %6334 = vmatpush1.bf16.msra.mxu0 %v6317
    %6335 = vmatprep.subr.bf16.mxu0 0
    %6336 = vmatpush1.bf16.msra.mxu0 %v6318
    %6337 = vmatprep.subr.bf16.mxu0 0
    %6338 = vmatpush1.bf16.msra.mxu0 %v6319
    %6339 = vmatprep.subr.bf16.mxu0 0
    %6340 = vmatpush1.bf16.msra.mxu0 %v6320
    %6341 = vmatprep.subr.bf16.mxu0 0
    %6342 = vmatpush1.bf16.msra.mxu0 %v6321
    %6343 = vmatprep.subr.bf16.mxu0 0
    %6344 = vmatpush1.bf16.msra.mxu0 %v6322
    %6345 = vmatprep.subr.bf16.mxu0 0
    %6346 = vmatpush1.bf16.msra.mxu0 %v6323
    %6347 = vmatprep.subr.bf16.mxu0 0
    %6348 = vmatpush1.bf16.msra.mxu0 %v6324
    %6349 = vmatprep.subr.bf16.mxu0 0
    %6350 = vmatpush1.bf16.msra.mxu0 0
    %6351 = vmatprep.subr.bf16.mxu0 0
    %6352 = vmatpush1.bf16.msra.mxu0 0
    %6353 = vmatprep.subr.bf16.mxu0 0
    %6354 = vmatpush1.bf16.msra.mxu0 0
    %6355 = vmatprep.subr.bf16.mxu0 0
    %6356 = vmatpush1.bf16.msra.mxu0 0
    %6357 = vmatprep.subr.bf16.mxu0 0
    %6358 = vmatpush1.bf16.msra.mxu0 0
    %6359 = vmatprep.subr.bf16.mxu0 0
    %6360 = vmatpush1.bf16.msra.mxu0 0
    %6361 = vmatprep.subr.bf16.mxu0 0
    %6362 = vmatpush1.bf16.msra.mxu0 0
    %6363 = vmatprep.subr.bf16.mxu0 0
    %6364 = vmatpush1.bf16.msra.mxu0 0
    %6365 = vmatprep.mubr.bf16.mxu0 0
    %6366 = vmatmul.mubr.bf16.gmra.mrb[0].mxu0 %v6220
    %v6367 = vpop.f32.mrb[0].mxu0
    %v6368 = vadd.f32 0.0, %v6367
    %v6369 = vpop.f32.mrb[0].mxu0
    %v6370 = vpop.f32.mrb[0].mxu0
    %v6371 = vadd.f32 0.0, %v6370
    %v6372 = vpop.f32.mrb[0].mxu0
    %6373 = vmatprep.mubr.bf16.mxu0 0
    %6374 = vmatmul.mubr.bf16.gmra.mrb[0].mxu0 %v6228
    %v6375 = vpop.f32.mrb[0].mxu0
    %v6376 = vadd.f32 0.0, %v6375
    %v6377 = vpop.f32.mrb[0].mxu0
    %v6378 = vpop.f32.mrb[0].mxu0
    %v6379 = vadd.f32 0.0, %v6378
    %v6380 = vpop.f32.mrb[0].mxu0
    %6381 = vmatprep.mubr.bf16.mxu0 0
    %6382 = vmatmul.mubr.bf16.gmra.mrb[0].mxu0 %v6236
    %v6383 = vpop.f32.mrb[0].mxu0
    %v6384 = vadd.f32 0.0, %v6383
    %v6385 = vpop.f32.mrb[0].mxu0
    %v6386 = vpop.f32.mrb[0].mxu0
    %v6387 = vadd.f32 0.0, %v6386
    %v6388 = vpop.f32.mrb[0].mxu0
    %6389 = vmatprep.mubr.bf16.mxu0 0
    %6390 = vmatmul.mubr.bf16.gmra.mrb[0].mxu0 %v6244
    %v6391 = vpop.f32.mrb[0].mxu0
    %v6392 = vadd.f32 0.0, %v6391
    %v6393 = vpop.f32.mrb[0].mxu0
    %v6394 = vpop.f32.mrb[0].mxu0
    %v6395 = vadd.f32 0.0, %v6394
    %v6396 = vpop.f32.mrb[0].mxu0
    %6397 = vmatprep.mubr.bf16.mxu0 0
    %6398 = vmatmul.mubr.bf16.gmra.mrb[0].mxu0 %v6252
    %v6399 = vpop.f32.mrb[0].mxu0
    %v6400 = vadd.f32 0.0, %v6399
    %v6401 = vpop.f32.mrb[0].mxu0
    %v6402 = vpop.f32.mrb[0].mxu0
    %v6403 = vadd.f32 0.0, %v6402
    %v6404 = vpop.f32.mrb[0].mxu0
    %6405 = vmatprep.mubr.bf16.mxu0 0
    %6406 = vmatmul.mubr.bf16.gmra.mrb[0].mxu0 %v6260
    %v6407 = vpop.f32.mrb[0].mxu0
    %v6408 = vadd.f32 0.0, %v6407
    %v6409 = vpop.f32.mrb[0].mxu0
    %v6410 = vpop.f32.mrb[0].mxu0
    %v6411 = vadd.f32 0.0, %v6410
    %v6412 = vpop.f32.mrb[0].mxu0
    %6413 = vmatprep.mubr.bf16.mxu0 0
    %6414 = vmatmul.mubr.bf16.gmra.mrb[0].mxu0 %v6268
    %v6415 = vpop.f32.mrb[0].mxu0
    %v6416 = vadd.f32 0.0, %v6415
    %v6417 = vpop.f32.mrb[0].mxu0
    %v6418 = vpop.f32.mrb[0].mxu0
    %v6419 = vadd.f32 0.0, %v6418
    %v6420 = vpop.f32.mrb[0].mxu0
    %6421 = vmatprep.mubr.bf16.mxu0 0
    %6422 = vmatmul.mubr.bf16.gmra.mrb[0].mxu0 %v6276
    %v6423 = vpop.f32.mrb[0].mxu0
    %v6424 = vadd.f32 0.0, %v6423
    %v6425 = vpop.f32.mrb[0].mxu0
    %v6426 = vpop.f32.mrb[0].mxu0
    %v6427 = vadd.f32 0.0, %v6426
    %v6428 = vpop.f32.mrb[0].mxu0
    %6429 = vdwg.mxu0
    %v6430 = vadd.f32 %v6168, %v6368
    %v6431 = vadd.f32 %v6169, %v6371
    %v6432 = vadd.f32 %v6170, %v6376
    %v6433 = vadd.f32 %v6171, %v6379
    %v6434 = vadd.f32 %v6172, %v6384
    %v6435 = vadd.f32 %v6173, %v6387
    %v6436 = vadd.f32 %v6174, %v6392
    %v6437 = vadd.f32 %v6175, %v6395
    %v6438 = vadd.f32 %v6176, %v6400
    %v6439 = vadd.f32 %v6177, %v6403
    %v6440 = vadd.f32 %v6178, %v6408
    %v6441 = vadd.f32 %v6179, %v6411
    %v6442 = vadd.f32 %v6180, %v6416
    %v6443 = vadd.f32 %v6181, %v6419
    %v6444 = vadd.f32 %v6182, %v6424
    %v6445 = vadd.f32 %v6183, %v6427
    %v6446 = vld [vmem:[#allocation2 + $0x90] sm:$0xfe]
    %v6447 = vld [vmem:[%s2732] sm:$0xf]
    %v6448 = vld [vmem:[%s2732 + $0x4] sm:$0xf]
    %v6449 = vld [vmem:[%s2732 + $0x8] sm:$0xf]
    %v6450 = vld [vmem:[%s2732 + $0xc] sm:$0xf]
    %v6451 = vld [vmem:[%s2732 + $0x10] sm:$0xf]
    %v6452 = vld [vmem:[%s2732 + $0x14] sm:$0xf]
    %v6453 = vld [vmem:[%s2732 + $0x18] sm:$0xf]
    %v6454 = vld [vmem:[%s2732 + $0x1c] sm:$0xf]
    %v6455 = vld [vmem:[%s2732 + $0x20] sm:$0xf]
    %v6456 = vld [vmem:[%s2732 + $0x24] sm:$0xf]
    %v6457 = vld [vmem:[%s2732 + $0x28] sm:$0xf]
    %v6458 = vld [vmem:[%s2732 + $0x2c] sm:$0xf]
    %v6459 = vld [vmem:[%s2732 + $0x30] sm:$0xf]
    %v6460 = vld [vmem:[%s2732 + $0x34] sm:$0xf]
    %v6461 = vld [vmem:[%s2732 + $0x38] sm:$0xf]
    %v6462 = vld [vmem:[%s2732 + $0x3c] sm:$0xf]
    %v6472 = vrot.slane %v6446, 1
    %v6473 = vrot.slane %v6185, 1
    %v6474 = vsel %vm1447, %v6472, %v6473
    %v6475 = vrot.slane %v6186, 1
    %v6476 = vsel %vm1447, %v6473, %v6475
    %v6477 = vrot.slane %v6187, 1
    %v6478 = vsel %vm1447, %v6475, %v6477
    %v6479 = vrot.slane %v6188, 1
    %v6480 = vsel %vm1447, %v6477, %v6479
    %v6481 = vrot.slane %v6189, 1
    %v6482 = vsel %vm1447, %v6479, %v6481
    %v6483 = vrot.slane %v6190, 1
    %v6484 = vsel %vm1447, %v6481, %v6483
    %v6485 = vrot.slane %v6191, 1
    %v6486 = vsel %vm1447, %v6483, %v6485
    %v6487 = vrot.slane %v6192, 1
    %v6488 = vsel %vm1447, %v6485, %v6487
    %v6513 = vunpack.c.l.b16 %v6447
    %v6514 = vunpack.c.l.b16 %v6448
    %v6515 = vunpack.c.l.b16 %v6449
    %v6516 = vunpack.c.l.b16 %v6450
    %v6517 = vunpack.c.l.b16 %v6451
    %v6518 = vunpack.c.l.b16 %v6452
    %v6519 = vunpack.c.l.b16 %v6453
    %v6520 = vunpack.c.l.b16 %v6454
    %v6521 = vunpack.c.l.b16 %v6455
    %v6522 = vunpack.c.l.b16 %v6456
    %v6523 = vunpack.c.l.b16 %v6457
    %v6524 = vunpack.c.l.b16 %v6458
    %v6525 = vunpack.c.l.b16 %v6459
    %v6526 = vunpack.c.l.b16 %v6460
    %v6527 = vunpack.c.l.b16 %v6461
    %v6528 = vunpack.c.l.b16 %v6462
    %v6529 = vpack.c.b16 %v6514, %v6513
    %v6530 = vpack.c.b16 %v6516, %v6515
    %v6531 = vpack.c.b16 %v6518, %v6517
    %v6532 = vpack.c.b16 %v6520, %v6519
    %v6533 = vpack.c.b16 %v6522, %v6521
    %v6534 = vpack.c.b16 %v6524, %v6523
    %v6535 = vpack.c.b16 %v6526, %v6525
    %v6536 = vpack.c.b16 %v6528, %v6527
    %6545 = vmatprep.subr.bf16.mxu0 0
    %6546 = vmatpush1.bf16.msra.mxu0 %v6529
    %6547 = vmatprep.subr.bf16.mxu0 0
    %6548 = vmatpush1.bf16.msra.mxu0 %v6530
    %6549 = vmatprep.subr.bf16.mxu0 0
    %6550 = vmatpush1.bf16.msra.mxu0 %v6531
    %6551 = vmatprep.subr.bf16.mxu0 0
    %6552 = vmatpush1.bf16.msra.mxu0 %v6532
    %6553 = vmatprep.subr.bf16.mxu0 0
    %6554 = vmatpush1.bf16.msra.mxu0 %v6533
    %6555 = vmatprep.subr.bf16.mxu0 0
    %6556 = vmatpush1.bf16.msra.mxu0 %v6534
    %6557 = vmatprep.subr.bf16.mxu0 0
    %6558 = vmatpush1.bf16.msra.mxu0 %v6535
    %6559 = vmatprep.subr.bf16.mxu0 0
    %6560 = vmatpush1.bf16.msra.mxu0 %v6536
    %6561 = vmatprep.subr.bf16.mxu0 0
    %6562 = vmatpush1.bf16.msra.mxu0 0
    %6563 = vmatprep.subr.bf16.mxu0 0
    %6564 = vmatpush1.bf16.msra.mxu0 0
    %6565 = vmatprep.subr.bf16.mxu0 0
    %6566 = vmatpush1.bf16.msra.mxu0 0
    %6567 = vmatprep.subr.bf16.mxu0 0
    %6568 = vmatpush1.bf16.msra.mxu0 0
    %6569 = vmatprep.subr.bf16.mxu0 0
    %6570 = vmatpush1.bf16.msra.mxu0 0
    %6571 = vmatprep.subr.bf16.mxu0 0
    %6572 = vmatpush1.bf16.msra.mxu0 0
    %6573 = vmatprep.subr.bf16.mxu0 0
    %6574 = vmatpush1.bf16.msra.mxu0 0
    %6575 = vmatprep.subr.bf16.mxu0 0
    %6576 = vmatpush1.bf16.msra.mxu0 0
    %6577 = vmatprep.mubr.bf16.mxu0 0
    %6578 = vmatmul.mubr.bf16.gmra.mrb[0].mxu0 %v6474
    %v6579 = vpop.f32.mrb[0].mxu0
    %v6580 = vadd.f32 0.0, %v6579
    %v6581 = vpop.f32.mrb[0].mxu0
    %v6582 = vpop.f32.mrb[0].mxu0
    %v6583 = vadd.f32 0.0, %v6582
    %v6584 = vpop.f32.mrb[0].mxu0
    %6585 = vmatprep.mubr.bf16.mxu0 0
    %6586 = vmatmul.mubr.bf16.gmra.mrb[0].mxu0 %v6476
    %v6587 = vpop.f32.mrb[0].mxu0
    %v6588 = vadd.f32 0.0, %v6587
    %v6589 = vpop.f32.mrb[0].mxu0
    %v6590 = vpop.f32.mrb[0].mxu0
    %v6591 = vadd.f32 0.0, %v6590
    %v6592 = vpop.f32.mrb[0].mxu0
    %6593 = vmatprep.mubr.bf16.mxu0 0
    %6594 = vmatmul.mubr.bf16.gmra.mrb[0].mxu0 %v6478
    %v6595 = vpop.f32.mrb[0].mxu0
    %v6596 = vadd.f32 0.0, %v6595
    %v6597 = vpop.f32.mrb[0].mxu0
    %v6598 = vpop.f32.mrb[0].mxu0
    %v6599 = vadd.f32 0.0, %v6598
    %v6600 = vpop.f32.mrb[0].mxu0
    %6601 = vmatprep.mubr.bf16.mxu0 0
    %6602 = vmatmul.mubr.bf16.gmra.mrb[0].mxu0 %v6480
    %v6603 = vpop.f32.mrb[0].mxu0
    %v6604 = vadd.f32 0.0, %v6603
    %v6605 = vpop.f32.mrb[0].mxu0
    %v6606 = vpop.f32.mrb[0].mxu0
    %v6607 = vadd.f32 0.0, %v6606
    %v6608 = vpop.f32.mrb[0].mxu0
    %6609 = vmatprep.mubr.bf16.mxu0 0
    %6610 = vmatmul.mubr.bf16.gmra.mrb[0].mxu0 %v6482
    %v6611 = vpop.f32.mrb[0].mxu0
    %v6612 = vadd.f32 0.0, %v6611
    %v6613 = vpop.f32.mrb[0].mxu0
    %v6614 = vpop.f32.mrb[0].mxu0
    %v6615 = vadd.f32 0.0, %v6614
    %v6616 = vpop.f32.mrb[0].mxu0
    %6617 = vmatprep.mubr.bf16.mxu0 0
    %6618 = vmatmul.mubr.bf16.gmra.mrb[0].mxu0 %v6484
    %v6619 = vpop.f32.mrb[0].mxu0
    %v6620 = vadd.f32 0.0, %v6619
    %v6621 = vpop.f32.mrb[0].mxu0
    %v6622 = vpop.f32.mrb[0].mxu0
    %v6623 = vadd.f32 0.0, %v6622
    %v6624 = vpop.f32.mrb[0].mxu0
    %6625 = vmatprep.mubr.bf16.mxu0 0
    %6626 = vmatmul.mubr.bf16.gmra.mrb[0].mxu0 %v6486
    %v6627 = vpop.f32.mrb[0].mxu0
    %v6628 = vadd.f32 0.0, %v6627
    %v6629 = vpop.f32.mrb[0].mxu0
    %v6630 = vpop.f32.mrb[0].mxu0
    %v6631 = vadd.f32 0.0, %v6630
    %v6632 = vpop.f32.mrb[0].mxu0
    %6633 = vmatprep.mubr.bf16.mxu0 0
    %6634 = vmatmul.mubr.bf16.gmra.mrb[0].mxu0 %v6488
    %v6635 = vpop.f32.mrb[0].mxu0
    %v6636 = vadd.f32 0.0, %v6635
    %v6637 = vpop.f32.mrb[0].mxu0
    %v6638 = vpop.f32.mrb[0].mxu0
    %v6639 = vadd.f32 0.0, %v6638
    %v6640 = vpop.f32.mrb[0].mxu0
    %6641 = vdwg.mxu0
    %v6642 = vadd.f32 %v6430, %v6580
    %v6643 = vadd.f32 %v6431, %v6583
    %v6644 = vadd.f32 %v6432, %v6588
    %v6645 = vadd.f32 %v6433, %v6591
    %v6646 = vadd.f32 %v6434, %v6596
    %v6647 = vadd.f32 %v6435, %v6599
    %v6648 = vadd.f32 %v6436, %v6604
    %v6649 = vadd.f32 %v6437, %v6607
    %v6650 = vadd.f32 %v6438, %v6612
    %v6651 = vadd.f32 %v6439, %v6615
    %v6652 = vadd.f32 %v6440, %v6620
    %v6653 = vadd.f32 %v6441, %v6623
    %v6654 = vadd.f32 %v6442, %v6628
    %v6655 = vadd.f32 %v6443, %v6631
    %v6656 = vadd.f32 %v6444, %v6636
    %v6657 = vadd.f32 %v6445, %v6639
    %6658 = vst [vmem:[#allocation3] sm:$0xff] %v6642
    %6659 = vst [vmem:[#allocation3 + $0x8] sm:$0xff] %v6643
    %6660 = vst [vmem:[#allocation3 + $0x10] sm:$0xff] %v6644
    %6661 = vst [vmem:[#allocation3 + $0x18] sm:$0xff] %v6645
    %6662 = vst [vmem:[#allocation3 + $0x20] sm:$0xff] %v6646
    %6663 = vst [vmem:[#allocation3 + $0x28] sm:$0xff] %v6647
    %6664 = vst [vmem:[#allocation3 + $0x30] sm:$0xff] %v6648
    %6665 = vst [vmem:[#allocation3 + $0x38] sm:$0xff] %v6649
    %6666 = vst [vmem:[#allocation3 + $0x40] sm:$0xff] %v6650
    %6667 = vst [vmem:[#allocation3 + $0x48] sm:$0xff] %v6651
    %6668 = vst [vmem:[#allocation3 + $0x50] sm:$0xff] %v6652
    %6669 = vst [vmem:[#allocation3 + $0x58] sm:$0xff] %v6653
    %6670 = vst [vmem:[#allocation3 + $0x60] sm:$0xff] %v6654
    %6671 = vst [vmem:[#allocation3 + $0x68] sm:$0xff] %v6655
    %6672 = vst [vmem:[#allocation3 + $0x70] sm:$0xff] %v6656
    %6673 = vst [vmem:[#allocation3 + $0x78] sm:$0xff] %v6657
    %v6674 = vld [vmem:[#allocation3] ss:$2 sm:$0xff]
    %v6675 = vld [vmem:[%s2961] ss:$2 sm:$0xff]
    %v6676 = vld [vmem:[%s2963] ss:$2 sm:$0xff]
    %v6677 = vld [vmem:[%s2965] ss:$2 sm:$0xff]
    %v6678 = vld [vmem:[%s2967] ss:$2 sm:$0xff]
    %v6679 = vld [vmem:[%s2969] ss:$2 sm:$0xff]
    %v6680 = vld [vmem:[%s2971] ss:$2 sm:$0xff]
    %v6681 = vld [vmem:[%s2973] ss:$2 sm:$0xff]
    %v6682 = vld [vmem:[%s2975] ss:$2 sm:$0xff]
    %v6683 = vld [vmem:[%s2977] ss:$2 sm:$0xff]
    %v6684 = vld [vmem:[%s2979] ss:$2 sm:$0xff]
    %v6685 = vld [vmem:[%s2981] ss:$2 sm:$0xff]
    %v6686 = vld [vmem:[%s2983] ss:$2 sm:$0xff]
    %v6687 = vld [vmem:[%s2985] ss:$2 sm:$0xff]
    %v6688 = vld [vmem:[%s2987] ss:$2 sm:$0xff]
    %v6689 = vld [vmem:[%s2989] ss:$2 sm:$0xff]
    %v6690 = vmax.f32 %v6674, %v6682
    %v6691 = vmax.f32 %v6675, %v6683
    %v6692 = vmax.f32 %v6676, %v6684
    %v6693 = vmax.f32 %v6677, %v6685
    %v6694 = vmax.f32 %v6678, %v6686
    %v6695 = vmax.f32 %v6679, %v6687
    %v6696 = vmax.f32 %v6680, %v6688
    %v6697 = vmax.f32 %v6681, %v6689
    %v6698 = vmax.f32 %v6690, %v6691
    %v6699 = vadd.f32 %v6698, %v3004
    %v6700 = vmax.f32 %v6699, 0.0
    %s6701 = scalar_lea.vmem [#allocation7], 56
    %6702 = vst [vmem:[%s6701] sm:$0xff] %v6700
    %v6703 = vmax.f32 %v6692, %v6693
    %v6704 = vadd.f32 %v6703, %v3004
    %v6705 = vmax.f32 %v6704, 0.0
    %6706 = vst [vmem:[%s6701 + $0x8] sm:$0xff] %v6705
    %v6707 = vmax.f32 %v6694, %v6695
    %v6708 = vadd.f32 %v6707, %v3004
    %v6709 = vmax.f32 %v6708, 0.0
    %6710 = vst [vmem:[%s6701 + $0x10] sm:$0xff] %v6709
    %v6711 = vmax.f32 %v6696, %v6697
    %v6712 = vadd.f32 %v6711, %v3004
    %v6713 = vmax.f32 %v6712, 0.0
    %6714 = vst [vmem:[%s6701 + $0x18] sm:$0xff] %v6713
    %v6715 = vld [vmem:[#allocation2 + $0xc0] sm:$0xff]
    %v6716 = vld [vmem:[#allocation2 + $0xc8] sm:$0xff]
    %v6717 = vld [vmem:[#allocation2 + $0xd0] sm:$0xff]
    %v6718 = vld [vmem:[#allocation2 + $0xd8] sm:$0xff]
    %v6719 = vld [vmem:[#allocation2 + $0xe0] sm:$0xff]
    %v6720 = vld [vmem:[#allocation2 + $0xe8] sm:$0xff]
    %v6721 = vld [vmem:[#allocation4] sm:$0xf]
    %v6722 = vld [vmem:[#allocation4 + $0x4] sm:$0xf]
    %v6723 = vld [vmem:[#allocation4 + $0x8] sm:$0xf]
    %v6724 = vld [vmem:[#allocation4 + $0xc] sm:$0xf]
    %v6725 = vld [vmem:[#allocation4 + $0x10] sm:$0xf]
    %v6726 = vld [vmem:[#allocation4 + $0x14] sm:$0xf]
    %v6727 = vld [vmem:[#allocation4 + $0x18] sm:$0xf]
    %v6728 = vld [vmem:[#allocation4 + $0x1c] sm:$0xf]
    %v6729 = vld [vmem:[#allocation4 + $0x20] sm:$0xf]
    %v6730 = vld [vmem:[#allocation4 + $0x24] sm:$0xf]
    %v6731 = vld [vmem:[#allocation4 + $0x28] sm:$0xf]
    %v6732 = vld [vmem:[#allocation4 + $0x2c] sm:$0xf]
    %v6733 = vld [vmem:[#allocation4 + $0x30] sm:$0xf]
    %v6734 = vld [vmem:[#allocation4 + $0x34] sm:$0xf]
    %v6735 = vld [vmem:[#allocation4 + $0x38] sm:$0xf]
    %v6736 = vld [vmem:[#allocation4 + $0x3c] sm:$0xf]
    %v6737 = vld [vmem:[#allocation2 + $0xf0] sm:$0x1]
    %v6738 = vld [vmem:[%s1036] sm:$0xf]
    %v6739 = vld [vmem:[%s1036 + $0x4] sm:$0xf]
    %v6740 = vld [vmem:[%s1036 + $0x8] sm:$0xf]
    %v6741 = vld [vmem:[%s1036 + $0xc] sm:$0xf]
    %v6742 = vld [vmem:[%s1036 + $0x10] sm:$0xf]
    %v6743 = vld [vmem:[%s1036 + $0x14] sm:$0xf]
    %v6744 = vld [vmem:[%s1036 + $0x18] sm:$0xf]
    %v6745 = vld [vmem:[%s1036 + $0x1c] sm:$0xf]
    %v6746 = vld [vmem:[%s1036 + $0x20] sm:$0xf]
    %v6747 = vld [vmem:[%s1036 + $0x24] sm:$0xf]
    %v6748 = vld [vmem:[%s1036 + $0x28] sm:$0xf]
    %v6749 = vld [vmem:[%s1036 + $0x2c] sm:$0xf]
    %v6750 = vld [vmem:[%s1036 + $0x30] sm:$0xf]
    %v6751 = vld [vmem:[%s1036 + $0x34] sm:$0xf]
    %v6752 = vld [vmem:[%s1036 + $0x38] sm:$0xf]
    %v6753 = vld [vmem:[%s1036 + $0x3c] sm:$0xf]
    %v6755 = vshrl.u32 %v6715, 16
    %v6757 = vshll.u32 %v6715, 16
    %v6759 = vrot.slane %v6757, 1
    %v6760 = vor.u32 %v6755, %v6759
    %v6762 = vshll.u32 %v6716, 16
    %v6764 = vrot.slane %v6762, 1
    %v6765 = vsel %vm1053, %v6760, %v6764
    %v6766 = vshrl.u32 %v6716, 16
    %v6768 = vor.u32 %v6766, %v6764
    %v6770 = vshll.u32 %v6717, 16
    %v6772 = vrot.slane %v6770, 1
    %v6773 = vsel %vm1053, %v6768, %v6772
    %v6774 = vshrl.u32 %v6717, 16
    %v6776 = vor.u32 %v6774, %v6772
    %v6778 = vshll.u32 %v6718, 16
    %v6780 = vrot.slane %v6778, 1
    %v6781 = vsel %vm1053, %v6776, %v6780
    %v6782 = vshrl.u32 %v6718, 16
    %v6784 = vor.u32 %v6782, %v6780
    %v6786 = vshll.u32 %v6719, 16
    %v6788 = vrot.slane %v6786, 1
    %v6789 = vsel %vm1053, %v6784, %v6788
    %v6790 = vshrl.u32 %v6719, 16
    %v6792 = vor.u32 %v6790, %v6788
    %v6794 = vshll.u32 %v6720, 16
    %v6796 = vrot.slane %v6794, 1
    %v6797 = vsel %vm1053, %v6792, %v6796
    %v6798 = vshrl.u32 %v6720, 16
    %v6800 = vor.u32 %v6798, %v6796
    %v6802 = vshll.u32 %v6737, 16
    %v6804 = vrot.slane %v6802, 1
    %v6805 = vsel %vm1053, %v6800, %v6804
    %v6828 = vunpack.c.l.b16 %v6738
    %v6829 = vunpack.c.l.b16 %v6739
    %v6830 = vunpack.c.l.b16 %v6740
    %v6831 = vunpack.c.l.b16 %v6741
    %v6832 = vunpack.c.l.b16 %v6742
    %v6833 = vunpack.c.l.b16 %v6743
    %v6834 = vunpack.c.l.b16 %v6744
    %v6835 = vunpack.c.l.b16 %v6745
    %v6836 = vunpack.c.l.b16 %v6746
    %v6837 = vunpack.c.l.b16 %v6747
    %v6838 = vunpack.c.l.b16 %v6748
    %v6839 = vunpack.c.l.b16 %v6749
    %v6840 = vunpack.c.l.b16 %v6750
    %v6841 = vunpack.c.l.b16 %v6751
    %v6842 = vunpack.c.l.b16 %v6752
    %v6843 = vunpack.c.l.b16 %v6753
    %v6844 = vpack.c.b16 %v6829, %v6828
    %v6845 = vpack.c.b16 %v6831, %v6830
    %v6846 = vpack.c.b16 %v6833, %v6832
    %v6847 = vpack.c.b16 %v6835, %v6834
    %v6848 = vpack.c.b16 %v6837, %v6836
    %v6849 = vpack.c.b16 %v6839, %v6838
    %v6850 = vpack.c.b16 %v6841, %v6840
    %v6851 = vpack.c.b16 %v6843, %v6842
    %6860 = vmatprep.subr.bf16.mxu0 0
    %6861 = vmatpush1.bf16.msra.mxu0 %v6844
    %6862 = vmatprep.subr.bf16.mxu0 0
    %6863 = vmatpush1.bf16.msra.mxu0 %v6845
    %6864 = vmatprep.subr.bf16.mxu0 0
    %6865 = vmatpush1.bf16.msra.mxu0 %v6846
    %6866 = vmatprep.subr.bf16.mxu0 0
    %6867 = vmatpush1.bf16.msra.mxu0 %v6847
    %6868 = vmatprep.subr.bf16.mxu0 0
    %6869 = vmatpush1.bf16.msra.mxu0 %v6848
    %6870 = vmatprep.subr.bf16.mxu0 0
    %6871 = vmatpush1.bf16.msra.mxu0 %v6849
    %6872 = vmatprep.subr.bf16.mxu0 0
    %6873 = vmatpush1.bf16.msra.mxu0 %v6850
    %6874 = vmatprep.subr.bf16.mxu0 0
    %6875 = vmatpush1.bf16.msra.mxu0 %v6851
    %6876 = vmatprep.subr.bf16.mxu0 0
    %6877 = vmatpush1.bf16.msra.mxu0 0
    %6878 = vmatprep.subr.bf16.mxu0 0
    %6879 = vmatpush1.bf16.msra.mxu0 0
    %6880 = vmatprep.subr.bf16.mxu0 0
    %6881 = vmatpush1.bf16.msra.mxu0 0
    %6882 = vmatprep.subr.bf16.mxu0 0
    %6883 = vmatpush1.bf16.msra.mxu0 0
    %6884 = vmatprep.subr.bf16.mxu0 0
    %6885 = vmatpush1.bf16.msra.mxu0 0
    %6886 = vmatprep.subr.bf16.mxu0 0
    %6887 = vmatpush1.bf16.msra.mxu0 0
    %6888 = vmatprep.subr.bf16.mxu0 0
    %6889 = vmatpush1.bf16.msra.mxu0 0
    %6890 = vmatprep.subr.bf16.mxu0 0
    %6891 = vmatpush1.bf16.msra.mxu0 0
    %6892 = vmatprep.mubr.bf16.mxu0 0
    %6893 = vmatmul.mubr.bf16.gmra.mrb[0].mxu0 %v6765
    %v6894 = vpop.f32.mrb[0].mxu0
    %v6895 = vadd.f32 0.0, %v6894
    %v6896 = vpop.f32.mrb[0].mxu0
    %v6897 = vpop.f32.mrb[0].mxu0
    %v6898 = vadd.f32 0.0, %v6897
    %v6899 = vpop.f32.mrb[0].mxu0
    %6900 = vmatprep.mubr.bf16.mxu0 0
    %6901 = vmatmul.mubr.bf16.gmra.mrb[0].mxu0 %v6773
    %v6902 = vpop.f32.mrb[0].mxu0
    %v6903 = vadd.f32 0.0, %v6902
    %v6904 = vpop.f32.mrb[0].mxu0
    %v6905 = vpop.f32.mrb[0].mxu0
    %v6906 = vadd.f32 0.0, %v6905
    %v6907 = vpop.f32.mrb[0].mxu0
    %6908 = vmatprep.mubr.bf16.mxu0 0
    %6909 = vmatmul.mubr.bf16.gmra.mrb[0].mxu0 %v6781
    %v6910 = vpop.f32.mrb[0].mxu0
    %v6911 = vadd.f32 0.0, %v6910
    %v6912 = vpop.f32.mrb[0].mxu0
    %v6913 = vpop.f32.mrb[0].mxu0
    %v6914 = vadd.f32 0.0, %v6913
    %v6915 = vpop.f32.mrb[0].mxu0
    %6916 = vmatprep.mubr.bf16.mxu0 0
    %6917 = vmatmul.mubr.bf16.gmra.mrb[0].mxu0 %v6789
    %v6918 = vpop.f32.mrb[0].mxu0
    %v6919 = vadd.f32 0.0, %v6918
    %v6920 = vpop.f32.mrb[0].mxu0
    %v6921 = vpop.f32.mrb[0].mxu0
    %v6922 = vadd.f32 0.0, %v6921
    %v6923 = vpop.f32.mrb[0].mxu0
    %6924 = vmatprep.mubr.bf16.mxu0 0
    %6925 = vmatmul.mubr.bf16.gmra.mrb[0].mxu0 %v6797
    %v6926 = vpop.f32.mrb[0].mxu0
    %v6927 = vadd.f32 0.0, %v6926
    %v6928 = vpop.f32.mrb[0].mxu0
    %v6929 = vpop.f32.mrb[0].mxu0
    %v6930 = vadd.f32 0.0, %v6929
    %v6931 = vpop.f32.mrb[0].mxu0
    %6932 = vmatprep.mubr.bf16.mxu0 0
    %6933 = vmatmul.mubr.bf16.gmra.mrb[0].mxu0 %v6805
    %v6934 = vpop.f32.mrb[0].mxu0
    %v6935 = vadd.f32 0.0, %v6934
    %v6936 = vpop.f32.mrb[0].mxu0
    %v6937 = vpop.f32.mrb[0].mxu0
    %v6938 = vadd.f32 0.0, %v6937
    %v6939 = vpop.f32.mrb[0].mxu0
    %6940 = vdwg.mxu0
    %v6957 = vunpack.c.l.b16 %v6721
    %v6958 = vunpack.c.l.b16 %v6722
    %v6959 = vunpack.c.l.b16 %v6723
    %v6960 = vunpack.c.l.b16 %v6724
    %v6961 = vunpack.c.l.b16 %v6725
    %v6962 = vunpack.c.l.b16 %v6726
    %v6963 = vunpack.c.l.b16 %v6727
    %v6964 = vunpack.c.l.b16 %v6728
    %v6965 = vunpack.c.l.b16 %v6729
    %v6966 = vunpack.c.l.b16 %v6730
    %v6967 = vunpack.c.l.b16 %v6731
    %v6968 = vunpack.c.l.b16 %v6732
    %v6969 = vunpack.c.l.b16 %v6733
    %v6970 = vunpack.c.l.b16 %v6734
    %v6971 = vunpack.c.l.b16 %v6735
    %v6972 = vunpack.c.l.b16 %v6736
    %v6973 = vpack.c.b16 %v6958, %v6957
    %v6974 = vpack.c.b16 %v6960, %v6959
    %v6975 = vpack.c.b16 %v6962, %v6961
    %v6976 = vpack.c.b16 %v6964, %v6963
    %v6977 = vpack.c.b16 %v6966, %v6965
    %v6978 = vpack.c.b16 %v6968, %v6967
    %v6979 = vpack.c.b16 %v6970, %v6969
    %v6980 = vpack.c.b16 %v6972, %v6971
    %6989 = vmatprep.subr.bf16.mxu0 0
    %6990 = vmatpush1.bf16.msra.mxu0 %v6973
    %6991 = vmatprep.subr.bf16.mxu0 0
    %6992 = vmatpush1.bf16.msra.mxu0 %v6974
    %6993 = vmatprep.subr.bf16.mxu0 0
    %6994 = vmatpush1.bf16.msra.mxu0 %v6975
    %6995 = vmatprep.subr.bf16.mxu0 0
    %6996 = vmatpush1.bf16.msra.mxu0 %v6976
    %6997 = vmatprep.subr.bf16.mxu0 0
    %6998 = vmatpush1.bf16.msra.mxu0 %v6977
    %6999 = vmatprep.subr.bf16.mxu0 0
    %7000 = vmatpush1.bf16.msra.mxu0 %v6978
    %7001 = vmatprep.subr.bf16.mxu0 0
    %7002 = vmatpush1.bf16.msra.mxu0 %v6979
    %7003 = vmatprep.subr.bf16.mxu0 0
    %7004 = vmatpush1.bf16.msra.mxu0 %v6980
    %7005 = vmatprep.subr.bf16.mxu0 0
    %7006 = vmatpush1.bf16.msra.mxu0 0
    %7007 = vmatprep.subr.bf16.mxu0 0
    %7008 = vmatpush1.bf16.msra.mxu0 0
    %7009 = vmatprep.subr.bf16.mxu0 0
    %7010 = vmatpush1.bf16.msra.mxu0 0
    %7011 = vmatprep.subr.bf16.mxu0 0
    %7012 = vmatpush1.bf16.msra.mxu0 0
    %7013 = vmatprep.subr.bf16.mxu0 0
    %7014 = vmatpush1.bf16.msra.mxu0 0
    %7015 = vmatprep.subr.bf16.mxu0 0
    %7016 = vmatpush1.bf16.msra.mxu0 0
    %7017 = vmatprep.subr.bf16.mxu0 0
    %7018 = vmatpush1.bf16.msra.mxu0 0
    %7019 = vmatprep.subr.bf16.mxu0 0
    %7020 = vmatpush1.bf16.msra.mxu0 0
    %7021 = vmatprep.mubr.bf16.mxu0 0
    %7022 = vmatmul.mubr.bf16.gmra.mrb[0].mxu0 %v6715
    %v7023 = vpop.f32.mrb[0].mxu0
    %v7024 = vadd.f32 %v6895, %v7023
    %v7025 = vpop.f32.mrb[0].mxu0
    %v7026 = vpop.f32.mrb[0].mxu0
    %v7027 = vadd.f32 %v6898, %v7026
    %v7028 = vpop.f32.mrb[0].mxu0
    %7029 = vmatprep.mubr.bf16.mxu0 0
    %7030 = vmatmul.mubr.bf16.gmra.mrb[0].mxu0 %v6716
    %v7031 = vpop.f32.mrb[0].mxu0
    %v7032 = vadd.f32 %v6903, %v7031
    %v7033 = vpop.f32.mrb[0].mxu0
    %v7034 = vpop.f32.mrb[0].mxu0
    %v7035 = vadd.f32 %v6906, %v7034
    %v7036 = vpop.f32.mrb[0].mxu0
    %7037 = vmatprep.mubr.bf16.mxu0 0
    %7038 = vmatmul.mubr.bf16.gmra.mrb[0].mxu0 %v6717
    %v7039 = vpop.f32.mrb[0].mxu0
    %v7040 = vadd.f32 %v6911, %v7039
    %v7041 = vpop.f32.mrb[0].mxu0
    %v7042 = vpop.f32.mrb[0].mxu0
    %v7043 = vadd.f32 %v6914, %v7042
    %v7044 = vpop.f32.mrb[0].mxu0
    %7045 = vmatprep.mubr.bf16.mxu0 0
    %7046 = vmatmul.mubr.bf16.gmra.mrb[0].mxu0 %v6718
    %v7047 = vpop.f32.mrb[0].mxu0
    %v7048 = vadd.f32 %v6919, %v7047
    %v7049 = vpop.f32.mrb[0].mxu0
    %v7050 = vpop.f32.mrb[0].mxu0
    %v7051 = vadd.f32 %v6922, %v7050
    %v7052 = vpop.f32.mrb[0].mxu0
    %7053 = vmatprep.mubr.bf16.mxu0 0
    %7054 = vmatmul.mubr.bf16.gmra.mrb[0].mxu0 %v6719
    %v7055 = vpop.f32.mrb[0].mxu0
    %v7056 = vadd.f32 %v6927, %v7055
    %v7057 = vpop.f32.mrb[0].mxu0
    %v7058 = vpop.f32.mrb[0].mxu0
    %v7059 = vadd.f32 %v6930, %v7058
    %v7060 = vpop.f32.mrb[0].mxu0
    %7061 = vmatprep.mubr.bf16.mxu0 0
    %7062 = vmatmul.mubr.bf16.gmra.mrb[0].mxu0 %v6720
    %v7063 = vpop.f32.mrb[0].mxu0
    %v7064 = vadd.f32 %v6935, %v7063
    %v7065 = vpop.f32.mrb[0].mxu0
    %v7066 = vpop.f32.mrb[0].mxu0
    %v7067 = vadd.f32 %v6938, %v7066
    %v7068 = vpop.f32.mrb[0].mxu0
    %7069 = vdwg.mxu0
    %v7070 = vld [vmem:[#allocation2 + $0xc0] sm:$0xfe]
    %v7071 = vld [vmem:[%s1421] sm:$0xf]
    %v7072 = vld [vmem:[%s1421 + $0x4] sm:$0xf]
    %v7073 = vld [vmem:[%s1421 + $0x8] sm:$0xf]
    %v7074 = vld [vmem:[%s1421 + $0xc] sm:$0xf]
    %v7075 = vld [vmem:[%s1421 + $0x10] sm:$0xf]
    %v7076 = vld [vmem:[%s1421 + $0x14] sm:$0xf]
    %v7077 = vld [vmem:[%s1421 + $0x18] sm:$0xf]
    %v7078 = vld [vmem:[%s1421 + $0x1c] sm:$0xf]
    %v7079 = vld [vmem:[%s1421 + $0x20] sm:$0xf]
    %v7080 = vld [vmem:[%s1421 + $0x24] sm:$0xf]
    %v7081 = vld [vmem:[%s1421 + $0x28] sm:$0xf]
    %v7082 = vld [vmem:[%s1421 + $0x2c] sm:$0xf]
    %v7083 = vld [vmem:[%s1421 + $0x30] sm:$0xf]
    %v7084 = vld [vmem:[%s1421 + $0x34] sm:$0xf]
    %v7085 = vld [vmem:[%s1421 + $0x38] sm:$0xf]
    %v7086 = vld [vmem:[%s1421 + $0x3c] sm:$0xf]
    %v7094 = vrot.slane %v7070, 1
    %v7095 = vrot.slane %v6716, 1
    %v7096 = vsel %vm1447, %v7094, %v7095
    %v7097 = vrot.slane %v6717, 1
    %v7098 = vsel %vm1447, %v7095, %v7097
    %v7099 = vrot.slane %v6718, 1
    %v7100 = vsel %vm1447, %v7097, %v7099
    %v7101 = vrot.slane %v6719, 1
    %v7102 = vsel %vm1447, %v7099, %v7101
    %v7103 = vrot.slane %v6720, 1
    %v7104 = vsel %vm1447, %v7101, %v7103
    %v7105 = vrot.slane %v6737, 1
    %v7106 = vsel %vm1447, %v7103, %v7105
    %v7129 = vunpack.c.l.b16 %v7071
    %v7130 = vunpack.c.l.b16 %v7072
    %v7131 = vunpack.c.l.b16 %v7073
    %v7132 = vunpack.c.l.b16 %v7074
    %v7133 = vunpack.c.l.b16 %v7075
    %v7134 = vunpack.c.l.b16 %v7076
    %v7135 = vunpack.c.l.b16 %v7077
    %v7136 = vunpack.c.l.b16 %v7078
    %v7137 = vunpack.c.l.b16 %v7079
    %v7138 = vunpack.c.l.b16 %v7080
    %v7139 = vunpack.c.l.b16 %v7081
    %v7140 = vunpack.c.l.b16 %v7082
    %v7141 = vunpack.c.l.b16 %v7083
    %v7142 = vunpack.c.l.b16 %v7084
    %v7143 = vunpack.c.l.b16 %v7085
    %v7144 = vunpack.c.l.b16 %v7086
    %v7145 = vpack.c.b16 %v7130, %v7129
    %v7146 = vpack.c.b16 %v7132, %v7131
    %v7147 = vpack.c.b16 %v7134, %v7133
    %v7148 = vpack.c.b16 %v7136, %v7135
    %v7149 = vpack.c.b16 %v7138, %v7137
    %v7150 = vpack.c.b16 %v7140, %v7139
    %v7151 = vpack.c.b16 %v7142, %v7141
    %v7152 = vpack.c.b16 %v7144, %v7143
    %7161 = vmatprep.subr.bf16.mxu0 0
    %7162 = vmatpush1.bf16.msra.mxu0 %v7145
    %7163 = vmatprep.subr.bf16.mxu0 0
    %7164 = vmatpush1.bf16.msra.mxu0 %v7146
    %7165 = vmatprep.subr.bf16.mxu0 0
    %7166 = vmatpush1.bf16.msra.mxu0 %v7147
    %7167 = vmatprep.subr.bf16.mxu0 0
    %7168 = vmatpush1.bf16.msra.mxu0 %v7148
    %7169 = vmatprep.subr.bf16.mxu0 0
    %7170 = vmatpush1.bf16.msra.mxu0 %v7149
    %7171 = vmatprep.subr.bf16.mxu0 0
    %7172 = vmatpush1.bf16.msra.mxu0 %v7150
    %7173 = vmatprep.subr.bf16.mxu0 0
    %7174 = vmatpush1.bf16.msra.mxu0 %v7151
    %7175 = vmatprep.subr.bf16.mxu0 0
    %7176 = vmatpush1.bf16.msra.mxu0 %v7152
    %7177 = vmatprep.subr.bf16.mxu0 0
    %7178 = vmatpush1.bf16.msra.mxu0 0
    %7179 = vmatprep.subr.bf16.mxu0 0
    %7180 = vmatpush1.bf16.msra.mxu0 0
    %7181 = vmatprep.subr.bf16.mxu0 0
    %7182 = vmatpush1.bf16.msra.mxu0 0
    %7183 = vmatprep.subr.bf16.mxu0 0
    %7184 = vmatpush1.bf16.msra.mxu0 0
    %7185 = vmatprep.subr.bf16.mxu0 0
    %7186 = vmatpush1.bf16.msra.mxu0 0
    %7187 = vmatprep.subr.bf16.mxu0 0
    %7188 = vmatpush1.bf16.msra.mxu0 0
    %7189 = vmatprep.subr.bf16.mxu0 0
    %7190 = vmatpush1.bf16.msra.mxu0 0
    %7191 = vmatprep.subr.bf16.mxu0 0
    %7192 = vmatpush1.bf16.msra.mxu0 0
    %7193 = vmatprep.mubr.bf16.mxu0 0
    %7194 = vmatmul.mubr.bf16.gmra.mrb[0].mxu0 %v7096
    %v7195 = vpop.f32.mrb[0].mxu0
    %v7196 = vadd.f32 0.0, %v7195
    %v7197 = vpop.f32.mrb[0].mxu0
    %v7198 = vpop.f32.mrb[0].mxu0
    %v7199 = vadd.f32 0.0, %v7198
    %v7200 = vpop.f32.mrb[0].mxu0
    %7201 = vmatprep.mubr.bf16.mxu0 0
    %7202 = vmatmul.mubr.bf16.gmra.mrb[0].mxu0 %v7098
    %v7203 = vpop.f32.mrb[0].mxu0
    %v7204 = vadd.f32 0.0, %v7203
    %v7205 = vpop.f32.mrb[0].mxu0
    %v7206 = vpop.f32.mrb[0].mxu0
    %v7207 = vadd.f32 0.0, %v7206
    %v7208 = vpop.f32.mrb[0].mxu0
    %7209 = vmatprep.mubr.bf16.mxu0 0
    %7210 = vmatmul.mubr.bf16.gmra.mrb[0].mxu0 %v7100
    %v7211 = vpop.f32.mrb[0].mxu0
    %v7212 = vadd.f32 0.0, %v7211
    %v7213 = vpop.f32.mrb[0].mxu0
    %v7214 = vpop.f32.mrb[0].mxu0
    %v7215 = vadd.f32 0.0, %v7214
    %v7216 = vpop.f32.mrb[0].mxu0
    %7217 = vmatprep.mubr.bf16.mxu0 0
    %7218 = vmatmul.mubr.bf16.gmra.mrb[0].mxu0 %v7102
    %v7219 = vpop.f32.mrb[0].mxu0
    %v7220 = vadd.f32 0.0, %v7219
    %v7221 = vpop.f32.mrb[0].mxu0
    %v7222 = vpop.f32.mrb[0].mxu0
    %v7223 = vadd.f32 0.0, %v7222
    %v7224 = vpop.f32.mrb[0].mxu0
    %7225 = vmatprep.mubr.bf16.mxu0 0
    %7226 = vmatmul.mubr.bf16.gmra.mrb[0].mxu0 %v7104
    %v7227 = vpop.f32.mrb[0].mxu0
    %v7228 = vadd.f32 0.0, %v7227
    %v7229 = vpop.f32.mrb[0].mxu0
    %v7230 = vpop.f32.mrb[0].mxu0
    %v7231 = vadd.f32 0.0, %v7230
    %v7232 = vpop.f32.mrb[0].mxu0
    %7233 = vmatprep.mubr.bf16.mxu0 0
    %7234 = vmatmul.mubr.bf16.gmra.mrb[0].mxu0 %v7106
    %v7235 = vpop.f32.mrb[0].mxu0
    %v7236 = vadd.f32 0.0, %v7235
    %v7237 = vpop.f32.mrb[0].mxu0
    %v7238 = vpop.f32.mrb[0].mxu0
    %v7239 = vadd.f32 0.0, %v7238
    %v7240 = vpop.f32.mrb[0].mxu0
    %7241 = vdwg.mxu0
    %v7242 = vadd.f32 %v7024, %v7196
    %v7243 = vadd.f32 %v7027, %v7199
    %v7244 = vadd.f32 %v7032, %v7204
    %v7245 = vadd.f32 %v7035, %v7207
    %v7246 = vadd.f32 %v7040, %v7212
    %v7247 = vadd.f32 %v7043, %v7215
    %v7248 = vadd.f32 %v7048, %v7220
    %v7249 = vadd.f32 %v7051, %v7223
    %v7250 = vadd.f32 %v7056, %v7228
    %v7251 = vadd.f32 %v7059, %v7231
    %v7252 = vadd.f32 %v7064, %v7236
    %v7253 = vadd.f32 %v7067, %v7239
    %v7254 = vld [vmem:[#allocation2 + $0xf0] sm:$0xff]
    %v7255 = vld [vmem:[%s1635] sm:$0xf]
    %v7256 = vld [vmem:[%s1635 + $0x4] sm:$0xf]
    %v7257 = vld [vmem:[%s1635 + $0x8] sm:$0xf]
    %v7258 = vld [vmem:[%s1635 + $0xc] sm:$0xf]
    %v7259 = vld [vmem:[%s1635 + $0x10] sm:$0xf]
    %v7260 = vld [vmem:[%s1635 + $0x14] sm:$0xf]
    %v7261 = vld [vmem:[%s1635 + $0x18] sm:$0xf]
    %v7262 = vld [vmem:[%s1635 + $0x1c] sm:$0xf]
    %v7263 = vld [vmem:[%s1635 + $0x20] sm:$0xf]
    %v7264 = vld [vmem:[%s1635 + $0x24] sm:$0xf]
    %v7265 = vld [vmem:[%s1635 + $0x28] sm:$0xf]
    %v7266 = vld [vmem:[%s1635 + $0x2c] sm:$0xf]
    %v7267 = vld [vmem:[%s1635 + $0x30] sm:$0xf]
    %v7268 = vld [vmem:[%s1635 + $0x34] sm:$0xf]
    %v7269 = vld [vmem:[%s1635 + $0x38] sm:$0xf]
    %v7270 = vld [vmem:[%s1635 + $0x3c] sm:$0xf]
    %v7287 = vunpack.c.l.b16 %v7255
    %v7288 = vunpack.c.l.b16 %v7256
    %v7289 = vunpack.c.l.b16 %v7257
    %v7290 = vunpack.c.l.b16 %v7258
    %v7291 = vunpack.c.l.b16 %v7259
    %v7292 = vunpack.c.l.b16 %v7260
    %v7293 = vunpack.c.l.b16 %v7261
    %v7294 = vunpack.c.l.b16 %v7262
    %v7295 = vunpack.c.l.b16 %v7263
    %v7296 = vunpack.c.l.b16 %v7264
    %v7297 = vunpack.c.l.b16 %v7265
    %v7298 = vunpack.c.l.b16 %v7266
    %v7299 = vunpack.c.l.b16 %v7267
    %v7300 = vunpack.c.l.b16 %v7268
    %v7301 = vunpack.c.l.b16 %v7269
    %v7302 = vunpack.c.l.b16 %v7270
    %v7303 = vpack.c.b16 %v7288, %v7287
    %v7304 = vpack.c.b16 %v7290, %v7289
    %v7305 = vpack.c.b16 %v7292, %v7291
    %v7306 = vpack.c.b16 %v7294, %v7293
    %v7307 = vpack.c.b16 %v7296, %v7295
    %v7308 = vpack.c.b16 %v7298, %v7297
    %v7309 = vpack.c.b16 %v7300, %v7299
    %v7310 = vpack.c.b16 %v7302, %v7301
    %7319 = vmatprep.subr.bf16.mxu0 0
    %7320 = vmatpush1.bf16.msra.mxu0 %v7303
    %7321 = vmatprep.subr.bf16.mxu0 0
    %7322 = vmatpush1.bf16.msra.mxu0 %v7304
    %7323 = vmatprep.subr.bf16.mxu0 0
    %7324 = vmatpush1.bf16.msra.mxu0 %v7305
    %7325 = vmatprep.subr.bf16.mxu0 0
    %7326 = vmatpush1.bf16.msra.mxu0 %v7306
    %7327 = vmatprep.subr.bf16.mxu0 0
    %7328 = vmatpush1.bf16.msra.mxu0 %v7307
    %7329 = vmatprep.subr.bf16.mxu0 0
    %7330 = vmatpush1.bf16.msra.mxu0 %v7308
    %7331 = vmatprep.subr.bf16.mxu0 0
    %7332 = vmatpush1.bf16.msra.mxu0 %v7309
    %7333 = vmatprep.subr.bf16.mxu0 0
    %7334 = vmatpush1.bf16.msra.mxu0 %v7310
    %7335 = vmatprep.subr.bf16.mxu0 0
    %7336 = vmatpush1.bf16.msra.mxu0 0
    %7337 = vmatprep.subr.bf16.mxu0 0
    %7338 = vmatpush1.bf16.msra.mxu0 0
    %7339 = vmatprep.subr.bf16.mxu0 0
    %7340 = vmatpush1.bf16.msra.mxu0 0
    %7341 = vmatprep.subr.bf16.mxu0 0
    %7342 = vmatpush1.bf16.msra.mxu0 0
    %7343 = vmatprep.subr.bf16.mxu0 0
    %7344 = vmatpush1.bf16.msra.mxu0 0
    %7345 = vmatprep.subr.bf16.mxu0 0
    %7346 = vmatpush1.bf16.msra.mxu0 0
    %7347 = vmatprep.subr.bf16.mxu0 0
    %7348 = vmatpush1.bf16.msra.mxu0 0
    %7349 = vmatprep.subr.bf16.mxu0 0
    %7350 = vmatpush1.bf16.msra.mxu0 0
    %7351 = vmatprep.mubr.bf16.mxu0 0
    %7352 = vmatmul.mubr.bf16.gmra.mrb[0].mxu0 %v6716
    %v7353 = vpop.f32.mrb[0].mxu0
    %v7354 = vadd.f32 0.0, %v7353
    %v7355 = vpop.f32.mrb[0].mxu0
    %v7356 = vpop.f32.mrb[0].mxu0
    %v7357 = vadd.f32 0.0, %v7356
    %v7358 = vpop.f32.mrb[0].mxu0
    %7359 = vmatprep.mubr.bf16.mxu0 0
    %7360 = vmatmul.mubr.bf16.gmra.mrb[0].mxu0 %v6717
    %v7361 = vpop.f32.mrb[0].mxu0
    %v7362 = vadd.f32 0.0, %v7361
    %v7363 = vpop.f32.mrb[0].mxu0
    %v7364 = vpop.f32.mrb[0].mxu0
    %v7365 = vadd.f32 0.0, %v7364
    %v7366 = vpop.f32.mrb[0].mxu0
    %7367 = vmatprep.mubr.bf16.mxu0 0
    %7368 = vmatmul.mubr.bf16.gmra.mrb[0].mxu0 %v6718
    %v7369 = vpop.f32.mrb[0].mxu0
    %v7370 = vadd.f32 0.0, %v7369
    %v7371 = vpop.f32.mrb[0].mxu0
    %v7372 = vpop.f32.mrb[0].mxu0
    %v7373 = vadd.f32 0.0, %v7372
    %v7374 = vpop.f32.mrb[0].mxu0
    %7375 = vmatprep.mubr.bf16.mxu0 0
    %7376 = vmatmul.mubr.bf16.gmra.mrb[0].mxu0 %v6719
    %v7377 = vpop.f32.mrb[0].mxu0
    %v7378 = vadd.f32 0.0, %v7377
    %v7379 = vpop.f32.mrb[0].mxu0
    %v7380 = vpop.f32.mrb[0].mxu0
    %v7381 = vadd.f32 0.0, %v7380
    %v7382 = vpop.f32.mrb[0].mxu0
    %7383 = vmatprep.mubr.bf16.mxu0 0
    %7384 = vmatmul.mubr.bf16.gmra.mrb[0].mxu0 %v6720
    %v7385 = vpop.f32.mrb[0].mxu0
    %v7386 = vadd.f32 0.0, %v7385
    %v7387 = vpop.f32.mrb[0].mxu0
    %v7388 = vpop.f32.mrb[0].mxu0
    %v7389 = vadd.f32 0.0, %v7388
    %v7390 = vpop.f32.mrb[0].mxu0
    %7391 = vmatprep.mubr.bf16.mxu0 0
    %7392 = vmatmul.mubr.bf16.gmra.mrb[0].mxu0 %v7254
    %v7393 = vpop.f32.mrb[0].mxu0
    %v7394 = vadd.f32 0.0, %v7393
    %v7395 = vpop.f32.mrb[0].mxu0
    %v7396 = vpop.f32.mrb[0].mxu0
    %v7397 = vadd.f32 0.0, %v7396
    %v7398 = vpop.f32.mrb[0].mxu0
    %7399 = vdwg.mxu0
    %v7400 = vadd.f32 %v7242, %v7354
    %v7401 = vadd.f32 %v7243, %v7357
    %v7402 = vadd.f32 %v7244, %v7362
    %v7403 = vadd.f32 %v7245, %v7365
    %v7404 = vadd.f32 %v7246, %v7370
    %v7405 = vadd.f32 %v7247, %v7373
    %v7406 = vadd.f32 %v7248, %v7378
    %v7407 = vadd.f32 %v7249, %v7381
    %v7408 = vadd.f32 %v7250, %v7386
    %v7409 = vadd.f32 %v7251, %v7389
    %v7410 = vadd.f32 %v7252, %v7394
    %v7411 = vadd.f32 %v7253, %v7397
    %v7412 = vld [vmem:[#allocation2 + $0xc8] sm:$0xff]
    %v7413 = vld [vmem:[#allocation2 + $0xd0] sm:$0xff]
    %v7414 = vld [vmem:[#allocation2 + $0xd8] sm:$0xff]
    %v7415 = vld [vmem:[#allocation2 + $0xe0] sm:$0xff]
    %v7416 = vld [vmem:[#allocation2 + $0xe8] sm:$0xff]
    %v7417 = vld [vmem:[#allocation2 + $0xf0] sm:$0xff]
    %v7418 = vld [vmem:[#allocation2 + $0xf8] sm:$0x1]
    %v7419 = vld [vmem:[%s1822] sm:$0xf]
    %v7420 = vld [vmem:[%s1822 + $0x4] sm:$0xf]
    %v7421 = vld [vmem:[%s1822 + $0x8] sm:$0xf]
    %v7422 = vld [vmem:[%s1822 + $0xc] sm:$0xf]
    %v7423 = vld [vmem:[%s1822 + $0x10] sm:$0xf]
    %v7424 = vld [vmem:[%s1822 + $0x14] sm:$0xf]
    %v7425 = vld [vmem:[%s1822 + $0x18] sm:$0xf]
    %v7426 = vld [vmem:[%s1822 + $0x1c] sm:$0xf]
    %v7427 = vld [vmem:[%s1822 + $0x20] sm:$0xf]
    %v7428 = vld [vmem:[%s1822 + $0x24] sm:$0xf]
    %v7429 = vld [vmem:[%s1822 + $0x28] sm:$0xf]
    %v7430 = vld [vmem:[%s1822 + $0x2c] sm:$0xf]
    %v7431 = vld [vmem:[%s1822 + $0x30] sm:$0xf]
    %v7432 = vld [vmem:[%s1822 + $0x34] sm:$0xf]
    %v7433 = vld [vmem:[%s1822 + $0x38] sm:$0xf]
    %v7434 = vld [vmem:[%s1822 + $0x3c] sm:$0xf]
    %v7436 = vshrl.u32 %v7412, 16
    %v7438 = vshll.u32 %v7412, 16
    %v7440 = vrot.slane %v7438, 1
    %v7441 = vor.u32 %v7436, %v7440
    %v7443 = vshll.u32 %v7413, 16
    %v7445 = vrot.slane %v7443, 1
    %v7446 = vsel %vm1053, %v7441, %v7445
    %v7447 = vshrl.u32 %v7413, 16
    %v7449 = vor.u32 %v7447, %v7445
    %v7451 = vshll.u32 %v7414, 16
    %v7453 = vrot.slane %v7451, 1
    %v7454 = vsel %vm1053, %v7449, %v7453
    %v7455 = vshrl.u32 %v7414, 16
    %v7457 = vor.u32 %v7455, %v7453
    %v7459 = vshll.u32 %v7415, 16
    %v7461 = vrot.slane %v7459, 1
    %v7462 = vsel %vm1053, %v7457, %v7461
    %v7463 = vshrl.u32 %v7415, 16
    %v7465 = vor.u32 %v7463, %v7461
    %v7467 = vshll.u32 %v7416, 16
    %v7469 = vrot.slane %v7467, 1
    %v7470 = vsel %vm1053, %v7465, %v7469
    %v7471 = vshrl.u32 %v7416, 16
    %v7473 = vor.u32 %v7471, %v7469
    %v7475 = vshll.u32 %v7417, 16
    %v7477 = vrot.slane %v7475, 1
    %v7478 = vsel %vm1053, %v7473, %v7477
    %v7479 = vshrl.u32 %v7417, 16
    %v7481 = vor.u32 %v7479, %v7477
    %v7483 = vshll.u32 %v7418, 16
    %v7485 = vrot.slane %v7483, 1
    %v7486 = vsel %vm1053, %v7481, %v7485
    %v7509 = vunpack.c.l.b16 %v7419
    %v7510 = vunpack.c.l.b16 %v7420
    %v7511 = vunpack.c.l.b16 %v7421
    %v7512 = vunpack.c.l.b16 %v7422
    %v7513 = vunpack.c.l.b16 %v7423
    %v7514 = vunpack.c.l.b16 %v7424
    %v7515 = vunpack.c.l.b16 %v7425
    %v7516 = vunpack.c.l.b16 %v7426
    %v7517 = vunpack.c.l.b16 %v7427
    %v7518 = vunpack.c.l.b16 %v7428
    %v7519 = vunpack.c.l.b16 %v7429
    %v7520 = vunpack.c.l.b16 %v7430
    %v7521 = vunpack.c.l.b16 %v7431
    %v7522 = vunpack.c.l.b16 %v7432
    %v7523 = vunpack.c.l.b16 %v7433
    %v7524 = vunpack.c.l.b16 %v7434
    %v7525 = vpack.c.b16 %v7510, %v7509
    %v7526 = vpack.c.b16 %v7512, %v7511
    %v7527 = vpack.c.b16 %v7514, %v7513
    %v7528 = vpack.c.b16 %v7516, %v7515
    %v7529 = vpack.c.b16 %v7518, %v7517
    %v7530 = vpack.c.b16 %v7520, %v7519
    %v7531 = vpack.c.b16 %v7522, %v7521
    %v7532 = vpack.c.b16 %v7524, %v7523
    %7541 = vmatprep.subr.bf16.mxu0 0
    %7542 = vmatpush1.bf16.msra.mxu0 %v7525
    %7543 = vmatprep.subr.bf16.mxu0 0
    %7544 = vmatpush1.bf16.msra.mxu0 %v7526
    %7545 = vmatprep.subr.bf16.mxu0 0
    %7546 = vmatpush1.bf16.msra.mxu0 %v7527
    %7547 = vmatprep.subr.bf16.mxu0 0
    %7548 = vmatpush1.bf16.msra.mxu0 %v7528
    %7549 = vmatprep.subr.bf16.mxu0 0
    %7550 = vmatpush1.bf16.msra.mxu0 %v7529
    %7551 = vmatprep.subr.bf16.mxu0 0
    %7552 = vmatpush1.bf16.msra.mxu0 %v7530
    %7553 = vmatprep.subr.bf16.mxu0 0
    %7554 = vmatpush1.bf16.msra.mxu0 %v7531
    %7555 = vmatprep.subr.bf16.mxu0 0
    %7556 = vmatpush1.bf16.msra.mxu0 %v7532
    %7557 = vmatprep.subr.bf16.mxu0 0
    %7558 = vmatpush1.bf16.msra.mxu0 0
    %7559 = vmatprep.subr.bf16.mxu0 0
    %7560 = vmatpush1.bf16.msra.mxu0 0
    %7561 = vmatprep.subr.bf16.mxu0 0
    %7562 = vmatpush1.bf16.msra.mxu0 0
    %7563 = vmatprep.subr.bf16.mxu0 0
    %7564 = vmatpush1.bf16.msra.mxu0 0
    %7565 = vmatprep.subr.bf16.mxu0 0
    %7566 = vmatpush1.bf16.msra.mxu0 0
    %7567 = vmatprep.subr.bf16.mxu0 0
    %7568 = vmatpush1.bf16.msra.mxu0 0
    %7569 = vmatprep.subr.bf16.mxu0 0
    %7570 = vmatpush1.bf16.msra.mxu0 0
    %7571 = vmatprep.subr.bf16.mxu0 0
    %7572 = vmatpush1.bf16.msra.mxu0 0
    %7573 = vmatprep.mubr.bf16.mxu0 0
    %7574 = vmatmul.mubr.bf16.gmra.mrb[0].mxu0 %v7446
    %v7575 = vpop.f32.mrb[0].mxu0
    %v7576 = vadd.f32 0.0, %v7575
    %v7577 = vpop.f32.mrb[0].mxu0
    %v7578 = vpop.f32.mrb[0].mxu0
    %v7579 = vadd.f32 0.0, %v7578
    %v7580 = vpop.f32.mrb[0].mxu0
    %7581 = vmatprep.mubr.bf16.mxu0 0
    %7582 = vmatmul.mubr.bf16.gmra.mrb[0].mxu0 %v7454
    %v7583 = vpop.f32.mrb[0].mxu0
    %v7584 = vadd.f32 0.0, %v7583
    %v7585 = vpop.f32.mrb[0].mxu0
    %v7586 = vpop.f32.mrb[0].mxu0
    %v7587 = vadd.f32 0.0, %v7586
    %v7588 = vpop.f32.mrb[0].mxu0
    %7589 = vmatprep.mubr.bf16.mxu0 0
    %7590 = vmatmul.mubr.bf16.gmra.mrb[0].mxu0 %v7462
    %v7591 = vpop.f32.mrb[0].mxu0
    %v7592 = vadd.f32 0.0, %v7591
    %v7593 = vpop.f32.mrb[0].mxu0
    %v7594 = vpop.f32.mrb[0].mxu0
    %v7595 = vadd.f32 0.0, %v7594
    %v7596 = vpop.f32.mrb[0].mxu0
    %7597 = vmatprep.mubr.bf16.mxu0 0
    %7598 = vmatmul.mubr.bf16.gmra.mrb[0].mxu0 %v7470
    %v7599 = vpop.f32.mrb[0].mxu0
    %v7600 = vadd.f32 0.0, %v7599
    %v7601 = vpop.f32.mrb[0].mxu0
    %v7602 = vpop.f32.mrb[0].mxu0
    %v7603 = vadd.f32 0.0, %v7602
    %v7604 = vpop.f32.mrb[0].mxu0
    %7605 = vmatprep.mubr.bf16.mxu0 0
    %7606 = vmatmul.mubr.bf16.gmra.mrb[0].mxu0 %v7478
    %v7607 = vpop.f32.mrb[0].mxu0
    %v7608 = vadd.f32 0.0, %v7607
    %v7609 = vpop.f32.mrb[0].mxu0
    %v7610 = vpop.f32.mrb[0].mxu0
    %v7611 = vadd.f32 0.0, %v7610
    %v7612 = vpop.f32.mrb[0].mxu0
    %7613 = vmatprep.mubr.bf16.mxu0 0
    %7614 = vmatmul.mubr.bf16.gmra.mrb[0].mxu0 %v7486
    %v7615 = vpop.f32.mrb[0].mxu0
    %v7616 = vadd.f32 0.0, %v7615
    %v7617 = vpop.f32.mrb[0].mxu0
    %v7618 = vpop.f32.mrb[0].mxu0
    %v7619 = vadd.f32 0.0, %v7618
    %v7620 = vpop.f32.mrb[0].mxu0
    %7621 = vdwg.mxu0
    %v7622 = vadd.f32 %v7400, %v7576
    %v7623 = vadd.f32 %v7401, %v7579
    %v7624 = vadd.f32 %v7402, %v7584
    %v7625 = vadd.f32 %v7403, %v7587
    %v7626 = vadd.f32 %v7404, %v7592
    %v7627 = vadd.f32 %v7405, %v7595
    %v7628 = vadd.f32 %v7406, %v7600
    %v7629 = vadd.f32 %v7407, %v7603
    %v7630 = vadd.f32 %v7408, %v7608
    %v7631 = vadd.f32 %v7409, %v7611
    %v7632 = vadd.f32 %v7410, %v7616
    %v7633 = vadd.f32 %v7411, %v7619
    %v7634 = vld [vmem:[#allocation2 + $0xc8] sm:$0xfe]
    %v7635 = vld [vmem:[%s2077] sm:$0xf]
    %v7636 = vld [vmem:[%s2077 + $0x4] sm:$0xf]
    %v7637 = vld [vmem:[%s2077 + $0x8] sm:$0xf]
    %v7638 = vld [vmem:[%s2077 + $0xc] sm:$0xf]
    %v7639 = vld [vmem:[%s2077 + $0x10] sm:$0xf]
    %v7640 = vld [vmem:[%s2077 + $0x14] sm:$0xf]
    %v7641 = vld [vmem:[%s2077 + $0x18] sm:$0xf]
    %v7642 = vld [vmem:[%s2077 + $0x1c] sm:$0xf]
    %v7643 = vld [vmem:[%s2077 + $0x20] sm:$0xf]
    %v7644 = vld [vmem:[%s2077 + $0x24] sm:$0xf]
    %v7645 = vld [vmem:[%s2077 + $0x28] sm:$0xf]
    %v7646 = vld [vmem:[%s2077 + $0x2c] sm:$0xf]
    %v7647 = vld [vmem:[%s2077 + $0x30] sm:$0xf]
    %v7648 = vld [vmem:[%s2077 + $0x34] sm:$0xf]
    %v7649 = vld [vmem:[%s2077 + $0x38] sm:$0xf]
    %v7650 = vld [vmem:[%s2077 + $0x3c] sm:$0xf]
    %v7658 = vrot.slane %v7634, 1
    %v7659 = vrot.slane %v7413, 1
    %v7660 = vsel %vm1447, %v7658, %v7659
    %v7661 = vrot.slane %v7414, 1
    %v7662 = vsel %vm1447, %v7659, %v7661
    %v7663 = vrot.slane %v7415, 1
    %v7664 = vsel %vm1447, %v7661, %v7663
    %v7665 = vrot.slane %v7416, 1
    %v7666 = vsel %vm1447, %v7663, %v7665
    %v7667 = vrot.slane %v7417, 1
    %v7668 = vsel %vm1447, %v7665, %v7667
    %v7669 = vrot.slane %v7418, 1
    %v7670 = vsel %vm1447, %v7667, %v7669
    %v7693 = vunpack.c.l.b16 %v7635
    %v7694 = vunpack.c.l.b16 %v7636
    %v7695 = vunpack.c.l.b16 %v7637
    %v7696 = vunpack.c.l.b16 %v7638
    %v7697 = vunpack.c.l.b16 %v7639
    %v7698 = vunpack.c.l.b16 %v7640
    %v7699 = vunpack.c.l.b16 %v7641
    %v7700 = vunpack.c.l.b16 %v7642
    %v7701 = vunpack.c.l.b16 %v7643
    %v7702 = vunpack.c.l.b16 %v7644
    %v7703 = vunpack.c.l.b16 %v7645
    %v7704 = vunpack.c.l.b16 %v7646
    %v7705 = vunpack.c.l.b16 %v7647
    %v7706 = vunpack.c.l.b16 %v7648
    %v7707 = vunpack.c.l.b16 %v7649
    %v7708 = vunpack.c.l.b16 %v7650
    %v7709 = vpack.c.b16 %v7694, %v7693
    %v7710 = vpack.c.b16 %v7696, %v7695
    %v7711 = vpack.c.b16 %v7698, %v7697
    %v7712 = vpack.c.b16 %v7700, %v7699
    %v7713 = vpack.c.b16 %v7702, %v7701
    %v7714 = vpack.c.b16 %v7704, %v7703
    %v7715 = vpack.c.b16 %v7706, %v7705
    %v7716 = vpack.c.b16 %v7708, %v7707
    %7725 = vmatprep.subr.bf16.mxu0 0
    %7726 = vmatpush1.bf16.msra.mxu0 %v7709
    %7727 = vmatprep.subr.bf16.mxu0 0
    %7728 = vmatpush1.bf16.msra.mxu0 %v7710
    %7729 = vmatprep.subr.bf16.mxu0 0
    %7730 = vmatpush1.bf16.msra.mxu0 %v7711
    %7731 = vmatprep.subr.bf16.mxu0 0
    %7732 = vmatpush1.bf16.msra.mxu0 %v7712
    %7733 = vmatprep.subr.bf16.mxu0 0
    %7734 = vmatpush1.bf16.msra.mxu0 %v7713
    %7735 = vmatprep.subr.bf16.mxu0 0
    %7736 = vmatpush1.bf16.msra.mxu0 %v7714
    %7737 = vmatprep.subr.bf16.mxu0 0
    %7738 = vmatpush1.bf16.msra.mxu0 %v7715
    %7739 = vmatprep.subr.bf16.mxu0 0
    %7740 = vmatpush1.bf16.msra.mxu0 %v7716
    %7741 = vmatprep.subr.bf16.mxu0 0
    %7742 = vmatpush1.bf16.msra.mxu0 0
    %7743 = vmatprep.subr.bf16.mxu0 0
    %7744 = vmatpush1.bf16.msra.mxu0 0
    %7745 = vmatprep.subr.bf16.mxu0 0
    %7746 = vmatpush1.bf16.msra.mxu0 0
    %7747 = vmatprep.subr.bf16.mxu0 0
    %7748 = vmatpush1.bf16.msra.mxu0 0
    %7749 = vmatprep.subr.bf16.mxu0 0
    %7750 = vmatpush1.bf16.msra.mxu0 0
    %7751 = vmatprep.subr.bf16.mxu0 0
    %7752 = vmatpush1.bf16.msra.mxu0 0
    %7753 = vmatprep.subr.bf16.mxu0 0
    %7754 = vmatpush1.bf16.msra.mxu0 0
    %7755 = vmatprep.subr.bf16.mxu0 0
    %7756 = vmatpush1.bf16.msra.mxu0 0
    %7757 = vmatprep.mubr.bf16.mxu0 0
    %7758 = vmatmul.mubr.bf16.gmra.mrb[0].mxu0 %v7660
    %v7759 = vpop.f32.mrb[0].mxu0
    %v7760 = vadd.f32 0.0, %v7759
    %v7761 = vpop.f32.mrb[0].mxu0
    %v7762 = vpop.f32.mrb[0].mxu0
    %v7763 = vadd.f32 0.0, %v7762
    %v7764 = vpop.f32.mrb[0].mxu0
    %7765 = vmatprep.mubr.bf16.mxu0 0
    %7766 = vmatmul.mubr.bf16.gmra.mrb[0].mxu0 %v7662
    %v7767 = vpop.f32.mrb[0].mxu0
    %v7768 = vadd.f32 0.0, %v7767
    %v7769 = vpop.f32.mrb[0].mxu0
    %v7770 = vpop.f32.mrb[0].mxu0
    %v7771 = vadd.f32 0.0, %v7770
    %v7772 = vpop.f32.mrb[0].mxu0
    %7773 = vmatprep.mubr.bf16.mxu0 0
    %7774 = vmatmul.mubr.bf16.gmra.mrb[0].mxu0 %v7664
    %v7775 = vpop.f32.mrb[0].mxu0
    %v7776 = vadd.f32 0.0, %v7775
    %v7777 = vpop.f32.mrb[0].mxu0
    %v7778 = vpop.f32.mrb[0].mxu0
    %v7779 = vadd.f32 0.0, %v7778
    %v7780 = vpop.f32.mrb[0].mxu0
    %7781 = vmatprep.mubr.bf16.mxu0 0
    %7782 = vmatmul.mubr.bf16.gmra.mrb[0].mxu0 %v7666
    %v7783 = vpop.f32.mrb[0].mxu0
    %v7784 = vadd.f32 0.0, %v7783
    %v7785 = vpop.f32.mrb[0].mxu0
    %v7786 = vpop.f32.mrb[0].mxu0
    %v7787 = vadd.f32 0.0, %v7786
    %v7788 = vpop.f32.mrb[0].mxu0
    %7789 = vmatprep.mubr.bf16.mxu0 0
    %7790 = vmatmul.mubr.bf16.gmra.mrb[0].mxu0 %v7668
    %v7791 = vpop.f32.mrb[0].mxu0
    %v7792 = vadd.f32 0.0, %v7791
    %v7793 = vpop.f32.mrb[0].mxu0
    %v7794 = vpop.f32.mrb[0].mxu0
    %v7795 = vadd.f32 0.0, %v7794
    %v7796 = vpop.f32.mrb[0].mxu0
    %7797 = vmatprep.mubr.bf16.mxu0 0
    %7798 = vmatmul.mubr.bf16.gmra.mrb[0].mxu0 %v7670
    %v7799 = vpop.f32.mrb[0].mxu0
    %v7800 = vadd.f32 0.0, %v7799
    %v7801 = vpop.f32.mrb[0].mxu0
    %v7802 = vpop.f32.mrb[0].mxu0
    %v7803 = vadd.f32 0.0, %v7802
    %v7804 = vpop.f32.mrb[0].mxu0
    %7805 = vdwg.mxu0
    %v7806 = vadd.f32 %v7622, %v7760
    %v7807 = vadd.f32 %v7623, %v7763
    %v7808 = vadd.f32 %v7624, %v7768
    %v7809 = vadd.f32 %v7625, %v7771
    %v7810 = vadd.f32 %v7626, %v7776
    %v7811 = vadd.f32 %v7627, %v7779
    %v7812 = vadd.f32 %v7628, %v7784
    %v7813 = vadd.f32 %v7629, %v7787
    %v7814 = vadd.f32 %v7630, %v7792
    %v7815 = vadd.f32 %v7631, %v7795
    %v7816 = vadd.f32 %v7632, %v7800
    %v7817 = vadd.f32 %v7633, %v7803
    %v7818 = vld [vmem:[#allocation2 + $0xf8] sm:$0xff]
    %v7819 = vld [vmem:[%s2290] sm:$0xf]
    %v7820 = vld [vmem:[%s2290 + $0x4] sm:$0xf]
    %v7821 = vld [vmem:[%s2290 + $0x8] sm:$0xf]
    %v7822 = vld [vmem:[%s2290 + $0xc] sm:$0xf]
    %v7823 = vld [vmem:[%s2290 + $0x10] sm:$0xf]
    %v7824 = vld [vmem:[%s2290 + $0x14] sm:$0xf]
    %v7825 = vld [vmem:[%s2290 + $0x18] sm:$0xf]
    %v7826 = vld [vmem:[%s2290 + $0x1c] sm:$0xf]
    %v7827 = vld [vmem:[%s2290 + $0x20] sm:$0xf]
    %v7828 = vld [vmem:[%s2290 + $0x24] sm:$0xf]
    %v7829 = vld [vmem:[%s2290 + $0x28] sm:$0xf]
    %v7830 = vld [vmem:[%s2290 + $0x2c] sm:$0xf]
    %v7831 = vld [vmem:[%s2290 + $0x30] sm:$0xf]
    %v7832 = vld [vmem:[%s2290 + $0x34] sm:$0xf]
    %v7833 = vld [vmem:[%s2290 + $0x38] sm:$0xf]
    %v7834 = vld [vmem:[%s2290 + $0x3c] sm:$0xf]
    %v7851 = vunpack.c.l.b16 %v7819
    %v7852 = vunpack.c.l.b16 %v7820
    %v7853 = vunpack.c.l.b16 %v7821
    %v7854 = vunpack.c.l.b16 %v7822
    %v7855 = vunpack.c.l.b16 %v7823
    %v7856 = vunpack.c.l.b16 %v7824
    %v7857 = vunpack.c.l.b16 %v7825
    %v7858 = vunpack.c.l.b16 %v7826
    %v7859 = vunpack.c.l.b16 %v7827
    %v7860 = vunpack.c.l.b16 %v7828
    %v7861 = vunpack.c.l.b16 %v7829
    %v7862 = vunpack.c.l.b16 %v7830
    %v7863 = vunpack.c.l.b16 %v7831
    %v7864 = vunpack.c.l.b16 %v7832
    %v7865 = vunpack.c.l.b16 %v7833
    %v7866 = vunpack.c.l.b16 %v7834
    %v7867 = vpack.c.b16 %v7852, %v7851
    %v7868 = vpack.c.b16 %v7854, %v7853
    %v7869 = vpack.c.b16 %v7856, %v7855
    %v7870 = vpack.c.b16 %v7858, %v7857
    %v7871 = vpack.c.b16 %v7860, %v7859
    %v7872 = vpack.c.b16 %v7862, %v7861
    %v7873 = vpack.c.b16 %v7864, %v7863
    %v7874 = vpack.c.b16 %v7866, %v7865
    %7883 = vmatprep.subr.bf16.mxu0 0
    %7884 = vmatpush1.bf16.msra.mxu0 %v7867
    %7885 = vmatprep.subr.bf16.mxu0 0
    %7886 = vmatpush1.bf16.msra.mxu0 %v7868
    %7887 = vmatprep.subr.bf16.mxu0 0
    %7888 = vmatpush1.bf16.msra.mxu0 %v7869
    %7889 = vmatprep.subr.bf16.mxu0 0
    %7890 = vmatpush1.bf16.msra.mxu0 %v7870
    %7891 = vmatprep.subr.bf16.mxu0 0
    %7892 = vmatpush1.bf16.msra.mxu0 %v7871
    %7893 = vmatprep.subr.bf16.mxu0 0
    %7894 = vmatpush1.bf16.msra.mxu0 %v7872
    %7895 = vmatprep.subr.bf16.mxu0 0
    %7896 = vmatpush1.bf16.msra.mxu0 %v7873
    %7897 = vmatprep.subr.bf16.mxu0 0
    %7898 = vmatpush1.bf16.msra.mxu0 %v7874
    %7899 = vmatprep.subr.bf16.mxu0 0
    %7900 = vmatpush1.bf16.msra.mxu0 0
    %7901 = vmatprep.subr.bf16.mxu0 0
    %7902 = vmatpush1.bf16.msra.mxu0 0
    %7903 = vmatprep.subr.bf16.mxu0 0
    %7904 = vmatpush1.bf16.msra.mxu0 0
    %7905 = vmatprep.subr.bf16.mxu0 0
    %7906 = vmatpush1.bf16.msra.mxu0 0
    %7907 = vmatprep.subr.bf16.mxu0 0
    %7908 = vmatpush1.bf16.msra.mxu0 0
    %7909 = vmatprep.subr.bf16.mxu0 0
    %7910 = vmatpush1.bf16.msra.mxu0 0
    %7911 = vmatprep.subr.bf16.mxu0 0
    %7912 = vmatpush1.bf16.msra.mxu0 0
    %7913 = vmatprep.subr.bf16.mxu0 0
    %7914 = vmatpush1.bf16.msra.mxu0 0
    %7915 = vmatprep.mubr.bf16.mxu0 0
    %7916 = vmatmul.mubr.bf16.gmra.mrb[0].mxu0 %v7413
    %v7917 = vpop.f32.mrb[0].mxu0
    %v7918 = vadd.f32 0.0, %v7917
    %v7919 = vpop.f32.mrb[0].mxu0
    %v7920 = vpop.f32.mrb[0].mxu0
    %v7921 = vadd.f32 0.0, %v7920
    %v7922 = vpop.f32.mrb[0].mxu0
    %7923 = vmatprep.mubr.bf16.mxu0 0
    %7924 = vmatmul.mubr.bf16.gmra.mrb[0].mxu0 %v7414
    %v7925 = vpop.f32.mrb[0].mxu0
    %v7926 = vadd.f32 0.0, %v7925
    %v7927 = vpop.f32.mrb[0].mxu0
    %v7928 = vpop.f32.mrb[0].mxu0
    %v7929 = vadd.f32 0.0, %v7928
    %v7930 = vpop.f32.mrb[0].mxu0
    %7931 = vmatprep.mubr.bf16.mxu0 0
    %7932 = vmatmul.mubr.bf16.gmra.mrb[0].mxu0 %v7415
    %v7933 = vpop.f32.mrb[0].mxu0
    %v7934 = vadd.f32 0.0, %v7933
    %v7935 = vpop.f32.mrb[0].mxu0
    %v7936 = vpop.f32.mrb[0].mxu0
    %v7937 = vadd.f32 0.0, %v7936
    %v7938 = vpop.f32.mrb[0].mxu0
    %7939 = vmatprep.mubr.bf16.mxu0 0
    %7940 = vmatmul.mubr.bf16.gmra.mrb[0].mxu0 %v7416
    %v7941 = vpop.f32.mrb[0].mxu0
    %v7942 = vadd.f32 0.0, %v7941
    %v7943 = vpop.f32.mrb[0].mxu0
    %v7944 = vpop.f32.mrb[0].mxu0
    %v7945 = vadd.f32 0.0, %v7944
    %v7946 = vpop.f32.mrb[0].mxu0
    %7947 = vmatprep.mubr.bf16.mxu0 0
    %7948 = vmatmul.mubr.bf16.gmra.mrb[0].mxu0 %v7417
    %v7949 = vpop.f32.mrb[0].mxu0
    %v7950 = vadd.f32 0.0, %v7949
    %v7951 = vpop.f32.mrb[0].mxu0
    %v7952 = vpop.f32.mrb[0].mxu0
    %v7953 = vadd.f32 0.0, %v7952
    %v7954 = vpop.f32.mrb[0].mxu0
    %7955 = vmatprep.mubr.bf16.mxu0 0
    %7956 = vmatmul.mubr.bf16.gmra.mrb[0].mxu0 %v7818
    %v7957 = vpop.f32.mrb[0].mxu0
    %v7958 = vadd.f32 0.0, %v7957
    %v7959 = vpop.f32.mrb[0].mxu0
    %v7960 = vpop.f32.mrb[0].mxu0
    %v7961 = vadd.f32 0.0, %v7960
    %v7962 = vpop.f32.mrb[0].mxu0
    %7963 = vdwg.mxu0
    %v7964 = vadd.f32 %v7806, %v7918
    %v7965 = vadd.f32 %v7807, %v7921
    %v7966 = vadd.f32 %v7808, %v7926
    %v7967 = vadd.f32 %v7809, %v7929
    %v7968 = vadd.f32 %v7810, %v7934
    %v7969 = vadd.f32 %v7811, %v7937
    %v7970 = vadd.f32 %v7812, %v7942
    %v7971 = vadd.f32 %v7813, %v7945
    %v7972 = vadd.f32 %v7814, %v7950
    %v7973 = vadd.f32 %v7815, %v7953
    %v7974 = vadd.f32 %v7816, %v7958
    %v7975 = vadd.f32 %v7817, %v7961
    %v7976 = vld [vmem:[#allocation2 + $0xd0] sm:$0xff]
    %v7977 = vld [vmem:[#allocation2 + $0xd8] sm:$0xff]
    %v7978 = vld [vmem:[#allocation2 + $0xe0] sm:$0xff]
    %v7979 = vld [vmem:[#allocation2 + $0xe8] sm:$0xff]
    %v7980 = vld [vmem:[#allocation2 + $0xf0] sm:$0xff]
    %v7981 = vld [vmem:[#allocation2 + $0xf8] sm:$0xff]
    %v7982 = vld [vmem:[#allocation2 + $0x100] sm:$0x1]
    %v7983 = vld [vmem:[%s2477] sm:$0xf]
    %v7984 = vld [vmem:[%s2477 + $0x4] sm:$0xf]
    %v7985 = vld [vmem:[%s2477 + $0x8] sm:$0xf]
    %v7986 = vld [vmem:[%s2477 + $0xc] sm:$0xf]
    %v7987 = vld [vmem:[%s2477 + $0x10] sm:$0xf]
    %v7988 = vld [vmem:[%s2477 + $0x14] sm:$0xf]
    %v7989 = vld [vmem:[%s2477 + $0x18] sm:$0xf]
    %v7990 = vld [vmem:[%s2477 + $0x1c] sm:$0xf]
    %v7991 = vld [vmem:[%s2477 + $0x20] sm:$0xf]
    %v7992 = vld [vmem:[%s2477 + $0x24] sm:$0xf]
    %v7993 = vld [vmem:[%s2477 + $0x28] sm:$0xf]
    %v7994 = vld [vmem:[%s2477 + $0x2c] sm:$0xf]
    %v7995 = vld [vmem:[%s2477 + $0x30] sm:$0xf]
    %v7996 = vld [vmem:[%s2477 + $0x34] sm:$0xf]
    %v7997 = vld [vmem:[%s2477 + $0x38] sm:$0xf]
    %v7998 = vld [vmem:[%s2477 + $0x3c] sm:$0xf]
    %v8000 = vshrl.u32 %v7976, 16
    %v8002 = vshll.u32 %v7976, 16
    %v8004 = vrot.slane %v8002, 1
    %v8005 = vor.u32 %v8000, %v8004
    %v8007 = vshll.u32 %v7977, 16
    %v8009 = vrot.slane %v8007, 1
    %v8010 = vsel %vm1053, %v8005, %v8009
    %v8011 = vshrl.u32 %v7977, 16
    %v8013 = vor.u32 %v8011, %v8009
    %v8015 = vshll.u32 %v7978, 16
    %v8017 = vrot.slane %v8015, 1
    %v8018 = vsel %vm1053, %v8013, %v8017
    %v8019 = vshrl.u32 %v7978, 16
    %v8021 = vor.u32 %v8019, %v8017
    %v8023 = vshll.u32 %v7979, 16
    %v8025 = vrot.slane %v8023, 1
    %v8026 = vsel %vm1053, %v8021, %v8025
    %v8027 = vshrl.u32 %v7979, 16
    %v8029 = vor.u32 %v8027, %v8025
    %v8031 = vshll.u32 %v7980, 16
    %v8033 = vrot.slane %v8031, 1
    %v8034 = vsel %vm1053, %v8029, %v8033
    %v8035 = vshrl.u32 %v7980, 16
    %v8037 = vor.u32 %v8035, %v8033
    %v8039 = vshll.u32 %v7981, 16
    %v8041 = vrot.slane %v8039, 1
    %v8042 = vsel %vm1053, %v8037, %v8041
    %v8043 = vshrl.u32 %v7981, 16
    %v8045 = vor.u32 %v8043, %v8041
    %v8047 = vshll.u32 %v7982, 16
    %v8049 = vrot.slane %v8047, 1
    %v8050 = vsel %vm1053, %v8045, %v8049
    %v8073 = vunpack.c.l.b16 %v7983
    %v8074 = vunpack.c.l.b16 %v7984
    %v8075 = vunpack.c.l.b16 %v7985
    %v8076 = vunpack.c.l.b16 %v7986
    %v8077 = vunpack.c.l.b16 %v7987
    %v8078 = vunpack.c.l.b16 %v7988
    %v8079 = vunpack.c.l.b16 %v7989
    %v8080 = vunpack.c.l.b16 %v7990
    %v8081 = vunpack.c.l.b16 %v7991
    %v8082 = vunpack.c.l.b16 %v7992
    %v8083 = vunpack.c.l.b16 %v7993
    %v8084 = vunpack.c.l.b16 %v7994
    %v8085 = vunpack.c.l.b16 %v7995
    %v8086 = vunpack.c.l.b16 %v7996
    %v8087 = vunpack.c.l.b16 %v7997
    %v8088 = vunpack.c.l.b16 %v7998
    %v8089 = vpack.c.b16 %v8074, %v8073
    %v8090 = vpack.c.b16 %v8076, %v8075
    %v8091 = vpack.c.b16 %v8078, %v8077
    %v8092 = vpack.c.b16 %v8080, %v8079
    %v8093 = vpack.c.b16 %v8082, %v8081
    %v8094 = vpack.c.b16 %v8084, %v8083
    %v8095 = vpack.c.b16 %v8086, %v8085
    %v8096 = vpack.c.b16 %v8088, %v8087
    %8105 = vmatprep.subr.bf16.mxu0 0
    %8106 = vmatpush1.bf16.msra.mxu0 %v8089
    %8107 = vmatprep.subr.bf16.mxu0 0
    %8108 = vmatpush1.bf16.msra.mxu0 %v8090
    %8109 = vmatprep.subr.bf16.mxu0 0
    %8110 = vmatpush1.bf16.msra.mxu0 %v8091
    %8111 = vmatprep.subr.bf16.mxu0 0
    %8112 = vmatpush1.bf16.msra.mxu0 %v8092
    %8113 = vmatprep.subr.bf16.mxu0 0
    %8114 = vmatpush1.bf16.msra.mxu0 %v8093
    %8115 = vmatprep.subr.bf16.mxu0 0
    %8116 = vmatpush1.bf16.msra.mxu0 %v8094
    %8117 = vmatprep.subr.bf16.mxu0 0
    %8118 = vmatpush1.bf16.msra.mxu0 %v8095
    %8119 = vmatprep.subr.bf16.mxu0 0
    %8120 = vmatpush1.bf16.msra.mxu0 %v8096
    %8121 = vmatprep.subr.bf16.mxu0 0
    %8122 = vmatpush1.bf16.msra.mxu0 0
    %8123 = vmatprep.subr.bf16.mxu0 0
    %8124 = vmatpush1.bf16.msra.mxu0 0
    %8125 = vmatprep.subr.bf16.mxu0 0
    %8126 = vmatpush1.bf16.msra.mxu0 0
    %8127 = vmatprep.subr.bf16.mxu0 0
    %8128 = vmatpush1.bf16.msra.mxu0 0
    %8129 = vmatprep.subr.bf16.mxu0 0
    %8130 = vmatpush1.bf16.msra.mxu0 0
    %8131 = vmatprep.subr.bf16.mxu0 0
    %8132 = vmatpush1.bf16.msra.mxu0 0
    %8133 = vmatprep.subr.bf16.mxu0 0
    %8134 = vmatpush1.bf16.msra.mxu0 0
    %8135 = vmatprep.subr.bf16.mxu0 0
    %8136 = vmatpush1.bf16.msra.mxu0 0
    %8137 = vmatprep.mubr.bf16.mxu0 0
    %8138 = vmatmul.mubr.bf16.gmra.mrb[0].mxu0 %v8010
    %v8139 = vpop.f32.mrb[0].mxu0
    %v8140 = vadd.f32 0.0, %v8139
    %v8141 = vpop.f32.mrb[0].mxu0
    %v8142 = vpop.f32.mrb[0].mxu0
    %v8143 = vadd.f32 0.0, %v8142
    %v8144 = vpop.f32.mrb[0].mxu0
    %8145 = vmatprep.mubr.bf16.mxu0 0
    %8146 = vmatmul.mubr.bf16.gmra.mrb[0].mxu0 %v8018
    %v8147 = vpop.f32.mrb[0].mxu0
    %v8148 = vadd.f32 0.0, %v8147
    %v8149 = vpop.f32.mrb[0].mxu0
    %v8150 = vpop.f32.mrb[0].mxu0
    %v8151 = vadd.f32 0.0, %v8150
    %v8152 = vpop.f32.mrb[0].mxu0
    %8153 = vmatprep.mubr.bf16.mxu0 0
    %8154 = vmatmul.mubr.bf16.gmra.mrb[0].mxu0 %v8026
    %v8155 = vpop.f32.mrb[0].mxu0
    %v8156 = vadd.f32 0.0, %v8155
    %v8157 = vpop.f32.mrb[0].mxu0
    %v8158 = vpop.f32.mrb[0].mxu0
    %v8159 = vadd.f32 0.0, %v8158
    %v8160 = vpop.f32.mrb[0].mxu0
    %8161 = vmatprep.mubr.bf16.mxu0 0
    %8162 = vmatmul.mubr.bf16.gmra.mrb[0].mxu0 %v8034
    %v8163 = vpop.f32.mrb[0].mxu0
    %v8164 = vadd.f32 0.0, %v8163
    %v8165 = vpop.f32.mrb[0].mxu0
    %v8166 = vpop.f32.mrb[0].mxu0
    %v8167 = vadd.f32 0.0, %v8166
    %v8168 = vpop.f32.mrb[0].mxu0
    %8169 = vmatprep.mubr.bf16.mxu0 0
    %8170 = vmatmul.mubr.bf16.gmra.mrb[0].mxu0 %v8042
    %v8171 = vpop.f32.mrb[0].mxu0
    %v8172 = vadd.f32 0.0, %v8171
    %v8173 = vpop.f32.mrb[0].mxu0
    %v8174 = vpop.f32.mrb[0].mxu0
    %v8175 = vadd.f32 0.0, %v8174
    %v8176 = vpop.f32.mrb[0].mxu0
    %8177 = vmatprep.mubr.bf16.mxu0 0
    %8178 = vmatmul.mubr.bf16.gmra.mrb[0].mxu0 %v8050
    %v8179 = vpop.f32.mrb[0].mxu0
    %v8180 = vadd.f32 0.0, %v8179
    %v8181 = vpop.f32.mrb[0].mxu0
    %v8182 = vpop.f32.mrb[0].mxu0
    %v8183 = vadd.f32 0.0, %v8182
    %v8184 = vpop.f32.mrb[0].mxu0
    %8185 = vdwg.mxu0
    %v8186 = vadd.f32 %v7964, %v8140
    %v8187 = vadd.f32 %v7965, %v8143
    %v8188 = vadd.f32 %v7966, %v8148
    %v8189 = vadd.f32 %v7967, %v8151
    %v8190 = vadd.f32 %v7968, %v8156
    %v8191 = vadd.f32 %v7969, %v8159
    %v8192 = vadd.f32 %v7970, %v8164
    %v8193 = vadd.f32 %v7971, %v8167
    %v8194 = vadd.f32 %v7972, %v8172
    %v8195 = vadd.f32 %v7973, %v8175
    %v8196 = vadd.f32 %v7974, %v8180
    %v8197 = vadd.f32 %v7975, %v8183
    %v8198 = vld [vmem:[#allocation2 + $0xd0] sm:$0xfe]
    %v8199 = vld [vmem:[%s2732] sm:$0xf]
    %v8200 = vld [vmem:[%s2732 + $0x4] sm:$0xf]
    %v8201 = vld [vmem:[%s2732 + $0x8] sm:$0xf]
    %v8202 = vld [vmem:[%s2732 + $0xc] sm:$0xf]
    %v8203 = vld [vmem:[%s2732 + $0x10] sm:$0xf]
    %v8204 = vld [vmem:[%s2732 + $0x14] sm:$0xf]
    %v8205 = vld [vmem:[%s2732 + $0x18] sm:$0xf]
    %v8206 = vld [vmem:[%s2732 + $0x1c] sm:$0xf]
    %v8207 = vld [vmem:[%s2732 + $0x20] sm:$0xf]
    %v8208 = vld [vmem:[%s2732 + $0x24] sm:$0xf]
    %v8209 = vld [vmem:[%s2732 + $0x28] sm:$0xf]
    %v8210 = vld [vmem:[%s2732 + $0x2c] sm:$0xf]
    %v8211 = vld [vmem:[%s2732 + $0x30] sm:$0xf]
    %v8212 = vld [vmem:[%s2732 + $0x34] sm:$0xf]
    %v8213 = vld [vmem:[%s2732 + $0x38] sm:$0xf]
    %v8214 = vld [vmem:[%s2732 + $0x3c] sm:$0xf]
    %v8222 = vrot.slane %v8198, 1
    %v8223 = vrot.slane %v7977, 1
    %v8224 = vsel %vm1447, %v8222, %v8223
    %v8225 = vrot.slane %v7978, 1
    %v8226 = vsel %vm1447, %v8223, %v8225
    %v8227 = vrot.slane %v7979, 1
    %v8228 = vsel %vm1447, %v8225, %v8227
    %v8229 = vrot.slane %v7980, 1
    %v8230 = vsel %vm1447, %v8227, %v8229
    %v8231 = vrot.slane %v7981, 1
    %v8232 = vsel %vm1447, %v8229, %v8231
    %v8233 = vrot.slane %v7982, 1
    %v8234 = vsel %vm1447, %v8231, %v8233
    %v8257 = vunpack.c.l.b16 %v8199
    %v8258 = vunpack.c.l.b16 %v8200
    %v8259 = vunpack.c.l.b16 %v8201
    %v8260 = vunpack.c.l.b16 %v8202
    %v8261 = vunpack.c.l.b16 %v8203
    %v8262 = vunpack.c.l.b16 %v8204
    %v8263 = vunpack.c.l.b16 %v8205
    %v8264 = vunpack.c.l.b16 %v8206
    %v8265 = vunpack.c.l.b16 %v8207
    %v8266 = vunpack.c.l.b16 %v8208
    %v8267 = vunpack.c.l.b16 %v8209
    %v8268 = vunpack.c.l.b16 %v8210
    %v8269 = vunpack.c.l.b16 %v8211
    %v8270 = vunpack.c.l.b16 %v8212
    %v8271 = vunpack.c.l.b16 %v8213
    %v8272 = vunpack.c.l.b16 %v8214
    %v8273 = vpack.c.b16 %v8258, %v8257
    %v8274 = vpack.c.b16 %v8260, %v8259
    %v8275 = vpack.c.b16 %v8262, %v8261
    %v8276 = vpack.c.b16 %v8264, %v8263
    %v8277 = vpack.c.b16 %v8266, %v8265
    %v8278 = vpack.c.b16 %v8268, %v8267
    %v8279 = vpack.c.b16 %v8270, %v8269
    %v8280 = vpack.c.b16 %v8272, %v8271
    %8289 = vmatprep.subr.bf16.mxu0 0
    %8290 = vmatpush1.bf16.msra.mxu0 %v8273
    %8291 = vmatprep.subr.bf16.mxu0 0
    %8292 = vmatpush1.bf16.msra.mxu0 %v8274
    %8293 = vmatprep.subr.bf16.mxu0 0
    %8294 = vmatpush1.bf16.msra.mxu0 %v8275
    %8295 = vmatprep.subr.bf16.mxu0 0
    %8296 = vmatpush1.bf16.msra.mxu0 %v8276
    %8297 = vmatprep.subr.bf16.mxu0 0
    %8298 = vmatpush1.bf16.msra.mxu0 %v8277
    %8299 = vmatprep.subr.bf16.mxu0 0
    %8300 = vmatpush1.bf16.msra.mxu0 %v8278
    %8301 = vmatprep.subr.bf16.mxu0 0
    %8302 = vmatpush1.bf16.msra.mxu0 %v8279
    %8303 = vmatprep.subr.bf16.mxu0 0
    %8304 = vmatpush1.bf16.msra.mxu0 %v8280
    %8305 = vmatprep.subr.bf16.mxu0 0
    %8306 = vmatpush1.bf16.msra.mxu0 0
    %8307 = vmatprep.subr.bf16.mxu0 0
    %8308 = vmatpush1.bf16.msra.mxu0 0
    %8309 = vmatprep.subr.bf16.mxu0 0
    %8310 = vmatpush1.bf16.msra.mxu0 0
    %8311 = vmatprep.subr.bf16.mxu0 0
    %8312 = vmatpush1.bf16.msra.mxu0 0
    %8313 = vmatprep.subr.bf16.mxu0 0
    %8314 = vmatpush1.bf16.msra.mxu0 0
    %8315 = vmatprep.subr.bf16.mxu0 0
    %8316 = vmatpush1.bf16.msra.mxu0 0
    %8317 = vmatprep.subr.bf16.mxu0 0
    %8318 = vmatpush1.bf16.msra.mxu0 0
    %8319 = vmatprep.subr.bf16.mxu0 0
    %8320 = vmatpush1.bf16.msra.mxu0 0
    %8321 = vmatprep.mubr.bf16.mxu0 0
    %8322 = vmatmul.mubr.bf16.gmra.mrb[0].mxu0 %v8224
    %v8323 = vpop.f32.mrb[0].mxu0
    %v8324 = vadd.f32 0.0, %v8323
    %v8325 = vpop.f32.mrb[0].mxu0
    %v8326 = vpop.f32.mrb[0].mxu0
    %v8327 = vadd.f32 0.0, %v8326
    %v8328 = vpop.f32.mrb[0].mxu0
    %8329 = vmatprep.mubr.bf16.mxu0 0
    %8330 = vmatmul.mubr.bf16.gmra.mrb[0].mxu0 %v8226
    %v8331 = vpop.f32.mrb[0].mxu0
    %v8332 = vadd.f32 0.0, %v8331
    %v8333 = vpop.f32.mrb[0].mxu0
    %v8334 = vpop.f32.mrb[0].mxu0
    %v8335 = vadd.f32 0.0, %v8334
    %v8336 = vpop.f32.mrb[0].mxu0
    %8337 = vmatprep.mubr.bf16.mxu0 0
    %8338 = vmatmul.mubr.bf16.gmra.mrb[0].mxu0 %v8228
    %v8339 = vpop.f32.mrb[0].mxu0
    %v8340 = vadd.f32 0.0, %v8339
    %v8341 = vpop.f32.mrb[0].mxu0
    %v8342 = vpop.f32.mrb[0].mxu0
    %v8343 = vadd.f32 0.0, %v8342
    %v8344 = vpop.f32.mrb[0].mxu0
    %8345 = vmatprep.mubr.bf16.mxu0 0
    %8346 = vmatmul.mubr.bf16.gmra.mrb[0].mxu0 %v8230
    %v8347 = vpop.f32.mrb[0].mxu0
    %v8348 = vadd.f32 0.0, %v8347
    %v8349 = vpop.f32.mrb[0].mxu0
    %v8350 = vpop.f32.mrb[0].mxu0
    %v8351 = vadd.f32 0.0, %v8350
    %v8352 = vpop.f32.mrb[0].mxu0
    %8353 = vmatprep.mubr.bf16.mxu0 0
    %8354 = vmatmul.mubr.bf16.gmra.mrb[0].mxu0 %v8232
    %v8355 = vpop.f32.mrb[0].mxu0
    %v8356 = vadd.f32 0.0, %v8355
    %v8357 = vpop.f32.mrb[0].mxu0
    %v8358 = vpop.f32.mrb[0].mxu0
    %v8359 = vadd.f32 0.0, %v8358
    %v8360 = vpop.f32.mrb[0].mxu0
    %8361 = vmatprep.mubr.bf16.mxu0 0
    %8362 = vmatmul.mubr.bf16.gmra.mrb[0].mxu0 %v8234
    %v8363 = vpop.f32.mrb[0].mxu0
    %v8364 = vadd.f32 0.0, %v8363
    %v8365 = vpop.f32.mrb[0].mxu0
    %v8366 = vpop.f32.mrb[0].mxu0
    %v8367 = vadd.f32 0.0, %v8366
    %v8368 = vpop.f32.mrb[0].mxu0
    %8369 = vdwg.mxu0
    %v8370 = vadd.f32 %v8186, %v8324
    %v8371 = vadd.f32 %v8187, %v8327
    %v8372 = vadd.f32 %v8188, %v8332
    %v8373 = vadd.f32 %v8189, %v8335
    %v8374 = vadd.f32 %v8190, %v8340
    %v8375 = vadd.f32 %v8191, %v8343
    %v8376 = vadd.f32 %v8192, %v8348
    %v8377 = vadd.f32 %v8193, %v8351
    %v8378 = vadd.f32 %v8194, %v8356
    %v8379 = vadd.f32 %v8195, %v8359
    %v8380 = vadd.f32 %v8196, %v8364
    %v8381 = vadd.f32 %v8197, %v8367
    %8382 = vst [vmem:[#allocation3] sm:$0xff] %v8370
    %8383 = vst [vmem:[#allocation3 + $0x8] sm:$0xff] %v8371
    %8384 = vst [vmem:[#allocation3 + $0x10] sm:$0xff] %v8372
    %8385 = vst [vmem:[#allocation3 + $0x18] sm:$0xff] %v8373
    %8386 = vst [vmem:[#allocation3 + $0x20] sm:$0xff] %v8374
    %8387 = vst [vmem:[#allocation3 + $0x28] sm:$0xff] %v8375
    %8388 = vst [vmem:[#allocation3 + $0x30] sm:$0xff] %v8376
    %8389 = vst [vmem:[#allocation3 + $0x38] sm:$0xff] %v8377
    %8390 = vst [vmem:[#allocation3 + $0x40] sm:$0xff] %v8378
    %8391 = vst [vmem:[#allocation3 + $0x48] sm:$0xff] %v8379
    %8392 = vst [vmem:[#allocation3 + $0x50] sm:$0xff] %v8380
    %8393 = vst [vmem:[#allocation3 + $0x58] sm:$0xff] %v8381
    %v8394 = vld [vmem:[#allocation3] ss:$2 sm:$0xff]
    %v8395 = vld [vmem:[%s4701] ss:$2 sm:$0xff]
    %v8396 = vld [vmem:[%s4703] ss:$2 sm:$0xff]
    %v8397 = vld [vmem:[%s4705] ss:$2 sm:$0xff]
    %v8398 = vld [vmem:[%s4707] ss:$2 sm:$0xff]
    %v8399 = vld [vmem:[%s4709] ss:$2 sm:$0xff]
    %v8400 = vld [vmem:[%s2975] ss:$2 sm:$0xff]
    %v8401 = vld [vmem:[%s2977] ss:$2 sm:$0xff]
    %v8402 = vld [vmem:[%s2979] ss:$2 sm:$0xff]
    %v8403 = vld [vmem:[%s2981] ss:$2 sm:$0xff]
    %v8404 = vld [vmem:[%s2983] ss:$2 sm:$0xff]
    %v8405 = vld [vmem:[%s2985] ss:$2 sm:$0xff]
    %v8406 = vmax.f32 %v8394, %v8400
    %v8407 = vmax.f32 %v8395, %v8401
    %v8408 = vmax.f32 %v8396, %v8402
    %v8409 = vmax.f32 %v8397, %v8403
    %v8410 = vmax.f32 %v8398, %v8404
    %v8411 = vmax.f32 %v8399, %v8405
    %v8412 = vmax.f32 %v8406, %v8407
    %v8413 = vadd.f32 %v8412, %v3004
    %v8414 = vmax.f32 %v8413, 0.0
    %8415 = vst [vmem:[%s6701 + $0x20] sm:$0xff] %v8414
    %v8416 = vmax.f32 %v8408, %v8409
    %v8417 = vadd.f32 %v8416, %v3004
    %v8418 = vmax.f32 %v8417, 0.0
    %8419 = vst [vmem:[%s6701 + $0x28] sm:$0xff] %v8418
    %v8420 = vmax.f32 %v8410, %v8411
    %v8421 = vadd.f32 %v8420, %v3004
    %v8422 = vmax.f32 %v8421, 0.0
    %8423 = vst [vmem:[%s6701 + $0x30] sm:$0xff] %v8422
    // Predicated region
    $region26: #{tpu_custom_call.1} parent=1 // pred_check
      _
    $region27: #{tpu_custom_call.1} parent=1 // pred_check_branch
      %8425 = sbr.rel (0) target = $region29
    $region28: #{tpu_custom_call.1} parent=1 // pred_region
      %s8427 = ssub.s32 1792, 1792
      %8428 = vsyncadd [#allocation6], %s8427
      %s8429 = sshll.u32 [#allocation7], 4
      %s8430 = int_to_ptr.vmem [resolvable:$true] %s8429
      %8435 = dma.vmem_to_hbm [thread:$0]  %s8430, 1792, %s5, [#allocation6], 128, 128, 8
    $region29: #{tpu_custom_call.1} parent=1 // pred_fallthru
      _
    // Predicated region
    $region30: #{tpu_custom_call.1} parent=1 // pred_check
      _
    $region31: #{tpu_custom_call.1} parent=1 // pred_check_branch
      %8437 = sbr.rel (0) target = $region33
    $region32: #{tpu_custom_call.1} parent=1 // pred_region
      %8438 = dma.done [#allocation6], 1792
    $region33: #{tpu_custom_call.1} parent=1 // pred_fallthru
      _
    %8439 = vsyncpa [#allocation5], 1
    %8440 = vsyncpa [#allocation6], 1

</llo_original>
